<compile_context>
chip_gen: v6e
topology: v6e:2x2x1
jax: 0.10.0
libtpu: 0.0.40
codegen_flags: <defaults>
</compile_context>

<pallas_src>
import numpy as np
import jax
import jax.numpy as jnp
from jax import lax
from jax.experimental import pallas as pl
from jax.experimental.pallas import tpu as pltpu


# ----------------------------------------------------------------------------
# Static 0/1 structure tensors (numpy, built once at import time).
# ----------------------------------------------------------------------------
def _conv_pool_struct_np(h, w):
    """(4, 9, h*w, (h//2)*(w//2)) : fused 3x3 'same'-conv tap + 2x2 max-pool
    phase selection.  s[ph, k, in_idx, out_idx] == 1 iff input pixel `in_idx`
    feeds kernel tap k of the conv output picked by pool phase ph at pooled
    output position `out_idx`."""
    ho, wo = h // 2, w // 2
    s = np.zeros((4, 9, h * w, ho * wo), np.float32)
    for di in range(2):
        for dj in range(2):
            ph = 2 * di + dj
            for ky in range(3):
                for kx in range(3):
                    k = 3 * ky + kx
                    for i in range(ho):
                        for j in range(wo):
                            y = 2 * i + di + ky - 1
                            x = 2 * j + dj + kx - 1
                            if 0 <= y < h and 0 <= x < w:
                                s[ph, k, y * w + x, i * wo + j] = 1.0
    return s


def _convt_scatter_np(h_in, w_in):
    """(9, 4*h_in*w_in, h_in*w_in): per-tap scatter for ConvTranspose2d
    (kernel 3, stride 2, padding 1, output_padding 1): y = 2i - 1 + ky."""
    h_out, w_out = 2 * h_in, 2 * w_in
    t = np.zeros((9, h_out * w_out, h_in * w_in), np.float32)
    for ky in range(3):
        for kx in range(3):
            k = 3 * ky + kx
            for i in range(h_in):
                for j in range(w_in):
                    y, x = 2 * i - 1 + ky, 2 * j - 1 + kx
                    if 0 <= y < h_out and 0 <= x < w_out:
                        t[k, y * w_out + x, i * w_in + j] = 1.0
    return t


_STRUCT1_NP = _conv_pool_struct_np(16, 16)   # (4, 9, 256, 64)
_STRUCT2_NP = _conv_pool_struct_np(8, 8)     # (4, 9, 64, 16)
_SCAT1_NP = _convt_scatter_np(4, 4)          # (9, 64, 16)
_SCAT2_NP = _convt_scatter_np(8, 8)          # (9, 256, 64)


# ----------------------------------------------------------------------------
# Parameters (PyTorch layouts, deterministic uniform init).
# ----------------------------------------------------------------------------
def _uniform(key, shape, fan_in):
    bound = 1.0 / jnp.sqrt(float(fan_in))
    return jax.random.uniform(key, shape, jnp.float32, -bound, bound)


def init_params(key):
    ks = jax.random.split(key, 12)
    p = {}
    # encoder convs: PyTorch weight layout (Cout, Cin, kH, kW)
    p["c1_w"] = _uniform(ks[0], (16, 1, 3, 3), 1 * 9)
    p["c1_b"] = _uniform(ks[1], (16,), 1 * 9)
    p["c2_w"] = _uniform(ks[2], (8, 16, 3, 3), 16 * 9)
    p["c2_b"] = _uniform(ks[3], (8,), 16 * 9)
    # linears: PyTorch layout (out, in)
    p["fc_e_w"] = _uniform(ks[4], (10, 128), 128)
    p["fc_e_b"] = _uniform(ks[5], (10,), 128)
    p["fc_d_w"] = _uniform(ks[6], (128, 10), 10)
    p["fc_d_b"] = _uniform(ks[7], (128,), 10)
    # conv-transposes: PyTorch weight layout (Cin, Cout, kH, kW)
    p["t1_w"] = _uniform(ks[8], (8, 16, 3, 3), 16 * 9)
    p["t1_b"] = _uniform(ks[9], (16,), 16 * 9)
    p["t2_w"] = _uniform(ks[10], (16, 1, 3, 3), 1 * 9)
    p["t2_b"] = _uniform(ks[11], (1,), 1 * 9)
    return p


def _prepare_kernel_params(p):
    """Fold conv / pool / convT structure into dense per-layer matrices.

    Internal feature layout is flattened CHW (index = c*H*W + h*W + w), which
    matches PyTorch's nn.Flatten / nn.Unflatten ordering exactly, so the fc
    weights are used as plain transposes.  Dense-matrix entries are individual
    original weights (0/1 scatter), so the bf16 cast loses exactly as much
    precision as casting the original conv weights."""
    bf16, f32 = jnp.bfloat16, jnp.float32

    w1 = jnp.transpose(p["c1_w"][:, 0], (1, 2, 0)).reshape(9, 16)      # [k, cout]
    w2 = jnp.transpose(p["c2_w"], (2, 3, 1, 0)).reshape(9, 16, 8)      # [k, cin, cout]
    wt1 = jnp.transpose(p["t1_w"], (2, 3, 0, 1)).reshape(9, 8, 16)     # [k, cin, cout]
    wt2 = jnp.transpose(p["t2_w"][:, 0], (1, 2, 0)).reshape(9, 16)     # [k, cin]

    s1 = jnp.asarray(_STRUCT1_NP)
    s2 = jnp.asarray(_STRUCT2_NP)
    t1 = jnp.asarray(_SCAT1_NP)
    t2 = jnp.asarray(_SCAT2_NP)

    c = {}
    # conv1 + pool1 : (4, 256, 1024)   out index = cout*64 + s_out
    c["m1"] = jnp.einsum("pkis,kc->pics", s1, w1).reshape(4, 256, 1024).astype(bf16)
    c["b1"] = jnp.repeat(p["c1_b"], 64).reshape(1, 1024).astype(f32)
    # conv2 + pool2 : (4, 1024, 128)   in = cin*64 + s_in, out = cout*16 + s_out
    c["m2"] = jnp.einsum("pkis,kab->paibs", s2, w2).reshape(4, 1024, 128).astype(bf16)
    c["b2"] = jnp.repeat(p["c2_b"], 16).reshape(1, 128).astype(f32)
    # fc_e / fc_d : PyTorch NCHW flatten order == our c*16+s order
    c["we"] = p["fc_e_w"].T.astype(bf16)                               # (128, 10)
    c["be"] = p["fc_e_b"].reshape(1, 10).astype(f32)
    c["wd"] = p["fc_d_w"].T.astype(bf16)                               # (10, 128)
    c["bd"] = p["fc_d_b"].reshape(1, 128).astype(f32)
    # convT1 : (128, 1024)   in = cin*16 + s_in, out = cout*64 + s_out
    c["d1"] = jnp.einsum("koi,kab->aibo", t1, wt1).reshape(128, 1024).astype(bf16)
    c["bt1"] = jnp.repeat(p["t1_b"], 64).reshape(1, 1024).astype(f32)
    # convT2 : (1024, 256)   out = h*16 + w  (single output channel)
    c["d2"] = jnp.einsum("koi,ka->aio", t2, wt2).reshape(1024, 256).astype(bf16)
    c["bt2"] = jnp.repeat(p["t2_b"], 256).reshape(1, 256).astype(f32)
    return c


# ----------------------------------------------------------------------------
# Fused Pallas kernel: whole autoencoder forward for one batch tile.
# ----------------------------------------------------------------------------
def _autoencoder_kernel(x_ref, m1_ref, b1_ref, m2_ref, b2_ref, we_ref, be_ref,
                        wd_ref, bd_ref, d1_ref, bt1_ref, d2_ref, bt2_ref,
                        enc_ref, dec_ref):
    f32, bf16 = jnp.float32, jnp.bfloat16

    def mm(a, b):
        # MXU matmul: bf16 operands, f32 accumulation.
        return jnp.dot(a.astype(bf16), b.astype(bf16),
                       preferred_element_type=f32)

    x = x_ref[...]                                            # (BT, 256)

    # conv1 (1->16, 3x3, pad 1) + ReLU + maxpool 2x2 : max over 4 pool phases
    # of one dense matmul each (ReLU/max commute with the 0/1 selection).
    z = mm(x, m1_ref[0])
    for ph in range(1, 4):
        z = jnp.maximum(z, mm(x, m1_ref[ph]))
    h1 = jnp.maximum(z + b1_ref[...], 0.0)                    # (BT, 1024)

    # conv2 (16->8, 3x3, pad 1) + ReLU + maxpool 2x2.
    z = mm(h1, m2_ref[0])
    for ph in range(1, 4):
        z = jnp.maximum(z, mm(h1, m2_ref[ph]))
    h2 = jnp.maximum(z + b2_ref[...], 0.0)                    # (BT, 128)

    # Flatten (NCHW order already baked in) + Linear(128 -> 10).
    enc = mm(h2, we_ref[...]) + be_ref[...]                   # (BT, 10)
    enc_ref[...] = enc.astype(enc_ref.dtype)

    # Linear(10 -> 128) + Unflatten(8, 4, 4).
    d = mm(enc, wd_ref[...]) + bd_ref[...]                    # (BT, 128)

    # ConvTranspose2d(8->16, k3, s2, p1, op1) + ReLU  (one dense matmul).
    g = jnp.maximum(mm(d, d1_ref[...]) + bt1_ref[...], 0.0)   # (BT, 1024)

    # ConvTranspose2d(16->1, k3, s2, p1, op1) + sigmoid (lane-dense output).
    y = mm(g, d2_ref[...]) + bt2_ref[...]                     # (BT, 256)
    dec_ref[...] = (1.0 / (1.0 + jnp.exp(-y))).astype(dec_ref.dtype)


def autoencoder_forward(x_nchw, params):
    """x: (B, 1, 16, 16) -> (encoded (B, 10), decoded (B, 1, 16, 16))."""
    assert x_nchw.shape[1:] == (1, 16, 16), x_nchw.shape
    B = x_nchw.shape[0]
    c = _prepare_kernel_params(params)

    x_flat = x_nchw.reshape(B, 256).astype(jnp.bfloat16)      # row-major h*16+w

    BT = B if B <= 128 else 128
    grid = (pl.cdiv(B, BT),)

    const_args = (c["m1"], c["b1"], c["m2"], c["b2"], c["we"], c["be"],
                  c["wd"], c["bd"], c["d1"], c["bt1"], c["d2"], c["bt2"])

    def _const_spec(a):
        n = a.ndim
        return pl.BlockSpec(tuple(a.shape), lambda i, _n=n: (0,) * _n)

    in_specs = [pl.BlockSpec((BT, 256), lambda i: (i, 0))]
    in_specs += [_const_spec(a) for a in const_args]

    out_shape = (jax.ShapeDtypeStruct((B, 10), jnp.float32),
                 jax.ShapeDtypeStruct((B, 256), jnp.float32))
    out_specs = (pl.BlockSpec((BT, 10), lambda i: (i, 0)),
                 pl.BlockSpec((BT, 256), lambda i: (i, 0)))

    enc, dec = pl.pallas_call(
        _autoencoder_kernel,
        grid=grid,
        in_specs=in_specs,
        out_specs=out_specs,
        out_shape=out_shape,
        compiler_params=pltpu.CompilerParams(
            dimension_semantics=("parallel",),
            vmem_limit_bytes=32 * 1024 * 1024),
    )(x_flat, *const_args)

    return enc, dec.reshape(B, 1, 16, 16)


# ----------------------------------------------------------------------------
# Pure-XLA reference with PyTorch semantics (validation only).
# ----------------------------------------------------------------------------
def reference_forward(x_nchw, p):
    dn = ("NCHW", "OIHW", "NCHW")
    x = x_nchw.astype(jnp.float32)

    h = lax.conv_general_dilated(x, p["c1_w"], (1, 1), ((1, 1), (1, 1)),
                                 dimension_numbers=dn)
    h = jax.nn.relu(h + p["c1_b"].reshape(1, -1, 1, 1))
    h = lax.reduce_window(h, -jnp.inf, lax.max, (1, 1, 2, 2), (1, 1, 2, 2),
                          "VALID")
    h = lax.conv_general_dilated(h, p["c2_w"], (1, 1), ((1, 1), (1, 1)),
                                 dimension_numbers=dn)
    h = jax.nn.relu(h + p["c2_b"].reshape(1, -1, 1, 1))
    h = lax.reduce_window(h, -jnp.inf, lax.max, (1, 1, 2, 2), (1, 1, 2, 2),
                          "VALID")
    flat = h.reshape(h.shape[0], -1)                       # NCHW flatten
    enc = flat @ p["fc_e_w"].T + p["fc_e_b"]

    d = enc @ p["fc_d_w"].T + p["fc_d_b"]
    d = d.reshape(-1, 8, 4, 4)
    # ConvTranspose2d(k3, s2, p1, op1) == dilated conv with spatially-flipped,
    # channel-swapped kernel and asymmetric padding (1, 2).
    w1f = jnp.transpose(p["t1_w"][:, :, ::-1, ::-1], (1, 0, 2, 3))
    d = lax.conv_general_dilated(d, w1f, (1, 1), ((1, 2), (1, 2)),
                                 lhs_dilation=(2, 2), dimension_numbers=dn)
    d = jax.nn.relu(d + p["t1_b"].reshape(1, -1, 1, 1))
    w2f = jnp.transpose(p["t2_w"][:, :, ::-1, ::-1], (1, 0, 2, 3))
    d = lax.conv_general_dilated(d, w2f, (1, 1), ((1, 2), (1, 2)),
                                 lhs_dilation=(2, 2), dimension_numbers=dn)
    d = jax.nn.sigmoid(d + p["t2_b"].reshape(1, -1, 1, 1))
    return enc, d


# ----------------------------------------------------------------------------
if __name__ == "__main__":
    key = jax.random.PRNGKey(0)
    k_x, k_p = jax.random.split(key)

    B = 2
    x = jax.random.uniform(k_x, (B, 1, 16, 16), jnp.float32)
    params = init_params(k_p)

    fwd = jax.jit(autoencoder_forward)
    encoded, decoded = fwd(x, params)
    jax.block_until_ready((encoded, decoded))

    assert encoded.shape == (B, 10), encoded.shape
    assert decoded.shape == (B, 1, 16, 16), decoded.shape
    assert bool(jnp.all(jnp.isfinite(encoded))) and bool(jnp.all(jnp.isfinite(decoded)))
    assert bool(jnp.all(decoded >= 0.0)) and bool(jnp.all(decoded <= 1.0))

    # Numerical check against a pure-XLA PyTorch-semantics reference
    # (loose tolerance: kernel uses bf16 MXU operands with f32 accumulation).
    enc_ref, dec_ref = jax.jit(reference_forward)(x, params)
    np.testing.assert_allclose(np.asarray(encoded), np.asarray(enc_ref),
                               atol=8e-2, rtol=0.0)
    np.testing.assert_allclose(np.asarray(decoded), np.asarray(dec_ref),
                               atol=3e-2, rtol=0.0)

    print("KERNEL_OK")
</pallas_src>

<mosaic_0001>
module attributes {stable_mosaic.version = 11 : i64} {
  func.func @_autoencoder_kernel(%arg0: i32, %arg1: memref<2x256xbf16, #tpu.memory_space<vmem>>, %arg2: memref<4x256x1024xbf16, #tpu.memory_space<vmem>>, %arg3: memref<1x1024xf32, #tpu.memory_space<vmem>>, %arg4: memref<4x1024x128xbf16, #tpu.memory_space<vmem>>, %arg5: memref<1x128xf32, #tpu.memory_space<vmem>>, %arg6: memref<128x10xbf16, #tpu.memory_space<vmem>>, %arg7: memref<1x10xf32, #tpu.memory_space<vmem>>, %arg8: memref<10x128xbf16, #tpu.memory_space<vmem>>, %arg9: memref<1x128xf32, #tpu.memory_space<vmem>>, %arg10: memref<128x1024xbf16, #tpu.memory_space<vmem>>, %arg11: memref<1x1024xf32, #tpu.memory_space<vmem>>, %arg12: memref<1024x256xbf16, #tpu.memory_space<vmem>>, %arg13: memref<1x256xf32, #tpu.memory_space<vmem>>, %arg14: memref<2x10xf32, #tpu.memory_space<vmem>>, %arg15: memref<2x256xf32, #tpu.memory_space<vmem>>) attributes {dimension_semantics = [#tpu.dimension_semantics<parallel>], iteration_bounds = array<i64: 1>, scalar_prefetch = 0 : i64, scratch_operands = 0 : i64, tpu.core_type = #tpu.core_type<tc>, window_params = [{transform_indices = @transform_0, window_bounds = array<i64: 2, 256>}, {pipeline_mode = #tpu.pipeline_mode<synchronous>, transform_indices = @transform_1, window_bounds = array<i64: 4, 256, 1024>}, {pipeline_mode = #tpu.pipeline_mode<synchronous>, transform_indices = @transform_2, window_bounds = array<i64: 1, 1024>}, {pipeline_mode = #tpu.pipeline_mode<synchronous>, transform_indices = @transform_3, window_bounds = array<i64: 4, 1024, 128>}, {pipeline_mode = #tpu.pipeline_mode<synchronous>, transform_indices = @transform_4, window_bounds = array<i64: 1, 128>}, {pipeline_mode = #tpu.pipeline_mode<synchronous>, transform_indices = @transform_5, window_bounds = array<i64: 128, 10>}, {pipeline_mode = #tpu.pipeline_mode<synchronous>, transform_indices = @transform_6, window_bounds = array<i64: 1, 10>}, {pipeline_mode = #tpu.pipeline_mode<synchronous>, transform_indices = @transform_7, window_bounds = array<i64: 10, 128>}, {pipeline_mode = #tpu.pipeline_mode<synchronous>, transform_indices = @transform_8, window_bounds = array<i64: 1, 128>}, {pipeline_mode = #tpu.pipeline_mode<synchronous>, transform_indices = @transform_9, window_bounds = array<i64: 128, 1024>}, {pipeline_mode = #tpu.pipeline_mode<synchronous>, transform_indices = @transform_10, window_bounds = array<i64: 1, 1024>}, {pipeline_mode = #tpu.pipeline_mode<synchronous>, transform_indices = @transform_11, window_bounds = array<i64: 1024, 256>}, {pipeline_mode = #tpu.pipeline_mode<synchronous>, transform_indices = @transform_12, window_bounds = array<i64: 1, 256>}, {transform_indices = @transform_13, window_bounds = array<i64: 2, 10>}, {transform_indices = @transform_14, window_bounds = array<i64: 2, 256>}]} {
    %c0 = arith.constant 0 : index
    %c0_0 = arith.constant 0 : index
    %0 = vector.load %arg1[%c0, %c0_0] : memref<2x256xbf16, #tpu.memory_space<vmem>>, vector<2x256xbf16>
    %c0_1 = arith.constant 0 : index
    %c0_2 = arith.constant 0 : index
    %c0_3 = arith.constant 0 : index
    %1 = vector.load %arg2[%c0_1, %c0_2, %c0_3] : memref<4x256x1024xbf16, #tpu.memory_space<vmem>>, vector<1x256x1024xbf16>
    %2 = vector.shape_cast %1 : vector<1x256x1024xbf16> to vector<256x1024xbf16>
    %cst = arith.constant dense<0.000000e+00> : vector<2x1024xf32>
    %3 = tpu.matmul %0, %2, %cst {dimension_numbers = #tpu.dot_dimension_numbers<[1], [0], [0], [1], [0, 0, 1, 1], [], []>} : vector<2x256xbf16>, vector<256x1024xbf16>, vector<2x1024xf32> -> vector<2x1024xf32>
    %c1 = arith.constant 1 : index
    %c0_4 = arith.constant 0 : index
    %c0_5 = arith.constant 0 : index
    %4 = vector.load %arg2[%c1, %c0_4, %c0_5] : memref<4x256x1024xbf16, #tpu.memory_space<vmem>>, vector<1x256x1024xbf16>
    %5 = vector.shape_cast %4 : vector<1x256x1024xbf16> to vector<256x1024xbf16>
    %cst_6 = arith.constant dense<0.000000e+00> : vector<2x1024xf32>
    %6 = tpu.matmul %0, %5, %cst_6 {dimension_numbers = #tpu.dot_dimension_numbers<[1], [0], [0], [1], [0, 0, 1, 1], [], []>} : vector<2x256xbf16>, vector<256x1024xbf16>, vector<2x1024xf32> -> vector<2x1024xf32>
    %7 = arith.maximumf %3, %6 : vector<2x1024xf32>
    %c2 = arith.constant 2 : index
    %c0_7 = arith.constant 0 : index
    %c0_8 = arith.constant 0 : index
    %8 = vector.load %arg2[%c2, %c0_7, %c0_8] : memref<4x256x1024xbf16, #tpu.memory_space<vmem>>, vector<1x256x1024xbf16>
    %9 = vector.shape_cast %8 : vector<1x256x1024xbf16> to vector<256x1024xbf16>
    %cst_9 = arith.constant dense<0.000000e+00> : vector<2x1024xf32>
    %10 = tpu.matmul %0, %9, %cst_9 {dimension_numbers = #tpu.dot_dimension_numbers<[1], [0], [0], [1], [0, 0, 1, 1], [], []>} : vector<2x256xbf16>, vector<256x1024xbf16>, vector<2x1024xf32> -> vector<2x1024xf32>
    %11 = arith.maximumf %7, %10 : vector<2x1024xf32>
    %c3 = arith.constant 3 : index
    %c0_10 = arith.constant 0 : index
    %c0_11 = arith.constant 0 : index
    %12 = vector.load %arg2[%c3, %c0_10, %c0_11] : memref<4x256x1024xbf16, #tpu.memory_space<vmem>>, vector<1x256x1024xbf16>
    %13 = vector.shape_cast %12 : vector<1x256x1024xbf16> to vector<256x1024xbf16>
    %cst_12 = arith.constant dense<0.000000e+00> : vector<2x1024xf32>
    %14 = tpu.matmul %0, %13, %cst_12 {dimension_numbers = #tpu.dot_dimension_numbers<[1], [0], [0], [1], [0, 0, 1, 1], [], []>} : vector<2x256xbf16>, vector<256x1024xbf16>, vector<2x1024xf32> -> vector<2x1024xf32>
    %15 = arith.maximumf %11, %14 : vector<2x1024xf32>
    %c0_13 = arith.constant 0 : index
    %c0_14 = arith.constant 0 : index
    %16 = vector.load %arg3[%c0_13, %c0_14] : memref<1x1024xf32, #tpu.memory_space<vmem>>, vector<1x1024xf32>
    %17 = vector.broadcast %16 : vector<1x1024xf32> to vector<2x1024xf32>
    %18 = arith.addf %15, %17 : vector<2x1024xf32>
    %cst_15 = arith.constant 0.000000e+00 : f32
    %19 = vector.broadcast %cst_15 : f32 to vector<2x1024xf32>
    %20 = arith.maximumf %18, %19 : vector<2x1024xf32>
    %c0_16 = arith.constant 0 : index
    %c0_17 = arith.constant 0 : index
    %c0_18 = arith.constant 0 : index
    %21 = vector.load %arg4[%c0_16, %c0_17, %c0_18] : memref<4x1024x128xbf16, #tpu.memory_space<vmem>>, vector<1x1024x128xbf16>
    %22 = vector.shape_cast %21 : vector<1x1024x128xbf16> to vector<1024x128xbf16>
    %23 = arith.truncf %20 : vector<2x1024xf32> to vector<2x1024xbf16>
    %cst_19 = arith.constant dense<0.000000e+00> : vector<2x128xf32>
    %24 = tpu.matmul %23, %22, %cst_19 {dimension_numbers = #tpu.dot_dimension_numbers<[1], [0], [0], [1], [0, 0, 1, 1], [], []>} : vector<2x1024xbf16>, vector<1024x128xbf16>, vector<2x128xf32> -> vector<2x128xf32>
    %c1_20 = arith.constant 1 : index
    %c0_21 = arith.constant 0 : index
    %c0_22 = arith.constant 0 : index
    %25 = vector.load %arg4[%c1_20, %c0_21, %c0_22] : memref<4x1024x128xbf16, #tpu.memory_space<vmem>>, vector<1x1024x128xbf16>
    %26 = vector.shape_cast %25 : vector<1x1024x128xbf16> to vector<1024x128xbf16>
    %27 = arith.truncf %20 : vector<2x1024xf32> to vector<2x1024xbf16>
    %cst_23 = arith.constant dense<0.000000e+00> : vector<2x128xf32>
    %28 = tpu.matmul %27, %26, %cst_23 {dimension_numbers = #tpu.dot_dimension_numbers<[1], [0], [0], [1], [0, 0, 1, 1], [], []>} : vector<2x1024xbf16>, vector<1024x128xbf16>, vector<2x128xf32> -> vector<2x128xf32>
    %29 = arith.maximumf %24, %28 : vector<2x128xf32>
    %c2_24 = arith.constant 2 : index
    %c0_25 = arith.constant 0 : index
    %c0_26 = arith.constant 0 : index
    %30 = vector.load %arg4[%c2_24, %c0_25, %c0_26] : memref<4x1024x128xbf16, #tpu.memory_space<vmem>>, vector<1x1024x128xbf16>
    %31 = vector.shape_cast %30 : vector<1x1024x128xbf16> to vector<1024x128xbf16>
    %32 = arith.truncf %20 : vector<2x1024xf32> to vector<2x1024xbf16>
    %cst_27 = arith.constant dense<0.000000e+00> : vector<2x128xf32>
    %33 = tpu.matmul %32, %31, %cst_27 {dimension_numbers = #tpu.dot_dimension_numbers<[1], [0], [0], [1], [0, 0, 1, 1], [], []>} : vector<2x1024xbf16>, vector<1024x128xbf16>, vector<2x128xf32> -> vector<2x128xf32>
    %34 = arith.maximumf %29, %33 : vector<2x128xf32>
    %c3_28 = arith.constant 3 : index
    %c0_29 = arith.constant 0 : index
    %c0_30 = arith.constant 0 : index
    %35 = vector.load %arg4[%c3_28, %c0_29, %c0_30] : memref<4x1024x128xbf16, #tpu.memory_space<vmem>>, vector<1x1024x128xbf16>
    %36 = vector.shape_cast %35 : vector<1x1024x128xbf16> to vector<1024x128xbf16>
    %37 = arith.truncf %20 : vector<2x1024xf32> to vector<2x1024xbf16>
    %cst_31 = arith.constant dense<0.000000e+00> : vector<2x128xf32>
    %38 = tpu.matmul %37, %36, %cst_31 {dimension_numbers = #tpu.dot_dimension_numbers<[1], [0], [0], [1], [0, 0, 1, 1], [], []>} : vector<2x1024xbf16>, vector<1024x128xbf16>, vector<2x128xf32> -> vector<2x128xf32>
    %39 = arith.maximumf %34, %38 : vector<2x128xf32>
    %c0_32 = arith.constant 0 : index
    %c0_33 = arith.constant 0 : index
    %40 = vector.load %arg5[%c0_32, %c0_33] : memref<1x128xf32, #tpu.memory_space<vmem>>, vector<1x128xf32>
    %41 = vector.broadcast %40 : vector<1x128xf32> to vector<2x128xf32>
    %42 = arith.addf %39, %41 : vector<2x128xf32>
    %cst_34 = arith.constant 0.000000e+00 : f32
    %43 = vector.broadcast %cst_34 : f32 to vector<2x128xf32>
    %44 = arith.maximumf %42, %43 : vector<2x128xf32>
    %c0_35 = arith.constant 0 : index
    %c0_36 = arith.constant 0 : index
    %45 = vector.load %arg6[%c0_35, %c0_36] : memref<128x10xbf16, #tpu.memory_space<vmem>>, vector<128x10xbf16>
    %46 = arith.truncf %44 : vector<2x128xf32> to vector<2x128xbf16>
    %cst_37 = arith.constant dense<0.000000e+00> : vector<2x10xf32>
    %47 = tpu.matmul %46, %45, %cst_37 {dimension_numbers = #tpu.dot_dimension_numbers<[1], [0], [0], [1], [0, 0, 1, 1], [], []>} : vector<2x128xbf16>, vector<128x10xbf16>, vector<2x10xf32> -> vector<2x10xf32>
    %c0_38 = arith.constant 0 : index
    %c0_39 = arith.constant 0 : index
    %48 = vector.load %arg7[%c0_38, %c0_39] : memref<1x10xf32, #tpu.memory_space<vmem>>, vector<1x10xf32>
    %49 = vector.broadcast %48 : vector<1x10xf32> to vector<2x10xf32>
    %50 = arith.addf %47, %49 : vector<2x10xf32>
    %c0_40 = arith.constant 0 : index
    %c0_41 = arith.constant 0 : index
    %51 = vector.load %arg14[%c0_40, %c0_41] : memref<2x10xf32, #tpu.memory_space<vmem>>, vector<2x10xf32>
    tpu.vector_store %arg14[%c0_40, %c0_41], %50 {strides = array<i32>} : memref<2x10xf32, #tpu.memory_space<vmem>>, vector<2x10xf32>,
    %c0_42 = arith.constant 0 : index
    %c0_43 = arith.constant 0 : index
    %52 = vector.load %arg8[%c0_42, %c0_43] : memref<10x128xbf16, #tpu.memory_space<vmem>>, vector<10x128xbf16>
    %53 = arith.truncf %50 : vector<2x10xf32> to vector<2x10xbf16>
    %cst_44 = arith.constant dense<0.000000e+00> : vector<2x128xf32>
    %54 = tpu.matmul %53, %52, %cst_44 {dimension_numbers = #tpu.dot_dimension_numbers<[1], [0], [0], [1], [0, 0, 1, 1], [], []>} : vector<2x10xbf16>, vector<10x128xbf16>, vector<2x128xf32> -> vector<2x128xf32>
    %c0_45 = arith.constant 0 : index
    %c0_46 = arith.constant 0 : index
    %55 = vector.load %arg9[%c0_45, %c0_46] : memref<1x128xf32, #tpu.memory_space<vmem>>, vector<1x128xf32>
    %56 = vector.broadcast %55 : vector<1x128xf32> to vector<2x128xf32>
    %57 = arith.addf %54, %56 : vector<2x128xf32>
    %c0_47 = arith.constant 0 : index
    %c0_48 = arith.constant 0 : index
    %58 = vector.load %arg10[%c0_47, %c0_48] : memref<128x1024xbf16, #tpu.memory_space<vmem>>, vector<128x1024xbf16>
    %59 = arith.truncf %57 : vector<2x128xf32> to vector<2x128xbf16>
    %cst_49 = arith.constant dense<0.000000e+00> : vector<2x1024xf32>
    %60 = tpu.matmul %59, %58, %cst_49 {dimension_numbers = #tpu.dot_dimension_numbers<[1], [0], [0], [1], [0, 0, 1, 1], [], []>} : vector<2x128xbf16>, vector<128x1024xbf16>, vector<2x1024xf32> -> vector<2x1024xf32>
    %c0_50 = arith.constant 0 : index
    %c0_51 = arith.constant 0 : index
    %61 = vector.load %arg11[%c0_50, %c0_51] : memref<1x1024xf32, #tpu.memory_space<vmem>>, vector<1x1024xf32>
    %62 = vector.broadcast %61 : vector<1x1024xf32> to vector<2x1024xf32>
    %63 = arith.addf %60, %62 : vector<2x1024xf32>
    %cst_52 = arith.constant 0.000000e+00 : f32
    %64 = vector.broadcast %cst_52 : f32 to vector<2x1024xf32>
    %65 = arith.maximumf %63, %64 : vector<2x1024xf32>
    %c0_53 = arith.constant 0 : index
    %c0_54 = arith.constant 0 : index
    %66 = vector.load %arg12[%c0_53, %c0_54] : memref<1024x256xbf16, #tpu.memory_space<vmem>>, vector<1024x256xbf16>
    %67 = arith.truncf %65 : vector<2x1024xf32> to vector<2x1024xbf16>
    %cst_55 = arith.constant dense<0.000000e+00> : vector<2x256xf32>
    %68 = tpu.matmul %67, %66, %cst_55 {dimension_numbers = #tpu.dot_dimension_numbers<[1], [0], [0], [1], [0, 0, 1, 1], [], []>} : vector<2x1024xbf16>, vector<1024x256xbf16>, vector<2x256xf32> -> vector<2x256xf32>
    %c0_56 = arith.constant 0 : index
    %c0_57 = arith.constant 0 : index
    %69 = vector.load %arg13[%c0_56, %c0_57] : memref<1x256xf32, #tpu.memory_space<vmem>>, vector<1x256xf32>
    %70 = vector.broadcast %69 : vector<1x256xf32> to vector<2x256xf32>
    %71 = arith.addf %68, %70 : vector<2x256xf32>
    %cst_58 = arith.constant 0.000000e+00 : f32
    %72 = vector.broadcast %cst_58 : f32 to vector<2x256xf32>
    %73 = arith.subf %72, %71 : vector<2x256xf32>
    %74 = math.exp %73 : vector<2x256xf32>
    %cst_59 = arith.constant 1.000000e+00 : f32
    %75 = vector.broadcast %cst_59 : f32 to vector<2x256xf32>
    %76 = arith.addf %75, %74 : vector<2x256xf32>
    %cst_60 = arith.constant 1.000000e+00 : f32
    %77 = vector.broadcast %cst_60 : f32 to vector<2x256xf32>
    %78 = arith.divf %77, %76 : vector<2x256xf32>
    %c0_61 = arith.constant 0 : index
    %c0_62 = arith.constant 0 : index
    %79 = vector.load %arg15[%c0_61, %c0_62] : memref<2x256xf32, #tpu.memory_space<vmem>>, vector<2x256xf32>
    tpu.vector_store %arg15[%c0_61, %c0_62], %78 {strides = array<i32>} : memref<2x256xf32, #tpu.memory_space<vmem>>, vector<2x256xf32>,
    return
  }
  func.func @transform_0(%arg0: i32) -> (i32, i32) {
    %c0_i32 = arith.constant 0 : i32
    %c0_i32_0 = arith.constant 0 : i32
    return %arg0, %c0_i32 : i32, i32
  }
  func.func @transform_1(%arg0: i32) -> (i32, i32, i32) {
    %c0_i32 = arith.constant 0 : i32
    %c0_i32_0 = arith.constant 0 : i32
    %c0_i32_1 = arith.constant 0 : i32
    %c0_i32_2 = arith.constant 0 : i32
    return %c0_i32, %c0_i32_0, %c0_i32_1 : i32, i32, i32
  }
  func.func @transform_2(%arg0: i32) -> (i32, i32) {
    %c0_i32 = arith.constant 0 : i32
    %c0_i32_0 = arith.constant 0 : i32
    %c0_i32_1 = arith.constant 0 : i32
    return %c0_i32, %c0_i32_0 : i32, i32
  }
  func.func @transform_3(%arg0: i32) -> (i32, i32, i32) {
    %c0_i32 = arith.constant 0 : i32
    %c0_i32_0 = arith.constant 0 : i32
    %c0_i32_1 = arith.constant 0 : i32
    %c0_i32_2 = arith.constant 0 : i32
    return %c0_i32, %c0_i32_0, %c0_i32_1 : i32, i32, i32
  }
  func.func @transform_4(%arg0: i32) -> (i32, i32) {
    %c0_i32 = arith.constant 0 : i32
    %c0_i32_0 = arith.constant 0 : i32
    %c0_i32_1 = arith.constant 0 : i32
    return %c0_i32, %c0_i32_0 : i32, i32
  }
  func.func @transform_5(%arg0: i32) -> (i32, i32) {
    %c0_i32 = arith.constant 0 : i32
    %c0_i32_0 = arith.constant 0 : i32
    %c0_i32_1 = arith.constant 0 : i32
    return %c0_i32, %c0_i32_0 : i32, i32
  }
  func.func @transform_6(%arg0: i32) -> (i32, i32) {
    %c0_i32 = arith.constant 0 : i32
    %c0_i32_0 = arith.constant 0 : i32
    %c0_i32_1 = arith.constant 0 : i32
    return %c0_i32, %c0_i32_0 : i32, i32
  }
  func.func @transform_7(%arg0: i32) -> (i32, i32) {
    %c0_i32 = arith.constant 0 : i32
    %c0_i32_0 = arith.constant 0 : i32
    %c0_i32_1 = arith.constant 0 : i32
    return %c0_i32, %c0_i32_0 : i32, i32
  }
  func.func @transform_8(%arg0: i32) -> (i32, i32) {
    %c0_i32 = arith.constant 0 : i32
    %c0_i32_0 = arith.constant 0 : i32
    %c0_i32_1 = arith.constant 0 : i32
    return %c0_i32, %c0_i32_0 : i32, i32
  }
  func.func @transform_9(%arg0: i32) -> (i32, i32) {
    %c0_i32 = arith.constant 0 : i32
    %c0_i32_0 = arith.constant 0 : i32
    %c0_i32_1 = arith.constant 0 : i32
    return %c0_i32, %c0_i32_0 : i32, i32
  }
  func.func @transform_10(%arg0: i32) -> (i32, i32) {
    %c0_i32 = arith.constant 0 : i32
    %c0_i32_0 = arith.constant 0 : i32
    %c0_i32_1 = arith.constant 0 : i32
    return %c0_i32, %c0_i32_0 : i32, i32
  }
  func.func @transform_11(%arg0: i32) -> (i32, i32) {
    %c0_i32 = arith.constant 0 : i32
    %c0_i32_0 = arith.constant 0 : i32
    %c0_i32_1 = arith.constant 0 : i32
    return %c0_i32, %c0_i32_0 : i32, i32
  }
  func.func @transform_12(%arg0: i32) -> (i32, i32) {
    %c0_i32 = arith.constant 0 : i32
    %c0_i32_0 = arith.constant 0 : i32
    %c0_i32_1 = arith.constant 0 : i32
    return %c0_i32, %c0_i32_0 : i32, i32
  }
  func.func @transform_13(%arg0: i32) -> (i32, i32) {
    %c0_i32 = arith.constant 0 : i32
    %c0_i32_0 = arith.constant 0 : i32
    return %arg0, %c0_i32 : i32, i32
  }
  func.func @transform_14(%arg0: i32) -> (i32, i32) {
    %c0_i32 = arith.constant 0 : i32
    %c0_i32_0 = arith.constant 0 : i32
    return %arg0, %c0_i32 : i32, i32
  }
}

</mosaic_0001>

<llo_original>
// kernel: autoencoder_forward.1
$region0: #{autoencoder_forward.1}
  #allocation0 [shape = 'u32[]', space=smem, size = 0x4, offset = 0x4, fixed_abs, tag = 'smem constant byte address 0x4 - core index']
  #allocation1 [shape = 'u32[144,128]{1,0:T(1,128)}', space=vmem, size = 0x12000, scoped, tag = 'internal scratch']
  %s0 = inlined_call_operand.vmem [shape: bf16[2,256], index: 0, kind: input, shape index: {}]
  %s1 = inlined_call_operand.vmem [shape: bf16[4,256,1024], index: 1, kind: input, shape index: {}]
  %s2 = inlined_call_operand.vmem [shape: f32[1,1024], index: 2, kind: input, shape index: {}]
  %s3 = inlined_call_operand.vmem [shape: bf16[4,1024,128], index: 3, kind: input, shape index: {}]
  %s4 = inlined_call_operand.vmem [shape: f32[1,128], index: 4, kind: input, shape index: {}]
  %s5 = inlined_call_operand.vmem [shape: bf16[128,10], index: 5, kind: input, shape index: {}]
  %s6 = inlined_call_operand.vmem [shape: f32[1,10], index: 6, kind: input, shape index: {}]
  %s7 = inlined_call_operand.vmem [shape: bf16[10,128], index: 7, kind: input, shape index: {}]
  %s8 = inlined_call_operand.vmem [shape: f32[1,128], index: 8, kind: input, shape index: {}]
  %s9 = inlined_call_operand.vmem [shape: bf16[128,1024], index: 9, kind: input, shape index: {}]
  %s10 = inlined_call_operand.vmem [shape: f32[1,1024], index: 10, kind: input, shape index: {}]
  %s11 = inlined_call_operand.vmem [shape: bf16[1024,256], index: 11, kind: input, shape index: {}]
  %s12 = inlined_call_operand.vmem [shape: f32[1,256], index: 12, kind: input, shape index: {}]
  %s13 = inlined_call_operand.hbm [shape: f32[2,10], index: 13, kind: output, shape index: {0}]
  %s14 = inlined_call_operand.vmem [shape: f32[2,256], index: 14, kind: output, shape index: {1}]
  %15 = xla_tuple %s13, %s14
  %s16 = sld [smem:[#allocation0]]
  $region70: #{autoencoder_forward.1} parent=0
    _
  %s18 = ssub.s32 1, %s16
  %s19 = scalar_select 0, %s18, %s16
  $region1: #{autoencoder_forward.1} parent=0
    #allocation2 [shape = 'u8[1024]{0}', space=vmem, size = 0x400, scoped, tag = 'output window, operand 0, single buffered']
    #allocation3 [shape = 's32[1]{0}', space=sflag, size = 0x4, scoped, tag = 'scoped memory for autoencoder_forward.1']
    %20 = vsyncpa [#allocation3], 0
    // Predicated region
    $region2: #{autoencoder_forward.1} parent=1 // pred_check
      _
    $region3: #{autoencoder_forward.1} parent=1 // pred_check_branch
      %22 = sbr.rel (0) target = $region5
    $region4: #{autoencoder_forward.1} parent=1 // pred_region
      _
    $region5: #{autoencoder_forward.1} parent=1 // pred_fallthru
      _
    // Predicated region
    $region6: #{autoencoder_forward.1} parent=1 // pred_check
      _
    $region7: #{autoencoder_forward.1} parent=1 // pred_check_branch
      %24 = sbr.rel (0) target = $region9
    $region8: #{autoencoder_forward.1} parent=1 // pred_region
      _
    $region9: #{autoencoder_forward.1} parent=1 // pred_fallthru
      _
    // Predicated region
    $region10: #{autoencoder_forward.1} parent=1 // pred_check
      _
    $region11: #{autoencoder_forward.1} parent=1 // pred_check_branch
      %26 = sbr.rel (0) target = $region13
    $region12: #{autoencoder_forward.1} parent=1 // pred_region
      _
    $region13: #{autoencoder_forward.1} parent=1 // pred_fallthru
      _
    // Predicated region
    $region14: #{autoencoder_forward.1} parent=1 // pred_check
      _
    $region15: #{autoencoder_forward.1} parent=1 // pred_check_branch
      %28 = sbr.rel (0) target = $region17
    $region16: #{autoencoder_forward.1} parent=1 // pred_region
      _
    $region17: #{autoencoder_forward.1} parent=1 // pred_fallthru
      _
    // Predicated region
    $region18: #{autoencoder_forward.1} parent=1 // pred_check
      _
    $region19: #{autoencoder_forward.1} parent=1 // pred_check_branch
      %30 = sbr.rel (0) target = $region21
    $region20: #{autoencoder_forward.1} parent=1 // pred_region
      _
    $region21: #{autoencoder_forward.1} parent=1 // pred_fallthru
      _
    // Predicated region
    $region22: #{autoencoder_forward.1} parent=1 // pred_check
      _
    $region23: #{autoencoder_forward.1} parent=1 // pred_check_branch
      %32 = sbr.rel (0) target = $region25
    $region24: #{autoencoder_forward.1} parent=1 // pred_region
      _
    $region25: #{autoencoder_forward.1} parent=1 // pred_fallthru
      _
    // Predicated region
    $region26: #{autoencoder_forward.1} parent=1 // pred_check
      _
    $region27: #{autoencoder_forward.1} parent=1 // pred_check_branch
      %34 = sbr.rel (0) target = $region29
    $region28: #{autoencoder_forward.1} parent=1 // pred_region
      _
    $region29: #{autoencoder_forward.1} parent=1 // pred_fallthru
      _
    // Predicated region
    $region30: #{autoencoder_forward.1} parent=1 // pred_check
      _
    $region31: #{autoencoder_forward.1} parent=1 // pred_check_branch
      %36 = sbr.rel (0) target = $region33
    $region32: #{autoencoder_forward.1} parent=1 // pred_region
      _
    $region33: #{autoencoder_forward.1} parent=1 // pred_fallthru
      _
    // Predicated region
    $region34: #{autoencoder_forward.1} parent=1 // pred_check
      _
    $region35: #{autoencoder_forward.1} parent=1 // pred_check_branch
      %38 = sbr.rel (0) target = $region37
    $region36: #{autoencoder_forward.1} parent=1 // pred_region
      _
    $region37: #{autoencoder_forward.1} parent=1 // pred_fallthru
      _
    // Predicated region
    $region38: #{autoencoder_forward.1} parent=1 // pred_check
      _
    $region39: #{autoencoder_forward.1} parent=1 // pred_check_branch
      %40 = sbr.rel (0) target = $region41
    $region40: #{autoencoder_forward.1} parent=1 // pred_region
      _
    $region41: #{autoencoder_forward.1} parent=1 // pred_fallthru
      _
    // Predicated region
    $region42: #{autoencoder_forward.1} parent=1 // pred_check
      _
    $region43: #{autoencoder_forward.1} parent=1 // pred_check_branch
      %42 = sbr.rel (0) target = $region45
    $region44: #{autoencoder_forward.1} parent=1 // pred_region
      _
    $region45: #{autoencoder_forward.1} parent=1 // pred_fallthru
      _
    // Predicated region
    $region46: #{autoencoder_forward.1} parent=1 // pred_check
      _
    $region47: #{autoencoder_forward.1} parent=1 // pred_check_branch
      %44 = sbr.rel (0) target = $region49
    $region48: #{autoencoder_forward.1} parent=1 // pred_region
      _
    $region49: #{autoencoder_forward.1} parent=1 // pred_fallthru
      _
    // Predicated region
    $region50: #{autoencoder_forward.1} parent=1 // pred_check
      _
    $region51: #{autoencoder_forward.1} parent=1 // pred_check_branch
      %46 = sbr.rel (0) target = $region53
    $region52: #{autoencoder_forward.1} parent=1 // pred_region
      _
    $region53: #{autoencoder_forward.1} parent=1 // pred_fallthru
      _
    %v48 = vld [vmem:[%s0] sm:$0x3]
    %v49 = vld [vmem:[%s1] sm:$0xff]
    %v50 = vld [vmem:[%s1 + $0x8] sm:$0xff]
    %v51 = vld [vmem:[%s1 + $0x10] sm:$0xff]
    %v52 = vld [vmem:[%s1 + $0x18] sm:$0xff]
    %v53 = vld [vmem:[%s1 + $0x20] sm:$0xff]
    %v54 = vld [vmem:[%s1 + $0x28] sm:$0xff]
    %v55 = vld [vmem:[%s1 + $0x30] sm:$0xff]
    %v56 = vld [vmem:[%s1 + $0x38] sm:$0xff]
    %v57 = vld [vmem:[%s1 + $0x40] sm:$0xff]
    %v58 = vld [vmem:[%s1 + $0x48] sm:$0xff]
    %v59 = vld [vmem:[%s1 + $0x50] sm:$0xff]
    %v60 = vld [vmem:[%s1 + $0x58] sm:$0xff]
    %v61 = vld [vmem:[%s1 + $0x60] sm:$0xff]
    %v62 = vld [vmem:[%s1 + $0x68] sm:$0xff]
    %v63 = vld [vmem:[%s1 + $0x70] sm:$0xff]
    %v64 = vld [vmem:[%s1 + $0x78] sm:$0xff]
    %v65 = vld [vmem:[%s1 + $0x80] sm:$0xff]
    %v66 = vld [vmem:[%s1 + $0x88] sm:$0xff]
    %v67 = vld [vmem:[%s1 + $0x90] sm:$0xff]
    %v68 = vld [vmem:[%s1 + $0x98] sm:$0xff]
    %v69 = vld [vmem:[%s1 + $0xa0] sm:$0xff]
    %v70 = vld [vmem:[%s1 + $0xa8] sm:$0xff]
    %v71 = vld [vmem:[%s1 + $0xb0] sm:$0xff]
    %v72 = vld [vmem:[%s1 + $0xb8] sm:$0xff]
    %v73 = vld [vmem:[%s1 + $0xc0] sm:$0xff]
    %v74 = vld [vmem:[%s1 + $0xc8] sm:$0xff]
    %v75 = vld [vmem:[%s1 + $0xd0] sm:$0xff]
    %v76 = vld [vmem:[%s1 + $0xd8] sm:$0xff]
    %v77 = vld [vmem:[%s1 + $0xe0] sm:$0xff]
    %v78 = vld [vmem:[%s1 + $0xe8] sm:$0xff]
    %v79 = vld [vmem:[%s1 + $0xf0] sm:$0xff]
    %v80 = vld [vmem:[%s1 + $0xf8] sm:$0xff]
    %v81 = vld [vmem:[%s1 + $0x100] sm:$0xff]
    %v82 = vld [vmem:[%s1 + $0x108] sm:$0xff]
    %v83 = vld [vmem:[%s1 + $0x110] sm:$0xff]
    %v84 = vld [vmem:[%s1 + $0x118] sm:$0xff]
    %v85 = vld [vmem:[%s1 + $0x120] sm:$0xff]
    %v86 = vld [vmem:[%s1 + $0x128] sm:$0xff]
    %v87 = vld [vmem:[%s1 + $0x130] sm:$0xff]
    %v88 = vld [vmem:[%s1 + $0x138] sm:$0xff]
    %v89 = vld [vmem:[%s1 + $0x140] sm:$0xff]
    %v90 = vld [vmem:[%s1 + $0x148] sm:$0xff]
    %v91 = vld [vmem:[%s1 + $0x150] sm:$0xff]
    %v92 = vld [vmem:[%s1 + $0x158] sm:$0xff]
    %v93 = vld [vmem:[%s1 + $0x160] sm:$0xff]
    %v94 = vld [vmem:[%s1 + $0x168] sm:$0xff]
    %v95 = vld [vmem:[%s1 + $0x170] sm:$0xff]
    %v96 = vld [vmem:[%s1 + $0x178] sm:$0xff]
    %v97 = vld [vmem:[%s1 + $0x180] sm:$0xff]
    %v98 = vld [vmem:[%s1 + $0x188] sm:$0xff]
    %v99 = vld [vmem:[%s1 + $0x190] sm:$0xff]
    %v100 = vld [vmem:[%s1 + $0x198] sm:$0xff]
    %v101 = vld [vmem:[%s1 + $0x1a0] sm:$0xff]
    %v102 = vld [vmem:[%s1 + $0x1a8] sm:$0xff]
    %v103 = vld [vmem:[%s1 + $0x1b0] sm:$0xff]
    %v104 = vld [vmem:[%s1 + $0x1b8] sm:$0xff]
    %v105 = vld [vmem:[%s1 + $0x1c0] sm:$0xff]
    %v106 = vld [vmem:[%s1 + $0x1c8] sm:$0xff]
    %v107 = vld [vmem:[%s1 + $0x1d0] sm:$0xff]
    %v108 = vld [vmem:[%s1 + $0x1d8] sm:$0xff]
    %v109 = vld [vmem:[%s1 + $0x1e0] sm:$0xff]
    %v110 = vld [vmem:[%s1 + $0x1e8] sm:$0xff]
    %v111 = vld [vmem:[%s1 + $0x1f0] sm:$0xff]
    %v112 = vld [vmem:[%s1 + $0x1f8] sm:$0xff]
    %v113 = vld [vmem:[%s1 + $0x200] sm:$0xff]
    %v114 = vld [vmem:[%s1 + $0x208] sm:$0xff]
    %v115 = vld [vmem:[%s1 + $0x210] sm:$0xff]
    %v116 = vld [vmem:[%s1 + $0x218] sm:$0xff]
    %v117 = vld [vmem:[%s1 + $0x220] sm:$0xff]
    %v118 = vld [vmem:[%s1 + $0x228] sm:$0xff]
    %v119 = vld [vmem:[%s1 + $0x230] sm:$0xff]
    %v120 = vld [vmem:[%s1 + $0x238] sm:$0xff]
    %v121 = vld [vmem:[%s1 + $0x240] sm:$0xff]
    %v122 = vld [vmem:[%s1 + $0x248] sm:$0xff]
    %v123 = vld [vmem:[%s1 + $0x250] sm:$0xff]
    %v124 = vld [vmem:[%s1 + $0x258] sm:$0xff]
    %v125 = vld [vmem:[%s1 + $0x260] sm:$0xff]
    %v126 = vld [vmem:[%s1 + $0x268] sm:$0xff]
    %v127 = vld [vmem:[%s1 + $0x270] sm:$0xff]
    %v128 = vld [vmem:[%s1 + $0x278] sm:$0xff]
    %v129 = vld [vmem:[%s1 + $0x280] sm:$0xff]
    %v130 = vld [vmem:[%s1 + $0x288] sm:$0xff]
    %v131 = vld [vmem:[%s1 + $0x290] sm:$0xff]
    %v132 = vld [vmem:[%s1 + $0x298] sm:$0xff]
    %v133 = vld [vmem:[%s1 + $0x2a0] sm:$0xff]
    %v134 = vld [vmem:[%s1 + $0x2a8] sm:$0xff]
    %v135 = vld [vmem:[%s1 + $0x2b0] sm:$0xff]
    %v136 = vld [vmem:[%s1 + $0x2b8] sm:$0xff]
    %v137 = vld [vmem:[%s1 + $0x2c0] sm:$0xff]
    %v138 = vld [vmem:[%s1 + $0x2c8] sm:$0xff]
    %v139 = vld [vmem:[%s1 + $0x2d0] sm:$0xff]
    %v140 = vld [vmem:[%s1 + $0x2d8] sm:$0xff]
    %v141 = vld [vmem:[%s1 + $0x2e0] sm:$0xff]
    %v142 = vld [vmem:[%s1 + $0x2e8] sm:$0xff]
    %v143 = vld [vmem:[%s1 + $0x2f0] sm:$0xff]
    %v144 = vld [vmem:[%s1 + $0x2f8] sm:$0xff]
    %v145 = vld [vmem:[%s1 + $0x300] sm:$0xff]
    %v146 = vld [vmem:[%s1 + $0x308] sm:$0xff]
    %v147 = vld [vmem:[%s1 + $0x310] sm:$0xff]
    %v148 = vld [vmem:[%s1 + $0x318] sm:$0xff]
    %v149 = vld [vmem:[%s1 + $0x320] sm:$0xff]
    %v150 = vld [vmem:[%s1 + $0x328] sm:$0xff]
    %v151 = vld [vmem:[%s1 + $0x330] sm:$0xff]
    %v152 = vld [vmem:[%s1 + $0x338] sm:$0xff]
    %v153 = vld [vmem:[%s1 + $0x340] sm:$0xff]
    %v154 = vld [vmem:[%s1 + $0x348] sm:$0xff]
    %v155 = vld [vmem:[%s1 + $0x350] sm:$0xff]
    %v156 = vld [vmem:[%s1 + $0x358] sm:$0xff]
    %v157 = vld [vmem:[%s1 + $0x360] sm:$0xff]
    %v158 = vld [vmem:[%s1 + $0x368] sm:$0xff]
    %v159 = vld [vmem:[%s1 + $0x370] sm:$0xff]
    %v160 = vld [vmem:[%s1 + $0x378] sm:$0xff]
    %v161 = vld [vmem:[%s1 + $0x380] sm:$0xff]
    %v162 = vld [vmem:[%s1 + $0x388] sm:$0xff]
    %v163 = vld [vmem:[%s1 + $0x390] sm:$0xff]
    %v164 = vld [vmem:[%s1 + $0x398] sm:$0xff]
    %v165 = vld [vmem:[%s1 + $0x3a0] sm:$0xff]
    %v166 = vld [vmem:[%s1 + $0x3a8] sm:$0xff]
    %v167 = vld [vmem:[%s1 + $0x3b0] sm:$0xff]
    %v168 = vld [vmem:[%s1 + $0x3b8] sm:$0xff]
    %v169 = vld [vmem:[%s1 + $0x3c0] sm:$0xff]
    %v170 = vld [vmem:[%s1 + $0x3c8] sm:$0xff]
    %v171 = vld [vmem:[%s1 + $0x3d0] sm:$0xff]
    %v172 = vld [vmem:[%s1 + $0x3d8] sm:$0xff]
    %v173 = vld [vmem:[%s1 + $0x3e0] sm:$0xff]
    %v174 = vld [vmem:[%s1 + $0x3e8] sm:$0xff]
    %v175 = vld [vmem:[%s1 + $0x3f0] sm:$0xff]
    %v176 = vld [vmem:[%s1 + $0x3f8] sm:$0xff]
    %v179 = vunpack.c.l.s4 1966171168
    %v180 = vunpack.c.0.s8 %v179
    %v181 = vlaneseq
    %v182 = vshrl.u32 %v181, 7
    %v183 = vsub.s32 %v180, %v182
    %v184 = vrot.slane %v48, %v183
    %v185 = vcombine.high %v184, %v184
    %v187 = vunpack.c.l.s4 1966171168
    %v188 = vunpack.c.0.s8 %v187
    %v189 = vlaneseq
    %v190 = vshrl.u32 %v189, 7
    %v191 = vsub.s32 %v188, %v190
    %v192 = vrot.slane %v184, %v191
    %v194 = vunpack.c.l.s4 1966171168
    %v195 = vunpack.c.0.s8 %v194
    %v196 = vlaneseq
    %v197 = vshrl.u32 %v196, 7
    %v198 = vsub.s32 %v195, %v197
    %v199 = vrot.slane %v185, %v198
    %v330 = vunpack.c.l.b16 %v49
    %v331 = vunpack.c.h.b16 %v49
    %v332 = vunpack.c.l.b16 %v50
    %v333 = vunpack.c.h.b16 %v50
    %v334 = vunpack.c.l.b16 %v51
    %v335 = vunpack.c.h.b16 %v51
    %v336 = vunpack.c.l.b16 %v52
    %v337 = vunpack.c.h.b16 %v52
    %v338 = vunpack.c.l.b16 %v53
    %v339 = vunpack.c.h.b16 %v53
    %v340 = vunpack.c.l.b16 %v54
    %v341 = vunpack.c.h.b16 %v54
    %v342 = vunpack.c.l.b16 %v55
    %v343 = vunpack.c.h.b16 %v55
    %v344 = vunpack.c.l.b16 %v56
    %v345 = vunpack.c.h.b16 %v56
    %v346 = vunpack.c.l.b16 %v57
    %v347 = vunpack.c.h.b16 %v57
    %v348 = vunpack.c.l.b16 %v58
    %v349 = vunpack.c.h.b16 %v58
    %v350 = vunpack.c.l.b16 %v59
    %v351 = vunpack.c.h.b16 %v59
    %v352 = vunpack.c.l.b16 %v60
    %v353 = vunpack.c.h.b16 %v60
    %v354 = vunpack.c.l.b16 %v61
    %v355 = vunpack.c.h.b16 %v61
    %v356 = vunpack.c.l.b16 %v62
    %v357 = vunpack.c.h.b16 %v62
    %v358 = vunpack.c.l.b16 %v63
    %v359 = vunpack.c.h.b16 %v63
    %v360 = vunpack.c.l.b16 %v64
    %v361 = vunpack.c.h.b16 %v64
    %v362 = vunpack.c.l.b16 %v65
    %v363 = vunpack.c.h.b16 %v65
    %v364 = vunpack.c.l.b16 %v66
    %v365 = vunpack.c.h.b16 %v66
    %v366 = vunpack.c.l.b16 %v67
    %v367 = vunpack.c.h.b16 %v67
    %v368 = vunpack.c.l.b16 %v68
    %v369 = vunpack.c.h.b16 %v68
    %v370 = vunpack.c.l.b16 %v69
    %v371 = vunpack.c.h.b16 %v69
    %v372 = vunpack.c.l.b16 %v70
    %v373 = vunpack.c.h.b16 %v70
    %v374 = vunpack.c.l.b16 %v71
    %v375 = vunpack.c.h.b16 %v71
    %v376 = vunpack.c.l.b16 %v72
    %v377 = vunpack.c.h.b16 %v72
    %v378 = vunpack.c.l.b16 %v73
    %v379 = vunpack.c.h.b16 %v73
    %v380 = vunpack.c.l.b16 %v74
    %v381 = vunpack.c.h.b16 %v74
    %v382 = vunpack.c.l.b16 %v75
    %v383 = vunpack.c.h.b16 %v75
    %v384 = vunpack.c.l.b16 %v76
    %v385 = vunpack.c.h.b16 %v76
    %v386 = vunpack.c.l.b16 %v77
    %v387 = vunpack.c.h.b16 %v77
    %v388 = vunpack.c.l.b16 %v78
    %v389 = vunpack.c.h.b16 %v78
    %v390 = vunpack.c.l.b16 %v79
    %v391 = vunpack.c.h.b16 %v79
    %v392 = vunpack.c.l.b16 %v80
    %v393 = vunpack.c.h.b16 %v80
    %v394 = vunpack.c.l.b16 %v81
    %v395 = vunpack.c.h.b16 %v81
    %v396 = vunpack.c.l.b16 %v82
    %v397 = vunpack.c.h.b16 %v82
    %v398 = vunpack.c.l.b16 %v83
    %v399 = vunpack.c.h.b16 %v83
    %v400 = vunpack.c.l.b16 %v84
    %v401 = vunpack.c.h.b16 %v84
    %v402 = vunpack.c.l.b16 %v85
    %v403 = vunpack.c.h.b16 %v85
    %v404 = vunpack.c.l.b16 %v86
    %v405 = vunpack.c.h.b16 %v86
    %v406 = vunpack.c.l.b16 %v87
    %v407 = vunpack.c.h.b16 %v87
    %v408 = vunpack.c.l.b16 %v88
    %v409 = vunpack.c.h.b16 %v88
    %v410 = vunpack.c.l.b16 %v89
    %v411 = vunpack.c.h.b16 %v89
    %v412 = vunpack.c.l.b16 %v90
    %v413 = vunpack.c.h.b16 %v90
    %v414 = vunpack.c.l.b16 %v91
    %v415 = vunpack.c.h.b16 %v91
    %v416 = vunpack.c.l.b16 %v92
    %v417 = vunpack.c.h.b16 %v92
    %v418 = vunpack.c.l.b16 %v93
    %v419 = vunpack.c.h.b16 %v93
    %v420 = vunpack.c.l.b16 %v94
    %v421 = vunpack.c.h.b16 %v94
    %v422 = vunpack.c.l.b16 %v95
    %v423 = vunpack.c.h.b16 %v95
    %v424 = vunpack.c.l.b16 %v96
    %v425 = vunpack.c.h.b16 %v96
    %v426 = vunpack.c.l.b16 %v97
    %v427 = vunpack.c.h.b16 %v97
    %v428 = vunpack.c.l.b16 %v98
    %v429 = vunpack.c.h.b16 %v98
    %v430 = vunpack.c.l.b16 %v99
    %v431 = vunpack.c.h.b16 %v99
    %v432 = vunpack.c.l.b16 %v100
    %v433 = vunpack.c.h.b16 %v100
    %v434 = vunpack.c.l.b16 %v101
    %v435 = vunpack.c.h.b16 %v101
    %v436 = vunpack.c.l.b16 %v102
    %v437 = vunpack.c.h.b16 %v102
    %v438 = vunpack.c.l.b16 %v103
    %v439 = vunpack.c.h.b16 %v103
    %v440 = vunpack.c.l.b16 %v104
    %v441 = vunpack.c.h.b16 %v104
    %v442 = vunpack.c.l.b16 %v105
    %v443 = vunpack.c.h.b16 %v105
    %v444 = vunpack.c.l.b16 %v106
    %v445 = vunpack.c.h.b16 %v106
    %v446 = vunpack.c.l.b16 %v107
    %v447 = vunpack.c.h.b16 %v107
    %v448 = vunpack.c.l.b16 %v108
    %v449 = vunpack.c.h.b16 %v108
    %v450 = vunpack.c.l.b16 %v109
    %v451 = vunpack.c.h.b16 %v109
    %v452 = vunpack.c.l.b16 %v110
    %v453 = vunpack.c.h.b16 %v110
    %v454 = vunpack.c.l.b16 %v111
    %v455 = vunpack.c.h.b16 %v111
    %v456 = vunpack.c.l.b16 %v112
    %v457 = vunpack.c.h.b16 %v112
    %v458 = vunpack.c.l.b16 %v113
    %v459 = vunpack.c.h.b16 %v113
    %v460 = vunpack.c.l.b16 %v114
    %v461 = vunpack.c.h.b16 %v114
    %v462 = vunpack.c.l.b16 %v115
    %v463 = vunpack.c.h.b16 %v115
    %v464 = vunpack.c.l.b16 %v116
    %v465 = vunpack.c.h.b16 %v116
    %v466 = vunpack.c.l.b16 %v117
    %v467 = vunpack.c.h.b16 %v117
    %v468 = vunpack.c.l.b16 %v118
    %v469 = vunpack.c.h.b16 %v118
    %v470 = vunpack.c.l.b16 %v119
    %v471 = vunpack.c.h.b16 %v119
    %v472 = vunpack.c.l.b16 %v120
    %v473 = vunpack.c.h.b16 %v120
    %v474 = vunpack.c.l.b16 %v121
    %v475 = vunpack.c.h.b16 %v121
    %v476 = vunpack.c.l.b16 %v122
    %v477 = vunpack.c.h.b16 %v122
    %v478 = vunpack.c.l.b16 %v123
    %v479 = vunpack.c.h.b16 %v123
    %v480 = vunpack.c.l.b16 %v124
    %v481 = vunpack.c.h.b16 %v124
    %v482 = vunpack.c.l.b16 %v125
    %v483 = vunpack.c.h.b16 %v125
    %v484 = vunpack.c.l.b16 %v126
    %v485 = vunpack.c.h.b16 %v126
    %v486 = vunpack.c.l.b16 %v127
    %v487 = vunpack.c.h.b16 %v127
    %v488 = vunpack.c.l.b16 %v128
    %v489 = vunpack.c.h.b16 %v128
    %v490 = vunpack.c.l.b16 %v129
    %v491 = vunpack.c.h.b16 %v129
    %v492 = vunpack.c.l.b16 %v130
    %v493 = vunpack.c.h.b16 %v130
    %v494 = vunpack.c.l.b16 %v131
    %v495 = vunpack.c.h.b16 %v131
    %v496 = vunpack.c.l.b16 %v132
    %v497 = vunpack.c.h.b16 %v132
    %v498 = vunpack.c.l.b16 %v133
    %v499 = vunpack.c.h.b16 %v133
    %v500 = vunpack.c.l.b16 %v134
    %v501 = vunpack.c.h.b16 %v134
    %v502 = vunpack.c.l.b16 %v135
    %v503 = vunpack.c.h.b16 %v135
    %v504 = vunpack.c.l.b16 %v136
    %v505 = vunpack.c.h.b16 %v136
    %v506 = vunpack.c.l.b16 %v137
    %v507 = vunpack.c.h.b16 %v137
    %v508 = vunpack.c.l.b16 %v138
    %v509 = vunpack.c.h.b16 %v138
    %v510 = vunpack.c.l.b16 %v139
    %v511 = vunpack.c.h.b16 %v139
    %v512 = vunpack.c.l.b16 %v140
    %v513 = vunpack.c.h.b16 %v140
    %v514 = vunpack.c.l.b16 %v141
    %v515 = vunpack.c.h.b16 %v141
    %v516 = vunpack.c.l.b16 %v142
    %v517 = vunpack.c.h.b16 %v142
    %v518 = vunpack.c.l.b16 %v143
    %v519 = vunpack.c.h.b16 %v143
    %v520 = vunpack.c.l.b16 %v144
    %v521 = vunpack.c.h.b16 %v144
    %v522 = vunpack.c.l.b16 %v145
    %v523 = vunpack.c.h.b16 %v145
    %v524 = vunpack.c.l.b16 %v146
    %v525 = vunpack.c.h.b16 %v146
    %v526 = vunpack.c.l.b16 %v147
    %v527 = vunpack.c.h.b16 %v147
    %v528 = vunpack.c.l.b16 %v148
    %v529 = vunpack.c.h.b16 %v148
    %v530 = vunpack.c.l.b16 %v149
    %v531 = vunpack.c.h.b16 %v149
    %v532 = vunpack.c.l.b16 %v150
    %v533 = vunpack.c.h.b16 %v150
    %v534 = vunpack.c.l.b16 %v151
    %v535 = vunpack.c.h.b16 %v151
    %v536 = vunpack.c.l.b16 %v152
    %v537 = vunpack.c.h.b16 %v152
    %v538 = vunpack.c.l.b16 %v153
    %v539 = vunpack.c.h.b16 %v153
    %v540 = vunpack.c.l.b16 %v154
    %v541 = vunpack.c.h.b16 %v154
    %v542 = vunpack.c.l.b16 %v155
    %v543 = vunpack.c.h.b16 %v155
    %v544 = vunpack.c.l.b16 %v156
    %v545 = vunpack.c.h.b16 %v156
    %v546 = vunpack.c.l.b16 %v157
    %v547 = vunpack.c.h.b16 %v157
    %v548 = vunpack.c.l.b16 %v158
    %v549 = vunpack.c.h.b16 %v158
    %v550 = vunpack.c.l.b16 %v159
    %v551 = vunpack.c.h.b16 %v159
    %v552 = vunpack.c.l.b16 %v160
    %v553 = vunpack.c.h.b16 %v160
    %v554 = vunpack.c.l.b16 %v161
    %v555 = vunpack.c.h.b16 %v161
    %v556 = vunpack.c.l.b16 %v162
    %v557 = vunpack.c.h.b16 %v162
    %v558 = vunpack.c.l.b16 %v163
    %v559 = vunpack.c.h.b16 %v163
    %v560 = vunpack.c.l.b16 %v164
    %v561 = vunpack.c.h.b16 %v164
    %v562 = vunpack.c.l.b16 %v165
    %v563 = vunpack.c.h.b16 %v165
    %v564 = vunpack.c.l.b16 %v166
    %v565 = vunpack.c.h.b16 %v166
    %v566 = vunpack.c.l.b16 %v167
    %v567 = vunpack.c.h.b16 %v167
    %v568 = vunpack.c.l.b16 %v168
    %v569 = vunpack.c.h.b16 %v168
    %v570 = vunpack.c.l.b16 %v169
    %v571 = vunpack.c.h.b16 %v169
    %v572 = vunpack.c.l.b16 %v170
    %v573 = vunpack.c.h.b16 %v170
    %v574 = vunpack.c.l.b16 %v171
    %v575 = vunpack.c.h.b16 %v171
    %v576 = vunpack.c.l.b16 %v172
    %v577 = vunpack.c.h.b16 %v172
    %v578 = vunpack.c.l.b16 %v173
    %v579 = vunpack.c.h.b16 %v173
    %v580 = vunpack.c.l.b16 %v174
    %v581 = vunpack.c.h.b16 %v174
    %v582 = vunpack.c.l.b16 %v175
    %v583 = vunpack.c.h.b16 %v175
    %v584 = vunpack.c.l.b16 %v176
    %v585 = vunpack.c.h.b16 %v176
    %v586 = vpack.c.b16 %v338, %v330
    %v587 = vpack.c.b16 %v339, %v331
    %v588 = vpack.c.b16 %v340, %v332
    %v589 = vpack.c.b16 %v341, %v333
    %v590 = vpack.c.b16 %v342, %v334
    %v591 = vpack.c.b16 %v343, %v335
    %v592 = vpack.c.b16 %v344, %v336
    %v593 = vpack.c.b16 %v345, %v337
    %v594 = vpack.c.b16 %v354, %v346
    %v595 = vpack.c.b16 %v355, %v347
    %v596 = vpack.c.b16 %v356, %v348
    %v597 = vpack.c.b16 %v357, %v349
    %v598 = vpack.c.b16 %v358, %v350
    %v599 = vpack.c.b16 %v359, %v351
    %v600 = vpack.c.b16 %v360, %v352
    %v601 = vpack.c.b16 %v361, %v353
    %v602 = vpack.c.b16 %v370, %v362
    %v603 = vpack.c.b16 %v371, %v363
    %v604 = vpack.c.b16 %v372, %v364
    %v605 = vpack.c.b16 %v373, %v365
    %v606 = vpack.c.b16 %v374, %v366
    %v607 = vpack.c.b16 %v375, %v367
    %v608 = vpack.c.b16 %v376, %v368
    %v609 = vpack.c.b16 %v377, %v369
    %v610 = vpack.c.b16 %v386, %v378
    %v611 = vpack.c.b16 %v387, %v379
    %v612 = vpack.c.b16 %v388, %v380
    %v613 = vpack.c.b16 %v389, %v381
    %v614 = vpack.c.b16 %v390, %v382
    %v615 = vpack.c.b16 %v391, %v383
    %v616 = vpack.c.b16 %v392, %v384
    %v617 = vpack.c.b16 %v393, %v385
    %v618 = vpack.c.b16 %v402, %v394
    %v619 = vpack.c.b16 %v403, %v395
    %v620 = vpack.c.b16 %v404, %v396
    %v621 = vpack.c.b16 %v405, %v397
    %v622 = vpack.c.b16 %v406, %v398
    %v623 = vpack.c.b16 %v407, %v399
    %v624 = vpack.c.b16 %v408, %v400
    %v625 = vpack.c.b16 %v409, %v401
    %v626 = vpack.c.b16 %v418, %v410
    %v627 = vpack.c.b16 %v419, %v411
    %v628 = vpack.c.b16 %v420, %v412
    %v629 = vpack.c.b16 %v421, %v413
    %v630 = vpack.c.b16 %v422, %v414
    %v631 = vpack.c.b16 %v423, %v415
    %v632 = vpack.c.b16 %v424, %v416
    %v633 = vpack.c.b16 %v425, %v417
    %v634 = vpack.c.b16 %v434, %v426
    %v635 = vpack.c.b16 %v435, %v427
    %v636 = vpack.c.b16 %v436, %v428
    %v637 = vpack.c.b16 %v437, %v429
    %v638 = vpack.c.b16 %v438, %v430
    %v639 = vpack.c.b16 %v439, %v431
    %v640 = vpack.c.b16 %v440, %v432
    %v641 = vpack.c.b16 %v441, %v433
    %v642 = vpack.c.b16 %v450, %v442
    %v643 = vpack.c.b16 %v451, %v443
    %v644 = vpack.c.b16 %v452, %v444
    %v645 = vpack.c.b16 %v453, %v445
    %v646 = vpack.c.b16 %v454, %v446
    %v647 = vpack.c.b16 %v455, %v447
    %v648 = vpack.c.b16 %v456, %v448
    %v649 = vpack.c.b16 %v457, %v449
    %v650 = vpack.c.b16 %v466, %v458
    %v651 = vpack.c.b16 %v467, %v459
    %v652 = vpack.c.b16 %v468, %v460
    %v653 = vpack.c.b16 %v469, %v461
    %v654 = vpack.c.b16 %v470, %v462
    %v655 = vpack.c.b16 %v471, %v463
    %v656 = vpack.c.b16 %v472, %v464
    %v657 = vpack.c.b16 %v473, %v465
    %v658 = vpack.c.b16 %v482, %v474
    %v659 = vpack.c.b16 %v483, %v475
    %v660 = vpack.c.b16 %v484, %v476
    %v661 = vpack.c.b16 %v485, %v477
    %v662 = vpack.c.b16 %v486, %v478
    %v663 = vpack.c.b16 %v487, %v479
    %v664 = vpack.c.b16 %v488, %v480
    %v665 = vpack.c.b16 %v489, %v481
    %v666 = vpack.c.b16 %v498, %v490
    %v667 = vpack.c.b16 %v499, %v491
    %v668 = vpack.c.b16 %v500, %v492
    %v669 = vpack.c.b16 %v501, %v493
    %v670 = vpack.c.b16 %v502, %v494
    %v671 = vpack.c.b16 %v503, %v495
    %v672 = vpack.c.b16 %v504, %v496
    %v673 = vpack.c.b16 %v505, %v497
    %v674 = vpack.c.b16 %v514, %v506
    %v675 = vpack.c.b16 %v515, %v507
    %v676 = vpack.c.b16 %v516, %v508
    %v677 = vpack.c.b16 %v517, %v509
    %v678 = vpack.c.b16 %v518, %v510
    %v679 = vpack.c.b16 %v519, %v511
    %v680 = vpack.c.b16 %v520, %v512
    %v681 = vpack.c.b16 %v521, %v513
    %v682 = vpack.c.b16 %v530, %v522
    %v683 = vpack.c.b16 %v531, %v523
    %v684 = vpack.c.b16 %v532, %v524
    %v685 = vpack.c.b16 %v533, %v525
    %v686 = vpack.c.b16 %v534, %v526
    %v687 = vpack.c.b16 %v535, %v527
    %v688 = vpack.c.b16 %v536, %v528
    %v689 = vpack.c.b16 %v537, %v529
    %v690 = vpack.c.b16 %v546, %v538
    %v691 = vpack.c.b16 %v547, %v539
    %v692 = vpack.c.b16 %v548, %v540
    %v693 = vpack.c.b16 %v549, %v541
    %v694 = vpack.c.b16 %v550, %v542
    %v695 = vpack.c.b16 %v551, %v543
    %v696 = vpack.c.b16 %v552, %v544
    %v697 = vpack.c.b16 %v553, %v545
    %v698 = vpack.c.b16 %v562, %v554
    %v699 = vpack.c.b16 %v563, %v555
    %v700 = vpack.c.b16 %v564, %v556
    %v701 = vpack.c.b16 %v565, %v557
    %v702 = vpack.c.b16 %v566, %v558
    %v703 = vpack.c.b16 %v567, %v559
    %v704 = vpack.c.b16 %v568, %v560
    %v705 = vpack.c.b16 %v569, %v561
    %v706 = vpack.c.b16 %v578, %v570
    %v707 = vpack.c.b16 %v579, %v571
    %v708 = vpack.c.b16 %v580, %v572
    %v709 = vpack.c.b16 %v581, %v573
    %v710 = vpack.c.b16 %v582, %v574
    %v711 = vpack.c.b16 %v583, %v575
    %v712 = vpack.c.b16 %v584, %v576
    %v713 = vpack.c.b16 %v585, %v577
    %842 = vmatprep.subr.bf16.mxu0 %v643
    %843 = vmatpush1.bf16.msra.mxu0 %v642
    %844 = vmatprep.subr.bf16.mxu0 %v635
    %845 = vmatpush1.bf16.msra.mxu0 %v634
    %846 = vmatprep.subr.bf16.mxu0 %v627
    %847 = vmatpush1.bf16.msra.mxu0 %v626
    %848 = vmatprep.subr.bf16.mxu0 %v619
    %849 = vmatpush1.bf16.msra.mxu0 %v618
    %850 = vmatprep.subr.bf16.mxu0 %v611
    %851 = vmatpush1.bf16.msra.mxu0 %v610
    %852 = vmatprep.subr.bf16.mxu0 %v603
    %853 = vmatpush1.bf16.msra.mxu0 %v602
    %854 = vmatprep.subr.bf16.mxu0 %v595
    %855 = vmatpush1.bf16.msra.mxu0 %v594
    %856 = vmatprep.subr.bf16.mxu0 %v587
    %857 = vmatpush1.bf16.msra.mxu0 %v586
    %858 = vmatprep.subr.bf16.mxu0 %v707
    %859 = vmatpush2.bf16.msra.mxu0 %v706
    %860 = vmatprep.subr.bf16.mxu0 %v699
    %861 = vmatpush2.bf16.msra.mxu0 %v698
    %862 = vmatprep.subr.bf16.mxu0 %v691
    %863 = vmatpush2.bf16.msra.mxu0 %v690
    %864 = vmatprep.subr.bf16.mxu0 %v683
    %865 = vmatpush2.bf16.msra.mxu0 %v682
    %866 = vmatprep.subr.bf16.mxu0 %v675
    %867 = vmatpush2.bf16.msra.mxu0 %v674
    %868 = vmatprep.subr.bf16.mxu0 %v667
    %869 = vmatpush2.bf16.msra.mxu0 %v666
    %870 = vmatprep.subr.bf16.mxu0 %v659
    %871 = vmatpush2.bf16.msra.mxu0 %v658
    %872 = vmatprep.subr.bf16.mxu0 %v651
    %873 = vmatpush2.bf16.msra.mxu0 %v650
    %874 = vmatprep.mubr.bf16.mxu0 %v199
    %875 = vmatmul.mubr.bf16.gmra.mxu0 %v192
    %v876 = vpop.f32.mrf.mxu0
    %v877 = vadd.f32 0.0, %v876
    %v878 = vpop.f32.mrf.mxu0
    %v879 = vadd.f32 0.0, %v878
    %v880 = vpop.f32.mrf.mxu0
    %v881 = vpop.f32.mrf.mxu0
    %882 = vdwg.mxu0
    %883 = vmatprep.subr.bf16.mxu0 %v645
    %884 = vmatpush1.bf16.msra.mxu0 %v644
    %885 = vmatprep.subr.bf16.mxu0 %v637
    %886 = vmatpush1.bf16.msra.mxu0 %v636
    %887 = vmatprep.subr.bf16.mxu0 %v629
    %888 = vmatpush1.bf16.msra.mxu0 %v628
    %889 = vmatprep.subr.bf16.mxu0 %v621
    %890 = vmatpush1.bf16.msra.mxu0 %v620
    %891 = vmatprep.subr.bf16.mxu0 %v613
    %892 = vmatpush1.bf16.msra.mxu0 %v612
    %893 = vmatprep.subr.bf16.mxu0 %v605
    %894 = vmatpush1.bf16.msra.mxu0 %v604
    %895 = vmatprep.subr.bf16.mxu0 %v597
    %896 = vmatpush1.bf16.msra.mxu0 %v596
    %897 = vmatprep.subr.bf16.mxu0 %v589
    %898 = vmatpush1.bf16.msra.mxu0 %v588
    %899 = vmatprep.subr.bf16.mxu0 %v709
    %900 = vmatpush2.bf16.msra.mxu0 %v708
    %901 = vmatprep.subr.bf16.mxu0 %v701
    %902 = vmatpush2.bf16.msra.mxu0 %v700
    %903 = vmatprep.subr.bf16.mxu0 %v693
    %904 = vmatpush2.bf16.msra.mxu0 %v692
    %905 = vmatprep.subr.bf16.mxu0 %v685
    %906 = vmatpush2.bf16.msra.mxu0 %v684
    %907 = vmatprep.subr.bf16.mxu0 %v677
    %908 = vmatpush2.bf16.msra.mxu0 %v676
    %909 = vmatprep.subr.bf16.mxu0 %v669
    %910 = vmatpush2.bf16.msra.mxu0 %v668
    %911 = vmatprep.subr.bf16.mxu0 %v661
    %912 = vmatpush2.bf16.msra.mxu0 %v660
    %913 = vmatprep.subr.bf16.mxu0 %v653
    %914 = vmatpush2.bf16.msra.mxu0 %v652
    %915 = vmatprep.mubr.bf16.mxu0 %v199
    %916 = vmatmul.mubr.bf16.gmra.mxu0 %v192
    %v917 = vpop.f32.mrf.mxu0
    %v918 = vadd.f32 0.0, %v917
    %v919 = vpop.f32.mrf.mxu0
    %v920 = vadd.f32 0.0, %v919
    %v921 = vpop.f32.mrf.mxu0
    %v922 = vpop.f32.mrf.mxu0
    %923 = vdwg.mxu0
    %924 = vmatprep.subr.bf16.mxu0 %v647
    %925 = vmatpush1.bf16.msra.mxu0 %v646
    %926 = vmatprep.subr.bf16.mxu0 %v639
    %927 = vmatpush1.bf16.msra.mxu0 %v638
    %928 = vmatprep.subr.bf16.mxu0 %v631
    %929 = vmatpush1.bf16.msra.mxu0 %v630
    %930 = vmatprep.subr.bf16.mxu0 %v623
    %931 = vmatpush1.bf16.msra.mxu0 %v622
    %932 = vmatprep.subr.bf16.mxu0 %v615
    %933 = vmatpush1.bf16.msra.mxu0 %v614
    %934 = vmatprep.subr.bf16.mxu0 %v607
    %935 = vmatpush1.bf16.msra.mxu0 %v606
    %936 = vmatprep.subr.bf16.mxu0 %v599
    %937 = vmatpush1.bf16.msra.mxu0 %v598
    %938 = vmatprep.subr.bf16.mxu0 %v591
    %939 = vmatpush1.bf16.msra.mxu0 %v590
    %940 = vmatprep.subr.bf16.mxu0 %v711
    %941 = vmatpush2.bf16.msra.mxu0 %v710
    %942 = vmatprep.subr.bf16.mxu0 %v703
    %943 = vmatpush2.bf16.msra.mxu0 %v702
    %944 = vmatprep.subr.bf16.mxu0 %v695
    %945 = vmatpush2.bf16.msra.mxu0 %v694
    %946 = vmatprep.subr.bf16.mxu0 %v687
    %947 = vmatpush2.bf16.msra.mxu0 %v686
    %948 = vmatprep.subr.bf16.mxu0 %v679
    %949 = vmatpush2.bf16.msra.mxu0 %v678
    %950 = vmatprep.subr.bf16.mxu0 %v671
    %951 = vmatpush2.bf16.msra.mxu0 %v670
    %952 = vmatprep.subr.bf16.mxu0 %v663
    %953 = vmatpush2.bf16.msra.mxu0 %v662
    %954 = vmatprep.subr.bf16.mxu0 %v655
    %955 = vmatpush2.bf16.msra.mxu0 %v654
    %956 = vmatprep.mubr.bf16.mxu0 %v199
    %957 = vmatmul.mubr.bf16.gmra.mxu0 %v192
    %v958 = vpop.f32.mrf.mxu0
    %v959 = vadd.f32 0.0, %v958
    %v960 = vpop.f32.mrf.mxu0
    %v961 = vadd.f32 0.0, %v960
    %v962 = vpop.f32.mrf.mxu0
    %v963 = vpop.f32.mrf.mxu0
    %964 = vdwg.mxu0
    %965 = vmatprep.subr.bf16.mxu0 %v649
    %966 = vmatpush1.bf16.msra.mxu0 %v648
    %967 = vmatprep.subr.bf16.mxu0 %v641
    %968 = vmatpush1.bf16.msra.mxu0 %v640
    %969 = vmatprep.subr.bf16.mxu0 %v633
    %970 = vmatpush1.bf16.msra.mxu0 %v632
    %971 = vmatprep.subr.bf16.mxu0 %v625
    %972 = vmatpush1.bf16.msra.mxu0 %v624
    %973 = vmatprep.subr.bf16.mxu0 %v617
    %974 = vmatpush1.bf16.msra.mxu0 %v616
    %975 = vmatprep.subr.bf16.mxu0 %v609
    %976 = vmatpush1.bf16.msra.mxu0 %v608
    %977 = vmatprep.subr.bf16.mxu0 %v601
    %978 = vmatpush1.bf16.msra.mxu0 %v600
    %979 = vmatprep.subr.bf16.mxu0 %v593
    %980 = vmatpush1.bf16.msra.mxu0 %v592
    %981 = vmatprep.subr.bf16.mxu0 %v713
    %982 = vmatpush2.bf16.msra.mxu0 %v712
    %983 = vmatprep.subr.bf16.mxu0 %v705
    %984 = vmatpush2.bf16.msra.mxu0 %v704
    %985 = vmatprep.subr.bf16.mxu0 %v697
    %986 = vmatpush2.bf16.msra.mxu0 %v696
    %987 = vmatprep.subr.bf16.mxu0 %v689
    %988 = vmatpush2.bf16.msra.mxu0 %v688
    %989 = vmatprep.subr.bf16.mxu0 %v681
    %990 = vmatpush2.bf16.msra.mxu0 %v680
    %991 = vmatprep.subr.bf16.mxu0 %v673
    %992 = vmatpush2.bf16.msra.mxu0 %v672
    %993 = vmatprep.subr.bf16.mxu0 %v665
    %994 = vmatpush2.bf16.msra.mxu0 %v664
    %995 = vmatprep.subr.bf16.mxu0 %v657
    %996 = vmatpush2.bf16.msra.mxu0 %v656
    %997 = vmatprep.mubr.bf16.mxu0 %v199
    %998 = vmatmul.mubr.bf16.gmra.mxu0 %v192
    %v999 = vpop.f32.mrf.mxu0
    %v1000 = vadd.f32 0.0, %v999
    %v1001 = vpop.f32.mrf.mxu0
    %v1002 = vadd.f32 0.0, %v1001
    %v1003 = vpop.f32.mrf.mxu0
    %v1004 = vpop.f32.mrf.mxu0
    %1005 = vdwg.mxu0
    %s1006 = scalar_lea.vmem %s1, 1024
    %v1007 = vld [vmem:[%s1006] sm:$0xff]
    %v1008 = vld [vmem:[%s1006 + $0x8] sm:$0xff]
    %v1009 = vld [vmem:[%s1006 + $0x10] sm:$0xff]
    %v1010 = vld [vmem:[%s1006 + $0x18] sm:$0xff]
    %v1011 = vld [vmem:[%s1006 + $0x20] sm:$0xff]
    %v1012 = vld [vmem:[%s1006 + $0x28] sm:$0xff]
    %v1013 = vld [vmem:[%s1006 + $0x30] sm:$0xff]
    %v1014 = vld [vmem:[%s1006 + $0x38] sm:$0xff]
    %v1015 = vld [vmem:[%s1006 + $0x40] sm:$0xff]
    %v1016 = vld [vmem:[%s1006 + $0x48] sm:$0xff]
    %v1017 = vld [vmem:[%s1006 + $0x50] sm:$0xff]
    %v1018 = vld [vmem:[%s1006 + $0x58] sm:$0xff]
    %v1019 = vld [vmem:[%s1006 + $0x60] sm:$0xff]
    %v1020 = vld [vmem:[%s1006 + $0x68] sm:$0xff]
    %v1021 = vld [vmem:[%s1006 + $0x70] sm:$0xff]
    %v1022 = vld [vmem:[%s1006 + $0x78] sm:$0xff]
    %v1023 = vld [vmem:[%s1006 + $0x80] sm:$0xff]
    %v1024 = vld [vmem:[%s1006 + $0x88] sm:$0xff]
    %v1025 = vld [vmem:[%s1006 + $0x90] sm:$0xff]
    %v1026 = vld [vmem:[%s1006 + $0x98] sm:$0xff]
    %v1027 = vld [vmem:[%s1006 + $0xa0] sm:$0xff]
    %v1028 = vld [vmem:[%s1006 + $0xa8] sm:$0xff]
    %v1029 = vld [vmem:[%s1006 + $0xb0] sm:$0xff]
    %v1030 = vld [vmem:[%s1006 + $0xb8] sm:$0xff]
    %v1031 = vld [vmem:[%s1006 + $0xc0] sm:$0xff]
    %v1032 = vld [vmem:[%s1006 + $0xc8] sm:$0xff]
    %v1033 = vld [vmem:[%s1006 + $0xd0] sm:$0xff]
    %v1034 = vld [vmem:[%s1006 + $0xd8] sm:$0xff]
    %v1035 = vld [vmem:[%s1006 + $0xe0] sm:$0xff]
    %v1036 = vld [vmem:[%s1006 + $0xe8] sm:$0xff]
    %v1037 = vld [vmem:[%s1006 + $0xf0] sm:$0xff]
    %v1038 = vld [vmem:[%s1006 + $0xf8] sm:$0xff]
    %v1039 = vld [vmem:[%s1006 + $0x100] sm:$0xff]
    %v1040 = vld [vmem:[%s1006 + $0x108] sm:$0xff]
    %v1041 = vld [vmem:[%s1006 + $0x110] sm:$0xff]
    %v1042 = vld [vmem:[%s1006 + $0x118] sm:$0xff]
    %v1043 = vld [vmem:[%s1006 + $0x120] sm:$0xff]
    %v1044 = vld [vmem:[%s1006 + $0x128] sm:$0xff]
    %v1045 = vld [vmem:[%s1006 + $0x130] sm:$0xff]
    %v1046 = vld [vmem:[%s1006 + $0x138] sm:$0xff]
    %v1047 = vld [vmem:[%s1006 + $0x140] sm:$0xff]
    %v1048 = vld [vmem:[%s1006 + $0x148] sm:$0xff]
    %v1049 = vld [vmem:[%s1006 + $0x150] sm:$0xff]
    %v1050 = vld [vmem:[%s1006 + $0x158] sm:$0xff]
    %v1051 = vld [vmem:[%s1006 + $0x160] sm:$0xff]
    %v1052 = vld [vmem:[%s1006 + $0x168] sm:$0xff]
    %v1053 = vld [vmem:[%s1006 + $0x170] sm:$0xff]
    %v1054 = vld [vmem:[%s1006 + $0x178] sm:$0xff]
    %v1055 = vld [vmem:[%s1006 + $0x180] sm:$0xff]
    %v1056 = vld [vmem:[%s1006 + $0x188] sm:$0xff]
    %v1057 = vld [vmem:[%s1006 + $0x190] sm:$0xff]
    %v1058 = vld [vmem:[%s1006 + $0x198] sm:$0xff]
    %v1059 = vld [vmem:[%s1006 + $0x1a0] sm:$0xff]
    %v1060 = vld [vmem:[%s1006 + $0x1a8] sm:$0xff]
    %v1061 = vld [vmem:[%s1006 + $0x1b0] sm:$0xff]
    %v1062 = vld [vmem:[%s1006 + $0x1b8] sm:$0xff]
    %v1063 = vld [vmem:[%s1006 + $0x1c0] sm:$0xff]
    %v1064 = vld [vmem:[%s1006 + $0x1c8] sm:$0xff]
    %v1065 = vld [vmem:[%s1006 + $0x1d0] sm:$0xff]
    %v1066 = vld [vmem:[%s1006 + $0x1d8] sm:$0xff]
    %v1067 = vld [vmem:[%s1006 + $0x1e0] sm:$0xff]
    %v1068 = vld [vmem:[%s1006 + $0x1e8] sm:$0xff]
    %v1069 = vld [vmem:[%s1006 + $0x1f0] sm:$0xff]
    %v1070 = vld [vmem:[%s1006 + $0x1f8] sm:$0xff]
    %v1071 = vld [vmem:[%s1006 + $0x200] sm:$0xff]
    %v1072 = vld [vmem:[%s1006 + $0x208] sm:$0xff]
    %v1073 = vld [vmem:[%s1006 + $0x210] sm:$0xff]
    %v1074 = vld [vmem:[%s1006 + $0x218] sm:$0xff]
    %v1075 = vld [vmem:[%s1006 + $0x220] sm:$0xff]
    %v1076 = vld [vmem:[%s1006 + $0x228] sm:$0xff]
    %v1077 = vld [vmem:[%s1006 + $0x230] sm:$0xff]
    %v1078 = vld [vmem:[%s1006 + $0x238] sm:$0xff]
    %v1079 = vld [vmem:[%s1006 + $0x240] sm:$0xff]
    %v1080 = vld [vmem:[%s1006 + $0x248] sm:$0xff]
    %v1081 = vld [vmem:[%s1006 + $0x250] sm:$0xff]
    %v1082 = vld [vmem:[%s1006 + $0x258] sm:$0xff]
    %v1083 = vld [vmem:[%s1006 + $0x260] sm:$0xff]
    %v1084 = vld [vmem:[%s1006 + $0x268] sm:$0xff]
    %v1085 = vld [vmem:[%s1006 + $0x270] sm:$0xff]
    %v1086 = vld [vmem:[%s1006 + $0x278] sm:$0xff]
    %v1087 = vld [vmem:[%s1006 + $0x280] sm:$0xff]
    %v1088 = vld [vmem:[%s1006 + $0x288] sm:$0xff]
    %v1089 = vld [vmem:[%s1006 + $0x290] sm:$0xff]
    %v1090 = vld [vmem:[%s1006 + $0x298] sm:$0xff]
    %v1091 = vld [vmem:[%s1006 + $0x2a0] sm:$0xff]
    %v1092 = vld [vmem:[%s1006 + $0x2a8] sm:$0xff]
    %v1093 = vld [vmem:[%s1006 + $0x2b0] sm:$0xff]
    %v1094 = vld [vmem:[%s1006 + $0x2b8] sm:$0xff]
    %v1095 = vld [vmem:[%s1006 + $0x2c0] sm:$0xff]
    %v1096 = vld [vmem:[%s1006 + $0x2c8] sm:$0xff]
    %v1097 = vld [vmem:[%s1006 + $0x2d0] sm:$0xff]
    %v1098 = vld [vmem:[%s1006 + $0x2d8] sm:$0xff]
    %v1099 = vld [vmem:[%s1006 + $0x2e0] sm:$0xff]
    %v1100 = vld [vmem:[%s1006 + $0x2e8] sm:$0xff]
    %v1101 = vld [vmem:[%s1006 + $0x2f0] sm:$0xff]
    %v1102 = vld [vmem:[%s1006 + $0x2f8] sm:$0xff]
    %v1103 = vld [vmem:[%s1006 + $0x300] sm:$0xff]
    %v1104 = vld [vmem:[%s1006 + $0x308] sm:$0xff]
    %v1105 = vld [vmem:[%s1006 + $0x310] sm:$0xff]
    %v1106 = vld [vmem:[%s1006 + $0x318] sm:$0xff]
    %v1107 = vld [vmem:[%s1006 + $0x320] sm:$0xff]
    %v1108 = vld [vmem:[%s1006 + $0x328] sm:$0xff]
    %v1109 = vld [vmem:[%s1006 + $0x330] sm:$0xff]
    %v1110 = vld [vmem:[%s1006 + $0x338] sm:$0xff]
    %v1111 = vld [vmem:[%s1006 + $0x340] sm:$0xff]
    %v1112 = vld [vmem:[%s1006 + $0x348] sm:$0xff]
    %v1113 = vld [vmem:[%s1006 + $0x350] sm:$0xff]
    %v1114 = vld [vmem:[%s1006 + $0x358] sm:$0xff]
    %v1115 = vld [vmem:[%s1006 + $0x360] sm:$0xff]
    %v1116 = vld [vmem:[%s1006 + $0x368] sm:$0xff]
    %v1117 = vld [vmem:[%s1006 + $0x370] sm:$0xff]
    %v1118 = vld [vmem:[%s1006 + $0x378] sm:$0xff]
    %v1119 = vld [vmem:[%s1006 + $0x380] sm:$0xff]
    %v1120 = vld [vmem:[%s1006 + $0x388] sm:$0xff]
    %v1121 = vld [vmem:[%s1006 + $0x390] sm:$0xff]
    %v1122 = vld [vmem:[%s1006 + $0x398] sm:$0xff]
    %v1123 = vld [vmem:[%s1006 + $0x3a0] sm:$0xff]
    %v1124 = vld [vmem:[%s1006 + $0x3a8] sm:$0xff]
    %v1125 = vld [vmem:[%s1006 + $0x3b0] sm:$0xff]
    %v1126 = vld [vmem:[%s1006 + $0x3b8] sm:$0xff]
    %v1127 = vld [vmem:[%s1006 + $0x3c0] sm:$0xff]
    %v1128 = vld [vmem:[%s1006 + $0x3c8] sm:$0xff]
    %v1129 = vld [vmem:[%s1006 + $0x3d0] sm:$0xff]
    %v1130 = vld [vmem:[%s1006 + $0x3d8] sm:$0xff]
    %v1131 = vld [vmem:[%s1006 + $0x3e0] sm:$0xff]
    %v1132 = vld [vmem:[%s1006 + $0x3e8] sm:$0xff]
    %v1133 = vld [vmem:[%s1006 + $0x3f0] sm:$0xff]
    %v1134 = vld [vmem:[%s1006 + $0x3f8] sm:$0xff]
    %v1263 = vunpack.c.l.b16 %v1007
    %v1264 = vunpack.c.h.b16 %v1007
    %v1265 = vunpack.c.l.b16 %v1008
    %v1266 = vunpack.c.h.b16 %v1008
    %v1267 = vunpack.c.l.b16 %v1009
    %v1268 = vunpack.c.h.b16 %v1009
    %v1269 = vunpack.c.l.b16 %v1010
    %v1270 = vunpack.c.h.b16 %v1010
    %v1271 = vunpack.c.l.b16 %v1011
    %v1272 = vunpack.c.h.b16 %v1011
    %v1273 = vunpack.c.l.b16 %v1012
    %v1274 = vunpack.c.h.b16 %v1012
    %v1275 = vunpack.c.l.b16 %v1013
    %v1276 = vunpack.c.h.b16 %v1013
    %v1277 = vunpack.c.l.b16 %v1014
    %v1278 = vunpack.c.h.b16 %v1014
    %v1279 = vunpack.c.l.b16 %v1015
    %v1280 = vunpack.c.h.b16 %v1015
    %v1281 = vunpack.c.l.b16 %v1016
    %v1282 = vunpack.c.h.b16 %v1016
    %v1283 = vunpack.c.l.b16 %v1017
    %v1284 = vunpack.c.h.b16 %v1017
    %v1285 = vunpack.c.l.b16 %v1018
    %v1286 = vunpack.c.h.b16 %v1018
    %v1287 = vunpack.c.l.b16 %v1019
    %v1288 = vunpack.c.h.b16 %v1019
    %v1289 = vunpack.c.l.b16 %v1020
    %v1290 = vunpack.c.h.b16 %v1020
    %v1291 = vunpack.c.l.b16 %v1021
    %v1292 = vunpack.c.h.b16 %v1021
    %v1293 = vunpack.c.l.b16 %v1022
    %v1294 = vunpack.c.h.b16 %v1022
    %v1295 = vunpack.c.l.b16 %v1023
    %v1296 = vunpack.c.h.b16 %v1023
    %v1297 = vunpack.c.l.b16 %v1024
    %v1298 = vunpack.c.h.b16 %v1024
    %v1299 = vunpack.c.l.b16 %v1025
    %v1300 = vunpack.c.h.b16 %v1025
    %v1301 = vunpack.c.l.b16 %v1026
    %v1302 = vunpack.c.h.b16 %v1026
    %v1303 = vunpack.c.l.b16 %v1027
    %v1304 = vunpack.c.h.b16 %v1027
    %v1305 = vunpack.c.l.b16 %v1028
    %v1306 = vunpack.c.h.b16 %v1028
    %v1307 = vunpack.c.l.b16 %v1029
    %v1308 = vunpack.c.h.b16 %v1029
    %v1309 = vunpack.c.l.b16 %v1030
    %v1310 = vunpack.c.h.b16 %v1030
    %v1311 = vunpack.c.l.b16 %v1031
    %v1312 = vunpack.c.h.b16 %v1031
    %v1313 = vunpack.c.l.b16 %v1032
    %v1314 = vunpack.c.h.b16 %v1032
    %v1315 = vunpack.c.l.b16 %v1033
    %v1316 = vunpack.c.h.b16 %v1033
    %v1317 = vunpack.c.l.b16 %v1034
    %v1318 = vunpack.c.h.b16 %v1034
    %v1319 = vunpack.c.l.b16 %v1035
    %v1320 = vunpack.c.h.b16 %v1035
    %v1321 = vunpack.c.l.b16 %v1036
    %v1322 = vunpack.c.h.b16 %v1036
    %v1323 = vunpack.c.l.b16 %v1037
    %v1324 = vunpack.c.h.b16 %v1037
    %v1325 = vunpack.c.l.b16 %v1038
    %v1326 = vunpack.c.h.b16 %v1038
    %v1327 = vunpack.c.l.b16 %v1039
    %v1328 = vunpack.c.h.b16 %v1039
    %v1329 = vunpack.c.l.b16 %v1040
    %v1330 = vunpack.c.h.b16 %v1040
    %v1331 = vunpack.c.l.b16 %v1041
    %v1332 = vunpack.c.h.b16 %v1041
    %v1333 = vunpack.c.l.b16 %v1042
    %v1334 = vunpack.c.h.b16 %v1042
    %v1335 = vunpack.c.l.b16 %v1043
    %v1336 = vunpack.c.h.b16 %v1043
    %v1337 = vunpack.c.l.b16 %v1044
    %v1338 = vunpack.c.h.b16 %v1044
    %v1339 = vunpack.c.l.b16 %v1045
    %v1340 = vunpack.c.h.b16 %v1045
    %v1341 = vunpack.c.l.b16 %v1046
    %v1342 = vunpack.c.h.b16 %v1046
    %v1343 = vunpack.c.l.b16 %v1047
    %v1344 = vunpack.c.h.b16 %v1047
    %v1345 = vunpack.c.l.b16 %v1048
    %v1346 = vunpack.c.h.b16 %v1048
    %v1347 = vunpack.c.l.b16 %v1049
    %v1348 = vunpack.c.h.b16 %v1049
    %v1349 = vunpack.c.l.b16 %v1050
    %v1350 = vunpack.c.h.b16 %v1050
    %v1351 = vunpack.c.l.b16 %v1051
    %v1352 = vunpack.c.h.b16 %v1051
    %v1353 = vunpack.c.l.b16 %v1052
    %v1354 = vunpack.c.h.b16 %v1052
    %v1355 = vunpack.c.l.b16 %v1053
    %v1356 = vunpack.c.h.b16 %v1053
    %v1357 = vunpack.c.l.b16 %v1054
    %v1358 = vunpack.c.h.b16 %v1054
    %v1359 = vunpack.c.l.b16 %v1055
    %v1360 = vunpack.c.h.b16 %v1055
    %v1361 = vunpack.c.l.b16 %v1056
    %v1362 = vunpack.c.h.b16 %v1056
    %v1363 = vunpack.c.l.b16 %v1057
    %v1364 = vunpack.c.h.b16 %v1057
    %v1365 = vunpack.c.l.b16 %v1058
    %v1366 = vunpack.c.h.b16 %v1058
    %v1367 = vunpack.c.l.b16 %v1059
    %v1368 = vunpack.c.h.b16 %v1059
    %v1369 = vunpack.c.l.b16 %v1060
    %v1370 = vunpack.c.h.b16 %v1060
    %v1371 = vunpack.c.l.b16 %v1061
    %v1372 = vunpack.c.h.b16 %v1061
    %v1373 = vunpack.c.l.b16 %v1062
    %v1374 = vunpack.c.h.b16 %v1062
    %v1375 = vunpack.c.l.b16 %v1063
    %v1376 = vunpack.c.h.b16 %v1063
    %v1377 = vunpack.c.l.b16 %v1064
    %v1378 = vunpack.c.h.b16 %v1064
    %v1379 = vunpack.c.l.b16 %v1065
    %v1380 = vunpack.c.h.b16 %v1065
    %v1381 = vunpack.c.l.b16 %v1066
    %v1382 = vunpack.c.h.b16 %v1066
    %v1383 = vunpack.c.l.b16 %v1067
    %v1384 = vunpack.c.h.b16 %v1067
    %v1385 = vunpack.c.l.b16 %v1068
    %v1386 = vunpack.c.h.b16 %v1068
    %v1387 = vunpack.c.l.b16 %v1069
    %v1388 = vunpack.c.h.b16 %v1069
    %v1389 = vunpack.c.l.b16 %v1070
    %v1390 = vunpack.c.h.b16 %v1070
    %v1391 = vunpack.c.l.b16 %v1071
    %v1392 = vunpack.c.h.b16 %v1071
    %v1393 = vunpack.c.l.b16 %v1072
    %v1394 = vunpack.c.h.b16 %v1072
    %v1395 = vunpack.c.l.b16 %v1073
    %v1396 = vunpack.c.h.b16 %v1073
    %v1397 = vunpack.c.l.b16 %v1074
    %v1398 = vunpack.c.h.b16 %v1074
    %v1399 = vunpack.c.l.b16 %v1075
    %v1400 = vunpack.c.h.b16 %v1075
    %v1401 = vunpack.c.l.b16 %v1076
    %v1402 = vunpack.c.h.b16 %v1076
    %v1403 = vunpack.c.l.b16 %v1077
    %v1404 = vunpack.c.h.b16 %v1077
    %v1405 = vunpack.c.l.b16 %v1078
    %v1406 = vunpack.c.h.b16 %v1078
    %v1407 = vunpack.c.l.b16 %v1079
    %v1408 = vunpack.c.h.b16 %v1079
    %v1409 = vunpack.c.l.b16 %v1080
    %v1410 = vunpack.c.h.b16 %v1080
    %v1411 = vunpack.c.l.b16 %v1081
    %v1412 = vunpack.c.h.b16 %v1081
    %v1413 = vunpack.c.l.b16 %v1082
    %v1414 = vunpack.c.h.b16 %v1082
    %v1415 = vunpack.c.l.b16 %v1083
    %v1416 = vunpack.c.h.b16 %v1083
    %v1417 = vunpack.c.l.b16 %v1084
    %v1418 = vunpack.c.h.b16 %v1084
    %v1419 = vunpack.c.l.b16 %v1085
    %v1420 = vunpack.c.h.b16 %v1085
    %v1421 = vunpack.c.l.b16 %v1086
    %v1422 = vunpack.c.h.b16 %v1086
    %v1423 = vunpack.c.l.b16 %v1087
    %v1424 = vunpack.c.h.b16 %v1087
    %v1425 = vunpack.c.l.b16 %v1088
    %v1426 = vunpack.c.h.b16 %v1088
    %v1427 = vunpack.c.l.b16 %v1089
    %v1428 = vunpack.c.h.b16 %v1089
    %v1429 = vunpack.c.l.b16 %v1090
    %v1430 = vunpack.c.h.b16 %v1090
    %v1431 = vunpack.c.l.b16 %v1091
    %v1432 = vunpack.c.h.b16 %v1091
    %v1433 = vunpack.c.l.b16 %v1092
    %v1434 = vunpack.c.h.b16 %v1092
    %v1435 = vunpack.c.l.b16 %v1093
    %v1436 = vunpack.c.h.b16 %v1093
    %v1437 = vunpack.c.l.b16 %v1094
    %v1438 = vunpack.c.h.b16 %v1094
    %v1439 = vunpack.c.l.b16 %v1095
    %v1440 = vunpack.c.h.b16 %v1095
    %v1441 = vunpack.c.l.b16 %v1096
    %v1442 = vunpack.c.h.b16 %v1096
    %v1443 = vunpack.c.l.b16 %v1097
    %v1444 = vunpack.c.h.b16 %v1097
    %v1445 = vunpack.c.l.b16 %v1098
    %v1446 = vunpack.c.h.b16 %v1098
    %v1447 = vunpack.c.l.b16 %v1099
    %v1448 = vunpack.c.h.b16 %v1099
    %v1449 = vunpack.c.l.b16 %v1100
    %v1450 = vunpack.c.h.b16 %v1100
    %v1451 = vunpack.c.l.b16 %v1101
    %v1452 = vunpack.c.h.b16 %v1101
    %v1453 = vunpack.c.l.b16 %v1102
    %v1454 = vunpack.c.h.b16 %v1102
    %v1455 = vunpack.c.l.b16 %v1103
    %v1456 = vunpack.c.h.b16 %v1103
    %v1457 = vunpack.c.l.b16 %v1104
    %v1458 = vunpack.c.h.b16 %v1104
    %v1459 = vunpack.c.l.b16 %v1105
    %v1460 = vunpack.c.h.b16 %v1105
    %v1461 = vunpack.c.l.b16 %v1106
    %v1462 = vunpack.c.h.b16 %v1106
    %v1463 = vunpack.c.l.b16 %v1107
    %v1464 = vunpack.c.h.b16 %v1107
    %v1465 = vunpack.c.l.b16 %v1108
    %v1466 = vunpack.c.h.b16 %v1108
    %v1467 = vunpack.c.l.b16 %v1109
    %v1468 = vunpack.c.h.b16 %v1109
    %v1469 = vunpack.c.l.b16 %v1110
    %v1470 = vunpack.c.h.b16 %v1110
    %v1471 = vunpack.c.l.b16 %v1111
    %v1472 = vunpack.c.h.b16 %v1111
    %v1473 = vunpack.c.l.b16 %v1112
    %v1474 = vunpack.c.h.b16 %v1112
    %v1475 = vunpack.c.l.b16 %v1113
    %v1476 = vunpack.c.h.b16 %v1113
    %v1477 = vunpack.c.l.b16 %v1114
    %v1478 = vunpack.c.h.b16 %v1114
    %v1479 = vunpack.c.l.b16 %v1115
    %v1480 = vunpack.c.h.b16 %v1115
    %v1481 = vunpack.c.l.b16 %v1116
    %v1482 = vunpack.c.h.b16 %v1116
    %v1483 = vunpack.c.l.b16 %v1117
    %v1484 = vunpack.c.h.b16 %v1117
    %v1485 = vunpack.c.l.b16 %v1118
    %v1486 = vunpack.c.h.b16 %v1118
    %v1487 = vunpack.c.l.b16 %v1119
    %v1488 = vunpack.c.h.b16 %v1119
    %v1489 = vunpack.c.l.b16 %v1120
    %v1490 = vunpack.c.h.b16 %v1120
    %v1491 = vunpack.c.l.b16 %v1121
    %v1492 = vunpack.c.h.b16 %v1121
    %v1493 = vunpack.c.l.b16 %v1122
    %v1494 = vunpack.c.h.b16 %v1122
    %v1495 = vunpack.c.l.b16 %v1123
    %v1496 = vunpack.c.h.b16 %v1123
    %v1497 = vunpack.c.l.b16 %v1124
    %v1498 = vunpack.c.h.b16 %v1124
    %v1499 = vunpack.c.l.b16 %v1125
    %v1500 = vunpack.c.h.b16 %v1125
    %v1501 = vunpack.c.l.b16 %v1126
    %v1502 = vunpack.c.h.b16 %v1126
    %v1503 = vunpack.c.l.b16 %v1127
    %v1504 = vunpack.c.h.b16 %v1127
    %v1505 = vunpack.c.l.b16 %v1128
    %v1506 = vunpack.c.h.b16 %v1128
    %v1507 = vunpack.c.l.b16 %v1129
    %v1508 = vunpack.c.h.b16 %v1129
    %v1509 = vunpack.c.l.b16 %v1130
    %v1510 = vunpack.c.h.b16 %v1130
    %v1511 = vunpack.c.l.b16 %v1131
    %v1512 = vunpack.c.h.b16 %v1131
    %v1513 = vunpack.c.l.b16 %v1132
    %v1514 = vunpack.c.h.b16 %v1132
    %v1515 = vunpack.c.l.b16 %v1133
    %v1516 = vunpack.c.h.b16 %v1133
    %v1517 = vunpack.c.l.b16 %v1134
    %v1518 = vunpack.c.h.b16 %v1134
    %v1519 = vpack.c.b16 %v1271, %v1263
    %v1520 = vpack.c.b16 %v1272, %v1264
    %v1521 = vpack.c.b16 %v1273, %v1265
    %v1522 = vpack.c.b16 %v1274, %v1266
    %v1523 = vpack.c.b16 %v1275, %v1267
    %v1524 = vpack.c.b16 %v1276, %v1268
    %v1525 = vpack.c.b16 %v1277, %v1269
    %v1526 = vpack.c.b16 %v1278, %v1270
    %v1527 = vpack.c.b16 %v1287, %v1279
    %v1528 = vpack.c.b16 %v1288, %v1280
    %v1529 = vpack.c.b16 %v1289, %v1281
    %v1530 = vpack.c.b16 %v1290, %v1282
    %v1531 = vpack.c.b16 %v1291, %v1283
    %v1532 = vpack.c.b16 %v1292, %v1284
    %v1533 = vpack.c.b16 %v1293, %v1285
    %v1534 = vpack.c.b16 %v1294, %v1286
    %v1535 = vpack.c.b16 %v1303, %v1295
    %v1536 = vpack.c.b16 %v1304, %v1296
    %v1537 = vpack.c.b16 %v1305, %v1297
    %v1538 = vpack.c.b16 %v1306, %v1298
    %v1539 = vpack.c.b16 %v1307, %v1299
    %v1540 = vpack.c.b16 %v1308, %v1300
    %v1541 = vpack.c.b16 %v1309, %v1301
    %v1542 = vpack.c.b16 %v1310, %v1302
    %v1543 = vpack.c.b16 %v1319, %v1311
    %v1544 = vpack.c.b16 %v1320, %v1312
    %v1545 = vpack.c.b16 %v1321, %v1313
    %v1546 = vpack.c.b16 %v1322, %v1314
    %v1547 = vpack.c.b16 %v1323, %v1315
    %v1548 = vpack.c.b16 %v1324, %v1316
    %v1549 = vpack.c.b16 %v1325, %v1317
    %v1550 = vpack.c.b16 %v1326, %v1318
    %v1551 = vpack.c.b16 %v1335, %v1327
    %v1552 = vpack.c.b16 %v1336, %v1328
    %v1553 = vpack.c.b16 %v1337, %v1329
    %v1554 = vpack.c.b16 %v1338, %v1330
    %v1555 = vpack.c.b16 %v1339, %v1331
    %v1556 = vpack.c.b16 %v1340, %v1332
    %v1557 = vpack.c.b16 %v1341, %v1333
    %v1558 = vpack.c.b16 %v1342, %v1334
    %v1559 = vpack.c.b16 %v1351, %v1343
    %v1560 = vpack.c.b16 %v1352, %v1344
    %v1561 = vpack.c.b16 %v1353, %v1345
    %v1562 = vpack.c.b16 %v1354, %v1346
    %v1563 = vpack.c.b16 %v1355, %v1347
    %v1564 = vpack.c.b16 %v1356, %v1348
    %v1565 = vpack.c.b16 %v1357, %v1349
    %v1566 = vpack.c.b16 %v1358, %v1350
    %v1567 = vpack.c.b16 %v1367, %v1359
    %v1568 = vpack.c.b16 %v1368, %v1360
    %v1569 = vpack.c.b16 %v1369, %v1361
    %v1570 = vpack.c.b16 %v1370, %v1362
    %v1571 = vpack.c.b16 %v1371, %v1363
    %v1572 = vpack.c.b16 %v1372, %v1364
    %v1573 = vpack.c.b16 %v1373, %v1365
    %v1574 = vpack.c.b16 %v1374, %v1366
    %v1575 = vpack.c.b16 %v1383, %v1375
    %v1576 = vpack.c.b16 %v1384, %v1376
    %v1577 = vpack.c.b16 %v1385, %v1377
    %v1578 = vpack.c.b16 %v1386, %v1378
    %v1579 = vpack.c.b16 %v1387, %v1379
    %v1580 = vpack.c.b16 %v1388, %v1380
    %v1581 = vpack.c.b16 %v1389, %v1381
    %v1582 = vpack.c.b16 %v1390, %v1382
    %v1583 = vpack.c.b16 %v1399, %v1391
    %v1584 = vpack.c.b16 %v1400, %v1392
    %v1585 = vpack.c.b16 %v1401, %v1393
    %v1586 = vpack.c.b16 %v1402, %v1394
    %v1587 = vpack.c.b16 %v1403, %v1395
    %v1588 = vpack.c.b16 %v1404, %v1396
    %v1589 = vpack.c.b16 %v1405, %v1397
    %v1590 = vpack.c.b16 %v1406, %v1398
    %v1591 = vpack.c.b16 %v1415, %v1407
    %v1592 = vpack.c.b16 %v1416, %v1408
    %v1593 = vpack.c.b16 %v1417, %v1409
    %v1594 = vpack.c.b16 %v1418, %v1410
    %v1595 = vpack.c.b16 %v1419, %v1411
    %v1596 = vpack.c.b16 %v1420, %v1412
    %v1597 = vpack.c.b16 %v1421, %v1413
    %v1598 = vpack.c.b16 %v1422, %v1414
    %v1599 = vpack.c.b16 %v1431, %v1423
    %v1600 = vpack.c.b16 %v1432, %v1424
    %v1601 = vpack.c.b16 %v1433, %v1425
    %v1602 = vpack.c.b16 %v1434, %v1426
    %v1603 = vpack.c.b16 %v1435, %v1427
    %v1604 = vpack.c.b16 %v1436, %v1428
    %v1605 = vpack.c.b16 %v1437, %v1429
    %v1606 = vpack.c.b16 %v1438, %v1430
    %v1607 = vpack.c.b16 %v1447, %v1439
    %v1608 = vpack.c.b16 %v1448, %v1440
    %v1609 = vpack.c.b16 %v1449, %v1441
    %v1610 = vpack.c.b16 %v1450, %v1442
    %v1611 = vpack.c.b16 %v1451, %v1443
    %v1612 = vpack.c.b16 %v1452, %v1444
    %v1613 = vpack.c.b16 %v1453, %v1445
    %v1614 = vpack.c.b16 %v1454, %v1446
    %v1615 = vpack.c.b16 %v1463, %v1455
    %v1616 = vpack.c.b16 %v1464, %v1456
    %v1617 = vpack.c.b16 %v1465, %v1457
    %v1618 = vpack.c.b16 %v1466, %v1458
    %v1619 = vpack.c.b16 %v1467, %v1459
    %v1620 = vpack.c.b16 %v1468, %v1460
    %v1621 = vpack.c.b16 %v1469, %v1461
    %v1622 = vpack.c.b16 %v1470, %v1462
    %v1623 = vpack.c.b16 %v1479, %v1471
    %v1624 = vpack.c.b16 %v1480, %v1472
    %v1625 = vpack.c.b16 %v1481, %v1473
    %v1626 = vpack.c.b16 %v1482, %v1474
    %v1627 = vpack.c.b16 %v1483, %v1475
    %v1628 = vpack.c.b16 %v1484, %v1476
    %v1629 = vpack.c.b16 %v1485, %v1477
    %v1630 = vpack.c.b16 %v1486, %v1478
    %v1631 = vpack.c.b16 %v1495, %v1487
    %v1632 = vpack.c.b16 %v1496, %v1488
    %v1633 = vpack.c.b16 %v1497, %v1489
    %v1634 = vpack.c.b16 %v1498, %v1490
    %v1635 = vpack.c.b16 %v1499, %v1491
    %v1636 = vpack.c.b16 %v1500, %v1492
    %v1637 = vpack.c.b16 %v1501, %v1493
    %v1638 = vpack.c.b16 %v1502, %v1494
    %v1639 = vpack.c.b16 %v1511, %v1503
    %v1640 = vpack.c.b16 %v1512, %v1504
    %v1641 = vpack.c.b16 %v1513, %v1505
    %v1642 = vpack.c.b16 %v1514, %v1506
    %v1643 = vpack.c.b16 %v1515, %v1507
    %v1644 = vpack.c.b16 %v1516, %v1508
    %v1645 = vpack.c.b16 %v1517, %v1509
    %v1646 = vpack.c.b16 %v1518, %v1510
    %1775 = vmatprep.subr.bf16.mxu0 %v1576
    %1776 = vmatpush1.bf16.msra.mxu0 %v1575
    %1777 = vmatprep.subr.bf16.mxu0 %v1568
    %1778 = vmatpush1.bf16.msra.mxu0 %v1567
    %1779 = vmatprep.subr.bf16.mxu0 %v1560
    %1780 = vmatpush1.bf16.msra.mxu0 %v1559
    %1781 = vmatprep.subr.bf16.mxu0 %v1552
    %1782 = vmatpush1.bf16.msra.mxu0 %v1551
    %1783 = vmatprep.subr.bf16.mxu0 %v1544
    %1784 = vmatpush1.bf16.msra.mxu0 %v1543
    %1785 = vmatprep.subr.bf16.mxu0 %v1536
    %1786 = vmatpush1.bf16.msra.mxu0 %v1535
    %1787 = vmatprep.subr.bf16.mxu0 %v1528
    %1788 = vmatpush1.bf16.msra.mxu0 %v1527
    %1789 = vmatprep.subr.bf16.mxu0 %v1520
    %1790 = vmatpush1.bf16.msra.mxu0 %v1519
    %1791 = vmatprep.subr.bf16.mxu0 %v1640
    %1792 = vmatpush2.bf16.msra.mxu0 %v1639
    %1793 = vmatprep.subr.bf16.mxu0 %v1632
    %1794 = vmatpush2.bf16.msra.mxu0 %v1631
    %1795 = vmatprep.subr.bf16.mxu0 %v1624
    %1796 = vmatpush2.bf16.msra.mxu0 %v1623
    %1797 = vmatprep.subr.bf16.mxu0 %v1616
    %1798 = vmatpush2.bf16.msra.mxu0 %v1615
    %1799 = vmatprep.subr.bf16.mxu0 %v1608
    %1800 = vmatpush2.bf16.msra.mxu0 %v1607
    %1801 = vmatprep.subr.bf16.mxu0 %v1600
    %1802 = vmatpush2.bf16.msra.mxu0 %v1599
    %1803 = vmatprep.subr.bf16.mxu0 %v1592
    %1804 = vmatpush2.bf16.msra.mxu0 %v1591
    %1805 = vmatprep.subr.bf16.mxu0 %v1584
    %1806 = vmatpush2.bf16.msra.mxu0 %v1583
    %1807 = vmatprep.mubr.bf16.mxu0 %v199
    %1808 = vmatmul.mubr.bf16.gmra.mxu0 %v192
    %v1809 = vpop.f32.mrf.mxu0
    %v1810 = vadd.f32 0.0, %v1809
    %v1811 = vpop.f32.mrf.mxu0
    %v1812 = vadd.f32 0.0, %v1811
    %v1813 = vpop.f32.mrf.mxu0
    %v1814 = vpop.f32.mrf.mxu0
    %1815 = vdwg.mxu0
    %1816 = vmatprep.subr.bf16.mxu0 %v1578
    %1817 = vmatpush1.bf16.msra.mxu0 %v1577
    %1818 = vmatprep.subr.bf16.mxu0 %v1570
    %1819 = vmatpush1.bf16.msra.mxu0 %v1569
    %1820 = vmatprep.subr.bf16.mxu0 %v1562
    %1821 = vmatpush1.bf16.msra.mxu0 %v1561
    %1822 = vmatprep.subr.bf16.mxu0 %v1554
    %1823 = vmatpush1.bf16.msra.mxu0 %v1553
    %1824 = vmatprep.subr.bf16.mxu0 %v1546
    %1825 = vmatpush1.bf16.msra.mxu0 %v1545
    %1826 = vmatprep.subr.bf16.mxu0 %v1538
    %1827 = vmatpush1.bf16.msra.mxu0 %v1537
    %1828 = vmatprep.subr.bf16.mxu0 %v1530
    %1829 = vmatpush1.bf16.msra.mxu0 %v1529
    %1830 = vmatprep.subr.bf16.mxu0 %v1522
    %1831 = vmatpush1.bf16.msra.mxu0 %v1521
    %1832 = vmatprep.subr.bf16.mxu0 %v1642
    %1833 = vmatpush2.bf16.msra.mxu0 %v1641
    %1834 = vmatprep.subr.bf16.mxu0 %v1634
    %1835 = vmatpush2.bf16.msra.mxu0 %v1633
    %1836 = vmatprep.subr.bf16.mxu0 %v1626
    %1837 = vmatpush2.bf16.msra.mxu0 %v1625
    %1838 = vmatprep.subr.bf16.mxu0 %v1618
    %1839 = vmatpush2.bf16.msra.mxu0 %v1617
    %1840 = vmatprep.subr.bf16.mxu0 %v1610
    %1841 = vmatpush2.bf16.msra.mxu0 %v1609
    %1842 = vmatprep.subr.bf16.mxu0 %v1602
    %1843 = vmatpush2.bf16.msra.mxu0 %v1601
    %1844 = vmatprep.subr.bf16.mxu0 %v1594
    %1845 = vmatpush2.bf16.msra.mxu0 %v1593
    %1846 = vmatprep.subr.bf16.mxu0 %v1586
    %1847 = vmatpush2.bf16.msra.mxu0 %v1585
    %1848 = vmatprep.mubr.bf16.mxu0 %v199
    %1849 = vmatmul.mubr.bf16.gmra.mxu0 %v192
    %v1850 = vpop.f32.mrf.mxu0
    %v1851 = vadd.f32 0.0, %v1850
    %v1852 = vpop.f32.mrf.mxu0
    %v1853 = vadd.f32 0.0, %v1852
    %v1854 = vpop.f32.mrf.mxu0
    %v1855 = vpop.f32.mrf.mxu0
    %1856 = vdwg.mxu0
    %1857 = vmatprep.subr.bf16.mxu0 %v1580
    %1858 = vmatpush1.bf16.msra.mxu0 %v1579
    %1859 = vmatprep.subr.bf16.mxu0 %v1572
    %1860 = vmatpush1.bf16.msra.mxu0 %v1571
    %1861 = vmatprep.subr.bf16.mxu0 %v1564
    %1862 = vmatpush1.bf16.msra.mxu0 %v1563
    %1863 = vmatprep.subr.bf16.mxu0 %v1556
    %1864 = vmatpush1.bf16.msra.mxu0 %v1555
    %1865 = vmatprep.subr.bf16.mxu0 %v1548
    %1866 = vmatpush1.bf16.msra.mxu0 %v1547
    %1867 = vmatprep.subr.bf16.mxu0 %v1540
    %1868 = vmatpush1.bf16.msra.mxu0 %v1539
    %1869 = vmatprep.subr.bf16.mxu0 %v1532
    %1870 = vmatpush1.bf16.msra.mxu0 %v1531
    %1871 = vmatprep.subr.bf16.mxu0 %v1524
    %1872 = vmatpush1.bf16.msra.mxu0 %v1523
    %1873 = vmatprep.subr.bf16.mxu0 %v1644
    %1874 = vmatpush2.bf16.msra.mxu0 %v1643
    %1875 = vmatprep.subr.bf16.mxu0 %v1636
    %1876 = vmatpush2.bf16.msra.mxu0 %v1635
    %1877 = vmatprep.subr.bf16.mxu0 %v1628
    %1878 = vmatpush2.bf16.msra.mxu0 %v1627
    %1879 = vmatprep.subr.bf16.mxu0 %v1620
    %1880 = vmatpush2.bf16.msra.mxu0 %v1619
    %1881 = vmatprep.subr.bf16.mxu0 %v1612
    %1882 = vmatpush2.bf16.msra.mxu0 %v1611
    %1883 = vmatprep.subr.bf16.mxu0 %v1604
    %1884 = vmatpush2.bf16.msra.mxu0 %v1603
    %1885 = vmatprep.subr.bf16.mxu0 %v1596
    %1886 = vmatpush2.bf16.msra.mxu0 %v1595
    %1887 = vmatprep.subr.bf16.mxu0 %v1588
    %1888 = vmatpush2.bf16.msra.mxu0 %v1587
    %1889 = vmatprep.mubr.bf16.mxu0 %v199
    %1890 = vmatmul.mubr.bf16.gmra.mxu0 %v192
    %v1891 = vpop.f32.mrf.mxu0
    %v1892 = vadd.f32 0.0, %v1891
    %v1893 = vpop.f32.mrf.mxu0
    %v1894 = vadd.f32 0.0, %v1893
    %v1895 = vpop.f32.mrf.mxu0
    %v1896 = vpop.f32.mrf.mxu0
    %1897 = vdwg.mxu0
    %1898 = vmatprep.subr.bf16.mxu0 %v1582
    %1899 = vmatpush1.bf16.msra.mxu0 %v1581
    %1900 = vmatprep.subr.bf16.mxu0 %v1574
    %1901 = vmatpush1.bf16.msra.mxu0 %v1573
    %1902 = vmatprep.subr.bf16.mxu0 %v1566
    %1903 = vmatpush1.bf16.msra.mxu0 %v1565
    %1904 = vmatprep.subr.bf16.mxu0 %v1558
    %1905 = vmatpush1.bf16.msra.mxu0 %v1557
    %1906 = vmatprep.subr.bf16.mxu0 %v1550
    %1907 = vmatpush1.bf16.msra.mxu0 %v1549
    %1908 = vmatprep.subr.bf16.mxu0 %v1542
    %1909 = vmatpush1.bf16.msra.mxu0 %v1541
    %1910 = vmatprep.subr.bf16.mxu0 %v1534
    %1911 = vmatpush1.bf16.msra.mxu0 %v1533
    %1912 = vmatprep.subr.bf16.mxu0 %v1526
    %1913 = vmatpush1.bf16.msra.mxu0 %v1525
    %1914 = vmatprep.subr.bf16.mxu0 %v1646
    %1915 = vmatpush2.bf16.msra.mxu0 %v1645
    %1916 = vmatprep.subr.bf16.mxu0 %v1638
    %1917 = vmatpush2.bf16.msra.mxu0 %v1637
    %1918 = vmatprep.subr.bf16.mxu0 %v1630
    %1919 = vmatpush2.bf16.msra.mxu0 %v1629
    %1920 = vmatprep.subr.bf16.mxu0 %v1622
    %1921 = vmatpush2.bf16.msra.mxu0 %v1621
    %1922 = vmatprep.subr.bf16.mxu0 %v1614
    %1923 = vmatpush2.bf16.msra.mxu0 %v1613
    %1924 = vmatprep.subr.bf16.mxu0 %v1606
    %1925 = vmatpush2.bf16.msra.mxu0 %v1605
    %1926 = vmatprep.subr.bf16.mxu0 %v1598
    %1927 = vmatpush2.bf16.msra.mxu0 %v1597
    %1928 = vmatprep.subr.bf16.mxu0 %v1590
    %1929 = vmatpush2.bf16.msra.mxu0 %v1589
    %1930 = vmatprep.mubr.bf16.mxu0 %v199
    %1931 = vmatmul.mubr.bf16.gmra.mxu0 %v192
    %v1932 = vpop.f32.mrf.mxu0
    %v1933 = vadd.f32 0.0, %v1932
    %v1934 = vpop.f32.mrf.mxu0
    %v1935 = vadd.f32 0.0, %v1934
    %v1936 = vpop.f32.mrf.mxu0
    %v1937 = vpop.f32.mrf.mxu0
    %1938 = vdwg.mxu0
    %v1939 = vmax.f32 %v877, %v1810
    %v1940 = vmax.f32 %v879, %v1812
    %v1941 = vmax.f32 %v918, %v1851
    %v1942 = vmax.f32 %v920, %v1853
    %v1943 = vmax.f32 %v959, %v1892
    %v1944 = vmax.f32 %v961, %v1894
    %v1945 = vmax.f32 %v1000, %v1933
    %v1946 = vmax.f32 %v1002, %v1935
    %s1947 = scalar_lea.vmem %s1, 2048
    %v1948 = vld [vmem:[%s1947] sm:$0xff]
    %v1949 = vld [vmem:[%s1947 + $0x8] sm:$0xff]
    %v1950 = vld [vmem:[%s1947 + $0x10] sm:$0xff]
    %v1951 = vld [vmem:[%s1947 + $0x18] sm:$0xff]
    %v1952 = vld [vmem:[%s1947 + $0x20] sm:$0xff]
    %v1953 = vld [vmem:[%s1947 + $0x28] sm:$0xff]
    %v1954 = vld [vmem:[%s1947 + $0x30] sm:$0xff]
    %v1955 = vld [vmem:[%s1947 + $0x38] sm:$0xff]
    %v1956 = vld [vmem:[%s1947 + $0x40] sm:$0xff]
    %v1957 = vld [vmem:[%s1947 + $0x48] sm:$0xff]
    %v1958 = vld [vmem:[%s1947 + $0x50] sm:$0xff]
    %v1959 = vld [vmem:[%s1947 + $0x58] sm:$0xff]
    %v1960 = vld [vmem:[%s1947 + $0x60] sm:$0xff]
    %v1961 = vld [vmem:[%s1947 + $0x68] sm:$0xff]
    %v1962 = vld [vmem:[%s1947 + $0x70] sm:$0xff]
    %v1963 = vld [vmem:[%s1947 + $0x78] sm:$0xff]
    %v1964 = vld [vmem:[%s1947 + $0x80] sm:$0xff]
    %v1965 = vld [vmem:[%s1947 + $0x88] sm:$0xff]
    %v1966 = vld [vmem:[%s1947 + $0x90] sm:$0xff]
    %v1967 = vld [vmem:[%s1947 + $0x98] sm:$0xff]
    %v1968 = vld [vmem:[%s1947 + $0xa0] sm:$0xff]
    %v1969 = vld [vmem:[%s1947 + $0xa8] sm:$0xff]
    %v1970 = vld [vmem:[%s1947 + $0xb0] sm:$0xff]
    %v1971 = vld [vmem:[%s1947 + $0xb8] sm:$0xff]
    %v1972 = vld [vmem:[%s1947 + $0xc0] sm:$0xff]
    %v1973 = vld [vmem:[%s1947 + $0xc8] sm:$0xff]
    %v1974 = vld [vmem:[%s1947 + $0xd0] sm:$0xff]
    %v1975 = vld [vmem:[%s1947 + $0xd8] sm:$0xff]
    %v1976 = vld [vmem:[%s1947 + $0xe0] sm:$0xff]
    %v1977 = vld [vmem:[%s1947 + $0xe8] sm:$0xff]
    %v1978 = vld [vmem:[%s1947 + $0xf0] sm:$0xff]
    %v1979 = vld [vmem:[%s1947 + $0xf8] sm:$0xff]
    %v1980 = vld [vmem:[%s1947 + $0x100] sm:$0xff]
    %v1981 = vld [vmem:[%s1947 + $0x108] sm:$0xff]
    %v1982 = vld [vmem:[%s1947 + $0x110] sm:$0xff]
    %v1983 = vld [vmem:[%s1947 + $0x118] sm:$0xff]
    %v1984 = vld [vmem:[%s1947 + $0x120] sm:$0xff]
    %v1985 = vld [vmem:[%s1947 + $0x128] sm:$0xff]
    %v1986 = vld [vmem:[%s1947 + $0x130] sm:$0xff]
    %v1987 = vld [vmem:[%s1947 + $0x138] sm:$0xff]
    %v1988 = vld [vmem:[%s1947 + $0x140] sm:$0xff]
    %v1989 = vld [vmem:[%s1947 + $0x148] sm:$0xff]
    %v1990 = vld [vmem:[%s1947 + $0x150] sm:$0xff]
    %v1991 = vld [vmem:[%s1947 + $0x158] sm:$0xff]
    %v1992 = vld [vmem:[%s1947 + $0x160] sm:$0xff]
    %v1993 = vld [vmem:[%s1947 + $0x168] sm:$0xff]
    %v1994 = vld [vmem:[%s1947 + $0x170] sm:$0xff]
    %v1995 = vld [vmem:[%s1947 + $0x178] sm:$0xff]
    %v1996 = vld [vmem:[%s1947 + $0x180] sm:$0xff]
    %v1997 = vld [vmem:[%s1947 + $0x188] sm:$0xff]
    %v1998 = vld [vmem:[%s1947 + $0x190] sm:$0xff]
    %v1999 = vld [vmem:[%s1947 + $0x198] sm:$0xff]
    %v2000 = vld [vmem:[%s1947 + $0x1a0] sm:$0xff]
    %v2001 = vld [vmem:[%s1947 + $0x1a8] sm:$0xff]
    %v2002 = vld [vmem:[%s1947 + $0x1b0] sm:$0xff]
    %v2003 = vld [vmem:[%s1947 + $0x1b8] sm:$0xff]
    %v2004 = vld [vmem:[%s1947 + $0x1c0] sm:$0xff]
    %v2005 = vld [vmem:[%s1947 + $0x1c8] sm:$0xff]
    %v2006 = vld [vmem:[%s1947 + $0x1d0] sm:$0xff]
    %v2007 = vld [vmem:[%s1947 + $0x1d8] sm:$0xff]
    %v2008 = vld [vmem:[%s1947 + $0x1e0] sm:$0xff]
    %v2009 = vld [vmem:[%s1947 + $0x1e8] sm:$0xff]
    %v2010 = vld [vmem:[%s1947 + $0x1f0] sm:$0xff]
    %v2011 = vld [vmem:[%s1947 + $0x1f8] sm:$0xff]
    %v2012 = vld [vmem:[%s1947 + $0x200] sm:$0xff]
    %v2013 = vld [vmem:[%s1947 + $0x208] sm:$0xff]
    %v2014 = vld [vmem:[%s1947 + $0x210] sm:$0xff]
    %v2015 = vld [vmem:[%s1947 + $0x218] sm:$0xff]
    %v2016 = vld [vmem:[%s1947 + $0x220] sm:$0xff]
    %v2017 = vld [vmem:[%s1947 + $0x228] sm:$0xff]
    %v2018 = vld [vmem:[%s1947 + $0x230] sm:$0xff]
    %v2019 = vld [vmem:[%s1947 + $0x238] sm:$0xff]
    %v2020 = vld [vmem:[%s1947 + $0x240] sm:$0xff]
    %v2021 = vld [vmem:[%s1947 + $0x248] sm:$0xff]
    %v2022 = vld [vmem:[%s1947 + $0x250] sm:$0xff]
    %v2023 = vld [vmem:[%s1947 + $0x258] sm:$0xff]
    %v2024 = vld [vmem:[%s1947 + $0x260] sm:$0xff]
    %v2025 = vld [vmem:[%s1947 + $0x268] sm:$0xff]
    %v2026 = vld [vmem:[%s1947 + $0x270] sm:$0xff]
    %v2027 = vld [vmem:[%s1947 + $0x278] sm:$0xff]
    %v2028 = vld [vmem:[%s1947 + $0x280] sm:$0xff]
    %v2029 = vld [vmem:[%s1947 + $0x288] sm:$0xff]
    %v2030 = vld [vmem:[%s1947 + $0x290] sm:$0xff]
    %v2031 = vld [vmem:[%s1947 + $0x298] sm:$0xff]
    %v2032 = vld [vmem:[%s1947 + $0x2a0] sm:$0xff]
    %v2033 = vld [vmem:[%s1947 + $0x2a8] sm:$0xff]
    %v2034 = vld [vmem:[%s1947 + $0x2b0] sm:$0xff]
    %v2035 = vld [vmem:[%s1947 + $0x2b8] sm:$0xff]
    %v2036 = vld [vmem:[%s1947 + $0x2c0] sm:$0xff]
    %v2037 = vld [vmem:[%s1947 + $0x2c8] sm:$0xff]
    %v2038 = vld [vmem:[%s1947 + $0x2d0] sm:$0xff]
    %v2039 = vld [vmem:[%s1947 + $0x2d8] sm:$0xff]
    %v2040 = vld [vmem:[%s1947 + $0x2e0] sm:$0xff]
    %v2041 = vld [vmem:[%s1947 + $0x2e8] sm:$0xff]
    %v2042 = vld [vmem:[%s1947 + $0x2f0] sm:$0xff]
    %v2043 = vld [vmem:[%s1947 + $0x2f8] sm:$0xff]
    %v2044 = vld [vmem:[%s1947 + $0x300] sm:$0xff]
    %v2045 = vld [vmem:[%s1947 + $0x308] sm:$0xff]
    %v2046 = vld [vmem:[%s1947 + $0x310] sm:$0xff]
    %v2047 = vld [vmem:[%s1947 + $0x318] sm:$0xff]
    %v2048 = vld [vmem:[%s1947 + $0x320] sm:$0xff]
    %v2049 = vld [vmem:[%s1947 + $0x328] sm:$0xff]
    %v2050 = vld [vmem:[%s1947 + $0x330] sm:$0xff]
    %v2051 = vld [vmem:[%s1947 + $0x338] sm:$0xff]
    %v2052 = vld [vmem:[%s1947 + $0x340] sm:$0xff]
    %v2053 = vld [vmem:[%s1947 + $0x348] sm:$0xff]
    %v2054 = vld [vmem:[%s1947 + $0x350] sm:$0xff]
    %v2055 = vld [vmem:[%s1947 + $0x358] sm:$0xff]
    %v2056 = vld [vmem:[%s1947 + $0x360] sm:$0xff]
    %v2057 = vld [vmem:[%s1947 + $0x368] sm:$0xff]
    %v2058 = vld [vmem:[%s1947 + $0x370] sm:$0xff]
    %v2059 = vld [vmem:[%s1947 + $0x378] sm:$0xff]
    %v2060 = vld [vmem:[%s1947 + $0x380] sm:$0xff]
    %v2061 = vld [vmem:[%s1947 + $0x388] sm:$0xff]
    %v2062 = vld [vmem:[%s1947 + $0x390] sm:$0xff]
    %v2063 = vld [vmem:[%s1947 + $0x398] sm:$0xff]
    %v2064 = vld [vmem:[%s1947 + $0x3a0] sm:$0xff]
    %v2065 = vld [vmem:[%s1947 + $0x3a8] sm:$0xff]
    %v2066 = vld [vmem:[%s1947 + $0x3b0] sm:$0xff]
    %v2067 = vld [vmem:[%s1947 + $0x3b8] sm:$0xff]
    %v2068 = vld [vmem:[%s1947 + $0x3c0] sm:$0xff]
    %v2069 = vld [vmem:[%s1947 + $0x3c8] sm:$0xff]
    %v2070 = vld [vmem:[%s1947 + $0x3d0] sm:$0xff]
    %v2071 = vld [vmem:[%s1947 + $0x3d8] sm:$0xff]
    %v2072 = vld [vmem:[%s1947 + $0x3e0] sm:$0xff]
    %v2073 = vld [vmem:[%s1947 + $0x3e8] sm:$0xff]
    %v2074 = vld [vmem:[%s1947 + $0x3f0] sm:$0xff]
    %v2075 = vld [vmem:[%s1947 + $0x3f8] sm:$0xff]
    %v2204 = vunpack.c.l.b16 %v1948
    %v2205 = vunpack.c.h.b16 %v1948
    %v2206 = vunpack.c.l.b16 %v1949
    %v2207 = vunpack.c.h.b16 %v1949
    %v2208 = vunpack.c.l.b16 %v1950
    %v2209 = vunpack.c.h.b16 %v1950
    %v2210 = vunpack.c.l.b16 %v1951
    %v2211 = vunpack.c.h.b16 %v1951
    %v2212 = vunpack.c.l.b16 %v1952
    %v2213 = vunpack.c.h.b16 %v1952
    %v2214 = vunpack.c.l.b16 %v1953
    %v2215 = vunpack.c.h.b16 %v1953
    %v2216 = vunpack.c.l.b16 %v1954
    %v2217 = vunpack.c.h.b16 %v1954
    %v2218 = vunpack.c.l.b16 %v1955
    %v2219 = vunpack.c.h.b16 %v1955
    %v2220 = vunpack.c.l.b16 %v1956
    %v2221 = vunpack.c.h.b16 %v1956
    %v2222 = vunpack.c.l.b16 %v1957
    %v2223 = vunpack.c.h.b16 %v1957
    %v2224 = vunpack.c.l.b16 %v1958
    %v2225 = vunpack.c.h.b16 %v1958
    %v2226 = vunpack.c.l.b16 %v1959
    %v2227 = vunpack.c.h.b16 %v1959
    %v2228 = vunpack.c.l.b16 %v1960
    %v2229 = vunpack.c.h.b16 %v1960
    %v2230 = vunpack.c.l.b16 %v1961
    %v2231 = vunpack.c.h.b16 %v1961
    %v2232 = vunpack.c.l.b16 %v1962
    %v2233 = vunpack.c.h.b16 %v1962
    %v2234 = vunpack.c.l.b16 %v1963
    %v2235 = vunpack.c.h.b16 %v1963
    %v2236 = vunpack.c.l.b16 %v1964
    %v2237 = vunpack.c.h.b16 %v1964
    %v2238 = vunpack.c.l.b16 %v1965
    %v2239 = vunpack.c.h.b16 %v1965
    %v2240 = vunpack.c.l.b16 %v1966
    %v2241 = vunpack.c.h.b16 %v1966
    %v2242 = vunpack.c.l.b16 %v1967
    %v2243 = vunpack.c.h.b16 %v1967
    %v2244 = vunpack.c.l.b16 %v1968
    %v2245 = vunpack.c.h.b16 %v1968
    %v2246 = vunpack.c.l.b16 %v1969
    %v2247 = vunpack.c.h.b16 %v1969
    %v2248 = vunpack.c.l.b16 %v1970
    %v2249 = vunpack.c.h.b16 %v1970
    %v2250 = vunpack.c.l.b16 %v1971
    %v2251 = vunpack.c.h.b16 %v1971
    %v2252 = vunpack.c.l.b16 %v1972
    %v2253 = vunpack.c.h.b16 %v1972
    %v2254 = vunpack.c.l.b16 %v1973
    %v2255 = vunpack.c.h.b16 %v1973
    %v2256 = vunpack.c.l.b16 %v1974
    %v2257 = vunpack.c.h.b16 %v1974
    %v2258 = vunpack.c.l.b16 %v1975
    %v2259 = vunpack.c.h.b16 %v1975
    %v2260 = vunpack.c.l.b16 %v1976
    %v2261 = vunpack.c.h.b16 %v1976
    %v2262 = vunpack.c.l.b16 %v1977
    %v2263 = vunpack.c.h.b16 %v1977
    %v2264 = vunpack.c.l.b16 %v1978
    %v2265 = vunpack.c.h.b16 %v1978
    %v2266 = vunpack.c.l.b16 %v1979
    %v2267 = vunpack.c.h.b16 %v1979
    %v2268 = vunpack.c.l.b16 %v1980
    %v2269 = vunpack.c.h.b16 %v1980
    %v2270 = vunpack.c.l.b16 %v1981
    %v2271 = vunpack.c.h.b16 %v1981
    %v2272 = vunpack.c.l.b16 %v1982
    %v2273 = vunpack.c.h.b16 %v1982
    %v2274 = vunpack.c.l.b16 %v1983
    %v2275 = vunpack.c.h.b16 %v1983
    %v2276 = vunpack.c.l.b16 %v1984
    %v2277 = vunpack.c.h.b16 %v1984
    %v2278 = vunpack.c.l.b16 %v1985
    %v2279 = vunpack.c.h.b16 %v1985
    %v2280 = vunpack.c.l.b16 %v1986
    %v2281 = vunpack.c.h.b16 %v1986
    %v2282 = vunpack.c.l.b16 %v1987
    %v2283 = vunpack.c.h.b16 %v1987
    %v2284 = vunpack.c.l.b16 %v1988
    %v2285 = vunpack.c.h.b16 %v1988
    %v2286 = vunpack.c.l.b16 %v1989
    %v2287 = vunpack.c.h.b16 %v1989
    %v2288 = vunpack.c.l.b16 %v1990
    %v2289 = vunpack.c.h.b16 %v1990
    %v2290 = vunpack.c.l.b16 %v1991
    %v2291 = vunpack.c.h.b16 %v1991
    %v2292 = vunpack.c.l.b16 %v1992
    %v2293 = vunpack.c.h.b16 %v1992
    %v2294 = vunpack.c.l.b16 %v1993
    %v2295 = vunpack.c.h.b16 %v1993
    %v2296 = vunpack.c.l.b16 %v1994
    %v2297 = vunpack.c.h.b16 %v1994
    %v2298 = vunpack.c.l.b16 %v1995
    %v2299 = vunpack.c.h.b16 %v1995
    %v2300 = vunpack.c.l.b16 %v1996
    %v2301 = vunpack.c.h.b16 %v1996
    %v2302 = vunpack.c.l.b16 %v1997
    %v2303 = vunpack.c.h.b16 %v1997
    %v2304 = vunpack.c.l.b16 %v1998
    %v2305 = vunpack.c.h.b16 %v1998
    %v2306 = vunpack.c.l.b16 %v1999
    %v2307 = vunpack.c.h.b16 %v1999
    %v2308 = vunpack.c.l.b16 %v2000
    %v2309 = vunpack.c.h.b16 %v2000
    %v2310 = vunpack.c.l.b16 %v2001
    %v2311 = vunpack.c.h.b16 %v2001
    %v2312 = vunpack.c.l.b16 %v2002
    %v2313 = vunpack.c.h.b16 %v2002
    %v2314 = vunpack.c.l.b16 %v2003
    %v2315 = vunpack.c.h.b16 %v2003
    %v2316 = vunpack.c.l.b16 %v2004
    %v2317 = vunpack.c.h.b16 %v2004
    %v2318 = vunpack.c.l.b16 %v2005
    %v2319 = vunpack.c.h.b16 %v2005
    %v2320 = vunpack.c.l.b16 %v2006
    %v2321 = vunpack.c.h.b16 %v2006
    %v2322 = vunpack.c.l.b16 %v2007
    %v2323 = vunpack.c.h.b16 %v2007
    %v2324 = vunpack.c.l.b16 %v2008
    %v2325 = vunpack.c.h.b16 %v2008
    %v2326 = vunpack.c.l.b16 %v2009
    %v2327 = vunpack.c.h.b16 %v2009
    %v2328 = vunpack.c.l.b16 %v2010
    %v2329 = vunpack.c.h.b16 %v2010
    %v2330 = vunpack.c.l.b16 %v2011
    %v2331 = vunpack.c.h.b16 %v2011
    %v2332 = vunpack.c.l.b16 %v2012
    %v2333 = vunpack.c.h.b16 %v2012
    %v2334 = vunpack.c.l.b16 %v2013
    %v2335 = vunpack.c.h.b16 %v2013
    %v2336 = vunpack.c.l.b16 %v2014
    %v2337 = vunpack.c.h.b16 %v2014
    %v2338 = vunpack.c.l.b16 %v2015
    %v2339 = vunpack.c.h.b16 %v2015
    %v2340 = vunpack.c.l.b16 %v2016
    %v2341 = vunpack.c.h.b16 %v2016
    %v2342 = vunpack.c.l.b16 %v2017
    %v2343 = vunpack.c.h.b16 %v2017
    %v2344 = vunpack.c.l.b16 %v2018
    %v2345 = vunpack.c.h.b16 %v2018
    %v2346 = vunpack.c.l.b16 %v2019
    %v2347 = vunpack.c.h.b16 %v2019
    %v2348 = vunpack.c.l.b16 %v2020
    %v2349 = vunpack.c.h.b16 %v2020
    %v2350 = vunpack.c.l.b16 %v2021
    %v2351 = vunpack.c.h.b16 %v2021
    %v2352 = vunpack.c.l.b16 %v2022
    %v2353 = vunpack.c.h.b16 %v2022
    %v2354 = vunpack.c.l.b16 %v2023
    %v2355 = vunpack.c.h.b16 %v2023
    %v2356 = vunpack.c.l.b16 %v2024
    %v2357 = vunpack.c.h.b16 %v2024
    %v2358 = vunpack.c.l.b16 %v2025
    %v2359 = vunpack.c.h.b16 %v2025
    %v2360 = vunpack.c.l.b16 %v2026
    %v2361 = vunpack.c.h.b16 %v2026
    %v2362 = vunpack.c.l.b16 %v2027
    %v2363 = vunpack.c.h.b16 %v2027
    %v2364 = vunpack.c.l.b16 %v2028
    %v2365 = vunpack.c.h.b16 %v2028
    %v2366 = vunpack.c.l.b16 %v2029
    %v2367 = vunpack.c.h.b16 %v2029
    %v2368 = vunpack.c.l.b16 %v2030
    %v2369 = vunpack.c.h.b16 %v2030
    %v2370 = vunpack.c.l.b16 %v2031
    %v2371 = vunpack.c.h.b16 %v2031
    %v2372 = vunpack.c.l.b16 %v2032
    %v2373 = vunpack.c.h.b16 %v2032
    %v2374 = vunpack.c.l.b16 %v2033
    %v2375 = vunpack.c.h.b16 %v2033
    %v2376 = vunpack.c.l.b16 %v2034
    %v2377 = vunpack.c.h.b16 %v2034
    %v2378 = vunpack.c.l.b16 %v2035
    %v2379 = vunpack.c.h.b16 %v2035
    %v2380 = vunpack.c.l.b16 %v2036
    %v2381 = vunpack.c.h.b16 %v2036
    %v2382 = vunpack.c.l.b16 %v2037
    %v2383 = vunpack.c.h.b16 %v2037
    %v2384 = vunpack.c.l.b16 %v2038
    %v2385 = vunpack.c.h.b16 %v2038
    %v2386 = vunpack.c.l.b16 %v2039
    %v2387 = vunpack.c.h.b16 %v2039
    %v2388 = vunpack.c.l.b16 %v2040
    %v2389 = vunpack.c.h.b16 %v2040
    %v2390 = vunpack.c.l.b16 %v2041
    %v2391 = vunpack.c.h.b16 %v2041
    %v2392 = vunpack.c.l.b16 %v2042
    %v2393 = vunpack.c.h.b16 %v2042
    %v2394 = vunpack.c.l.b16 %v2043
    %v2395 = vunpack.c.h.b16 %v2043
    %v2396 = vunpack.c.l.b16 %v2044
    %v2397 = vunpack.c.h.b16 %v2044
    %v2398 = vunpack.c.l.b16 %v2045
    %v2399 = vunpack.c.h.b16 %v2045
    %v2400 = vunpack.c.l.b16 %v2046
    %v2401 = vunpack.c.h.b16 %v2046
    %v2402 = vunpack.c.l.b16 %v2047
    %v2403 = vunpack.c.h.b16 %v2047
    %v2404 = vunpack.c.l.b16 %v2048
    %v2405 = vunpack.c.h.b16 %v2048
    %v2406 = vunpack.c.l.b16 %v2049
    %v2407 = vunpack.c.h.b16 %v2049
    %v2408 = vunpack.c.l.b16 %v2050
    %v2409 = vunpack.c.h.b16 %v2050
    %v2410 = vunpack.c.l.b16 %v2051
    %v2411 = vunpack.c.h.b16 %v2051
    %v2412 = vunpack.c.l.b16 %v2052
    %v2413 = vunpack.c.h.b16 %v2052
    %v2414 = vunpack.c.l.b16 %v2053
    %v2415 = vunpack.c.h.b16 %v2053
    %v2416 = vunpack.c.l.b16 %v2054
    %v2417 = vunpack.c.h.b16 %v2054
    %v2418 = vunpack.c.l.b16 %v2055
    %v2419 = vunpack.c.h.b16 %v2055
    %v2420 = vunpack.c.l.b16 %v2056
    %v2421 = vunpack.c.h.b16 %v2056
    %v2422 = vunpack.c.l.b16 %v2057
    %v2423 = vunpack.c.h.b16 %v2057
    %v2424 = vunpack.c.l.b16 %v2058
    %v2425 = vunpack.c.h.b16 %v2058
    %v2426 = vunpack.c.l.b16 %v2059
    %v2427 = vunpack.c.h.b16 %v2059
    %v2428 = vunpack.c.l.b16 %v2060
    %v2429 = vunpack.c.h.b16 %v2060
    %v2430 = vunpack.c.l.b16 %v2061
    %v2431 = vunpack.c.h.b16 %v2061
    %v2432 = vunpack.c.l.b16 %v2062
    %v2433 = vunpack.c.h.b16 %v2062
    %v2434 = vunpack.c.l.b16 %v2063
    %v2435 = vunpack.c.h.b16 %v2063
    %v2436 = vunpack.c.l.b16 %v2064
    %v2437 = vunpack.c.h.b16 %v2064
    %v2438 = vunpack.c.l.b16 %v2065
    %v2439 = vunpack.c.h.b16 %v2065
    %v2440 = vunpack.c.l.b16 %v2066
    %v2441 = vunpack.c.h.b16 %v2066
    %v2442 = vunpack.c.l.b16 %v2067
    %v2443 = vunpack.c.h.b16 %v2067
    %v2444 = vunpack.c.l.b16 %v2068
    %v2445 = vunpack.c.h.b16 %v2068
    %v2446 = vunpack.c.l.b16 %v2069
    %v2447 = vunpack.c.h.b16 %v2069
    %v2448 = vunpack.c.l.b16 %v2070
    %v2449 = vunpack.c.h.b16 %v2070
    %v2450 = vunpack.c.l.b16 %v2071
    %v2451 = vunpack.c.h.b16 %v2071
    %v2452 = vunpack.c.l.b16 %v2072
    %v2453 = vunpack.c.h.b16 %v2072
    %v2454 = vunpack.c.l.b16 %v2073
    %v2455 = vunpack.c.h.b16 %v2073
    %v2456 = vunpack.c.l.b16 %v2074
    %v2457 = vunpack.c.h.b16 %v2074
    %v2458 = vunpack.c.l.b16 %v2075
    %v2459 = vunpack.c.h.b16 %v2075
    %v2460 = vpack.c.b16 %v2212, %v2204
    %v2461 = vpack.c.b16 %v2213, %v2205
    %v2462 = vpack.c.b16 %v2214, %v2206
    %v2463 = vpack.c.b16 %v2215, %v2207
    %v2464 = vpack.c.b16 %v2216, %v2208
    %v2465 = vpack.c.b16 %v2217, %v2209
    %v2466 = vpack.c.b16 %v2218, %v2210
    %v2467 = vpack.c.b16 %v2219, %v2211
    %v2468 = vpack.c.b16 %v2228, %v2220
    %v2469 = vpack.c.b16 %v2229, %v2221
    %v2470 = vpack.c.b16 %v2230, %v2222
    %v2471 = vpack.c.b16 %v2231, %v2223
    %v2472 = vpack.c.b16 %v2232, %v2224
    %v2473 = vpack.c.b16 %v2233, %v2225
    %v2474 = vpack.c.b16 %v2234, %v2226
    %v2475 = vpack.c.b16 %v2235, %v2227
    %v2476 = vpack.c.b16 %v2244, %v2236
    %v2477 = vpack.c.b16 %v2245, %v2237
    %v2478 = vpack.c.b16 %v2246, %v2238
    %v2479 = vpack.c.b16 %v2247, %v2239
    %v2480 = vpack.c.b16 %v2248, %v2240
    %v2481 = vpack.c.b16 %v2249, %v2241
    %v2482 = vpack.c.b16 %v2250, %v2242
    %v2483 = vpack.c.b16 %v2251, %v2243
    %v2484 = vpack.c.b16 %v2260, %v2252
    %v2485 = vpack.c.b16 %v2261, %v2253
    %v2486 = vpack.c.b16 %v2262, %v2254
    %v2487 = vpack.c.b16 %v2263, %v2255
    %v2488 = vpack.c.b16 %v2264, %v2256
    %v2489 = vpack.c.b16 %v2265, %v2257
    %v2490 = vpack.c.b16 %v2266, %v2258
    %v2491 = vpack.c.b16 %v2267, %v2259
    %v2492 = vpack.c.b16 %v2276, %v2268
    %v2493 = vpack.c.b16 %v2277, %v2269
    %v2494 = vpack.c.b16 %v2278, %v2270
    %v2495 = vpack.c.b16 %v2279, %v2271
    %v2496 = vpack.c.b16 %v2280, %v2272
    %v2497 = vpack.c.b16 %v2281, %v2273
    %v2498 = vpack.c.b16 %v2282, %v2274
    %v2499 = vpack.c.b16 %v2283, %v2275
    %v2500 = vpack.c.b16 %v2292, %v2284
    %v2501 = vpack.c.b16 %v2293, %v2285
    %v2502 = vpack.c.b16 %v2294, %v2286
    %v2503 = vpack.c.b16 %v2295, %v2287
    %v2504 = vpack.c.b16 %v2296, %v2288
    %v2505 = vpack.c.b16 %v2297, %v2289
    %v2506 = vpack.c.b16 %v2298, %v2290
    %v2507 = vpack.c.b16 %v2299, %v2291
    %v2508 = vpack.c.b16 %v2308, %v2300
    %v2509 = vpack.c.b16 %v2309, %v2301
    %v2510 = vpack.c.b16 %v2310, %v2302
    %v2511 = vpack.c.b16 %v2311, %v2303
    %v2512 = vpack.c.b16 %v2312, %v2304
    %v2513 = vpack.c.b16 %v2313, %v2305
    %v2514 = vpack.c.b16 %v2314, %v2306
    %v2515 = vpack.c.b16 %v2315, %v2307
    %v2516 = vpack.c.b16 %v2324, %v2316
    %v2517 = vpack.c.b16 %v2325, %v2317
    %v2518 = vpack.c.b16 %v2326, %v2318
    %v2519 = vpack.c.b16 %v2327, %v2319
    %v2520 = vpack.c.b16 %v2328, %v2320
    %v2521 = vpack.c.b16 %v2329, %v2321
    %v2522 = vpack.c.b16 %v2330, %v2322
    %v2523 = vpack.c.b16 %v2331, %v2323
    %v2524 = vpack.c.b16 %v2340, %v2332
    %v2525 = vpack.c.b16 %v2341, %v2333
    %v2526 = vpack.c.b16 %v2342, %v2334
    %v2527 = vpack.c.b16 %v2343, %v2335
    %v2528 = vpack.c.b16 %v2344, %v2336
    %v2529 = vpack.c.b16 %v2345, %v2337
    %v2530 = vpack.c.b16 %v2346, %v2338
    %v2531 = vpack.c.b16 %v2347, %v2339
    %v2532 = vpack.c.b16 %v2356, %v2348
    %v2533 = vpack.c.b16 %v2357, %v2349
    %v2534 = vpack.c.b16 %v2358, %v2350
    %v2535 = vpack.c.b16 %v2359, %v2351
    %v2536 = vpack.c.b16 %v2360, %v2352
    %v2537 = vpack.c.b16 %v2361, %v2353
    %v2538 = vpack.c.b16 %v2362, %v2354
    %v2539 = vpack.c.b16 %v2363, %v2355
    %v2540 = vpack.c.b16 %v2372, %v2364
    %v2541 = vpack.c.b16 %v2373, %v2365
    %v2542 = vpack.c.b16 %v2374, %v2366
    %v2543 = vpack.c.b16 %v2375, %v2367
    %v2544 = vpack.c.b16 %v2376, %v2368
    %v2545 = vpack.c.b16 %v2377, %v2369
    %v2546 = vpack.c.b16 %v2378, %v2370
    %v2547 = vpack.c.b16 %v2379, %v2371
    %v2548 = vpack.c.b16 %v2388, %v2380
    %v2549 = vpack.c.b16 %v2389, %v2381
    %v2550 = vpack.c.b16 %v2390, %v2382
    %v2551 = vpack.c.b16 %v2391, %v2383
    %v2552 = vpack.c.b16 %v2392, %v2384
    %v2553 = vpack.c.b16 %v2393, %v2385
    %v2554 = vpack.c.b16 %v2394, %v2386
    %v2555 = vpack.c.b16 %v2395, %v2387
    %v2556 = vpack.c.b16 %v2404, %v2396
    %v2557 = vpack.c.b16 %v2405, %v2397
    %v2558 = vpack.c.b16 %v2406, %v2398
    %v2559 = vpack.c.b16 %v2407, %v2399
    %v2560 = vpack.c.b16 %v2408, %v2400
    %v2561 = vpack.c.b16 %v2409, %v2401
    %v2562 = vpack.c.b16 %v2410, %v2402
    %v2563 = vpack.c.b16 %v2411, %v2403
    %v2564 = vpack.c.b16 %v2420, %v2412
    %v2565 = vpack.c.b16 %v2421, %v2413
    %v2566 = vpack.c.b16 %v2422, %v2414
    %v2567 = vpack.c.b16 %v2423, %v2415
    %v2568 = vpack.c.b16 %v2424, %v2416
    %v2569 = vpack.c.b16 %v2425, %v2417
    %v2570 = vpack.c.b16 %v2426, %v2418
    %v2571 = vpack.c.b16 %v2427, %v2419
    %v2572 = vpack.c.b16 %v2436, %v2428
    %v2573 = vpack.c.b16 %v2437, %v2429
    %v2574 = vpack.c.b16 %v2438, %v2430
    %v2575 = vpack.c.b16 %v2439, %v2431
    %v2576 = vpack.c.b16 %v2440, %v2432
    %v2577 = vpack.c.b16 %v2441, %v2433
    %v2578 = vpack.c.b16 %v2442, %v2434
    %v2579 = vpack.c.b16 %v2443, %v2435
    %v2580 = vpack.c.b16 %v2452, %v2444
    %v2581 = vpack.c.b16 %v2453, %v2445
    %v2582 = vpack.c.b16 %v2454, %v2446
    %v2583 = vpack.c.b16 %v2455, %v2447
    %v2584 = vpack.c.b16 %v2456, %v2448
    %v2585 = vpack.c.b16 %v2457, %v2449
    %v2586 = vpack.c.b16 %v2458, %v2450
    %v2587 = vpack.c.b16 %v2459, %v2451
    %2716 = vmatprep.subr.bf16.mxu0 %v2517
    %2717 = vmatpush1.bf16.msra.mxu0 %v2516
    %2718 = vmatprep.subr.bf16.mxu0 %v2509
    %2719 = vmatpush1.bf16.msra.mxu0 %v2508
    %2720 = vmatprep.subr.bf16.mxu0 %v2501
    %2721 = vmatpush1.bf16.msra.mxu0 %v2500
    %2722 = vmatprep.subr.bf16.mxu0 %v2493
    %2723 = vmatpush1.bf16.msra.mxu0 %v2492
    %2724 = vmatprep.subr.bf16.mxu0 %v2485
    %2725 = vmatpush1.bf16.msra.mxu0 %v2484
    %2726 = vmatprep.subr.bf16.mxu0 %v2477
    %2727 = vmatpush1.bf16.msra.mxu0 %v2476
    %2728 = vmatprep.subr.bf16.mxu0 %v2469
    %2729 = vmatpush1.bf16.msra.mxu0 %v2468
    %2730 = vmatprep.subr.bf16.mxu0 %v2461
    %2731 = vmatpush1.bf16.msra.mxu0 %v2460
    %2732 = vmatprep.subr.bf16.mxu0 %v2581
    %2733 = vmatpush2.bf16.msra.mxu0 %v2580
    %2734 = vmatprep.subr.bf16.mxu0 %v2573
    %2735 = vmatpush2.bf16.msra.mxu0 %v2572
    %2736 = vmatprep.subr.bf16.mxu0 %v2565
    %2737 = vmatpush2.bf16.msra.mxu0 %v2564
    %2738 = vmatprep.subr.bf16.mxu0 %v2557
    %2739 = vmatpush2.bf16.msra.mxu0 %v2556
    %2740 = vmatprep.subr.bf16.mxu0 %v2549
    %2741 = vmatpush2.bf16.msra.mxu0 %v2548
    %2742 = vmatprep.subr.bf16.mxu0 %v2541
    %2743 = vmatpush2.bf16.msra.mxu0 %v2540
    %2744 = vmatprep.subr.bf16.mxu0 %v2533
    %2745 = vmatpush2.bf16.msra.mxu0 %v2532
    %2746 = vmatprep.subr.bf16.mxu0 %v2525
    %2747 = vmatpush2.bf16.msra.mxu0 %v2524
    %2748 = vmatprep.mubr.bf16.mxu0 %v199
    %2749 = vmatmul.mubr.bf16.gmra.mxu0 %v192
    %v2750 = vpop.f32.mrf.mxu0
    %v2751 = vadd.f32 0.0, %v2750
    %v2752 = vpop.f32.mrf.mxu0
    %v2753 = vadd.f32 0.0, %v2752
    %v2754 = vpop.f32.mrf.mxu0
    %v2755 = vpop.f32.mrf.mxu0
    %2756 = vdwg.mxu0
    %2757 = vmatprep.subr.bf16.mxu0 %v2519
    %2758 = vmatpush1.bf16.msra.mxu0 %v2518
    %2759 = vmatprep.subr.bf16.mxu0 %v2511
    %2760 = vmatpush1.bf16.msra.mxu0 %v2510
    %2761 = vmatprep.subr.bf16.mxu0 %v2503
    %2762 = vmatpush1.bf16.msra.mxu0 %v2502
    %2763 = vmatprep.subr.bf16.mxu0 %v2495
    %2764 = vmatpush1.bf16.msra.mxu0 %v2494
    %2765 = vmatprep.subr.bf16.mxu0 %v2487
    %2766 = vmatpush1.bf16.msra.mxu0 %v2486
    %2767 = vmatprep.subr.bf16.mxu0 %v2479
    %2768 = vmatpush1.bf16.msra.mxu0 %v2478
    %2769 = vmatprep.subr.bf16.mxu0 %v2471
    %2770 = vmatpush1.bf16.msra.mxu0 %v2470
    %2771 = vmatprep.subr.bf16.mxu0 %v2463
    %2772 = vmatpush1.bf16.msra.mxu0 %v2462
    %2773 = vmatprep.subr.bf16.mxu0 %v2583
    %2774 = vmatpush2.bf16.msra.mxu0 %v2582
    %2775 = vmatprep.subr.bf16.mxu0 %v2575
    %2776 = vmatpush2.bf16.msra.mxu0 %v2574
    %2777 = vmatprep.subr.bf16.mxu0 %v2567
    %2778 = vmatpush2.bf16.msra.mxu0 %v2566
    %2779 = vmatprep.subr.bf16.mxu0 %v2559
    %2780 = vmatpush2.bf16.msra.mxu0 %v2558
    %2781 = vmatprep.subr.bf16.mxu0 %v2551
    %2782 = vmatpush2.bf16.msra.mxu0 %v2550
    %2783 = vmatprep.subr.bf16.mxu0 %v2543
    %2784 = vmatpush2.bf16.msra.mxu0 %v2542
    %2785 = vmatprep.subr.bf16.mxu0 %v2535
    %2786 = vmatpush2.bf16.msra.mxu0 %v2534
    %2787 = vmatprep.subr.bf16.mxu0 %v2527
    %2788 = vmatpush2.bf16.msra.mxu0 %v2526
    %2789 = vmatprep.mubr.bf16.mxu0 %v199
    %2790 = vmatmul.mubr.bf16.gmra.mxu0 %v192
    %v2791 = vpop.f32.mrf.mxu0
    %v2792 = vadd.f32 0.0, %v2791
    %v2793 = vpop.f32.mrf.mxu0
    %v2794 = vadd.f32 0.0, %v2793
    %v2795 = vpop.f32.mrf.mxu0
    %v2796 = vpop.f32.mrf.mxu0
    %2797 = vdwg.mxu0
    %2798 = vmatprep.subr.bf16.mxu0 %v2521
    %2799 = vmatpush1.bf16.msra.mxu0 %v2520
    %2800 = vmatprep.subr.bf16.mxu0 %v2513
    %2801 = vmatpush1.bf16.msra.mxu0 %v2512
    %2802 = vmatprep.subr.bf16.mxu0 %v2505
    %2803 = vmatpush1.bf16.msra.mxu0 %v2504
    %2804 = vmatprep.subr.bf16.mxu0 %v2497
    %2805 = vmatpush1.bf16.msra.mxu0 %v2496
    %2806 = vmatprep.subr.bf16.mxu0 %v2489
    %2807 = vmatpush1.bf16.msra.mxu0 %v2488
    %2808 = vmatprep.subr.bf16.mxu0 %v2481
    %2809 = vmatpush1.bf16.msra.mxu0 %v2480
    %2810 = vmatprep.subr.bf16.mxu0 %v2473
    %2811 = vmatpush1.bf16.msra.mxu0 %v2472
    %2812 = vmatprep.subr.bf16.mxu0 %v2465
    %2813 = vmatpush1.bf16.msra.mxu0 %v2464
    %2814 = vmatprep.subr.bf16.mxu0 %v2585
    %2815 = vmatpush2.bf16.msra.mxu0 %v2584
    %2816 = vmatprep.subr.bf16.mxu0 %v2577
    %2817 = vmatpush2.bf16.msra.mxu0 %v2576
    %2818 = vmatprep.subr.bf16.mxu0 %v2569
    %2819 = vmatpush2.bf16.msra.mxu0 %v2568
    %2820 = vmatprep.subr.bf16.mxu0 %v2561
    %2821 = vmatpush2.bf16.msra.mxu0 %v2560
    %2822 = vmatprep.subr.bf16.mxu0 %v2553
    %2823 = vmatpush2.bf16.msra.mxu0 %v2552
    %2824 = vmatprep.subr.bf16.mxu0 %v2545
    %2825 = vmatpush2.bf16.msra.mxu0 %v2544
    %2826 = vmatprep.subr.bf16.mxu0 %v2537
    %2827 = vmatpush2.bf16.msra.mxu0 %v2536
    %2828 = vmatprep.subr.bf16.mxu0 %v2529
    %2829 = vmatpush2.bf16.msra.mxu0 %v2528
    %2830 = vmatprep.mubr.bf16.mxu0 %v199
    %2831 = vmatmul.mubr.bf16.gmra.mxu0 %v192
    %v2832 = vpop.f32.mrf.mxu0
    %v2833 = vadd.f32 0.0, %v2832
    %v2834 = vpop.f32.mrf.mxu0
    %v2835 = vadd.f32 0.0, %v2834
    %v2836 = vpop.f32.mrf.mxu0
    %v2837 = vpop.f32.mrf.mxu0
    %2838 = vdwg.mxu0
    %2839 = vmatprep.subr.bf16.mxu0 %v2523
    %2840 = vmatpush1.bf16.msra.mxu0 %v2522
    %2841 = vmatprep.subr.bf16.mxu0 %v2515
    %2842 = vmatpush1.bf16.msra.mxu0 %v2514
    %2843 = vmatprep.subr.bf16.mxu0 %v2507
    %2844 = vmatpush1.bf16.msra.mxu0 %v2506
    %2845 = vmatprep.subr.bf16.mxu0 %v2499
    %2846 = vmatpush1.bf16.msra.mxu0 %v2498
    %2847 = vmatprep.subr.bf16.mxu0 %v2491
    %2848 = vmatpush1.bf16.msra.mxu0 %v2490
    %2849 = vmatprep.subr.bf16.mxu0 %v2483
    %2850 = vmatpush1.bf16.msra.mxu0 %v2482
    %2851 = vmatprep.subr.bf16.mxu0 %v2475
    %2852 = vmatpush1.bf16.msra.mxu0 %v2474
    %2853 = vmatprep.subr.bf16.mxu0 %v2467
    %2854 = vmatpush1.bf16.msra.mxu0 %v2466
    %2855 = vmatprep.subr.bf16.mxu0 %v2587
    %2856 = vmatpush2.bf16.msra.mxu0 %v2586
    %2857 = vmatprep.subr.bf16.mxu0 %v2579
    %2858 = vmatpush2.bf16.msra.mxu0 %v2578
    %2859 = vmatprep.subr.bf16.mxu0 %v2571
    %2860 = vmatpush2.bf16.msra.mxu0 %v2570
    %2861 = vmatprep.subr.bf16.mxu0 %v2563
    %2862 = vmatpush2.bf16.msra.mxu0 %v2562
    %2863 = vmatprep.subr.bf16.mxu0 %v2555
    %2864 = vmatpush2.bf16.msra.mxu0 %v2554
    %2865 = vmatprep.subr.bf16.mxu0 %v2547
    %2866 = vmatpush2.bf16.msra.mxu0 %v2546
    %2867 = vmatprep.subr.bf16.mxu0 %v2539
    %2868 = vmatpush2.bf16.msra.mxu0 %v2538
    %2869 = vmatprep.subr.bf16.mxu0 %v2531
    %2870 = vmatpush2.bf16.msra.mxu0 %v2530
    %2871 = vmatprep.mubr.bf16.mxu0 %v199
    %2872 = vmatmul.mubr.bf16.gmra.mxu0 %v192
    %v2873 = vpop.f32.mrf.mxu0
    %v2874 = vadd.f32 0.0, %v2873
    %v2875 = vpop.f32.mrf.mxu0
    %v2876 = vadd.f32 0.0, %v2875
    %v2877 = vpop.f32.mrf.mxu0
    %v2878 = vpop.f32.mrf.mxu0
    %2879 = vdwg.mxu0
    %v2880 = vmax.f32 %v1939, %v2751
    %v2881 = vmax.f32 %v1940, %v2753
    %v2882 = vmax.f32 %v1941, %v2792
    %v2883 = vmax.f32 %v1942, %v2794
    %v2884 = vmax.f32 %v1943, %v2833
    %v2885 = vmax.f32 %v1944, %v2835
    %v2886 = vmax.f32 %v1945, %v2874
    %v2887 = vmax.f32 %v1946, %v2876
    %s2888 = scalar_lea.vmem %s1, 3072
    %v2889 = vld [vmem:[%s2888] sm:$0xff]
    %v2890 = vld [vmem:[%s2888 + $0x8] sm:$0xff]
    %v2891 = vld [vmem:[%s2888 + $0x10] sm:$0xff]
    %v2892 = vld [vmem:[%s2888 + $0x18] sm:$0xff]
    %v2893 = vld [vmem:[%s2888 + $0x20] sm:$0xff]
    %v2894 = vld [vmem:[%s2888 + $0x28] sm:$0xff]
    %v2895 = vld [vmem:[%s2888 + $0x30] sm:$0xff]
    %v2896 = vld [vmem:[%s2888 + $0x38] sm:$0xff]
    %v2897 = vld [vmem:[%s2888 + $0x40] sm:$0xff]
    %v2898 = vld [vmem:[%s2888 + $0x48] sm:$0xff]
    %v2899 = vld [vmem:[%s2888 + $0x50] sm:$0xff]
    %v2900 = vld [vmem:[%s2888 + $0x58] sm:$0xff]
    %v2901 = vld [vmem:[%s2888 + $0x60] sm:$0xff]
    %v2902 = vld [vmem:[%s2888 + $0x68] sm:$0xff]
    %v2903 = vld [vmem:[%s2888 + $0x70] sm:$0xff]
    %v2904 = vld [vmem:[%s2888 + $0x78] sm:$0xff]
    %v2905 = vld [vmem:[%s2888 + $0x80] sm:$0xff]
    %v2906 = vld [vmem:[%s2888 + $0x88] sm:$0xff]
    %v2907 = vld [vmem:[%s2888 + $0x90] sm:$0xff]
    %v2908 = vld [vmem:[%s2888 + $0x98] sm:$0xff]
    %v2909 = vld [vmem:[%s2888 + $0xa0] sm:$0xff]
    %v2910 = vld [vmem:[%s2888 + $0xa8] sm:$0xff]
    %v2911 = vld [vmem:[%s2888 + $0xb0] sm:$0xff]
    %v2912 = vld [vmem:[%s2888 + $0xb8] sm:$0xff]
    %v2913 = vld [vmem:[%s2888 + $0xc0] sm:$0xff]
    %v2914 = vld [vmem:[%s2888 + $0xc8] sm:$0xff]
    %v2915 = vld [vmem:[%s2888 + $0xd0] sm:$0xff]
    %v2916 = vld [vmem:[%s2888 + $0xd8] sm:$0xff]
    %v2917 = vld [vmem:[%s2888 + $0xe0] sm:$0xff]
    %v2918 = vld [vmem:[%s2888 + $0xe8] sm:$0xff]
    %v2919 = vld [vmem:[%s2888 + $0xf0] sm:$0xff]
    %v2920 = vld [vmem:[%s2888 + $0xf8] sm:$0xff]
    %v2921 = vld [vmem:[%s2888 + $0x100] sm:$0xff]
    %v2922 = vld [vmem:[%s2888 + $0x108] sm:$0xff]
    %v2923 = vld [vmem:[%s2888 + $0x110] sm:$0xff]
    %v2924 = vld [vmem:[%s2888 + $0x118] sm:$0xff]
    %v2925 = vld [vmem:[%s2888 + $0x120] sm:$0xff]
    %v2926 = vld [vmem:[%s2888 + $0x128] sm:$0xff]
    %v2927 = vld [vmem:[%s2888 + $0x130] sm:$0xff]
    %v2928 = vld [vmem:[%s2888 + $0x138] sm:$0xff]
    %v2929 = vld [vmem:[%s2888 + $0x140] sm:$0xff]
    %v2930 = vld [vmem:[%s2888 + $0x148] sm:$0xff]
    %v2931 = vld [vmem:[%s2888 + $0x150] sm:$0xff]
    %v2932 = vld [vmem:[%s2888 + $0x158] sm:$0xff]
    %v2933 = vld [vmem:[%s2888 + $0x160] sm:$0xff]
    %v2934 = vld [vmem:[%s2888 + $0x168] sm:$0xff]
    %v2935 = vld [vmem:[%s2888 + $0x170] sm:$0xff]
    %v2936 = vld [vmem:[%s2888 + $0x178] sm:$0xff]
    %v2937 = vld [vmem:[%s2888 + $0x180] sm:$0xff]
    %v2938 = vld [vmem:[%s2888 + $0x188] sm:$0xff]
    %v2939 = vld [vmem:[%s2888 + $0x190] sm:$0xff]
    %v2940 = vld [vmem:[%s2888 + $0x198] sm:$0xff]
    %v2941 = vld [vmem:[%s2888 + $0x1a0] sm:$0xff]
    %v2942 = vld [vmem:[%s2888 + $0x1a8] sm:$0xff]
    %v2943 = vld [vmem:[%s2888 + $0x1b0] sm:$0xff]
    %v2944 = vld [vmem:[%s2888 + $0x1b8] sm:$0xff]
    %v2945 = vld [vmem:[%s2888 + $0x1c0] sm:$0xff]
    %v2946 = vld [vmem:[%s2888 + $0x1c8] sm:$0xff]
    %v2947 = vld [vmem:[%s2888 + $0x1d0] sm:$0xff]
    %v2948 = vld [vmem:[%s2888 + $0x1d8] sm:$0xff]
    %v2949 = vld [vmem:[%s2888 + $0x1e0] sm:$0xff]
    %v2950 = vld [vmem:[%s2888 + $0x1e8] sm:$0xff]
    %v2951 = vld [vmem:[%s2888 + $0x1f0] sm:$0xff]
    %v2952 = vld [vmem:[%s2888 + $0x1f8] sm:$0xff]
    %v2953 = vld [vmem:[%s2888 + $0x200] sm:$0xff]
    %v2954 = vld [vmem:[%s2888 + $0x208] sm:$0xff]
    %v2955 = vld [vmem:[%s2888 + $0x210] sm:$0xff]
    %v2956 = vld [vmem:[%s2888 + $0x218] sm:$0xff]
    %v2957 = vld [vmem:[%s2888 + $0x220] sm:$0xff]
    %v2958 = vld [vmem:[%s2888 + $0x228] sm:$0xff]
    %v2959 = vld [vmem:[%s2888 + $0x230] sm:$0xff]
    %v2960 = vld [vmem:[%s2888 + $0x238] sm:$0xff]
    %v2961 = vld [vmem:[%s2888 + $0x240] sm:$0xff]
    %v2962 = vld [vmem:[%s2888 + $0x248] sm:$0xff]
    %v2963 = vld [vmem:[%s2888 + $0x250] sm:$0xff]
    %v2964 = vld [vmem:[%s2888 + $0x258] sm:$0xff]
    %v2965 = vld [vmem:[%s2888 + $0x260] sm:$0xff]
    %v2966 = vld [vmem:[%s2888 + $0x268] sm:$0xff]
    %v2967 = vld [vmem:[%s2888 + $0x270] sm:$0xff]
    %v2968 = vld [vmem:[%s2888 + $0x278] sm:$0xff]
    %v2969 = vld [vmem:[%s2888 + $0x280] sm:$0xff]
    %v2970 = vld [vmem:[%s2888 + $0x288] sm:$0xff]
    %v2971 = vld [vmem:[%s2888 + $0x290] sm:$0xff]
    %v2972 = vld [vmem:[%s2888 + $0x298] sm:$0xff]
    %v2973 = vld [vmem:[%s2888 + $0x2a0] sm:$0xff]
    %v2974 = vld [vmem:[%s2888 + $0x2a8] sm:$0xff]
    %v2975 = vld [vmem:[%s2888 + $0x2b0] sm:$0xff]
    %v2976 = vld [vmem:[%s2888 + $0x2b8] sm:$0xff]
    %v2977 = vld [vmem:[%s2888 + $0x2c0] sm:$0xff]
    %v2978 = vld [vmem:[%s2888 + $0x2c8] sm:$0xff]
    %v2979 = vld [vmem:[%s2888 + $0x2d0] sm:$0xff]
    %v2980 = vld [vmem:[%s2888 + $0x2d8] sm:$0xff]
    %v2981 = vld [vmem:[%s2888 + $0x2e0] sm:$0xff]
    %v2982 = vld [vmem:[%s2888 + $0x2e8] sm:$0xff]
    %v2983 = vld [vmem:[%s2888 + $0x2f0] sm:$0xff]
    %v2984 = vld [vmem:[%s2888 + $0x2f8] sm:$0xff]
    %v2985 = vld [vmem:[%s2888 + $0x300] sm:$0xff]
    %v2986 = vld [vmem:[%s2888 + $0x308] sm:$0xff]
    %v2987 = vld [vmem:[%s2888 + $0x310] sm:$0xff]
    %v2988 = vld [vmem:[%s2888 + $0x318] sm:$0xff]
    %v2989 = vld [vmem:[%s2888 + $0x320] sm:$0xff]
    %v2990 = vld [vmem:[%s2888 + $0x328] sm:$0xff]
    %v2991 = vld [vmem:[%s2888 + $0x330] sm:$0xff]
    %v2992 = vld [vmem:[%s2888 + $0x338] sm:$0xff]
    %v2993 = vld [vmem:[%s2888 + $0x340] sm:$0xff]
    %v2994 = vld [vmem:[%s2888 + $0x348] sm:$0xff]
    %v2995 = vld [vmem:[%s2888 + $0x350] sm:$0xff]
    %v2996 = vld [vmem:[%s2888 + $0x358] sm:$0xff]
    %v2997 = vld [vmem:[%s2888 + $0x360] sm:$0xff]
    %v2998 = vld [vmem:[%s2888 + $0x368] sm:$0xff]
    %v2999 = vld [vmem:[%s2888 + $0x370] sm:$0xff]
    %v3000 = vld [vmem:[%s2888 + $0x378] sm:$0xff]
    %v3001 = vld [vmem:[%s2888 + $0x380] sm:$0xff]
    %v3002 = vld [vmem:[%s2888 + $0x388] sm:$0xff]
    %v3003 = vld [vmem:[%s2888 + $0x390] sm:$0xff]
    %v3004 = vld [vmem:[%s2888 + $0x398] sm:$0xff]
    %v3005 = vld [vmem:[%s2888 + $0x3a0] sm:$0xff]
    %v3006 = vld [vmem:[%s2888 + $0x3a8] sm:$0xff]
    %v3007 = vld [vmem:[%s2888 + $0x3b0] sm:$0xff]
    %v3008 = vld [vmem:[%s2888 + $0x3b8] sm:$0xff]
    %v3009 = vld [vmem:[%s2888 + $0x3c0] sm:$0xff]
    %v3010 = vld [vmem:[%s2888 + $0x3c8] sm:$0xff]
    %v3011 = vld [vmem:[%s2888 + $0x3d0] sm:$0xff]
    %v3012 = vld [vmem:[%s2888 + $0x3d8] sm:$0xff]
    %v3013 = vld [vmem:[%s2888 + $0x3e0] sm:$0xff]
    %v3014 = vld [vmem:[%s2888 + $0x3e8] sm:$0xff]
    %v3015 = vld [vmem:[%s2888 + $0x3f0] sm:$0xff]
    %v3016 = vld [vmem:[%s2888 + $0x3f8] sm:$0xff]
    %v3145 = vunpack.c.l.b16 %v2889
    %v3146 = vunpack.c.h.b16 %v2889
    %v3147 = vunpack.c.l.b16 %v2890
    %v3148 = vunpack.c.h.b16 %v2890
    %v3149 = vunpack.c.l.b16 %v2891
    %v3150 = vunpack.c.h.b16 %v2891
    %v3151 = vunpack.c.l.b16 %v2892
    %v3152 = vunpack.c.h.b16 %v2892
    %v3153 = vunpack.c.l.b16 %v2893
    %v3154 = vunpack.c.h.b16 %v2893
    %v3155 = vunpack.c.l.b16 %v2894
    %v3156 = vunpack.c.h.b16 %v2894
    %v3157 = vunpack.c.l.b16 %v2895
    %v3158 = vunpack.c.h.b16 %v2895
    %v3159 = vunpack.c.l.b16 %v2896
    %v3160 = vunpack.c.h.b16 %v2896
    %v3161 = vunpack.c.l.b16 %v2897
    %v3162 = vunpack.c.h.b16 %v2897
    %v3163 = vunpack.c.l.b16 %v2898
    %v3164 = vunpack.c.h.b16 %v2898
    %v3165 = vunpack.c.l.b16 %v2899
    %v3166 = vunpack.c.h.b16 %v2899
    %v3167 = vunpack.c.l.b16 %v2900
    %v3168 = vunpack.c.h.b16 %v2900
    %v3169 = vunpack.c.l.b16 %v2901
    %v3170 = vunpack.c.h.b16 %v2901
    %v3171 = vunpack.c.l.b16 %v2902
    %v3172 = vunpack.c.h.b16 %v2902
    %v3173 = vunpack.c.l.b16 %v2903
    %v3174 = vunpack.c.h.b16 %v2903
    %v3175 = vunpack.c.l.b16 %v2904
    %v3176 = vunpack.c.h.b16 %v2904
    %v3177 = vunpack.c.l.b16 %v2905
    %v3178 = vunpack.c.h.b16 %v2905
    %v3179 = vunpack.c.l.b16 %v2906
    %v3180 = vunpack.c.h.b16 %v2906
    %v3181 = vunpack.c.l.b16 %v2907
    %v3182 = vunpack.c.h.b16 %v2907
    %v3183 = vunpack.c.l.b16 %v2908
    %v3184 = vunpack.c.h.b16 %v2908
    %v3185 = vunpack.c.l.b16 %v2909
    %v3186 = vunpack.c.h.b16 %v2909
    %v3187 = vunpack.c.l.b16 %v2910
    %v3188 = vunpack.c.h.b16 %v2910
    %v3189 = vunpack.c.l.b16 %v2911
    %v3190 = vunpack.c.h.b16 %v2911
    %v3191 = vunpack.c.l.b16 %v2912
    %v3192 = vunpack.c.h.b16 %v2912
    %v3193 = vunpack.c.l.b16 %v2913
    %v3194 = vunpack.c.h.b16 %v2913
    %v3195 = vunpack.c.l.b16 %v2914
    %v3196 = vunpack.c.h.b16 %v2914
    %v3197 = vunpack.c.l.b16 %v2915
    %v3198 = vunpack.c.h.b16 %v2915
    %v3199 = vunpack.c.l.b16 %v2916
    %v3200 = vunpack.c.h.b16 %v2916
    %v3201 = vunpack.c.l.b16 %v2917
    %v3202 = vunpack.c.h.b16 %v2917
    %v3203 = vunpack.c.l.b16 %v2918
    %v3204 = vunpack.c.h.b16 %v2918
    %v3205 = vunpack.c.l.b16 %v2919
    %v3206 = vunpack.c.h.b16 %v2919
    %v3207 = vunpack.c.l.b16 %v2920
    %v3208 = vunpack.c.h.b16 %v2920
    %v3209 = vunpack.c.l.b16 %v2921
    %v3210 = vunpack.c.h.b16 %v2921
    %v3211 = vunpack.c.l.b16 %v2922
    %v3212 = vunpack.c.h.b16 %v2922
    %v3213 = vunpack.c.l.b16 %v2923
    %v3214 = vunpack.c.h.b16 %v2923
    %v3215 = vunpack.c.l.b16 %v2924
    %v3216 = vunpack.c.h.b16 %v2924
    %v3217 = vunpack.c.l.b16 %v2925
    %v3218 = vunpack.c.h.b16 %v2925
    %v3219 = vunpack.c.l.b16 %v2926
    %v3220 = vunpack.c.h.b16 %v2926
    %v3221 = vunpack.c.l.b16 %v2927
    %v3222 = vunpack.c.h.b16 %v2927
    %v3223 = vunpack.c.l.b16 %v2928
    %v3224 = vunpack.c.h.b16 %v2928
    %v3225 = vunpack.c.l.b16 %v2929
    %v3226 = vunpack.c.h.b16 %v2929
    %v3227 = vunpack.c.l.b16 %v2930
    %v3228 = vunpack.c.h.b16 %v2930
    %v3229 = vunpack.c.l.b16 %v2931
    %v3230 = vunpack.c.h.b16 %v2931
    %v3231 = vunpack.c.l.b16 %v2932
    %v3232 = vunpack.c.h.b16 %v2932
    %v3233 = vunpack.c.l.b16 %v2933
    %v3234 = vunpack.c.h.b16 %v2933
    %v3235 = vunpack.c.l.b16 %v2934
    %v3236 = vunpack.c.h.b16 %v2934
    %v3237 = vunpack.c.l.b16 %v2935
    %v3238 = vunpack.c.h.b16 %v2935
    %v3239 = vunpack.c.l.b16 %v2936
    %v3240 = vunpack.c.h.b16 %v2936
    %v3241 = vunpack.c.l.b16 %v2937
    %v3242 = vunpack.c.h.b16 %v2937
    %v3243 = vunpack.c.l.b16 %v2938
    %v3244 = vunpack.c.h.b16 %v2938
    %v3245 = vunpack.c.l.b16 %v2939
    %v3246 = vunpack.c.h.b16 %v2939
    %v3247 = vunpack.c.l.b16 %v2940
    %v3248 = vunpack.c.h.b16 %v2940
    %v3249 = vunpack.c.l.b16 %v2941
    %v3250 = vunpack.c.h.b16 %v2941
    %v3251 = vunpack.c.l.b16 %v2942
    %v3252 = vunpack.c.h.b16 %v2942
    %v3253 = vunpack.c.l.b16 %v2943
    %v3254 = vunpack.c.h.b16 %v2943
    %v3255 = vunpack.c.l.b16 %v2944
    %v3256 = vunpack.c.h.b16 %v2944
    %v3257 = vunpack.c.l.b16 %v2945
    %v3258 = vunpack.c.h.b16 %v2945
    %v3259 = vunpack.c.l.b16 %v2946
    %v3260 = vunpack.c.h.b16 %v2946
    %v3261 = vunpack.c.l.b16 %v2947
    %v3262 = vunpack.c.h.b16 %v2947
    %v3263 = vunpack.c.l.b16 %v2948
    %v3264 = vunpack.c.h.b16 %v2948
    %v3265 = vunpack.c.l.b16 %v2949
    %v3266 = vunpack.c.h.b16 %v2949
    %v3267 = vunpack.c.l.b16 %v2950
    %v3268 = vunpack.c.h.b16 %v2950
    %v3269 = vunpack.c.l.b16 %v2951
    %v3270 = vunpack.c.h.b16 %v2951
    %v3271 = vunpack.c.l.b16 %v2952
    %v3272 = vunpack.c.h.b16 %v2952
    %v3273 = vunpack.c.l.b16 %v2953
    %v3274 = vunpack.c.h.b16 %v2953
    %v3275 = vunpack.c.l.b16 %v2954
    %v3276 = vunpack.c.h.b16 %v2954
    %v3277 = vunpack.c.l.b16 %v2955
    %v3278 = vunpack.c.h.b16 %v2955
    %v3279 = vunpack.c.l.b16 %v2956
    %v3280 = vunpack.c.h.b16 %v2956
    %v3281 = vunpack.c.l.b16 %v2957
    %v3282 = vunpack.c.h.b16 %v2957
    %v3283 = vunpack.c.l.b16 %v2958
    %v3284 = vunpack.c.h.b16 %v2958
    %v3285 = vunpack.c.l.b16 %v2959
    %v3286 = vunpack.c.h.b16 %v2959
    %v3287 = vunpack.c.l.b16 %v2960
    %v3288 = vunpack.c.h.b16 %v2960
    %v3289 = vunpack.c.l.b16 %v2961
    %v3290 = vunpack.c.h.b16 %v2961
    %v3291 = vunpack.c.l.b16 %v2962
    %v3292 = vunpack.c.h.b16 %v2962
    %v3293 = vunpack.c.l.b16 %v2963
    %v3294 = vunpack.c.h.b16 %v2963
    %v3295 = vunpack.c.l.b16 %v2964
    %v3296 = vunpack.c.h.b16 %v2964
    %v3297 = vunpack.c.l.b16 %v2965
    %v3298 = vunpack.c.h.b16 %v2965
    %v3299 = vunpack.c.l.b16 %v2966
    %v3300 = vunpack.c.h.b16 %v2966
    %v3301 = vunpack.c.l.b16 %v2967
    %v3302 = vunpack.c.h.b16 %v2967
    %v3303 = vunpack.c.l.b16 %v2968
    %v3304 = vunpack.c.h.b16 %v2968
    %v3305 = vunpack.c.l.b16 %v2969
    %v3306 = vunpack.c.h.b16 %v2969
    %v3307 = vunpack.c.l.b16 %v2970
    %v3308 = vunpack.c.h.b16 %v2970
    %v3309 = vunpack.c.l.b16 %v2971
    %v3310 = vunpack.c.h.b16 %v2971
    %v3311 = vunpack.c.l.b16 %v2972
    %v3312 = vunpack.c.h.b16 %v2972
    %v3313 = vunpack.c.l.b16 %v2973
    %v3314 = vunpack.c.h.b16 %v2973
    %v3315 = vunpack.c.l.b16 %v2974
    %v3316 = vunpack.c.h.b16 %v2974
    %v3317 = vunpack.c.l.b16 %v2975
    %v3318 = vunpack.c.h.b16 %v2975
    %v3319 = vunpack.c.l.b16 %v2976
    %v3320 = vunpack.c.h.b16 %v2976
    %v3321 = vunpack.c.l.b16 %v2977
    %v3322 = vunpack.c.h.b16 %v2977
    %v3323 = vunpack.c.l.b16 %v2978
    %v3324 = vunpack.c.h.b16 %v2978
    %v3325 = vunpack.c.l.b16 %v2979
    %v3326 = vunpack.c.h.b16 %v2979
    %v3327 = vunpack.c.l.b16 %v2980
    %v3328 = vunpack.c.h.b16 %v2980
    %v3329 = vunpack.c.l.b16 %v2981
    %v3330 = vunpack.c.h.b16 %v2981
    %v3331 = vunpack.c.l.b16 %v2982
    %v3332 = vunpack.c.h.b16 %v2982
    %v3333 = vunpack.c.l.b16 %v2983
    %v3334 = vunpack.c.h.b16 %v2983
    %v3335 = vunpack.c.l.b16 %v2984
    %v3336 = vunpack.c.h.b16 %v2984
    %v3337 = vunpack.c.l.b16 %v2985
    %v3338 = vunpack.c.h.b16 %v2985
    %v3339 = vunpack.c.l.b16 %v2986
    %v3340 = vunpack.c.h.b16 %v2986
    %v3341 = vunpack.c.l.b16 %v2987
    %v3342 = vunpack.c.h.b16 %v2987
    %v3343 = vunpack.c.l.b16 %v2988
    %v3344 = vunpack.c.h.b16 %v2988
    %v3345 = vunpack.c.l.b16 %v2989
    %v3346 = vunpack.c.h.b16 %v2989
    %v3347 = vunpack.c.l.b16 %v2990
    %v3348 = vunpack.c.h.b16 %v2990
    %v3349 = vunpack.c.l.b16 %v2991
    %v3350 = vunpack.c.h.b16 %v2991
    %v3351 = vunpack.c.l.b16 %v2992
    %v3352 = vunpack.c.h.b16 %v2992
    %v3353 = vunpack.c.l.b16 %v2993
    %v3354 = vunpack.c.h.b16 %v2993
    %v3355 = vunpack.c.l.b16 %v2994
    %v3356 = vunpack.c.h.b16 %v2994
    %v3357 = vunpack.c.l.b16 %v2995
    %v3358 = vunpack.c.h.b16 %v2995
    %v3359 = vunpack.c.l.b16 %v2996
    %v3360 = vunpack.c.h.b16 %v2996
    %v3361 = vunpack.c.l.b16 %v2997
    %v3362 = vunpack.c.h.b16 %v2997
    %v3363 = vunpack.c.l.b16 %v2998
    %v3364 = vunpack.c.h.b16 %v2998
    %v3365 = vunpack.c.l.b16 %v2999
    %v3366 = vunpack.c.h.b16 %v2999
    %v3367 = vunpack.c.l.b16 %v3000
    %v3368 = vunpack.c.h.b16 %v3000
    %v3369 = vunpack.c.l.b16 %v3001
    %v3370 = vunpack.c.h.b16 %v3001
    %v3371 = vunpack.c.l.b16 %v3002
    %v3372 = vunpack.c.h.b16 %v3002
    %v3373 = vunpack.c.l.b16 %v3003
    %v3374 = vunpack.c.h.b16 %v3003
    %v3375 = vunpack.c.l.b16 %v3004
    %v3376 = vunpack.c.h.b16 %v3004
    %v3377 = vunpack.c.l.b16 %v3005
    %v3378 = vunpack.c.h.b16 %v3005
    %v3379 = vunpack.c.l.b16 %v3006
    %v3380 = vunpack.c.h.b16 %v3006
    %v3381 = vunpack.c.l.b16 %v3007
    %v3382 = vunpack.c.h.b16 %v3007
    %v3383 = vunpack.c.l.b16 %v3008
    %v3384 = vunpack.c.h.b16 %v3008
    %v3385 = vunpack.c.l.b16 %v3009
    %v3386 = vunpack.c.h.b16 %v3009
    %v3387 = vunpack.c.l.b16 %v3010
    %v3388 = vunpack.c.h.b16 %v3010
    %v3389 = vunpack.c.l.b16 %v3011
    %v3390 = vunpack.c.h.b16 %v3011
    %v3391 = vunpack.c.l.b16 %v3012
    %v3392 = vunpack.c.h.b16 %v3012
    %v3393 = vunpack.c.l.b16 %v3013
    %v3394 = vunpack.c.h.b16 %v3013
    %v3395 = vunpack.c.l.b16 %v3014
    %v3396 = vunpack.c.h.b16 %v3014
    %v3397 = vunpack.c.l.b16 %v3015
    %v3398 = vunpack.c.h.b16 %v3015
    %v3399 = vunpack.c.l.b16 %v3016
    %v3400 = vunpack.c.h.b16 %v3016
    %v3401 = vpack.c.b16 %v3153, %v3145
    %v3402 = vpack.c.b16 %v3154, %v3146
    %v3403 = vpack.c.b16 %v3155, %v3147
    %v3404 = vpack.c.b16 %v3156, %v3148
    %v3405 = vpack.c.b16 %v3157, %v3149
    %v3406 = vpack.c.b16 %v3158, %v3150
    %v3407 = vpack.c.b16 %v3159, %v3151
    %v3408 = vpack.c.b16 %v3160, %v3152
    %v3409 = vpack.c.b16 %v3169, %v3161
    %v3410 = vpack.c.b16 %v3170, %v3162
    %v3411 = vpack.c.b16 %v3171, %v3163
    %v3412 = vpack.c.b16 %v3172, %v3164
    %v3413 = vpack.c.b16 %v3173, %v3165
    %v3414 = vpack.c.b16 %v3174, %v3166
    %v3415 = vpack.c.b16 %v3175, %v3167
    %v3416 = vpack.c.b16 %v3176, %v3168
    %v3417 = vpack.c.b16 %v3185, %v3177
    %v3418 = vpack.c.b16 %v3186, %v3178
    %v3419 = vpack.c.b16 %v3187, %v3179
    %v3420 = vpack.c.b16 %v3188, %v3180
    %v3421 = vpack.c.b16 %v3189, %v3181
    %v3422 = vpack.c.b16 %v3190, %v3182
    %v3423 = vpack.c.b16 %v3191, %v3183
    %v3424 = vpack.c.b16 %v3192, %v3184
    %v3425 = vpack.c.b16 %v3201, %v3193
    %v3426 = vpack.c.b16 %v3202, %v3194
    %v3427 = vpack.c.b16 %v3203, %v3195
    %v3428 = vpack.c.b16 %v3204, %v3196
    %v3429 = vpack.c.b16 %v3205, %v3197
    %v3430 = vpack.c.b16 %v3206, %v3198
    %v3431 = vpack.c.b16 %v3207, %v3199
    %v3432 = vpack.c.b16 %v3208, %v3200
    %v3433 = vpack.c.b16 %v3217, %v3209
    %v3434 = vpack.c.b16 %v3218, %v3210
    %v3435 = vpack.c.b16 %v3219, %v3211
    %v3436 = vpack.c.b16 %v3220, %v3212
    %v3437 = vpack.c.b16 %v3221, %v3213
    %v3438 = vpack.c.b16 %v3222, %v3214
    %v3439 = vpack.c.b16 %v3223, %v3215
    %v3440 = vpack.c.b16 %v3224, %v3216
    %v3441 = vpack.c.b16 %v3233, %v3225
    %v3442 = vpack.c.b16 %v3234, %v3226
    %v3443 = vpack.c.b16 %v3235, %v3227
    %v3444 = vpack.c.b16 %v3236, %v3228
    %v3445 = vpack.c.b16 %v3237, %v3229
    %v3446 = vpack.c.b16 %v3238, %v3230
    %v3447 = vpack.c.b16 %v3239, %v3231
    %v3448 = vpack.c.b16 %v3240, %v3232
    %v3449 = vpack.c.b16 %v3249, %v3241
    %v3450 = vpack.c.b16 %v3250, %v3242
    %v3451 = vpack.c.b16 %v3251, %v3243
    %v3452 = vpack.c.b16 %v3252, %v3244
    %v3453 = vpack.c.b16 %v3253, %v3245
    %v3454 = vpack.c.b16 %v3254, %v3246
    %v3455 = vpack.c.b16 %v3255, %v3247
    %v3456 = vpack.c.b16 %v3256, %v3248
    %v3457 = vpack.c.b16 %v3265, %v3257
    %v3458 = vpack.c.b16 %v3266, %v3258
    %v3459 = vpack.c.b16 %v3267, %v3259
    %v3460 = vpack.c.b16 %v3268, %v3260
    %v3461 = vpack.c.b16 %v3269, %v3261
    %v3462 = vpack.c.b16 %v3270, %v3262
    %v3463 = vpack.c.b16 %v3271, %v3263
    %v3464 = vpack.c.b16 %v3272, %v3264
    %v3465 = vpack.c.b16 %v3281, %v3273
    %v3466 = vpack.c.b16 %v3282, %v3274
    %v3467 = vpack.c.b16 %v3283, %v3275
    %v3468 = vpack.c.b16 %v3284, %v3276
    %v3469 = vpack.c.b16 %v3285, %v3277
    %v3470 = vpack.c.b16 %v3286, %v3278
    %v3471 = vpack.c.b16 %v3287, %v3279
    %v3472 = vpack.c.b16 %v3288, %v3280
    %v3473 = vpack.c.b16 %v3297, %v3289
    %v3474 = vpack.c.b16 %v3298, %v3290
    %v3475 = vpack.c.b16 %v3299, %v3291
    %v3476 = vpack.c.b16 %v3300, %v3292
    %v3477 = vpack.c.b16 %v3301, %v3293
    %v3478 = vpack.c.b16 %v3302, %v3294
    %v3479 = vpack.c.b16 %v3303, %v3295
    %v3480 = vpack.c.b16 %v3304, %v3296
    %v3481 = vpack.c.b16 %v3313, %v3305
    %v3482 = vpack.c.b16 %v3314, %v3306
    %v3483 = vpack.c.b16 %v3315, %v3307
    %v3484 = vpack.c.b16 %v3316, %v3308
    %v3485 = vpack.c.b16 %v3317, %v3309
    %v3486 = vpack.c.b16 %v3318, %v3310
    %v3487 = vpack.c.b16 %v3319, %v3311
    %v3488 = vpack.c.b16 %v3320, %v3312
    %v3489 = vpack.c.b16 %v3329, %v3321
    %v3490 = vpack.c.b16 %v3330, %v3322
    %v3491 = vpack.c.b16 %v3331, %v3323
    %v3492 = vpack.c.b16 %v3332, %v3324
    %v3493 = vpack.c.b16 %v3333, %v3325
    %v3494 = vpack.c.b16 %v3334, %v3326
    %v3495 = vpack.c.b16 %v3335, %v3327
    %v3496 = vpack.c.b16 %v3336, %v3328
    %v3497 = vpack.c.b16 %v3345, %v3337
    %v3498 = vpack.c.b16 %v3346, %v3338
    %v3499 = vpack.c.b16 %v3347, %v3339
    %v3500 = vpack.c.b16 %v3348, %v3340
    %v3501 = vpack.c.b16 %v3349, %v3341
    %v3502 = vpack.c.b16 %v3350, %v3342
    %v3503 = vpack.c.b16 %v3351, %v3343
    %v3504 = vpack.c.b16 %v3352, %v3344
    %v3505 = vpack.c.b16 %v3361, %v3353
    %v3506 = vpack.c.b16 %v3362, %v3354
    %v3507 = vpack.c.b16 %v3363, %v3355
    %v3508 = vpack.c.b16 %v3364, %v3356
    %v3509 = vpack.c.b16 %v3365, %v3357
    %v3510 = vpack.c.b16 %v3366, %v3358
    %v3511 = vpack.c.b16 %v3367, %v3359
    %v3512 = vpack.c.b16 %v3368, %v3360
    %v3513 = vpack.c.b16 %v3377, %v3369
    %v3514 = vpack.c.b16 %v3378, %v3370
    %v3515 = vpack.c.b16 %v3379, %v3371
    %v3516 = vpack.c.b16 %v3380, %v3372
    %v3517 = vpack.c.b16 %v3381, %v3373
    %v3518 = vpack.c.b16 %v3382, %v3374
    %v3519 = vpack.c.b16 %v3383, %v3375
    %v3520 = vpack.c.b16 %v3384, %v3376
    %v3521 = vpack.c.b16 %v3393, %v3385
    %v3522 = vpack.c.b16 %v3394, %v3386
    %v3523 = vpack.c.b16 %v3395, %v3387
    %v3524 = vpack.c.b16 %v3396, %v3388
    %v3525 = vpack.c.b16 %v3397, %v3389
    %v3526 = vpack.c.b16 %v3398, %v3390
    %v3527 = vpack.c.b16 %v3399, %v3391
    %v3528 = vpack.c.b16 %v3400, %v3392
    %3657 = vmatprep.subr.bf16.mxu0 %v3458
    %3658 = vmatpush1.bf16.msra.mxu0 %v3457
    %3659 = vmatprep.subr.bf16.mxu0 %v3450
    %3660 = vmatpush1.bf16.msra.mxu0 %v3449
    %3661 = vmatprep.subr.bf16.mxu0 %v3442
    %3662 = vmatpush1.bf16.msra.mxu0 %v3441
    %3663 = vmatprep.subr.bf16.mxu0 %v3434
    %3664 = vmatpush1.bf16.msra.mxu0 %v3433
    %3665 = vmatprep.subr.bf16.mxu0 %v3426
    %3666 = vmatpush1.bf16.msra.mxu0 %v3425
    %3667 = vmatprep.subr.bf16.mxu0 %v3418
    %3668 = vmatpush1.bf16.msra.mxu0 %v3417
    %3669 = vmatprep.subr.bf16.mxu0 %v3410
    %3670 = vmatpush1.bf16.msra.mxu0 %v3409
    %3671 = vmatprep.subr.bf16.mxu0 %v3402
    %3672 = vmatpush1.bf16.msra.mxu0 %v3401
    %3673 = vmatprep.subr.bf16.mxu0 %v3522
    %3674 = vmatpush2.bf16.msra.mxu0 %v3521
    %3675 = vmatprep.subr.bf16.mxu0 %v3514
    %3676 = vmatpush2.bf16.msra.mxu0 %v3513
    %3677 = vmatprep.subr.bf16.mxu0 %v3506
    %3678 = vmatpush2.bf16.msra.mxu0 %v3505
    %3679 = vmatprep.subr.bf16.mxu0 %v3498
    %3680 = vmatpush2.bf16.msra.mxu0 %v3497
    %3681 = vmatprep.subr.bf16.mxu0 %v3490
    %3682 = vmatpush2.bf16.msra.mxu0 %v3489
    %3683 = vmatprep.subr.bf16.mxu0 %v3482
    %3684 = vmatpush2.bf16.msra.mxu0 %v3481
    %3685 = vmatprep.subr.bf16.mxu0 %v3474
    %3686 = vmatpush2.bf16.msra.mxu0 %v3473
    %3687 = vmatprep.subr.bf16.mxu0 %v3466
    %3688 = vmatpush2.bf16.msra.mxu0 %v3465
    %3689 = vmatprep.mubr.bf16.mxu0 %v199
    %3690 = vmatmul.mubr.bf16.gmra.mxu0 %v192
    %v3691 = vpop.f32.mrf.mxu0
    %v3692 = vadd.f32 0.0, %v3691
    %v3693 = vpop.f32.mrf.mxu0
    %v3694 = vadd.f32 0.0, %v3693
    %v3695 = vpop.f32.mrf.mxu0
    %v3696 = vpop.f32.mrf.mxu0
    %3697 = vdwg.mxu0
    %3698 = vmatprep.subr.bf16.mxu0 %v3460
    %3699 = vmatpush1.bf16.msra.mxu0 %v3459
    %3700 = vmatprep.subr.bf16.mxu0 %v3452
    %3701 = vmatpush1.bf16.msra.mxu0 %v3451
    %3702 = vmatprep.subr.bf16.mxu0 %v3444
    %3703 = vmatpush1.bf16.msra.mxu0 %v3443
    %3704 = vmatprep.subr.bf16.mxu0 %v3436
    %3705 = vmatpush1.bf16.msra.mxu0 %v3435
    %3706 = vmatprep.subr.bf16.mxu0 %v3428
    %3707 = vmatpush1.bf16.msra.mxu0 %v3427
    %3708 = vmatprep.subr.bf16.mxu0 %v3420
    %3709 = vmatpush1.bf16.msra.mxu0 %v3419
    %3710 = vmatprep.subr.bf16.mxu0 %v3412
    %3711 = vmatpush1.bf16.msra.mxu0 %v3411
    %3712 = vmatprep.subr.bf16.mxu0 %v3404
    %3713 = vmatpush1.bf16.msra.mxu0 %v3403
    %3714 = vmatprep.subr.bf16.mxu0 %v3524
    %3715 = vmatpush2.bf16.msra.mxu0 %v3523
    %3716 = vmatprep.subr.bf16.mxu0 %v3516
    %3717 = vmatpush2.bf16.msra.mxu0 %v3515
    %3718 = vmatprep.subr.bf16.mxu0 %v3508
    %3719 = vmatpush2.bf16.msra.mxu0 %v3507
    %3720 = vmatprep.subr.bf16.mxu0 %v3500
    %3721 = vmatpush2.bf16.msra.mxu0 %v3499
    %3722 = vmatprep.subr.bf16.mxu0 %v3492
    %3723 = vmatpush2.bf16.msra.mxu0 %v3491
    %3724 = vmatprep.subr.bf16.mxu0 %v3484
    %3725 = vmatpush2.bf16.msra.mxu0 %v3483
    %3726 = vmatprep.subr.bf16.mxu0 %v3476
    %3727 = vmatpush2.bf16.msra.mxu0 %v3475
    %3728 = vmatprep.subr.bf16.mxu0 %v3468
    %3729 = vmatpush2.bf16.msra.mxu0 %v3467
    %3730 = vmatprep.mubr.bf16.mxu0 %v199
    %3731 = vmatmul.mubr.bf16.gmra.mxu0 %v192
    %v3732 = vpop.f32.mrf.mxu0
    %v3733 = vadd.f32 0.0, %v3732
    %v3734 = vpop.f32.mrf.mxu0
    %v3735 = vadd.f32 0.0, %v3734
    %v3736 = vpop.f32.mrf.mxu0
    %v3737 = vpop.f32.mrf.mxu0
    %3738 = vdwg.mxu0
    %3739 = vmatprep.subr.bf16.mxu0 %v3462
    %3740 = vmatpush1.bf16.msra.mxu0 %v3461
    %3741 = vmatprep.subr.bf16.mxu0 %v3454
    %3742 = vmatpush1.bf16.msra.mxu0 %v3453
    %3743 = vmatprep.subr.bf16.mxu0 %v3446
    %3744 = vmatpush1.bf16.msra.mxu0 %v3445
    %3745 = vmatprep.subr.bf16.mxu0 %v3438
    %3746 = vmatpush1.bf16.msra.mxu0 %v3437
    %3747 = vmatprep.subr.bf16.mxu0 %v3430
    %3748 = vmatpush1.bf16.msra.mxu0 %v3429
    %3749 = vmatprep.subr.bf16.mxu0 %v3422
    %3750 = vmatpush1.bf16.msra.mxu0 %v3421
    %3751 = vmatprep.subr.bf16.mxu0 %v3414
    %3752 = vmatpush1.bf16.msra.mxu0 %v3413
    %3753 = vmatprep.subr.bf16.mxu0 %v3406
    %3754 = vmatpush1.bf16.msra.mxu0 %v3405
    %3755 = vmatprep.subr.bf16.mxu0 %v3526
    %3756 = vmatpush2.bf16.msra.mxu0 %v3525
    %3757 = vmatprep.subr.bf16.mxu0 %v3518
    %3758 = vmatpush2.bf16.msra.mxu0 %v3517
    %3759 = vmatprep.subr.bf16.mxu0 %v3510
    %3760 = vmatpush2.bf16.msra.mxu0 %v3509
    %3761 = vmatprep.subr.bf16.mxu0 %v3502
    %3762 = vmatpush2.bf16.msra.mxu0 %v3501
    %3763 = vmatprep.subr.bf16.mxu0 %v3494
    %3764 = vmatpush2.bf16.msra.mxu0 %v3493
    %3765 = vmatprep.subr.bf16.mxu0 %v3486
    %3766 = vmatpush2.bf16.msra.mxu0 %v3485
    %3767 = vmatprep.subr.bf16.mxu0 %v3478
    %3768 = vmatpush2.bf16.msra.mxu0 %v3477
    %3769 = vmatprep.subr.bf16.mxu0 %v3470
    %3770 = vmatpush2.bf16.msra.mxu0 %v3469
    %3771 = vmatprep.mubr.bf16.mxu0 %v199
    %3772 = vmatmul.mubr.bf16.gmra.mxu0 %v192
    %v3773 = vpop.f32.mrf.mxu0
    %v3774 = vadd.f32 0.0, %v3773
    %v3775 = vpop.f32.mrf.mxu0
    %v3776 = vadd.f32 0.0, %v3775
    %v3777 = vpop.f32.mrf.mxu0
    %v3778 = vpop.f32.mrf.mxu0
    %3779 = vdwg.mxu0
    %3780 = vmatprep.subr.bf16.mxu0 %v3464
    %3781 = vmatpush1.bf16.msra.mxu0 %v3463
    %3782 = vmatprep.subr.bf16.mxu0 %v3456
    %3783 = vmatpush1.bf16.msra.mxu0 %v3455
    %3784 = vmatprep.subr.bf16.mxu0 %v3448
    %3785 = vmatpush1.bf16.msra.mxu0 %v3447
    %3786 = vmatprep.subr.bf16.mxu0 %v3440
    %3787 = vmatpush1.bf16.msra.mxu0 %v3439
    %3788 = vmatprep.subr.bf16.mxu0 %v3432
    %3789 = vmatpush1.bf16.msra.mxu0 %v3431
    %3790 = vmatprep.subr.bf16.mxu0 %v3424
    %3791 = vmatpush1.bf16.msra.mxu0 %v3423
    %3792 = vmatprep.subr.bf16.mxu0 %v3416
    %3793 = vmatpush1.bf16.msra.mxu0 %v3415
    %3794 = vmatprep.subr.bf16.mxu0 %v3408
    %3795 = vmatpush1.bf16.msra.mxu0 %v3407
    %3796 = vmatprep.subr.bf16.mxu0 %v3528
    %3797 = vmatpush2.bf16.msra.mxu0 %v3527
    %3798 = vmatprep.subr.bf16.mxu0 %v3520
    %3799 = vmatpush2.bf16.msra.mxu0 %v3519
    %3800 = vmatprep.subr.bf16.mxu0 %v3512
    %3801 = vmatpush2.bf16.msra.mxu0 %v3511
    %3802 = vmatprep.subr.bf16.mxu0 %v3504
    %3803 = vmatpush2.bf16.msra.mxu0 %v3503
    %3804 = vmatprep.subr.bf16.mxu0 %v3496
    %3805 = vmatpush2.bf16.msra.mxu0 %v3495
    %3806 = vmatprep.subr.bf16.mxu0 %v3488
    %3807 = vmatpush2.bf16.msra.mxu0 %v3487
    %3808 = vmatprep.subr.bf16.mxu0 %v3480
    %3809 = vmatpush2.bf16.msra.mxu0 %v3479
    %3810 = vmatprep.subr.bf16.mxu0 %v3472
    %3811 = vmatpush2.bf16.msra.mxu0 %v3471
    %3812 = vmatprep.mubr.bf16.mxu0 %v199
    %3813 = vmatmul.mubr.bf16.gmra.mxu0 %v192
    %v3814 = vpop.f32.mrf.mxu0
    %v3815 = vadd.f32 0.0, %v3814
    %v3816 = vpop.f32.mrf.mxu0
    %v3817 = vadd.f32 0.0, %v3816
    %v3818 = vpop.f32.mrf.mxu0
    %v3819 = vpop.f32.mrf.mxu0
    %3820 = vdwg.mxu0
    %v3821 = vmax.f32 %v2880, %v3692
    %v3822 = vmax.f32 %v2881, %v3694
    %v3823 = vmax.f32 %v2882, %v3733
    %v3824 = vmax.f32 %v2883, %v3735
    %v3825 = vmax.f32 %v2884, %v3774
    %v3826 = vmax.f32 %v2885, %v3776
    %v3827 = vmax.f32 %v2886, %v3815
    %v3828 = vmax.f32 %v2887, %v3817
    %v3829 = vld [vmem:[%s2] sm:$0xff]
    %v3831 = vlaneseq
    %v3832 = vshrl.u32 %v3831, 7
    %v3833 = vsub.s32 0, %v3832
    %v3834 = vrot.slane %v3829, %v3833
    %v3835 = vlaneseq
    %v3836 = vshrl.u32 %v3835, 7
    %v3837 = vsub.s32 1, %v3836
    %v3838 = vrot.slane %v3829, %v3837
    %v3839 = vlaneseq
    %v3840 = vshrl.u32 %v3839, 7
    %v3841 = vsub.s32 2, %v3840
    %v3842 = vrot.slane %v3829, %v3841
    %v3843 = vlaneseq
    %v3844 = vshrl.u32 %v3843, 7
    %v3845 = vsub.s32 3, %v3844
    %v3846 = vrot.slane %v3829, %v3845
    %v3847 = vlaneseq
    %v3848 = vshrl.u32 %v3847, 7
    %v3849 = vsub.s32 4, %v3848
    %v3850 = vrot.slane %v3829, %v3849
    %v3851 = vlaneseq
    %v3852 = vshrl.u32 %v3851, 7
    %v3853 = vsub.s32 5, %v3852
    %v3854 = vrot.slane %v3829, %v3853
    %v3855 = vlaneseq
    %v3856 = vshrl.u32 %v3855, 7
    %v3857 = vsub.s32 6, %v3856
    %v3858 = vrot.slane %v3829, %v3857
    %v3859 = vlaneseq
    %v3860 = vshrl.u32 %v3859, 7
    %v3861 = vsub.s32 7, %v3860
    %v3862 = vrot.slane %v3829, %v3861
    %v3871 = vadd.f32 %v3821, %v3834
    %v3872 = vadd.f32 %v3822, %v3838
    %v3873 = vadd.f32 %v3823, %v3842
    %v3874 = vadd.f32 %v3824, %v3846
    %v3875 = vadd.f32 %v3825, %v3850
    %v3876 = vadd.f32 %v3826, %v3854
    %v3877 = vadd.f32 %v3827, %v3858
    %v3878 = vadd.f32 %v3828, %v3862
    %v3879 = vmax.f32 %v3871, 0.0
    %v3880 = vmax.f32 %v3872, 0.0
    %v3881 = vmax.f32 %v3873, 0.0
    %v3882 = vmax.f32 %v3874, 0.0
    %v3883 = vmax.f32 %v3875, 0.0
    %v3884 = vmax.f32 %v3876, 0.0
    %v3885 = vmax.f32 %v3877, 0.0
    %v3886 = vmax.f32 %v3878, 0.0
    %v3887 = vld [vmem:[%s3] sm:$0xf]
    %v3888 = vld [vmem:[%s3 + $0x4] sm:$0xf]
    %v3889 = vld [vmem:[%s3 + $0x8] sm:$0xf]
    %v3890 = vld [vmem:[%s3 + $0xc] sm:$0xf]
    %v3891 = vld [vmem:[%s3 + $0x10] sm:$0xf]
    %v3892 = vld [vmem:[%s3 + $0x14] sm:$0xf]
    %v3893 = vld [vmem:[%s3 + $0x18] sm:$0xf]
    %v3894 = vld [vmem:[%s3 + $0x1c] sm:$0xf]
    %v3895 = vld [vmem:[%s3 + $0x20] sm:$0xf]
    %v3896 = vld [vmem:[%s3 + $0x24] sm:$0xf]
    %v3897 = vld [vmem:[%s3 + $0x28] sm:$0xf]
    %v3898 = vld [vmem:[%s3 + $0x2c] sm:$0xf]
    %v3899 = vld [vmem:[%s3 + $0x30] sm:$0xf]
    %v3900 = vld [vmem:[%s3 + $0x34] sm:$0xf]
    %v3901 = vld [vmem:[%s3 + $0x38] sm:$0xf]
    %v3902 = vld [vmem:[%s3 + $0x3c] sm:$0xf]
    %v3903 = vld [vmem:[%s3 + $0x40] sm:$0xf]
    %v3904 = vld [vmem:[%s3 + $0x44] sm:$0xf]
    %v3905 = vld [vmem:[%s3 + $0x48] sm:$0xf]
    %v3906 = vld [vmem:[%s3 + $0x4c] sm:$0xf]
    %v3907 = vld [vmem:[%s3 + $0x50] sm:$0xf]
    %v3908 = vld [vmem:[%s3 + $0x54] sm:$0xf]
    %v3909 = vld [vmem:[%s3 + $0x58] sm:$0xf]
    %v3910 = vld [vmem:[%s3 + $0x5c] sm:$0xf]
    %v3911 = vld [vmem:[%s3 + $0x60] sm:$0xf]
    %v3912 = vld [vmem:[%s3 + $0x64] sm:$0xf]
    %v3913 = vld [vmem:[%s3 + $0x68] sm:$0xf]
    %v3914 = vld [vmem:[%s3 + $0x6c] sm:$0xf]
    %v3915 = vld [vmem:[%s3 + $0x70] sm:$0xf]
    %v3916 = vld [vmem:[%s3 + $0x74] sm:$0xf]
    %v3917 = vld [vmem:[%s3 + $0x78] sm:$0xf]
    %v3918 = vld [vmem:[%s3 + $0x7c] sm:$0xf]
    %v3919 = vld [vmem:[%s3 + $0x80] sm:$0xf]
    %v3920 = vld [vmem:[%s3 + $0x84] sm:$0xf]
    %v3921 = vld [vmem:[%s3 + $0x88] sm:$0xf]
    %v3922 = vld [vmem:[%s3 + $0x8c] sm:$0xf]
    %v3923 = vld [vmem:[%s3 + $0x90] sm:$0xf]
    %v3924 = vld [vmem:[%s3 + $0x94] sm:$0xf]
    %v3925 = vld [vmem:[%s3 + $0x98] sm:$0xf]
    %v3926 = vld [vmem:[%s3 + $0x9c] sm:$0xf]
    %v3927 = vld [vmem:[%s3 + $0xa0] sm:$0xf]
    %v3928 = vld [vmem:[%s3 + $0xa4] sm:$0xf]
    %v3929 = vld [vmem:[%s3 + $0xa8] sm:$0xf]
    %v3930 = vld [vmem:[%s3 + $0xac] sm:$0xf]
    %v3931 = vld [vmem:[%s3 + $0xb0] sm:$0xf]
    %v3932 = vld [vmem:[%s3 + $0xb4] sm:$0xf]
    %v3933 = vld [vmem:[%s3 + $0xb8] sm:$0xf]
    %v3934 = vld [vmem:[%s3 + $0xbc] sm:$0xf]
    %v3935 = vld [vmem:[%s3 + $0xc0] sm:$0xf]
    %v3936 = vld [vmem:[%s3 + $0xc4] sm:$0xf]
    %v3937 = vld [vmem:[%s3 + $0xc8] sm:$0xf]
    %v3938 = vld [vmem:[%s3 + $0xcc] sm:$0xf]
    %v3939 = vld [vmem:[%s3 + $0xd0] sm:$0xf]
    %v3940 = vld [vmem:[%s3 + $0xd4] sm:$0xf]
    %v3941 = vld [vmem:[%s3 + $0xd8] sm:$0xf]
    %v3942 = vld [vmem:[%s3 + $0xdc] sm:$0xf]
    %v3943 = vld [vmem:[%s3 + $0xe0] sm:$0xf]
    %v3944 = vld [vmem:[%s3 + $0xe4] sm:$0xf]
    %v3945 = vld [vmem:[%s3 + $0xe8] sm:$0xf]
    %v3946 = vld [vmem:[%s3 + $0xec] sm:$0xf]
    %v3947 = vld [vmem:[%s3 + $0xf0] sm:$0xf]
    %v3948 = vld [vmem:[%s3 + $0xf4] sm:$0xf]
    %v3949 = vld [vmem:[%s3 + $0xf8] sm:$0xf]
    %v3950 = vld [vmem:[%s3 + $0xfc] sm:$0xf]
    %v3951 = vld [vmem:[%s3 + $0x100] sm:$0xf]
    %v3952 = vld [vmem:[%s3 + $0x104] sm:$0xf]
    %v3953 = vld [vmem:[%s3 + $0x108] sm:$0xf]
    %v3954 = vld [vmem:[%s3 + $0x10c] sm:$0xf]
    %v3955 = vld [vmem:[%s3 + $0x110] sm:$0xf]
    %v3956 = vld [vmem:[%s3 + $0x114] sm:$0xf]
    %v3957 = vld [vmem:[%s3 + $0x118] sm:$0xf]
    %v3958 = vld [vmem:[%s3 + $0x11c] sm:$0xf]
    %v3959 = vld [vmem:[%s3 + $0x120] sm:$0xf]
    %v3960 = vld [vmem:[%s3 + $0x124] sm:$0xf]
    %v3961 = vld [vmem:[%s3 + $0x128] sm:$0xf]
    %v3962 = vld [vmem:[%s3 + $0x12c] sm:$0xf]
    %v3963 = vld [vmem:[%s3 + $0x130] sm:$0xf]
    %v3964 = vld [vmem:[%s3 + $0x134] sm:$0xf]
    %v3965 = vld [vmem:[%s3 + $0x138] sm:$0xf]
    %v3966 = vld [vmem:[%s3 + $0x13c] sm:$0xf]
    %v3967 = vld [vmem:[%s3 + $0x140] sm:$0xf]
    %v3968 = vld [vmem:[%s3 + $0x144] sm:$0xf]
    %v3969 = vld [vmem:[%s3 + $0x148] sm:$0xf]
    %v3970 = vld [vmem:[%s3 + $0x14c] sm:$0xf]
    %v3971 = vld [vmem:[%s3 + $0x150] sm:$0xf]
    %v3972 = vld [vmem:[%s3 + $0x154] sm:$0xf]
    %v3973 = vld [vmem:[%s3 + $0x158] sm:$0xf]
    %v3974 = vld [vmem:[%s3 + $0x15c] sm:$0xf]
    %v3975 = vld [vmem:[%s3 + $0x160] sm:$0xf]
    %v3976 = vld [vmem:[%s3 + $0x164] sm:$0xf]
    %v3977 = vld [vmem:[%s3 + $0x168] sm:$0xf]
    %v3978 = vld [vmem:[%s3 + $0x16c] sm:$0xf]
    %v3979 = vld [vmem:[%s3 + $0x170] sm:$0xf]
    %v3980 = vld [vmem:[%s3 + $0x174] sm:$0xf]
    %v3981 = vld [vmem:[%s3 + $0x178] sm:$0xf]
    %v3982 = vld [vmem:[%s3 + $0x17c] sm:$0xf]
    %v3983 = vld [vmem:[%s3 + $0x180] sm:$0xf]
    %v3984 = vld [vmem:[%s3 + $0x184] sm:$0xf]
    %v3985 = vld [vmem:[%s3 + $0x188] sm:$0xf]
    %v3986 = vld [vmem:[%s3 + $0x18c] sm:$0xf]
    %v3987 = vld [vmem:[%s3 + $0x190] sm:$0xf]
    %v3988 = vld [vmem:[%s3 + $0x194] sm:$0xf]
    %v3989 = vld [vmem:[%s3 + $0x198] sm:$0xf]
    %v3990 = vld [vmem:[%s3 + $0x19c] sm:$0xf]
    %v3991 = vld [vmem:[%s3 + $0x1a0] sm:$0xf]
    %v3992 = vld [vmem:[%s3 + $0x1a4] sm:$0xf]
    %v3993 = vld [vmem:[%s3 + $0x1a8] sm:$0xf]
    %v3994 = vld [vmem:[%s3 + $0x1ac] sm:$0xf]
    %v3995 = vld [vmem:[%s3 + $0x1b0] sm:$0xf]
    %v3996 = vld [vmem:[%s3 + $0x1b4] sm:$0xf]
    %v3997 = vld [vmem:[%s3 + $0x1b8] sm:$0xf]
    %v3998 = vld [vmem:[%s3 + $0x1bc] sm:$0xf]
    %v3999 = vld [vmem:[%s3 + $0x1c0] sm:$0xf]
    %v4000 = vld [vmem:[%s3 + $0x1c4] sm:$0xf]
    %v4001 = vld [vmem:[%s3 + $0x1c8] sm:$0xf]
    %v4002 = vld [vmem:[%s3 + $0x1cc] sm:$0xf]
    %v4003 = vld [vmem:[%s3 + $0x1d0] sm:$0xf]
    %v4004 = vld [vmem:[%s3 + $0x1d4] sm:$0xf]
    %v4005 = vld [vmem:[%s3 + $0x1d8] sm:$0xf]
    %v4006 = vld [vmem:[%s3 + $0x1dc] sm:$0xf]
    %v4007 = vld [vmem:[%s3 + $0x1e0] sm:$0xf]
    %v4008 = vld [vmem:[%s3 + $0x1e4] sm:$0xf]
    %v4009 = vld [vmem:[%s3 + $0x1e8] sm:$0xf]
    %v4010 = vld [vmem:[%s3 + $0x1ec] sm:$0xf]
    %v4011 = vld [vmem:[%s3 + $0x1f0] sm:$0xf]
    %v4012 = vld [vmem:[%s3 + $0x1f4] sm:$0xf]
    %v4013 = vld [vmem:[%s3 + $0x1f8] sm:$0xf]
    %v4014 = vld [vmem:[%s3 + $0x1fc] sm:$0xf]
    %v4015 = vpack.c.bf16 %v3879, %v3879
    %v4016 = vpack.c.bf16 %v3880, %v3880
    %v4017 = vpack.c.bf16 %v3881, %v3881
    %v4018 = vpack.c.bf16 %v3882, %v3882
    %v4019 = vpack.c.bf16 %v3883, %v3883
    %v4020 = vpack.c.bf16 %v3884, %v3884
    %v4021 = vpack.c.bf16 %v3885, %v3885
    %v4022 = vpack.c.bf16 %v3886, %v3886
    %v4151 = vunpack.c.l.b16 %v3887
    %v4152 = vunpack.c.l.b16 %v3888
    %v4153 = vunpack.c.l.b16 %v3889
    %v4154 = vunpack.c.l.b16 %v3890
    %v4155 = vunpack.c.l.b16 %v3891
    %v4156 = vunpack.c.l.b16 %v3892
    %v4157 = vunpack.c.l.b16 %v3893
    %v4158 = vunpack.c.l.b16 %v3894
    %v4159 = vunpack.c.l.b16 %v3895
    %v4160 = vunpack.c.l.b16 %v3896
    %v4161 = vunpack.c.l.b16 %v3897
    %v4162 = vunpack.c.l.b16 %v3898
    %v4163 = vunpack.c.l.b16 %v3899
    %v4164 = vunpack.c.l.b16 %v3900
    %v4165 = vunpack.c.l.b16 %v3901
    %v4166 = vunpack.c.l.b16 %v3902
    %v4167 = vunpack.c.l.b16 %v3903
    %v4168 = vunpack.c.l.b16 %v3904
    %v4169 = vunpack.c.l.b16 %v3905
    %v4170 = vunpack.c.l.b16 %v3906
    %v4171 = vunpack.c.l.b16 %v3907
    %v4172 = vunpack.c.l.b16 %v3908
    %v4173 = vunpack.c.l.b16 %v3909
    %v4174 = vunpack.c.l.b16 %v3910
    %v4175 = vunpack.c.l.b16 %v3911
    %v4176 = vunpack.c.l.b16 %v3912
    %v4177 = vunpack.c.l.b16 %v3913
    %v4178 = vunpack.c.l.b16 %v3914
    %v4179 = vunpack.c.l.b16 %v3915
    %v4180 = vunpack.c.l.b16 %v3916
    %v4181 = vunpack.c.l.b16 %v3917
    %v4182 = vunpack.c.l.b16 %v3918
    %v4183 = vunpack.c.l.b16 %v3919
    %v4184 = vunpack.c.l.b16 %v3920
    %v4185 = vunpack.c.l.b16 %v3921
    %v4186 = vunpack.c.l.b16 %v3922
    %v4187 = vunpack.c.l.b16 %v3923
    %v4188 = vunpack.c.l.b16 %v3924
    %v4189 = vunpack.c.l.b16 %v3925
    %v4190 = vunpack.c.l.b16 %v3926
    %v4191 = vunpack.c.l.b16 %v3927
    %v4192 = vunpack.c.l.b16 %v3928
    %v4193 = vunpack.c.l.b16 %v3929
    %v4194 = vunpack.c.l.b16 %v3930
    %v4195 = vunpack.c.l.b16 %v3931
    %v4196 = vunpack.c.l.b16 %v3932
    %v4197 = vunpack.c.l.b16 %v3933
    %v4198 = vunpack.c.l.b16 %v3934
    %v4199 = vunpack.c.l.b16 %v3935
    %v4200 = vunpack.c.l.b16 %v3936
    %v4201 = vunpack.c.l.b16 %v3937
    %v4202 = vunpack.c.l.b16 %v3938
    %v4203 = vunpack.c.l.b16 %v3939
    %v4204 = vunpack.c.l.b16 %v3940
    %v4205 = vunpack.c.l.b16 %v3941
    %v4206 = vunpack.c.l.b16 %v3942
    %v4207 = vunpack.c.l.b16 %v3943
    %v4208 = vunpack.c.l.b16 %v3944
    %v4209 = vunpack.c.l.b16 %v3945
    %v4210 = vunpack.c.l.b16 %v3946
    %v4211 = vunpack.c.l.b16 %v3947
    %v4212 = vunpack.c.l.b16 %v3948
    %v4213 = vunpack.c.l.b16 %v3949
    %v4214 = vunpack.c.l.b16 %v3950
    %v4215 = vunpack.c.l.b16 %v3951
    %v4216 = vunpack.c.l.b16 %v3952
    %v4217 = vunpack.c.l.b16 %v3953
    %v4218 = vunpack.c.l.b16 %v3954
    %v4219 = vunpack.c.l.b16 %v3955
    %v4220 = vunpack.c.l.b16 %v3956
    %v4221 = vunpack.c.l.b16 %v3957
    %v4222 = vunpack.c.l.b16 %v3958
    %v4223 = vunpack.c.l.b16 %v3959
    %v4224 = vunpack.c.l.b16 %v3960
    %v4225 = vunpack.c.l.b16 %v3961
    %v4226 = vunpack.c.l.b16 %v3962
    %v4227 = vunpack.c.l.b16 %v3963
    %v4228 = vunpack.c.l.b16 %v3964
    %v4229 = vunpack.c.l.b16 %v3965
    %v4230 = vunpack.c.l.b16 %v3966
    %v4231 = vunpack.c.l.b16 %v3967
    %v4232 = vunpack.c.l.b16 %v3968
    %v4233 = vunpack.c.l.b16 %v3969
    %v4234 = vunpack.c.l.b16 %v3970
    %v4235 = vunpack.c.l.b16 %v3971
    %v4236 = vunpack.c.l.b16 %v3972
    %v4237 = vunpack.c.l.b16 %v3973
    %v4238 = vunpack.c.l.b16 %v3974
    %v4239 = vunpack.c.l.b16 %v3975
    %v4240 = vunpack.c.l.b16 %v3976
    %v4241 = vunpack.c.l.b16 %v3977
    %v4242 = vunpack.c.l.b16 %v3978
    %v4243 = vunpack.c.l.b16 %v3979
    %v4244 = vunpack.c.l.b16 %v3980
    %v4245 = vunpack.c.l.b16 %v3981
    %v4246 = vunpack.c.l.b16 %v3982
    %v4247 = vunpack.c.l.b16 %v3983
    %v4248 = vunpack.c.l.b16 %v3984
    %v4249 = vunpack.c.l.b16 %v3985
    %v4250 = vunpack.c.l.b16 %v3986
    %v4251 = vunpack.c.l.b16 %v3987
    %v4252 = vunpack.c.l.b16 %v3988
    %v4253 = vunpack.c.l.b16 %v3989
    %v4254 = vunpack.c.l.b16 %v3990
    %v4255 = vunpack.c.l.b16 %v3991
    %v4256 = vunpack.c.l.b16 %v3992
    %v4257 = vunpack.c.l.b16 %v3993
    %v4258 = vunpack.c.l.b16 %v3994
    %v4259 = vunpack.c.l.b16 %v3995
    %v4260 = vunpack.c.l.b16 %v3996
    %v4261 = vunpack.c.l.b16 %v3997
    %v4262 = vunpack.c.l.b16 %v3998
    %v4263 = vunpack.c.l.b16 %v3999
    %v4264 = vunpack.c.l.b16 %v4000
    %v4265 = vunpack.c.l.b16 %v4001
    %v4266 = vunpack.c.l.b16 %v4002
    %v4267 = vunpack.c.l.b16 %v4003
    %v4268 = vunpack.c.l.b16 %v4004
    %v4269 = vunpack.c.l.b16 %v4005
    %v4270 = vunpack.c.l.b16 %v4006
    %v4271 = vunpack.c.l.b16 %v4007
    %v4272 = vunpack.c.l.b16 %v4008
    %v4273 = vunpack.c.l.b16 %v4009
    %v4274 = vunpack.c.l.b16 %v4010
    %v4275 = vunpack.c.l.b16 %v4011
    %v4276 = vunpack.c.l.b16 %v4012
    %v4277 = vunpack.c.l.b16 %v4013
    %v4278 = vunpack.c.l.b16 %v4014
    %v4279 = vpack.c.b16 %v4152, %v4151
    %v4280 = vpack.c.b16 %v4154, %v4153
    %v4281 = vpack.c.b16 %v4156, %v4155
    %v4282 = vpack.c.b16 %v4158, %v4157
    %v4283 = vpack.c.b16 %v4160, %v4159
    %v4284 = vpack.c.b16 %v4162, %v4161
    %v4285 = vpack.c.b16 %v4164, %v4163
    %v4286 = vpack.c.b16 %v4166, %v4165
    %v4287 = vpack.c.b16 %v4168, %v4167
    %v4288 = vpack.c.b16 %v4170, %v4169
    %v4289 = vpack.c.b16 %v4172, %v4171
    %v4290 = vpack.c.b16 %v4174, %v4173
    %v4291 = vpack.c.b16 %v4176, %v4175
    %v4292 = vpack.c.b16 %v4178, %v4177
    %v4293 = vpack.c.b16 %v4180, %v4179
    %v4294 = vpack.c.b16 %v4182, %v4181
    %v4295 = vpack.c.b16 %v4184, %v4183
    %v4296 = vpack.c.b16 %v4186, %v4185
    %v4297 = vpack.c.b16 %v4188, %v4187
    %v4298 = vpack.c.b16 %v4190, %v4189
    %v4299 = vpack.c.b16 %v4192, %v4191
    %v4300 = vpack.c.b16 %v4194, %v4193
    %v4301 = vpack.c.b16 %v4196, %v4195
    %v4302 = vpack.c.b16 %v4198, %v4197
    %v4303 = vpack.c.b16 %v4200, %v4199
    %v4304 = vpack.c.b16 %v4202, %v4201
    %v4305 = vpack.c.b16 %v4204, %v4203
    %v4306 = vpack.c.b16 %v4206, %v4205
    %v4307 = vpack.c.b16 %v4208, %v4207
    %v4308 = vpack.c.b16 %v4210, %v4209
    %v4309 = vpack.c.b16 %v4212, %v4211
    %v4310 = vpack.c.b16 %v4214, %v4213
    %v4311 = vpack.c.b16 %v4216, %v4215
    %v4312 = vpack.c.b16 %v4218, %v4217
    %v4313 = vpack.c.b16 %v4220, %v4219
    %v4314 = vpack.c.b16 %v4222, %v4221
    %v4315 = vpack.c.b16 %v4224, %v4223
    %v4316 = vpack.c.b16 %v4226, %v4225
    %v4317 = vpack.c.b16 %v4228, %v4227
    %v4318 = vpack.c.b16 %v4230, %v4229
    %v4319 = vpack.c.b16 %v4232, %v4231
    %v4320 = vpack.c.b16 %v4234, %v4233
    %v4321 = vpack.c.b16 %v4236, %v4235
    %v4322 = vpack.c.b16 %v4238, %v4237
    %v4323 = vpack.c.b16 %v4240, %v4239
    %v4324 = vpack.c.b16 %v4242, %v4241
    %v4325 = vpack.c.b16 %v4244, %v4243
    %v4326 = vpack.c.b16 %v4246, %v4245
    %v4327 = vpack.c.b16 %v4248, %v4247
    %v4328 = vpack.c.b16 %v4250, %v4249
    %v4329 = vpack.c.b16 %v4252, %v4251
    %v4330 = vpack.c.b16 %v4254, %v4253
    %v4331 = vpack.c.b16 %v4256, %v4255
    %v4332 = vpack.c.b16 %v4258, %v4257
    %v4333 = vpack.c.b16 %v4260, %v4259
    %v4334 = vpack.c.b16 %v4262, %v4261
    %v4335 = vpack.c.b16 %v4264, %v4263
    %v4336 = vpack.c.b16 %v4266, %v4265
    %v4337 = vpack.c.b16 %v4268, %v4267
    %v4338 = vpack.c.b16 %v4270, %v4269
    %v4339 = vpack.c.b16 %v4272, %v4271
    %v4340 = vpack.c.b16 %v4274, %v4273
    %v4341 = vpack.c.b16 %v4276, %v4275
    %v4342 = vpack.c.b16 %v4278, %v4277
    %4407 = vmatprep.subr.bf16.mxu0 0
    %4408 = vmatpush1.bf16.msra.mxu0 %v4286
    %4409 = vmatprep.subr.bf16.mxu0 0
    %4410 = vmatpush1.bf16.msra.mxu0 %v4285
    %4411 = vmatprep.subr.bf16.mxu0 0
    %4412 = vmatpush1.bf16.msra.mxu0 %v4284
    %4413 = vmatprep.subr.bf16.mxu0 0
    %4414 = vmatpush1.bf16.msra.mxu0 %v4283
    %4415 = vmatprep.subr.bf16.mxu0 0
    %4416 = vmatpush1.bf16.msra.mxu0 %v4282
    %4417 = vmatprep.subr.bf16.mxu0 0
    %4418 = vmatpush1.bf16.msra.mxu0 %v4281
    %4419 = vmatprep.subr.bf16.mxu0 0
    %4420 = vmatpush1.bf16.msra.mxu0 %v4280
    %4421 = vmatprep.subr.bf16.mxu0 0
    %4422 = vmatpush1.bf16.msra.mxu0 %v4279
    %4423 = vmatprep.subr.bf16.mxu0 0
    %4424 = vmatpush2.bf16.msra.mxu0 %v4294
    %4425 = vmatprep.subr.bf16.mxu0 0
    %4426 = vmatpush2.bf16.msra.mxu0 %v4293
    %4427 = vmatprep.subr.bf16.mxu0 0
    %4428 = vmatpush2.bf16.msra.mxu0 %v4292
    %4429 = vmatprep.subr.bf16.mxu0 0
    %4430 = vmatpush2.bf16.msra.mxu0 %v4291
    %4431 = vmatprep.subr.bf16.mxu0 0
    %4432 = vmatpush2.bf16.msra.mxu0 %v4290
    %4433 = vmatprep.subr.bf16.mxu0 0
    %4434 = vmatpush2.bf16.msra.mxu0 %v4289
    %4435 = vmatprep.subr.bf16.mxu0 0
    %4436 = vmatpush2.bf16.msra.mxu0 %v4288
    %4437 = vmatprep.subr.bf16.mxu0 0
    %4438 = vmatpush2.bf16.msra.mxu0 %v4287
    %4439 = vmatprep.mubr.bf16.mxu0 %v4016
    %4440 = vmatmul.mubr.bf16.gmra.mxu0 %v4015
    %v4441 = vpop.f32.mrf.mxu0
    %v4442 = vadd.f32 0.0, %v4441
    %v4443 = vpop.f32.mrf.mxu0
    %v4444 = vpop.f32.mrf.mxu0
    %v4445 = vpop.f32.mrf.mxu0
    %4446 = vdwg.mxu0
    %4447 = vmatprep.subr.bf16.mxu0 0
    %4448 = vmatpush1.bf16.msra.mxu0 %v4302
    %4449 = vmatprep.subr.bf16.mxu0 0
    %4450 = vmatpush1.bf16.msra.mxu0 %v4301
    %4451 = vmatprep.subr.bf16.mxu0 0
    %4452 = vmatpush1.bf16.msra.mxu0 %v4300
    %4453 = vmatprep.subr.bf16.mxu0 0
    %4454 = vmatpush1.bf16.msra.mxu0 %v4299
    %4455 = vmatprep.subr.bf16.mxu0 0
    %4456 = vmatpush1.bf16.msra.mxu0 %v4298
    %4457 = vmatprep.subr.bf16.mxu0 0
    %4458 = vmatpush1.bf16.msra.mxu0 %v4297
    %4459 = vmatprep.subr.bf16.mxu0 0
    %4460 = vmatpush1.bf16.msra.mxu0 %v4296
    %4461 = vmatprep.subr.bf16.mxu0 0
    %4462 = vmatpush1.bf16.msra.mxu0 %v4295
    %4463 = vmatprep.subr.bf16.mxu0 0
    %4464 = vmatpush2.bf16.msra.mxu0 %v4310
    %4465 = vmatprep.subr.bf16.mxu0 0
    %4466 = vmatpush2.bf16.msra.mxu0 %v4309
    %4467 = vmatprep.subr.bf16.mxu0 0
    %4468 = vmatpush2.bf16.msra.mxu0 %v4308
    %4469 = vmatprep.subr.bf16.mxu0 0
    %4470 = vmatpush2.bf16.msra.mxu0 %v4307
    %4471 = vmatprep.subr.bf16.mxu0 0
    %4472 = vmatpush2.bf16.msra.mxu0 %v4306
    %4473 = vmatprep.subr.bf16.mxu0 0
    %4474 = vmatpush2.bf16.msra.mxu0 %v4305
    %4475 = vmatprep.subr.bf16.mxu0 0
    %4476 = vmatpush2.bf16.msra.mxu0 %v4304
    %4477 = vmatprep.subr.bf16.mxu0 0
    %4478 = vmatpush2.bf16.msra.mxu0 %v4303
    %4479 = vmatprep.mubr.bf16.mxu0 %v4018
    %4480 = vmatmul.mubr.bf16.gmra.mxu0 %v4017
    %v4481 = vpop.f32.mrf.mxu0
    %v4482 = vadd.f32 %v4442, %v4481
    %v4483 = vpop.f32.mrf.mxu0
    %v4484 = vpop.f32.mrf.mxu0
    %v4485 = vpop.f32.mrf.mxu0
    %4486 = vdwg.mxu0
    %4487 = vmatprep.subr.bf16.mxu0 0
    %4488 = vmatpush1.bf16.msra.mxu0 %v4318
    %4489 = vmatprep.subr.bf16.mxu0 0
    %4490 = vmatpush1.bf16.msra.mxu0 %v4317
    %4491 = vmatprep.subr.bf16.mxu0 0
    %4492 = vmatpush1.bf16.msra.mxu0 %v4316
    %4493 = vmatprep.subr.bf16.mxu0 0
    %4494 = vmatpush1.bf16.msra.mxu0 %v4315
    %4495 = vmatprep.subr.bf16.mxu0 0
    %4496 = vmatpush1.bf16.msra.mxu0 %v4314
    %4497 = vmatprep.subr.bf16.mxu0 0
    %4498 = vmatpush1.bf16.msra.mxu0 %v4313
    %4499 = vmatprep.subr.bf16.mxu0 0
    %4500 = vmatpush1.bf16.msra.mxu0 %v4312
    %4501 = vmatprep.subr.bf16.mxu0 0
    %4502 = vmatpush1.bf16.msra.mxu0 %v4311
    %4503 = vmatprep.subr.bf16.mxu0 0
    %4504 = vmatpush2.bf16.msra.mxu0 %v4326
    %4505 = vmatprep.subr.bf16.mxu0 0
    %4506 = vmatpush2.bf16.msra.mxu0 %v4325
    %4507 = vmatprep.subr.bf16.mxu0 0
    %4508 = vmatpush2.bf16.msra.mxu0 %v4324
    %4509 = vmatprep.subr.bf16.mxu0 0
    %4510 = vmatpush2.bf16.msra.mxu0 %v4323
    %4511 = vmatprep.subr.bf16.mxu0 0
    %4512 = vmatpush2.bf16.msra.mxu0 %v4322
    %4513 = vmatprep.subr.bf16.mxu0 0
    %4514 = vmatpush2.bf16.msra.mxu0 %v4321
    %4515 = vmatprep.subr.bf16.mxu0 0
    %4516 = vmatpush2.bf16.msra.mxu0 %v4320
    %4517 = vmatprep.subr.bf16.mxu0 0
    %4518 = vmatpush2.bf16.msra.mxu0 %v4319
    %4519 = vmatprep.mubr.bf16.mxu0 %v4020
    %4520 = vmatmul.mubr.bf16.gmra.mxu0 %v4019
    %v4521 = vpop.f32.mrf.mxu0
    %v4522 = vadd.f32 %v4482, %v4521
    %v4523 = vpop.f32.mrf.mxu0
    %v4524 = vpop.f32.mrf.mxu0
    %v4525 = vpop.f32.mrf.mxu0
    %4526 = vdwg.mxu0
    %4527 = vmatprep.subr.bf16.mxu0 0
    %4528 = vmatpush1.bf16.msra.mxu0 %v4334
    %4529 = vmatprep.subr.bf16.mxu0 0
    %4530 = vmatpush1.bf16.msra.mxu0 %v4333
    %4531 = vmatprep.subr.bf16.mxu0 0
    %4532 = vmatpush1.bf16.msra.mxu0 %v4332
    %4533 = vmatprep.subr.bf16.mxu0 0
    %4534 = vmatpush1.bf16.msra.mxu0 %v4331
    %4535 = vmatprep.subr.bf16.mxu0 0
    %4536 = vmatpush1.bf16.msra.mxu0 %v4330
    %4537 = vmatprep.subr.bf16.mxu0 0
    %4538 = vmatpush1.bf16.msra.mxu0 %v4329
    %4539 = vmatprep.subr.bf16.mxu0 0
    %4540 = vmatpush1.bf16.msra.mxu0 %v4328
    %4541 = vmatprep.subr.bf16.mxu0 0
    %4542 = vmatpush1.bf16.msra.mxu0 %v4327
    %4543 = vmatprep.subr.bf16.mxu0 0
    %4544 = vmatpush2.bf16.msra.mxu0 %v4342
    %4545 = vmatprep.subr.bf16.mxu0 0
    %4546 = vmatpush2.bf16.msra.mxu0 %v4341
    %4547 = vmatprep.subr.bf16.mxu0 0
    %4548 = vmatpush2.bf16.msra.mxu0 %v4340
    %4549 = vmatprep.subr.bf16.mxu0 0
    %4550 = vmatpush2.bf16.msra.mxu0 %v4339
    %4551 = vmatprep.subr.bf16.mxu0 0
    %4552 = vmatpush2.bf16.msra.mxu0 %v4338
    %4553 = vmatprep.subr.bf16.mxu0 0
    %4554 = vmatpush2.bf16.msra.mxu0 %v4337
    %4555 = vmatprep.subr.bf16.mxu0 0
    %4556 = vmatpush2.bf16.msra.mxu0 %v4336
    %4557 = vmatprep.subr.bf16.mxu0 0
    %4558 = vmatpush2.bf16.msra.mxu0 %v4335
    %4559 = vmatprep.mubr.bf16.mxu0 %v4022
    %4560 = vmatmul.mubr.bf16.gmra.mxu0 %v4021
    %v4561 = vpop.f32.mrf.mxu0
    %v4562 = vadd.f32 %v4522, %v4561
    %v4563 = vpop.f32.mrf.mxu0
    %v4564 = vpop.f32.mrf.mxu0
    %v4565 = vpop.f32.mrf.mxu0
    %4566 = vdwg.mxu0
    %s4567 = scalar_lea.vmem %s3, 512
    %v4568 = vld [vmem:[%s4567] sm:$0xf]
    %v4569 = vld [vmem:[%s4567 + $0x4] sm:$0xf]
    %v4570 = vld [vmem:[%s4567 + $0x8] sm:$0xf]
    %v4571 = vld [vmem:[%s4567 + $0xc] sm:$0xf]
    %v4572 = vld [vmem:[%s4567 + $0x10] sm:$0xf]
    %v4573 = vld [vmem:[%s4567 + $0x14] sm:$0xf]
    %v4574 = vld [vmem:[%s4567 + $0x18] sm:$0xf]
    %v4575 = vld [vmem:[%s4567 + $0x1c] sm:$0xf]
    %v4576 = vld [vmem:[%s4567 + $0x20] sm:$0xf]
    %v4577 = vld [vmem:[%s4567 + $0x24] sm:$0xf]
    %v4578 = vld [vmem:[%s4567 + $0x28] sm:$0xf]
    %v4579 = vld [vmem:[%s4567 + $0x2c] sm:$0xf]
    %v4580 = vld [vmem:[%s4567 + $0x30] sm:$0xf]
    %v4581 = vld [vmem:[%s4567 + $0x34] sm:$0xf]
    %v4582 = vld [vmem:[%s4567 + $0x38] sm:$0xf]
    %v4583 = vld [vmem:[%s4567 + $0x3c] sm:$0xf]
    %v4584 = vld [vmem:[%s4567 + $0x40] sm:$0xf]
    %v4585 = vld [vmem:[%s4567 + $0x44] sm:$0xf]
    %v4586 = vld [vmem:[%s4567 + $0x48] sm:$0xf]
    %v4587 = vld [vmem:[%s4567 + $0x4c] sm:$0xf]
    %v4588 = vld [vmem:[%s4567 + $0x50] sm:$0xf]
    %v4589 = vld [vmem:[%s4567 + $0x54] sm:$0xf]
    %v4590 = vld [vmem:[%s4567 + $0x58] sm:$0xf]
    %v4591 = vld [vmem:[%s4567 + $0x5c] sm:$0xf]
    %v4592 = vld [vmem:[%s4567 + $0x60] sm:$0xf]
    %v4593 = vld [vmem:[%s4567 + $0x64] sm:$0xf]
    %v4594 = vld [vmem:[%s4567 + $0x68] sm:$0xf]
    %v4595 = vld [vmem:[%s4567 + $0x6c] sm:$0xf]
    %v4596 = vld [vmem:[%s4567 + $0x70] sm:$0xf]
    %v4597 = vld [vmem:[%s4567 + $0x74] sm:$0xf]
    %v4598 = vld [vmem:[%s4567 + $0x78] sm:$0xf]
    %v4599 = vld [vmem:[%s4567 + $0x7c] sm:$0xf]
    %v4600 = vld [vmem:[%s4567 + $0x80] sm:$0xf]
    %v4601 = vld [vmem:[%s4567 + $0x84] sm:$0xf]
    %v4602 = vld [vmem:[%s4567 + $0x88] sm:$0xf]
    %v4603 = vld [vmem:[%s4567 + $0x8c] sm:$0xf]
    %v4604 = vld [vmem:[%s4567 + $0x90] sm:$0xf]
    %v4605 = vld [vmem:[%s4567 + $0x94] sm:$0xf]
    %v4606 = vld [vmem:[%s4567 + $0x98] sm:$0xf]
    %v4607 = vld [vmem:[%s4567 + $0x9c] sm:$0xf]
    %v4608 = vld [vmem:[%s4567 + $0xa0] sm:$0xf]
    %v4609 = vld [vmem:[%s4567 + $0xa4] sm:$0xf]
    %v4610 = vld [vmem:[%s4567 + $0xa8] sm:$0xf]
    %v4611 = vld [vmem:[%s4567 + $0xac] sm:$0xf]
    %v4612 = vld [vmem:[%s4567 + $0xb0] sm:$0xf]
    %v4613 = vld [vmem:[%s4567 + $0xb4] sm:$0xf]
    %v4614 = vld [vmem:[%s4567 + $0xb8] sm:$0xf]
    %v4615 = vld [vmem:[%s4567 + $0xbc] sm:$0xf]
    %v4616 = vld [vmem:[%s4567 + $0xc0] sm:$0xf]
    %v4617 = vld [vmem:[%s4567 + $0xc4] sm:$0xf]
    %v4618 = vld [vmem:[%s4567 + $0xc8] sm:$0xf]
    %v4619 = vld [vmem:[%s4567 + $0xcc] sm:$0xf]
    %v4620 = vld [vmem:[%s4567 + $0xd0] sm:$0xf]
    %v4621 = vld [vmem:[%s4567 + $0xd4] sm:$0xf]
    %v4622 = vld [vmem:[%s4567 + $0xd8] sm:$0xf]
    %v4623 = vld [vmem:[%s4567 + $0xdc] sm:$0xf]
    %v4624 = vld [vmem:[%s4567 + $0xe0] sm:$0xf]
    %v4625 = vld [vmem:[%s4567 + $0xe4] sm:$0xf]
    %v4626 = vld [vmem:[%s4567 + $0xe8] sm:$0xf]
    %v4627 = vld [vmem:[%s4567 + $0xec] sm:$0xf]
    %v4628 = vld [vmem:[%s4567 + $0xf0] sm:$0xf]
    %v4629 = vld [vmem:[%s4567 + $0xf4] sm:$0xf]
    %v4630 = vld [vmem:[%s4567 + $0xf8] sm:$0xf]
    %v4631 = vld [vmem:[%s4567 + $0xfc] sm:$0xf]
    %v4632 = vld [vmem:[%s4567 + $0x100] sm:$0xf]
    %v4633 = vld [vmem:[%s4567 + $0x104] sm:$0xf]
    %v4634 = vld [vmem:[%s4567 + $0x108] sm:$0xf]
    %v4635 = vld [vmem:[%s4567 + $0x10c] sm:$0xf]
    %v4636 = vld [vmem:[%s4567 + $0x110] sm:$0xf]
    %v4637 = vld [vmem:[%s4567 + $0x114] sm:$0xf]
    %v4638 = vld [vmem:[%s4567 + $0x118] sm:$0xf]
    %v4639 = vld [vmem:[%s4567 + $0x11c] sm:$0xf]
    %v4640 = vld [vmem:[%s4567 + $0x120] sm:$0xf]
    %v4641 = vld [vmem:[%s4567 + $0x124] sm:$0xf]
    %v4642 = vld [vmem:[%s4567 + $0x128] sm:$0xf]
    %v4643 = vld [vmem:[%s4567 + $0x12c] sm:$0xf]
    %v4644 = vld [vmem:[%s4567 + $0x130] sm:$0xf]
    %v4645 = vld [vmem:[%s4567 + $0x134] sm:$0xf]
    %v4646 = vld [vmem:[%s4567 + $0x138] sm:$0xf]
    %v4647 = vld [vmem:[%s4567 + $0x13c] sm:$0xf]
    %v4648 = vld [vmem:[%s4567 + $0x140] sm:$0xf]
    %v4649 = vld [vmem:[%s4567 + $0x144] sm:$0xf]
    %v4650 = vld [vmem:[%s4567 + $0x148] sm:$0xf]
    %v4651 = vld [vmem:[%s4567 + $0x14c] sm:$0xf]
    %v4652 = vld [vmem:[%s4567 + $0x150] sm:$0xf]
    %v4653 = vld [vmem:[%s4567 + $0x154] sm:$0xf]
    %v4654 = vld [vmem:[%s4567 + $0x158] sm:$0xf]
    %v4655 = vld [vmem:[%s4567 + $0x15c] sm:$0xf]
    %v4656 = vld [vmem:[%s4567 + $0x160] sm:$0xf]
    %v4657 = vld [vmem:[%s4567 + $0x164] sm:$0xf]
    %v4658 = vld [vmem:[%s4567 + $0x168] sm:$0xf]
    %v4659 = vld [vmem:[%s4567 + $0x16c] sm:$0xf]
    %v4660 = vld [vmem:[%s4567 + $0x170] sm:$0xf]
    %v4661 = vld [vmem:[%s4567 + $0x174] sm:$0xf]
    %v4662 = vld [vmem:[%s4567 + $0x178] sm:$0xf]
    %v4663 = vld [vmem:[%s4567 + $0x17c] sm:$0xf]
    %v4664 = vld [vmem:[%s4567 + $0x180] sm:$0xf]
    %v4665 = vld [vmem:[%s4567 + $0x184] sm:$0xf]
    %v4666 = vld [vmem:[%s4567 + $0x188] sm:$0xf]
    %v4667 = vld [vmem:[%s4567 + $0x18c] sm:$0xf]
    %v4668 = vld [vmem:[%s4567 + $0x190] sm:$0xf]
    %v4669 = vld [vmem:[%s4567 + $0x194] sm:$0xf]
    %v4670 = vld [vmem:[%s4567 + $0x198] sm:$0xf]
    %v4671 = vld [vmem:[%s4567 + $0x19c] sm:$0xf]
    %v4672 = vld [vmem:[%s4567 + $0x1a0] sm:$0xf]
    %v4673 = vld [vmem:[%s4567 + $0x1a4] sm:$0xf]
    %v4674 = vld [vmem:[%s4567 + $0x1a8] sm:$0xf]
    %v4675 = vld [vmem:[%s4567 + $0x1ac] sm:$0xf]
    %v4676 = vld [vmem:[%s4567 + $0x1b0] sm:$0xf]
    %v4677 = vld [vmem:[%s4567 + $0x1b4] sm:$0xf]
    %v4678 = vld [vmem:[%s4567 + $0x1b8] sm:$0xf]
    %v4679 = vld [vmem:[%s4567 + $0x1bc] sm:$0xf]
    %v4680 = vld [vmem:[%s4567 + $0x1c0] sm:$0xf]
    %v4681 = vld [vmem:[%s4567 + $0x1c4] sm:$0xf]
    %v4682 = vld [vmem:[%s4567 + $0x1c8] sm:$0xf]
    %v4683 = vld [vmem:[%s4567 + $0x1cc] sm:$0xf]
    %v4684 = vld [vmem:[%s4567 + $0x1d0] sm:$0xf]
    %v4685 = vld [vmem:[%s4567 + $0x1d4] sm:$0xf]
    %v4686 = vld [vmem:[%s4567 + $0x1d8] sm:$0xf]
    %v4687 = vld [vmem:[%s4567 + $0x1dc] sm:$0xf]
    %v4688 = vld [vmem:[%s4567 + $0x1e0] sm:$0xf]
    %v4689 = vld [vmem:[%s4567 + $0x1e4] sm:$0xf]
    %v4690 = vld [vmem:[%s4567 + $0x1e8] sm:$0xf]
    %v4691 = vld [vmem:[%s4567 + $0x1ec] sm:$0xf]
    %v4692 = vld [vmem:[%s4567 + $0x1f0] sm:$0xf]
    %v4693 = vld [vmem:[%s4567 + $0x1f4] sm:$0xf]
    %v4694 = vld [vmem:[%s4567 + $0x1f8] sm:$0xf]
    %v4695 = vld [vmem:[%s4567 + $0x1fc] sm:$0xf]
    %v4824 = vunpack.c.l.b16 %v4568
    %v4825 = vunpack.c.l.b16 %v4569
    %v4826 = vunpack.c.l.b16 %v4570
    %v4827 = vunpack.c.l.b16 %v4571
    %v4828 = vunpack.c.l.b16 %v4572
    %v4829 = vunpack.c.l.b16 %v4573
    %v4830 = vunpack.c.l.b16 %v4574
    %v4831 = vunpack.c.l.b16 %v4575
    %v4832 = vunpack.c.l.b16 %v4576
    %v4833 = vunpack.c.l.b16 %v4577
    %v4834 = vunpack.c.l.b16 %v4578
    %v4835 = vunpack.c.l.b16 %v4579
    %v4836 = vunpack.c.l.b16 %v4580
    %v4837 = vunpack.c.l.b16 %v4581
    %v4838 = vunpack.c.l.b16 %v4582
    %v4839 = vunpack.c.l.b16 %v4583
    %v4840 = vunpack.c.l.b16 %v4584
    %v4841 = vunpack.c.l.b16 %v4585
    %v4842 = vunpack.c.l.b16 %v4586
    %v4843 = vunpack.c.l.b16 %v4587
    %v4844 = vunpack.c.l.b16 %v4588
    %v4845 = vunpack.c.l.b16 %v4589
    %v4846 = vunpack.c.l.b16 %v4590
    %v4847 = vunpack.c.l.b16 %v4591
    %v4848 = vunpack.c.l.b16 %v4592
    %v4849 = vunpack.c.l.b16 %v4593
    %v4850 = vunpack.c.l.b16 %v4594
    %v4851 = vunpack.c.l.b16 %v4595
    %v4852 = vunpack.c.l.b16 %v4596
    %v4853 = vunpack.c.l.b16 %v4597
    %v4854 = vunpack.c.l.b16 %v4598
    %v4855 = vunpack.c.l.b16 %v4599
    %v4856 = vunpack.c.l.b16 %v4600
    %v4857 = vunpack.c.l.b16 %v4601
    %v4858 = vunpack.c.l.b16 %v4602
    %v4859 = vunpack.c.l.b16 %v4603
    %v4860 = vunpack.c.l.b16 %v4604
    %v4861 = vunpack.c.l.b16 %v4605
    %v4862 = vunpack.c.l.b16 %v4606
    %v4863 = vunpack.c.l.b16 %v4607
    %v4864 = vunpack.c.l.b16 %v4608
    %v4865 = vunpack.c.l.b16 %v4609
    %v4866 = vunpack.c.l.b16 %v4610
    %v4867 = vunpack.c.l.b16 %v4611
    %v4868 = vunpack.c.l.b16 %v4612
    %v4869 = vunpack.c.l.b16 %v4613
    %v4870 = vunpack.c.l.b16 %v4614
    %v4871 = vunpack.c.l.b16 %v4615
    %v4872 = vunpack.c.l.b16 %v4616
    %v4873 = vunpack.c.l.b16 %v4617
    %v4874 = vunpack.c.l.b16 %v4618
    %v4875 = vunpack.c.l.b16 %v4619
    %v4876 = vunpack.c.l.b16 %v4620
    %v4877 = vunpack.c.l.b16 %v4621
    %v4878 = vunpack.c.l.b16 %v4622
    %v4879 = vunpack.c.l.b16 %v4623
    %v4880 = vunpack.c.l.b16 %v4624
    %v4881 = vunpack.c.l.b16 %v4625
    %v4882 = vunpack.c.l.b16 %v4626
    %v4883 = vunpack.c.l.b16 %v4627
    %v4884 = vunpack.c.l.b16 %v4628
    %v4885 = vunpack.c.l.b16 %v4629
    %v4886 = vunpack.c.l.b16 %v4630
    %v4887 = vunpack.c.l.b16 %v4631
    %v4888 = vunpack.c.l.b16 %v4632
    %v4889 = vunpack.c.l.b16 %v4633
    %v4890 = vunpack.c.l.b16 %v4634
    %v4891 = vunpack.c.l.b16 %v4635
    %v4892 = vunpack.c.l.b16 %v4636
    %v4893 = vunpack.c.l.b16 %v4637
    %v4894 = vunpack.c.l.b16 %v4638
    %v4895 = vunpack.c.l.b16 %v4639
    %v4896 = vunpack.c.l.b16 %v4640
    %v4897 = vunpack.c.l.b16 %v4641
    %v4898 = vunpack.c.l.b16 %v4642
    %v4899 = vunpack.c.l.b16 %v4643
    %v4900 = vunpack.c.l.b16 %v4644
    %v4901 = vunpack.c.l.b16 %v4645
    %v4902 = vunpack.c.l.b16 %v4646
    %v4903 = vunpack.c.l.b16 %v4647
    %v4904 = vunpack.c.l.b16 %v4648
    %v4905 = vunpack.c.l.b16 %v4649
    %v4906 = vunpack.c.l.b16 %v4650
    %v4907 = vunpack.c.l.b16 %v4651
    %v4908 = vunpack.c.l.b16 %v4652
    %v4909 = vunpack.c.l.b16 %v4653
    %v4910 = vunpack.c.l.b16 %v4654
    %v4911 = vunpack.c.l.b16 %v4655
    %v4912 = vunpack.c.l.b16 %v4656
    %v4913 = vunpack.c.l.b16 %v4657
    %v4914 = vunpack.c.l.b16 %v4658
    %v4915 = vunpack.c.l.b16 %v4659
    %v4916 = vunpack.c.l.b16 %v4660
    %v4917 = vunpack.c.l.b16 %v4661
    %v4918 = vunpack.c.l.b16 %v4662
    %v4919 = vunpack.c.l.b16 %v4663
    %v4920 = vunpack.c.l.b16 %v4664
    %v4921 = vunpack.c.l.b16 %v4665
    %v4922 = vunpack.c.l.b16 %v4666
    %v4923 = vunpack.c.l.b16 %v4667
    %v4924 = vunpack.c.l.b16 %v4668
    %v4925 = vunpack.c.l.b16 %v4669
    %v4926 = vunpack.c.l.b16 %v4670
    %v4927 = vunpack.c.l.b16 %v4671
    %v4928 = vunpack.c.l.b16 %v4672
    %v4929 = vunpack.c.l.b16 %v4673
    %v4930 = vunpack.c.l.b16 %v4674
    %v4931 = vunpack.c.l.b16 %v4675
    %v4932 = vunpack.c.l.b16 %v4676
    %v4933 = vunpack.c.l.b16 %v4677
    %v4934 = vunpack.c.l.b16 %v4678
    %v4935 = vunpack.c.l.b16 %v4679
    %v4936 = vunpack.c.l.b16 %v4680
    %v4937 = vunpack.c.l.b16 %v4681
    %v4938 = vunpack.c.l.b16 %v4682
    %v4939 = vunpack.c.l.b16 %v4683
    %v4940 = vunpack.c.l.b16 %v4684
    %v4941 = vunpack.c.l.b16 %v4685
    %v4942 = vunpack.c.l.b16 %v4686
    %v4943 = vunpack.c.l.b16 %v4687
    %v4944 = vunpack.c.l.b16 %v4688
    %v4945 = vunpack.c.l.b16 %v4689
    %v4946 = vunpack.c.l.b16 %v4690
    %v4947 = vunpack.c.l.b16 %v4691
    %v4948 = vunpack.c.l.b16 %v4692
    %v4949 = vunpack.c.l.b16 %v4693
    %v4950 = vunpack.c.l.b16 %v4694
    %v4951 = vunpack.c.l.b16 %v4695
    %v4952 = vpack.c.b16 %v4825, %v4824
    %v4953 = vpack.c.b16 %v4827, %v4826
    %v4954 = vpack.c.b16 %v4829, %v4828
    %v4955 = vpack.c.b16 %v4831, %v4830
    %v4956 = vpack.c.b16 %v4833, %v4832
    %v4957 = vpack.c.b16 %v4835, %v4834
    %v4958 = vpack.c.b16 %v4837, %v4836
    %v4959 = vpack.c.b16 %v4839, %v4838
    %v4960 = vpack.c.b16 %v4841, %v4840
    %v4961 = vpack.c.b16 %v4843, %v4842
    %v4962 = vpack.c.b16 %v4845, %v4844
    %v4963 = vpack.c.b16 %v4847, %v4846
    %v4964 = vpack.c.b16 %v4849, %v4848
    %v4965 = vpack.c.b16 %v4851, %v4850
    %v4966 = vpack.c.b16 %v4853, %v4852
    %v4967 = vpack.c.b16 %v4855, %v4854
    %v4968 = vpack.c.b16 %v4857, %v4856
    %v4969 = vpack.c.b16 %v4859, %v4858
    %v4970 = vpack.c.b16 %v4861, %v4860
    %v4971 = vpack.c.b16 %v4863, %v4862
    %v4972 = vpack.c.b16 %v4865, %v4864
    %v4973 = vpack.c.b16 %v4867, %v4866
    %v4974 = vpack.c.b16 %v4869, %v4868
    %v4975 = vpack.c.b16 %v4871, %v4870
    %v4976 = vpack.c.b16 %v4873, %v4872
    %v4977 = vpack.c.b16 %v4875, %v4874
    %v4978 = vpack.c.b16 %v4877, %v4876
    %v4979 = vpack.c.b16 %v4879, %v4878
    %v4980 = vpack.c.b16 %v4881, %v4880
    %v4981 = vpack.c.b16 %v4883, %v4882
    %v4982 = vpack.c.b16 %v4885, %v4884
    %v4983 = vpack.c.b16 %v4887, %v4886
    %v4984 = vpack.c.b16 %v4889, %v4888
    %v4985 = vpack.c.b16 %v4891, %v4890
    %v4986 = vpack.c.b16 %v4893, %v4892
    %v4987 = vpack.c.b16 %v4895, %v4894
    %v4988 = vpack.c.b16 %v4897, %v4896
    %v4989 = vpack.c.b16 %v4899, %v4898
    %v4990 = vpack.c.b16 %v4901, %v4900
    %v4991 = vpack.c.b16 %v4903, %v4902
    %v4992 = vpack.c.b16 %v4905, %v4904
    %v4993 = vpack.c.b16 %v4907, %v4906
    %v4994 = vpack.c.b16 %v4909, %v4908
    %v4995 = vpack.c.b16 %v4911, %v4910
    %v4996 = vpack.c.b16 %v4913, %v4912
    %v4997 = vpack.c.b16 %v4915, %v4914
    %v4998 = vpack.c.b16 %v4917, %v4916
    %v4999 = vpack.c.b16 %v4919, %v4918
    %v5000 = vpack.c.b16 %v4921, %v4920
    %v5001 = vpack.c.b16 %v4923, %v4922
    %v5002 = vpack.c.b16 %v4925, %v4924
    %v5003 = vpack.c.b16 %v4927, %v4926
    %v5004 = vpack.c.b16 %v4929, %v4928
    %v5005 = vpack.c.b16 %v4931, %v4930
    %v5006 = vpack.c.b16 %v4933, %v4932
    %v5007 = vpack.c.b16 %v4935, %v4934
    %v5008 = vpack.c.b16 %v4937, %v4936
    %v5009 = vpack.c.b16 %v4939, %v4938
    %v5010 = vpack.c.b16 %v4941, %v4940
    %v5011 = vpack.c.b16 %v4943, %v4942
    %v5012 = vpack.c.b16 %v4945, %v4944
    %v5013 = vpack.c.b16 %v4947, %v4946
    %v5014 = vpack.c.b16 %v4949, %v4948
    %v5015 = vpack.c.b16 %v4951, %v4950
    %5080 = vmatprep.subr.bf16.mxu0 0
    %5081 = vmatpush1.bf16.msra.mxu0 %v4959
    %5082 = vmatprep.subr.bf16.mxu0 0
    %5083 = vmatpush1.bf16.msra.mxu0 %v4958
    %5084 = vmatprep.subr.bf16.mxu0 0
    %5085 = vmatpush1.bf16.msra.mxu0 %v4957
    %5086 = vmatprep.subr.bf16.mxu0 0
    %5087 = vmatpush1.bf16.msra.mxu0 %v4956
    %5088 = vmatprep.subr.bf16.mxu0 0
    %5089 = vmatpush1.bf16.msra.mxu0 %v4955
    %5090 = vmatprep.subr.bf16.mxu0 0
    %5091 = vmatpush1.bf16.msra.mxu0 %v4954
    %5092 = vmatprep.subr.bf16.mxu0 0
    %5093 = vmatpush1.bf16.msra.mxu0 %v4953
    %5094 = vmatprep.subr.bf16.mxu0 0
    %5095 = vmatpush1.bf16.msra.mxu0 %v4952
    %5096 = vmatprep.subr.bf16.mxu0 0
    %5097 = vmatpush2.bf16.msra.mxu0 %v4967
    %5098 = vmatprep.subr.bf16.mxu0 0
    %5099 = vmatpush2.bf16.msra.mxu0 %v4966
    %5100 = vmatprep.subr.bf16.mxu0 0
    %5101 = vmatpush2.bf16.msra.mxu0 %v4965
    %5102 = vmatprep.subr.bf16.mxu0 0
    %5103 = vmatpush2.bf16.msra.mxu0 %v4964
    %5104 = vmatprep.subr.bf16.mxu0 0
    %5105 = vmatpush2.bf16.msra.mxu0 %v4963
    %5106 = vmatprep.subr.bf16.mxu0 0
    %5107 = vmatpush2.bf16.msra.mxu0 %v4962
    %5108 = vmatprep.subr.bf16.mxu0 0
    %5109 = vmatpush2.bf16.msra.mxu0 %v4961
    %5110 = vmatprep.subr.bf16.mxu0 0
    %5111 = vmatpush2.bf16.msra.mxu0 %v4960
    %5112 = vmatprep.mubr.bf16.mxu0 %v4016
    %5113 = vmatmul.mubr.bf16.gmra.mxu0 %v4015
    %v5114 = vpop.f32.mrf.mxu0
    %v5115 = vadd.f32 0.0, %v5114
    %v5116 = vpop.f32.mrf.mxu0
    %v5117 = vpop.f32.mrf.mxu0
    %v5118 = vpop.f32.mrf.mxu0
    %5119 = vdwg.mxu0
    %5120 = vmatprep.subr.bf16.mxu0 0
    %5121 = vmatpush1.bf16.msra.mxu0 %v4975
    %5122 = vmatprep.subr.bf16.mxu0 0
    %5123 = vmatpush1.bf16.msra.mxu0 %v4974
    %5124 = vmatprep.subr.bf16.mxu0 0
    %5125 = vmatpush1.bf16.msra.mxu0 %v4973
    %5126 = vmatprep.subr.bf16.mxu0 0
    %5127 = vmatpush1.bf16.msra.mxu0 %v4972
    %5128 = vmatprep.subr.bf16.mxu0 0
    %5129 = vmatpush1.bf16.msra.mxu0 %v4971
    %5130 = vmatprep.subr.bf16.mxu0 0
    %5131 = vmatpush1.bf16.msra.mxu0 %v4970
    %5132 = vmatprep.subr.bf16.mxu0 0
    %5133 = vmatpush1.bf16.msra.mxu0 %v4969
    %5134 = vmatprep.subr.bf16.mxu0 0
    %5135 = vmatpush1.bf16.msra.mxu0 %v4968
    %5136 = vmatprep.subr.bf16.mxu0 0
    %5137 = vmatpush2.bf16.msra.mxu0 %v4983
    %5138 = vmatprep.subr.bf16.mxu0 0
    %5139 = vmatpush2.bf16.msra.mxu0 %v4982
    %5140 = vmatprep.subr.bf16.mxu0 0
    %5141 = vmatpush2.bf16.msra.mxu0 %v4981
    %5142 = vmatprep.subr.bf16.mxu0 0
    %5143 = vmatpush2.bf16.msra.mxu0 %v4980
    %5144 = vmatprep.subr.bf16.mxu0 0
    %5145 = vmatpush2.bf16.msra.mxu0 %v4979
    %5146 = vmatprep.subr.bf16.mxu0 0
    %5147 = vmatpush2.bf16.msra.mxu0 %v4978
    %5148 = vmatprep.subr.bf16.mxu0 0
    %5149 = vmatpush2.bf16.msra.mxu0 %v4977
    %5150 = vmatprep.subr.bf16.mxu0 0
    %5151 = vmatpush2.bf16.msra.mxu0 %v4976
    %5152 = vmatprep.mubr.bf16.mxu0 %v4018
    %5153 = vmatmul.mubr.bf16.gmra.mxu0 %v4017
    %v5154 = vpop.f32.mrf.mxu0
    %v5155 = vadd.f32 %v5115, %v5154
    %v5156 = vpop.f32.mrf.mxu0
    %v5157 = vpop.f32.mrf.mxu0
    %v5158 = vpop.f32.mrf.mxu0
    %5159 = vdwg.mxu0
    %5160 = vmatprep.subr.bf16.mxu0 0
    %5161 = vmatpush1.bf16.msra.mxu0 %v4991
    %5162 = vmatprep.subr.bf16.mxu0 0
    %5163 = vmatpush1.bf16.msra.mxu0 %v4990
    %5164 = vmatprep.subr.bf16.mxu0 0
    %5165 = vmatpush1.bf16.msra.mxu0 %v4989
    %5166 = vmatprep.subr.bf16.mxu0 0
    %5167 = vmatpush1.bf16.msra.mxu0 %v4988
    %5168 = vmatprep.subr.bf16.mxu0 0
    %5169 = vmatpush1.bf16.msra.mxu0 %v4987
    %5170 = vmatprep.subr.bf16.mxu0 0
    %5171 = vmatpush1.bf16.msra.mxu0 %v4986
    %5172 = vmatprep.subr.bf16.mxu0 0
    %5173 = vmatpush1.bf16.msra.mxu0 %v4985
    %5174 = vmatprep.subr.bf16.mxu0 0
    %5175 = vmatpush1.bf16.msra.mxu0 %v4984
    %5176 = vmatprep.subr.bf16.mxu0 0
    %5177 = vmatpush2.bf16.msra.mxu0 %v4999
    %5178 = vmatprep.subr.bf16.mxu0 0
    %5179 = vmatpush2.bf16.msra.mxu0 %v4998
    %5180 = vmatprep.subr.bf16.mxu0 0
    %5181 = vmatpush2.bf16.msra.mxu0 %v4997
    %5182 = vmatprep.subr.bf16.mxu0 0
    %5183 = vmatpush2.bf16.msra.mxu0 %v4996
    %5184 = vmatprep.subr.bf16.mxu0 0
    %5185 = vmatpush2.bf16.msra.mxu0 %v4995
    %5186 = vmatprep.subr.bf16.mxu0 0
    %5187 = vmatpush2.bf16.msra.mxu0 %v4994
    %5188 = vmatprep.subr.bf16.mxu0 0
    %5189 = vmatpush2.bf16.msra.mxu0 %v4993
    %5190 = vmatprep.subr.bf16.mxu0 0
    %5191 = vmatpush2.bf16.msra.mxu0 %v4992
    %5192 = vmatprep.mubr.bf16.mxu0 %v4020
    %5193 = vmatmul.mubr.bf16.gmra.mxu0 %v4019
    %v5194 = vpop.f32.mrf.mxu0
    %v5195 = vadd.f32 %v5155, %v5194
    %v5196 = vpop.f32.mrf.mxu0
    %v5197 = vpop.f32.mrf.mxu0
    %v5198 = vpop.f32.mrf.mxu0
    %5199 = vdwg.mxu0
    %5200 = vmatprep.subr.bf16.mxu0 0
    %5201 = vmatpush1.bf16.msra.mxu0 %v5007
    %5202 = vmatprep.subr.bf16.mxu0 0
    %5203 = vmatpush1.bf16.msra.mxu0 %v5006
    %5204 = vmatprep.subr.bf16.mxu0 0
    %5205 = vmatpush1.bf16.msra.mxu0 %v5005
    %5206 = vmatprep.subr.bf16.mxu0 0
    %5207 = vmatpush1.bf16.msra.mxu0 %v5004
    %5208 = vmatprep.subr.bf16.mxu0 0
    %5209 = vmatpush1.bf16.msra.mxu0 %v5003
    %5210 = vmatprep.subr.bf16.mxu0 0
    %5211 = vmatpush1.bf16.msra.mxu0 %v5002
    %5212 = vmatprep.subr.bf16.mxu0 0
    %5213 = vmatpush1.bf16.msra.mxu0 %v5001
    %5214 = vmatprep.subr.bf16.mxu0 0
    %5215 = vmatpush1.bf16.msra.mxu0 %v5000
    %5216 = vmatprep.subr.bf16.mxu0 0
    %5217 = vmatpush2.bf16.msra.mxu0 %v5015
    %5218 = vmatprep.subr.bf16.mxu0 0
    %5219 = vmatpush2.bf16.msra.mxu0 %v5014
    %5220 = vmatprep.subr.bf16.mxu0 0
    %5221 = vmatpush2.bf16.msra.mxu0 %v5013
    %5222 = vmatprep.subr.bf16.mxu0 0
    %5223 = vmatpush2.bf16.msra.mxu0 %v5012
    %5224 = vmatprep.subr.bf16.mxu0 0
    %5225 = vmatpush2.bf16.msra.mxu0 %v5011
    %5226 = vmatprep.subr.bf16.mxu0 0
    %5227 = vmatpush2.bf16.msra.mxu0 %v5010
    %5228 = vmatprep.subr.bf16.mxu0 0
    %5229 = vmatpush2.bf16.msra.mxu0 %v5009
    %5230 = vmatprep.subr.bf16.mxu0 0
    %5231 = vmatpush2.bf16.msra.mxu0 %v5008
    %5232 = vmatprep.mubr.bf16.mxu0 %v4022
    %5233 = vmatmul.mubr.bf16.gmra.mxu0 %v4021
    %v5234 = vpop.f32.mrf.mxu0
    %v5235 = vadd.f32 %v5195, %v5234
    %v5236 = vpop.f32.mrf.mxu0
    %v5237 = vpop.f32.mrf.mxu0
    %v5238 = vpop.f32.mrf.mxu0
    %5239 = vdwg.mxu0
    %v5240 = vmax.f32 %v4562, %v5235
    %s5241 = scalar_lea.vmem %s3, 1024
    %v5242 = vld [vmem:[%s5241] sm:$0xf]
    %v5243 = vld [vmem:[%s5241 + $0x4] sm:$0xf]
    %v5244 = vld [vmem:[%s5241 + $0x8] sm:$0xf]
    %v5245 = vld [vmem:[%s5241 + $0xc] sm:$0xf]
    %v5246 = vld [vmem:[%s5241 + $0x10] sm:$0xf]
    %v5247 = vld [vmem:[%s5241 + $0x14] sm:$0xf]
    %v5248 = vld [vmem:[%s5241 + $0x18] sm:$0xf]
    %v5249 = vld [vmem:[%s5241 + $0x1c] sm:$0xf]
    %v5250 = vld [vmem:[%s5241 + $0x20] sm:$0xf]
    %v5251 = vld [vmem:[%s5241 + $0x24] sm:$0xf]
    %v5252 = vld [vmem:[%s5241 + $0x28] sm:$0xf]
    %v5253 = vld [vmem:[%s5241 + $0x2c] sm:$0xf]
    %v5254 = vld [vmem:[%s5241 + $0x30] sm:$0xf]
    %v5255 = vld [vmem:[%s5241 + $0x34] sm:$0xf]
    %v5256 = vld [vmem:[%s5241 + $0x38] sm:$0xf]
    %v5257 = vld [vmem:[%s5241 + $0x3c] sm:$0xf]
    %v5258 = vld [vmem:[%s5241 + $0x40] sm:$0xf]
    %v5259 = vld [vmem:[%s5241 + $0x44] sm:$0xf]
    %v5260 = vld [vmem:[%s5241 + $0x48] sm:$0xf]
    %v5261 = vld [vmem:[%s5241 + $0x4c] sm:$0xf]
    %v5262 = vld [vmem:[%s5241 + $0x50] sm:$0xf]
    %v5263 = vld [vmem:[%s5241 + $0x54] sm:$0xf]
    %v5264 = vld [vmem:[%s5241 + $0x58] sm:$0xf]
    %v5265 = vld [vmem:[%s5241 + $0x5c] sm:$0xf]
    %v5266 = vld [vmem:[%s5241 + $0x60] sm:$0xf]
    %v5267 = vld [vmem:[%s5241 + $0x64] sm:$0xf]
    %v5268 = vld [vmem:[%s5241 + $0x68] sm:$0xf]
    %v5269 = vld [vmem:[%s5241 + $0x6c] sm:$0xf]
    %v5270 = vld [vmem:[%s5241 + $0x70] sm:$0xf]
    %v5271 = vld [vmem:[%s5241 + $0x74] sm:$0xf]
    %v5272 = vld [vmem:[%s5241 + $0x78] sm:$0xf]
    %v5273 = vld [vmem:[%s5241 + $0x7c] sm:$0xf]
    %v5274 = vld [vmem:[%s5241 + $0x80] sm:$0xf]
    %v5275 = vld [vmem:[%s5241 + $0x84] sm:$0xf]
    %v5276 = vld [vmem:[%s5241 + $0x88] sm:$0xf]
    %v5277 = vld [vmem:[%s5241 + $0x8c] sm:$0xf]
    %v5278 = vld [vmem:[%s5241 + $0x90] sm:$0xf]
    %v5279 = vld [vmem:[%s5241 + $0x94] sm:$0xf]
    %v5280 = vld [vmem:[%s5241 + $0x98] sm:$0xf]
    %v5281 = vld [vmem:[%s5241 + $0x9c] sm:$0xf]
    %v5282 = vld [vmem:[%s5241 + $0xa0] sm:$0xf]
    %v5283 = vld [vmem:[%s5241 + $0xa4] sm:$0xf]
    %v5284 = vld [vmem:[%s5241 + $0xa8] sm:$0xf]
    %v5285 = vld [vmem:[%s5241 + $0xac] sm:$0xf]
    %v5286 = vld [vmem:[%s5241 + $0xb0] sm:$0xf]
    %v5287 = vld [vmem:[%s5241 + $0xb4] sm:$0xf]
    %v5288 = vld [vmem:[%s5241 + $0xb8] sm:$0xf]
    %v5289 = vld [vmem:[%s5241 + $0xbc] sm:$0xf]
    %v5290 = vld [vmem:[%s5241 + $0xc0] sm:$0xf]
    %v5291 = vld [vmem:[%s5241 + $0xc4] sm:$0xf]
    %v5292 = vld [vmem:[%s5241 + $0xc8] sm:$0xf]
    %v5293 = vld [vmem:[%s5241 + $0xcc] sm:$0xf]
    %v5294 = vld [vmem:[%s5241 + $0xd0] sm:$0xf]
    %v5295 = vld [vmem:[%s5241 + $0xd4] sm:$0xf]
    %v5296 = vld [vmem:[%s5241 + $0xd8] sm:$0xf]
    %v5297 = vld [vmem:[%s5241 + $0xdc] sm:$0xf]
    %v5298 = vld [vmem:[%s5241 + $0xe0] sm:$0xf]
    %v5299 = vld [vmem:[%s5241 + $0xe4] sm:$0xf]
    %v5300 = vld [vmem:[%s5241 + $0xe8] sm:$0xf]
    %v5301 = vld [vmem:[%s5241 + $0xec] sm:$0xf]
    %v5302 = vld [vmem:[%s5241 + $0xf0] sm:$0xf]
    %v5303 = vld [vmem:[%s5241 + $0xf4] sm:$0xf]
    %v5304 = vld [vmem:[%s5241 + $0xf8] sm:$0xf]
    %v5305 = vld [vmem:[%s5241 + $0xfc] sm:$0xf]
    %v5306 = vld [vmem:[%s5241 + $0x100] sm:$0xf]
    %v5307 = vld [vmem:[%s5241 + $0x104] sm:$0xf]
    %v5308 = vld [vmem:[%s5241 + $0x108] sm:$0xf]
    %v5309 = vld [vmem:[%s5241 + $0x10c] sm:$0xf]
    %v5310 = vld [vmem:[%s5241 + $0x110] sm:$0xf]
    %v5311 = vld [vmem:[%s5241 + $0x114] sm:$0xf]
    %v5312 = vld [vmem:[%s5241 + $0x118] sm:$0xf]
    %v5313 = vld [vmem:[%s5241 + $0x11c] sm:$0xf]
    %v5314 = vld [vmem:[%s5241 + $0x120] sm:$0xf]
    %v5315 = vld [vmem:[%s5241 + $0x124] sm:$0xf]
    %v5316 = vld [vmem:[%s5241 + $0x128] sm:$0xf]
    %v5317 = vld [vmem:[%s5241 + $0x12c] sm:$0xf]
    %v5318 = vld [vmem:[%s5241 + $0x130] sm:$0xf]
    %v5319 = vld [vmem:[%s5241 + $0x134] sm:$0xf]
    %v5320 = vld [vmem:[%s5241 + $0x138] sm:$0xf]
    %v5321 = vld [vmem:[%s5241 + $0x13c] sm:$0xf]
    %v5322 = vld [vmem:[%s5241 + $0x140] sm:$0xf]
    %v5323 = vld [vmem:[%s5241 + $0x144] sm:$0xf]
    %v5324 = vld [vmem:[%s5241 + $0x148] sm:$0xf]
    %v5325 = vld [vmem:[%s5241 + $0x14c] sm:$0xf]
    %v5326 = vld [vmem:[%s5241 + $0x150] sm:$0xf]
    %v5327 = vld [vmem:[%s5241 + $0x154] sm:$0xf]
    %v5328 = vld [vmem:[%s5241 + $0x158] sm:$0xf]
    %v5329 = vld [vmem:[%s5241 + $0x15c] sm:$0xf]
    %v5330 = vld [vmem:[%s5241 + $0x160] sm:$0xf]
    %v5331 = vld [vmem:[%s5241 + $0x164] sm:$0xf]
    %v5332 = vld [vmem:[%s5241 + $0x168] sm:$0xf]
    %v5333 = vld [vmem:[%s5241 + $0x16c] sm:$0xf]
    %v5334 = vld [vmem:[%s5241 + $0x170] sm:$0xf]
    %v5335 = vld [vmem:[%s5241 + $0x174] sm:$0xf]
    %v5336 = vld [vmem:[%s5241 + $0x178] sm:$0xf]
    %v5337 = vld [vmem:[%s5241 + $0x17c] sm:$0xf]
    %v5338 = vld [vmem:[%s5241 + $0x180] sm:$0xf]
    %v5339 = vld [vmem:[%s5241 + $0x184] sm:$0xf]
    %v5340 = vld [vmem:[%s5241 + $0x188] sm:$0xf]
    %v5341 = vld [vmem:[%s5241 + $0x18c] sm:$0xf]
    %v5342 = vld [vmem:[%s5241 + $0x190] sm:$0xf]
    %v5343 = vld [vmem:[%s5241 + $0x194] sm:$0xf]
    %v5344 = vld [vmem:[%s5241 + $0x198] sm:$0xf]
    %v5345 = vld [vmem:[%s5241 + $0x19c] sm:$0xf]
    %v5346 = vld [vmem:[%s5241 + $0x1a0] sm:$0xf]
    %v5347 = vld [vmem:[%s5241 + $0x1a4] sm:$0xf]
    %v5348 = vld [vmem:[%s5241 + $0x1a8] sm:$0xf]
    %v5349 = vld [vmem:[%s5241 + $0x1ac] sm:$0xf]
    %v5350 = vld [vmem:[%s5241 + $0x1b0] sm:$0xf]
    %v5351 = vld [vmem:[%s5241 + $0x1b4] sm:$0xf]
    %v5352 = vld [vmem:[%s5241 + $0x1b8] sm:$0xf]
    %v5353 = vld [vmem:[%s5241 + $0x1bc] sm:$0xf]
    %v5354 = vld [vmem:[%s5241 + $0x1c0] sm:$0xf]
    %v5355 = vld [vmem:[%s5241 + $0x1c4] sm:$0xf]
    %v5356 = vld [vmem:[%s5241 + $0x1c8] sm:$0xf]
    %v5357 = vld [vmem:[%s5241 + $0x1cc] sm:$0xf]
    %v5358 = vld [vmem:[%s5241 + $0x1d0] sm:$0xf]
    %v5359 = vld [vmem:[%s5241 + $0x1d4] sm:$0xf]
    %v5360 = vld [vmem:[%s5241 + $0x1d8] sm:$0xf]
    %v5361 = vld [vmem:[%s5241 + $0x1dc] sm:$0xf]
    %v5362 = vld [vmem:[%s5241 + $0x1e0] sm:$0xf]
    %v5363 = vld [vmem:[%s5241 + $0x1e4] sm:$0xf]
    %v5364 = vld [vmem:[%s5241 + $0x1e8] sm:$0xf]
    %v5365 = vld [vmem:[%s5241 + $0x1ec] sm:$0xf]
    %v5366 = vld [vmem:[%s5241 + $0x1f0] sm:$0xf]
    %v5367 = vld [vmem:[%s5241 + $0x1f4] sm:$0xf]
    %v5368 = vld [vmem:[%s5241 + $0x1f8] sm:$0xf]
    %v5369 = vld [vmem:[%s5241 + $0x1fc] sm:$0xf]
    %v5498 = vunpack.c.l.b16 %v5242
    %v5499 = vunpack.c.l.b16 %v5243
    %v5500 = vunpack.c.l.b16 %v5244
    %v5501 = vunpack.c.l.b16 %v5245
    %v5502 = vunpack.c.l.b16 %v5246
    %v5503 = vunpack.c.l.b16 %v5247
    %v5504 = vunpack.c.l.b16 %v5248
    %v5505 = vunpack.c.l.b16 %v5249
    %v5506 = vunpack.c.l.b16 %v5250
    %v5507 = vunpack.c.l.b16 %v5251
    %v5508 = vunpack.c.l.b16 %v5252
    %v5509 = vunpack.c.l.b16 %v5253
    %v5510 = vunpack.c.l.b16 %v5254
    %v5511 = vunpack.c.l.b16 %v5255
    %v5512 = vunpack.c.l.b16 %v5256
    %v5513 = vunpack.c.l.b16 %v5257
    %v5514 = vunpack.c.l.b16 %v5258
    %v5515 = vunpack.c.l.b16 %v5259
    %v5516 = vunpack.c.l.b16 %v5260
    %v5517 = vunpack.c.l.b16 %v5261
    %v5518 = vunpack.c.l.b16 %v5262
    %v5519 = vunpack.c.l.b16 %v5263
    %v5520 = vunpack.c.l.b16 %v5264
    %v5521 = vunpack.c.l.b16 %v5265
    %v5522 = vunpack.c.l.b16 %v5266
    %v5523 = vunpack.c.l.b16 %v5267
    %v5524 = vunpack.c.l.b16 %v5268
    %v5525 = vunpack.c.l.b16 %v5269
    %v5526 = vunpack.c.l.b16 %v5270
    %v5527 = vunpack.c.l.b16 %v5271
    %v5528 = vunpack.c.l.b16 %v5272
    %v5529 = vunpack.c.l.b16 %v5273
    %v5530 = vunpack.c.l.b16 %v5274
    %v5531 = vunpack.c.l.b16 %v5275
    %v5532 = vunpack.c.l.b16 %v5276
    %v5533 = vunpack.c.l.b16 %v5277
    %v5534 = vunpack.c.l.b16 %v5278
    %v5535 = vunpack.c.l.b16 %v5279
    %v5536 = vunpack.c.l.b16 %v5280
    %v5537 = vunpack.c.l.b16 %v5281
    %v5538 = vunpack.c.l.b16 %v5282
    %v5539 = vunpack.c.l.b16 %v5283
    %v5540 = vunpack.c.l.b16 %v5284
    %v5541 = vunpack.c.l.b16 %v5285
    %v5542 = vunpack.c.l.b16 %v5286
    %v5543 = vunpack.c.l.b16 %v5287
    %v5544 = vunpack.c.l.b16 %v5288
    %v5545 = vunpack.c.l.b16 %v5289
    %v5546 = vunpack.c.l.b16 %v5290
    %v5547 = vunpack.c.l.b16 %v5291
    %v5548 = vunpack.c.l.b16 %v5292
    %v5549 = vunpack.c.l.b16 %v5293
    %v5550 = vunpack.c.l.b16 %v5294
    %v5551 = vunpack.c.l.b16 %v5295
    %v5552 = vunpack.c.l.b16 %v5296
    %v5553 = vunpack.c.l.b16 %v5297
    %v5554 = vunpack.c.l.b16 %v5298
    %v5555 = vunpack.c.l.b16 %v5299
    %v5556 = vunpack.c.l.b16 %v5300
    %v5557 = vunpack.c.l.b16 %v5301
    %v5558 = vunpack.c.l.b16 %v5302
    %v5559 = vunpack.c.l.b16 %v5303
    %v5560 = vunpack.c.l.b16 %v5304
    %v5561 = vunpack.c.l.b16 %v5305
    %v5562 = vunpack.c.l.b16 %v5306
    %v5563 = vunpack.c.l.b16 %v5307
    %v5564 = vunpack.c.l.b16 %v5308
    %v5565 = vunpack.c.l.b16 %v5309
    %v5566 = vunpack.c.l.b16 %v5310
    %v5567 = vunpack.c.l.b16 %v5311
    %v5568 = vunpack.c.l.b16 %v5312
    %v5569 = vunpack.c.l.b16 %v5313
    %v5570 = vunpack.c.l.b16 %v5314
    %v5571 = vunpack.c.l.b16 %v5315
    %v5572 = vunpack.c.l.b16 %v5316
    %v5573 = vunpack.c.l.b16 %v5317
    %v5574 = vunpack.c.l.b16 %v5318
    %v5575 = vunpack.c.l.b16 %v5319
    %v5576 = vunpack.c.l.b16 %v5320
    %v5577 = vunpack.c.l.b16 %v5321
    %v5578 = vunpack.c.l.b16 %v5322
    %v5579 = vunpack.c.l.b16 %v5323
    %v5580 = vunpack.c.l.b16 %v5324
    %v5581 = vunpack.c.l.b16 %v5325
    %v5582 = vunpack.c.l.b16 %v5326
    %v5583 = vunpack.c.l.b16 %v5327
    %v5584 = vunpack.c.l.b16 %v5328
    %v5585 = vunpack.c.l.b16 %v5329
    %v5586 = vunpack.c.l.b16 %v5330
    %v5587 = vunpack.c.l.b16 %v5331
    %v5588 = vunpack.c.l.b16 %v5332
    %v5589 = vunpack.c.l.b16 %v5333
    %v5590 = vunpack.c.l.b16 %v5334
    %v5591 = vunpack.c.l.b16 %v5335
    %v5592 = vunpack.c.l.b16 %v5336
    %v5593 = vunpack.c.l.b16 %v5337
    %v5594 = vunpack.c.l.b16 %v5338
    %v5595 = vunpack.c.l.b16 %v5339
    %v5596 = vunpack.c.l.b16 %v5340
    %v5597 = vunpack.c.l.b16 %v5341
    %v5598 = vunpack.c.l.b16 %v5342
    %v5599 = vunpack.c.l.b16 %v5343
    %v5600 = vunpack.c.l.b16 %v5344
    %v5601 = vunpack.c.l.b16 %v5345
    %v5602 = vunpack.c.l.b16 %v5346
    %v5603 = vunpack.c.l.b16 %v5347
    %v5604 = vunpack.c.l.b16 %v5348
    %v5605 = vunpack.c.l.b16 %v5349
    %v5606 = vunpack.c.l.b16 %v5350
    %v5607 = vunpack.c.l.b16 %v5351
    %v5608 = vunpack.c.l.b16 %v5352
    %v5609 = vunpack.c.l.b16 %v5353
    %v5610 = vunpack.c.l.b16 %v5354
    %v5611 = vunpack.c.l.b16 %v5355
    %v5612 = vunpack.c.l.b16 %v5356
    %v5613 = vunpack.c.l.b16 %v5357
    %v5614 = vunpack.c.l.b16 %v5358
    %v5615 = vunpack.c.l.b16 %v5359
    %v5616 = vunpack.c.l.b16 %v5360
    %v5617 = vunpack.c.l.b16 %v5361
    %v5618 = vunpack.c.l.b16 %v5362
    %v5619 = vunpack.c.l.b16 %v5363
    %v5620 = vunpack.c.l.b16 %v5364
    %v5621 = vunpack.c.l.b16 %v5365
    %v5622 = vunpack.c.l.b16 %v5366
    %v5623 = vunpack.c.l.b16 %v5367
    %v5624 = vunpack.c.l.b16 %v5368
    %v5625 = vunpack.c.l.b16 %v5369
    %v5626 = vpack.c.b16 %v5499, %v5498
    %v5627 = vpack.c.b16 %v5501, %v5500
    %v5628 = vpack.c.b16 %v5503, %v5502
    %v5629 = vpack.c.b16 %v5505, %v5504
    %v5630 = vpack.c.b16 %v5507, %v5506
    %v5631 = vpack.c.b16 %v5509, %v5508
    %v5632 = vpack.c.b16 %v5511, %v5510
    %v5633 = vpack.c.b16 %v5513, %v5512
    %v5634 = vpack.c.b16 %v5515, %v5514
    %v5635 = vpack.c.b16 %v5517, %v5516
    %v5636 = vpack.c.b16 %v5519, %v5518
    %v5637 = vpack.c.b16 %v5521, %v5520
    %v5638 = vpack.c.b16 %v5523, %v5522
    %v5639 = vpack.c.b16 %v5525, %v5524
    %v5640 = vpack.c.b16 %v5527, %v5526
    %v5641 = vpack.c.b16 %v5529, %v5528
    %v5642 = vpack.c.b16 %v5531, %v5530
    %v5643 = vpack.c.b16 %v5533, %v5532
    %v5644 = vpack.c.b16 %v5535, %v5534
    %v5645 = vpack.c.b16 %v5537, %v5536
    %v5646 = vpack.c.b16 %v5539, %v5538
    %v5647 = vpack.c.b16 %v5541, %v5540
    %v5648 = vpack.c.b16 %v5543, %v5542
    %v5649 = vpack.c.b16 %v5545, %v5544
    %v5650 = vpack.c.b16 %v5547, %v5546
    %v5651 = vpack.c.b16 %v5549, %v5548
    %v5652 = vpack.c.b16 %v5551, %v5550
    %v5653 = vpack.c.b16 %v5553, %v5552
    %v5654 = vpack.c.b16 %v5555, %v5554
    %v5655 = vpack.c.b16 %v5557, %v5556
    %v5656 = vpack.c.b16 %v5559, %v5558
    %v5657 = vpack.c.b16 %v5561, %v5560
    %v5658 = vpack.c.b16 %v5563, %v5562
    %v5659 = vpack.c.b16 %v5565, %v5564
    %v5660 = vpack.c.b16 %v5567, %v5566
    %v5661 = vpack.c.b16 %v5569, %v5568
    %v5662 = vpack.c.b16 %v5571, %v5570
    %v5663 = vpack.c.b16 %v5573, %v5572
    %v5664 = vpack.c.b16 %v5575, %v5574
    %v5665 = vpack.c.b16 %v5577, %v5576
    %v5666 = vpack.c.b16 %v5579, %v5578
    %v5667 = vpack.c.b16 %v5581, %v5580
    %v5668 = vpack.c.b16 %v5583, %v5582
    %v5669 = vpack.c.b16 %v5585, %v5584
    %v5670 = vpack.c.b16 %v5587, %v5586
    %v5671 = vpack.c.b16 %v5589, %v5588
    %v5672 = vpack.c.b16 %v5591, %v5590
    %v5673 = vpack.c.b16 %v5593, %v5592
    %v5674 = vpack.c.b16 %v5595, %v5594
    %v5675 = vpack.c.b16 %v5597, %v5596
    %v5676 = vpack.c.b16 %v5599, %v5598
    %v5677 = vpack.c.b16 %v5601, %v5600
    %v5678 = vpack.c.b16 %v5603, %v5602
    %v5679 = vpack.c.b16 %v5605, %v5604
    %v5680 = vpack.c.b16 %v5607, %v5606
    %v5681 = vpack.c.b16 %v5609, %v5608
    %v5682 = vpack.c.b16 %v5611, %v5610
    %v5683 = vpack.c.b16 %v5613, %v5612
    %v5684 = vpack.c.b16 %v5615, %v5614
    %v5685 = vpack.c.b16 %v5617, %v5616
    %v5686 = vpack.c.b16 %v5619, %v5618
    %v5687 = vpack.c.b16 %v5621, %v5620
    %v5688 = vpack.c.b16 %v5623, %v5622
    %v5689 = vpack.c.b16 %v5625, %v5624
    %5754 = vmatprep.subr.bf16.mxu0 0
    %5755 = vmatpush1.bf16.msra.mxu0 %v5633
    %5756 = vmatprep.subr.bf16.mxu0 0
    %5757 = vmatpush1.bf16.msra.mxu0 %v5632
    %5758 = vmatprep.subr.bf16.mxu0 0
    %5759 = vmatpush1.bf16.msra.mxu0 %v5631
    %5760 = vmatprep.subr.bf16.mxu0 0
    %5761 = vmatpush1.bf16.msra.mxu0 %v5630
    %5762 = vmatprep.subr.bf16.mxu0 0
    %5763 = vmatpush1.bf16.msra.mxu0 %v5629
    %5764 = vmatprep.subr.bf16.mxu0 0
    %5765 = vmatpush1.bf16.msra.mxu0 %v5628
    %5766 = vmatprep.subr.bf16.mxu0 0
    %5767 = vmatpush1.bf16.msra.mxu0 %v5627
    %5768 = vmatprep.subr.bf16.mxu0 0
    %5769 = vmatpush1.bf16.msra.mxu0 %v5626
    %5770 = vmatprep.subr.bf16.mxu0 0
    %5771 = vmatpush2.bf16.msra.mxu0 %v5641
    %5772 = vmatprep.subr.bf16.mxu0 0
    %5773 = vmatpush2.bf16.msra.mxu0 %v5640
    %5774 = vmatprep.subr.bf16.mxu0 0
    %5775 = vmatpush2.bf16.msra.mxu0 %v5639
    %5776 = vmatprep.subr.bf16.mxu0 0
    %5777 = vmatpush2.bf16.msra.mxu0 %v5638
    %5778 = vmatprep.subr.bf16.mxu0 0
    %5779 = vmatpush2.bf16.msra.mxu0 %v5637
    %5780 = vmatprep.subr.bf16.mxu0 0
    %5781 = vmatpush2.bf16.msra.mxu0 %v5636
    %5782 = vmatprep.subr.bf16.mxu0 0
    %5783 = vmatpush2.bf16.msra.mxu0 %v5635
    %5784 = vmatprep.subr.bf16.mxu0 0
    %5785 = vmatpush2.bf16.msra.mxu0 %v5634
    %5786 = vmatprep.mubr.bf16.mxu0 %v4016
    %5787 = vmatmul.mubr.bf16.gmra.mxu0 %v4015
    %v5788 = vpop.f32.mrf.mxu0
    %v5789 = vadd.f32 0.0, %v5788
    %v5790 = vpop.f32.mrf.mxu0
    %v5791 = vpop.f32.mrf.mxu0
    %v5792 = vpop.f32.mrf.mxu0
    %5793 = vdwg.mxu0
    %5794 = vmatprep.subr.bf16.mxu0 0
    %5795 = vmatpush1.bf16.msra.mxu0 %v5649
    %5796 = vmatprep.subr.bf16.mxu0 0
    %5797 = vmatpush1.bf16.msra.mxu0 %v5648
    %5798 = vmatprep.subr.bf16.mxu0 0
    %5799 = vmatpush1.bf16.msra.mxu0 %v5647
    %5800 = vmatprep.subr.bf16.mxu0 0
    %5801 = vmatpush1.bf16.msra.mxu0 %v5646
    %5802 = vmatprep.subr.bf16.mxu0 0
    %5803 = vmatpush1.bf16.msra.mxu0 %v5645
    %5804 = vmatprep.subr.bf16.mxu0 0
    %5805 = vmatpush1.bf16.msra.mxu0 %v5644
    %5806 = vmatprep.subr.bf16.mxu0 0
    %5807 = vmatpush1.bf16.msra.mxu0 %v5643
    %5808 = vmatprep.subr.bf16.mxu0 0
    %5809 = vmatpush1.bf16.msra.mxu0 %v5642
    %5810 = vmatprep.subr.bf16.mxu0 0
    %5811 = vmatpush2.bf16.msra.mxu0 %v5657
    %5812 = vmatprep.subr.bf16.mxu0 0
    %5813 = vmatpush2.bf16.msra.mxu0 %v5656
    %5814 = vmatprep.subr.bf16.mxu0 0
    %5815 = vmatpush2.bf16.msra.mxu0 %v5655
    %5816 = vmatprep.subr.bf16.mxu0 0
    %5817 = vmatpush2.bf16.msra.mxu0 %v5654
    %5818 = vmatprep.subr.bf16.mxu0 0
    %5819 = vmatpush2.bf16.msra.mxu0 %v5653
    %5820 = vmatprep.subr.bf16.mxu0 0
    %5821 = vmatpush2.bf16.msra.mxu0 %v5652
    %5822 = vmatprep.subr.bf16.mxu0 0
    %5823 = vmatpush2.bf16.msra.mxu0 %v5651
    %5824 = vmatprep.subr.bf16.mxu0 0
    %5825 = vmatpush2.bf16.msra.mxu0 %v5650
    %5826 = vmatprep.mubr.bf16.mxu0 %v4018
    %5827 = vmatmul.mubr.bf16.gmra.mxu0 %v4017
    %v5828 = vpop.f32.mrf.mxu0
    %v5829 = vadd.f32 %v5789, %v5828
    %v5830 = vpop.f32.mrf.mxu0
    %v5831 = vpop.f32.mrf.mxu0
    %v5832 = vpop.f32.mrf.mxu0
    %5833 = vdwg.mxu0
    %5834 = vmatprep.subr.bf16.mxu0 0
    %5835 = vmatpush1.bf16.msra.mxu0 %v5665
    %5836 = vmatprep.subr.bf16.mxu0 0
    %5837 = vmatpush1.bf16.msra.mxu0 %v5664
    %5838 = vmatprep.subr.bf16.mxu0 0
    %5839 = vmatpush1.bf16.msra.mxu0 %v5663
    %5840 = vmatprep.subr.bf16.mxu0 0
    %5841 = vmatpush1.bf16.msra.mxu0 %v5662
    %5842 = vmatprep.subr.bf16.mxu0 0
    %5843 = vmatpush1.bf16.msra.mxu0 %v5661
    %5844 = vmatprep.subr.bf16.mxu0 0
    %5845 = vmatpush1.bf16.msra.mxu0 %v5660
    %5846 = vmatprep.subr.bf16.mxu0 0
    %5847 = vmatpush1.bf16.msra.mxu0 %v5659
    %5848 = vmatprep.subr.bf16.mxu0 0
    %5849 = vmatpush1.bf16.msra.mxu0 %v5658
    %5850 = vmatprep.subr.bf16.mxu0 0
    %5851 = vmatpush2.bf16.msra.mxu0 %v5673
    %5852 = vmatprep.subr.bf16.mxu0 0
    %5853 = vmatpush2.bf16.msra.mxu0 %v5672
    %5854 = vmatprep.subr.bf16.mxu0 0
    %5855 = vmatpush2.bf16.msra.mxu0 %v5671
    %5856 = vmatprep.subr.bf16.mxu0 0
    %5857 = vmatpush2.bf16.msra.mxu0 %v5670
    %5858 = vmatprep.subr.bf16.mxu0 0
    %5859 = vmatpush2.bf16.msra.mxu0 %v5669
    %5860 = vmatprep.subr.bf16.mxu0 0
    %5861 = vmatpush2.bf16.msra.mxu0 %v5668
    %5862 = vmatprep.subr.bf16.mxu0 0
    %5863 = vmatpush2.bf16.msra.mxu0 %v5667
    %5864 = vmatprep.subr.bf16.mxu0 0
    %5865 = vmatpush2.bf16.msra.mxu0 %v5666
    %5866 = vmatprep.mubr.bf16.mxu0 %v4020
    %5867 = vmatmul.mubr.bf16.gmra.mxu0 %v4019
    %v5868 = vpop.f32.mrf.mxu0
    %v5869 = vadd.f32 %v5829, %v5868
    %v5870 = vpop.f32.mrf.mxu0
    %v5871 = vpop.f32.mrf.mxu0
    %v5872 = vpop.f32.mrf.mxu0
    %5873 = vdwg.mxu0
    %5874 = vmatprep.subr.bf16.mxu0 0
    %5875 = vmatpush1.bf16.msra.mxu0 %v5681
    %5876 = vmatprep.subr.bf16.mxu0 0
    %5877 = vmatpush1.bf16.msra.mxu0 %v5680
    %5878 = vmatprep.subr.bf16.mxu0 0
    %5879 = vmatpush1.bf16.msra.mxu0 %v5679
    %5880 = vmatprep.subr.bf16.mxu0 0
    %5881 = vmatpush1.bf16.msra.mxu0 %v5678
    %5882 = vmatprep.subr.bf16.mxu0 0
    %5883 = vmatpush1.bf16.msra.mxu0 %v5677
    %5884 = vmatprep.subr.bf16.mxu0 0
    %5885 = vmatpush1.bf16.msra.mxu0 %v5676
    %5886 = vmatprep.subr.bf16.mxu0 0
    %5887 = vmatpush1.bf16.msra.mxu0 %v5675
    %5888 = vmatprep.subr.bf16.mxu0 0
    %5889 = vmatpush1.bf16.msra.mxu0 %v5674
    %5890 = vmatprep.subr.bf16.mxu0 0
    %5891 = vmatpush2.bf16.msra.mxu0 %v5689
    %5892 = vmatprep.subr.bf16.mxu0 0
    %5893 = vmatpush2.bf16.msra.mxu0 %v5688
    %5894 = vmatprep.subr.bf16.mxu0 0
    %5895 = vmatpush2.bf16.msra.mxu0 %v5687
    %5896 = vmatprep.subr.bf16.mxu0 0
    %5897 = vmatpush2.bf16.msra.mxu0 %v5686
    %5898 = vmatprep.subr.bf16.mxu0 0
    %5899 = vmatpush2.bf16.msra.mxu0 %v5685
    %5900 = vmatprep.subr.bf16.mxu0 0
    %5901 = vmatpush2.bf16.msra.mxu0 %v5684
    %5902 = vmatprep.subr.bf16.mxu0 0
    %5903 = vmatpush2.bf16.msra.mxu0 %v5683
    %5904 = vmatprep.subr.bf16.mxu0 0
    %5905 = vmatpush2.bf16.msra.mxu0 %v5682
    %5906 = vmatprep.mubr.bf16.mxu0 %v4022
    %5907 = vmatmul.mubr.bf16.gmra.mxu0 %v4021
    %v5908 = vpop.f32.mrf.mxu0
    %v5909 = vadd.f32 %v5869, %v5908
    %v5910 = vpop.f32.mrf.mxu0
    %v5911 = vpop.f32.mrf.mxu0
    %v5912 = vpop.f32.mrf.mxu0
    %5913 = vdwg.mxu0
    %v5914 = vmax.f32 %v5240, %v5909
    %s5915 = scalar_lea.vmem %s3, 1536
    %v5916 = vld [vmem:[%s5915] sm:$0xf]
    %v5917 = vld [vmem:[%s5915 + $0x4] sm:$0xf]
    %v5918 = vld [vmem:[%s5915 + $0x8] sm:$0xf]
    %v5919 = vld [vmem:[%s5915 + $0xc] sm:$0xf]
    %v5920 = vld [vmem:[%s5915 + $0x10] sm:$0xf]
    %v5921 = vld [vmem:[%s5915 + $0x14] sm:$0xf]
    %v5922 = vld [vmem:[%s5915 + $0x18] sm:$0xf]
    %v5923 = vld [vmem:[%s5915 + $0x1c] sm:$0xf]
    %v5924 = vld [vmem:[%s5915 + $0x20] sm:$0xf]
    %v5925 = vld [vmem:[%s5915 + $0x24] sm:$0xf]
    %v5926 = vld [vmem:[%s5915 + $0x28] sm:$0xf]
    %v5927 = vld [vmem:[%s5915 + $0x2c] sm:$0xf]
    %v5928 = vld [vmem:[%s5915 + $0x30] sm:$0xf]
    %v5929 = vld [vmem:[%s5915 + $0x34] sm:$0xf]
    %v5930 = vld [vmem:[%s5915 + $0x38] sm:$0xf]
    %v5931 = vld [vmem:[%s5915 + $0x3c] sm:$0xf]
    %v5932 = vld [vmem:[%s5915 + $0x40] sm:$0xf]
    %v5933 = vld [vmem:[%s5915 + $0x44] sm:$0xf]
    %v5934 = vld [vmem:[%s5915 + $0x48] sm:$0xf]
    %v5935 = vld [vmem:[%s5915 + $0x4c] sm:$0xf]
    %v5936 = vld [vmem:[%s5915 + $0x50] sm:$0xf]
    %v5937 = vld [vmem:[%s5915 + $0x54] sm:$0xf]
    %v5938 = vld [vmem:[%s5915 + $0x58] sm:$0xf]
    %v5939 = vld [vmem:[%s5915 + $0x5c] sm:$0xf]
    %v5940 = vld [vmem:[%s5915 + $0x60] sm:$0xf]
    %v5941 = vld [vmem:[%s5915 + $0x64] sm:$0xf]
    %v5942 = vld [vmem:[%s5915 + $0x68] sm:$0xf]
    %v5943 = vld [vmem:[%s5915 + $0x6c] sm:$0xf]
    %v5944 = vld [vmem:[%s5915 + $0x70] sm:$0xf]
    %v5945 = vld [vmem:[%s5915 + $0x74] sm:$0xf]
    %v5946 = vld [vmem:[%s5915 + $0x78] sm:$0xf]
    %v5947 = vld [vmem:[%s5915 + $0x7c] sm:$0xf]
    %v5948 = vld [vmem:[%s5915 + $0x80] sm:$0xf]
    %v5949 = vld [vmem:[%s5915 + $0x84] sm:$0xf]
    %v5950 = vld [vmem:[%s5915 + $0x88] sm:$0xf]
    %v5951 = vld [vmem:[%s5915 + $0x8c] sm:$0xf]
    %v5952 = vld [vmem:[%s5915 + $0x90] sm:$0xf]
    %v5953 = vld [vmem:[%s5915 + $0x94] sm:$0xf]
    %v5954 = vld [vmem:[%s5915 + $0x98] sm:$0xf]
    %v5955 = vld [vmem:[%s5915 + $0x9c] sm:$0xf]
    %v5956 = vld [vmem:[%s5915 + $0xa0] sm:$0xf]
    %v5957 = vld [vmem:[%s5915 + $0xa4] sm:$0xf]
    %v5958 = vld [vmem:[%s5915 + $0xa8] sm:$0xf]
    %v5959 = vld [vmem:[%s5915 + $0xac] sm:$0xf]
    %v5960 = vld [vmem:[%s5915 + $0xb0] sm:$0xf]
    %v5961 = vld [vmem:[%s5915 + $0xb4] sm:$0xf]
    %v5962 = vld [vmem:[%s5915 + $0xb8] sm:$0xf]
    %v5963 = vld [vmem:[%s5915 + $0xbc] sm:$0xf]
    %v5964 = vld [vmem:[%s5915 + $0xc0] sm:$0xf]
    %v5965 = vld [vmem:[%s5915 + $0xc4] sm:$0xf]
    %v5966 = vld [vmem:[%s5915 + $0xc8] sm:$0xf]
    %v5967 = vld [vmem:[%s5915 + $0xcc] sm:$0xf]
    %v5968 = vld [vmem:[%s5915 + $0xd0] sm:$0xf]
    %v5969 = vld [vmem:[%s5915 + $0xd4] sm:$0xf]
    %v5970 = vld [vmem:[%s5915 + $0xd8] sm:$0xf]
    %v5971 = vld [vmem:[%s5915 + $0xdc] sm:$0xf]
    %v5972 = vld [vmem:[%s5915 + $0xe0] sm:$0xf]
    %v5973 = vld [vmem:[%s5915 + $0xe4] sm:$0xf]
    %v5974 = vld [vmem:[%s5915 + $0xe8] sm:$0xf]
    %v5975 = vld [vmem:[%s5915 + $0xec] sm:$0xf]
    %v5976 = vld [vmem:[%s5915 + $0xf0] sm:$0xf]
    %v5977 = vld [vmem:[%s5915 + $0xf4] sm:$0xf]
    %v5978 = vld [vmem:[%s5915 + $0xf8] sm:$0xf]
    %v5979 = vld [vmem:[%s5915 + $0xfc] sm:$0xf]
    %v5980 = vld [vmem:[%s5915 + $0x100] sm:$0xf]
    %v5981 = vld [vmem:[%s5915 + $0x104] sm:$0xf]
    %v5982 = vld [vmem:[%s5915 + $0x108] sm:$0xf]
    %v5983 = vld [vmem:[%s5915 + $0x10c] sm:$0xf]
    %v5984 = vld [vmem:[%s5915 + $0x110] sm:$0xf]
    %v5985 = vld [vmem:[%s5915 + $0x114] sm:$0xf]
    %v5986 = vld [vmem:[%s5915 + $0x118] sm:$0xf]
    %v5987 = vld [vmem:[%s5915 + $0x11c] sm:$0xf]
    %v5988 = vld [vmem:[%s5915 + $0x120] sm:$0xf]
    %v5989 = vld [vmem:[%s5915 + $0x124] sm:$0xf]
    %v5990 = vld [vmem:[%s5915 + $0x128] sm:$0xf]
    %v5991 = vld [vmem:[%s5915 + $0x12c] sm:$0xf]
    %v5992 = vld [vmem:[%s5915 + $0x130] sm:$0xf]
    %v5993 = vld [vmem:[%s5915 + $0x134] sm:$0xf]
    %v5994 = vld [vmem:[%s5915 + $0x138] sm:$0xf]
    %v5995 = vld [vmem:[%s5915 + $0x13c] sm:$0xf]
    %v5996 = vld [vmem:[%s5915 + $0x140] sm:$0xf]
    %v5997 = vld [vmem:[%s5915 + $0x144] sm:$0xf]
    %v5998 = vld [vmem:[%s5915 + $0x148] sm:$0xf]
    %v5999 = vld [vmem:[%s5915 + $0x14c] sm:$0xf]
    %v6000 = vld [vmem:[%s5915 + $0x150] sm:$0xf]
    %v6001 = vld [vmem:[%s5915 + $0x154] sm:$0xf]
    %v6002 = vld [vmem:[%s5915 + $0x158] sm:$0xf]
    %v6003 = vld [vmem:[%s5915 + $0x15c] sm:$0xf]
    %v6004 = vld [vmem:[%s5915 + $0x160] sm:$0xf]
    %v6005 = vld [vmem:[%s5915 + $0x164] sm:$0xf]
    %v6006 = vld [vmem:[%s5915 + $0x168] sm:$0xf]
    %v6007 = vld [vmem:[%s5915 + $0x16c] sm:$0xf]
    %v6008 = vld [vmem:[%s5915 + $0x170] sm:$0xf]
    %v6009 = vld [vmem:[%s5915 + $0x174] sm:$0xf]
    %v6010 = vld [vmem:[%s5915 + $0x178] sm:$0xf]
    %v6011 = vld [vmem:[%s5915 + $0x17c] sm:$0xf]
    %v6012 = vld [vmem:[%s5915 + $0x180] sm:$0xf]
    %v6013 = vld [vmem:[%s5915 + $0x184] sm:$0xf]
    %v6014 = vld [vmem:[%s5915 + $0x188] sm:$0xf]
    %v6015 = vld [vmem:[%s5915 + $0x18c] sm:$0xf]
    %v6016 = vld [vmem:[%s5915 + $0x190] sm:$0xf]
    %v6017 = vld [vmem:[%s5915 + $0x194] sm:$0xf]
    %v6018 = vld [vmem:[%s5915 + $0x198] sm:$0xf]
    %v6019 = vld [vmem:[%s5915 + $0x19c] sm:$0xf]
    %v6020 = vld [vmem:[%s5915 + $0x1a0] sm:$0xf]
    %v6021 = vld [vmem:[%s5915 + $0x1a4] sm:$0xf]
    %v6022 = vld [vmem:[%s5915 + $0x1a8] sm:$0xf]
    %v6023 = vld [vmem:[%s5915 + $0x1ac] sm:$0xf]
    %v6024 = vld [vmem:[%s5915 + $0x1b0] sm:$0xf]
    %v6025 = vld [vmem:[%s5915 + $0x1b4] sm:$0xf]
    %v6026 = vld [vmem:[%s5915 + $0x1b8] sm:$0xf]
    %v6027 = vld [vmem:[%s5915 + $0x1bc] sm:$0xf]
    %v6028 = vld [vmem:[%s5915 + $0x1c0] sm:$0xf]
    %v6029 = vld [vmem:[%s5915 + $0x1c4] sm:$0xf]
    %v6030 = vld [vmem:[%s5915 + $0x1c8] sm:$0xf]
    %v6031 = vld [vmem:[%s5915 + $0x1cc] sm:$0xf]
    %v6032 = vld [vmem:[%s5915 + $0x1d0] sm:$0xf]
    %v6033 = vld [vmem:[%s5915 + $0x1d4] sm:$0xf]
    %v6034 = vld [vmem:[%s5915 + $0x1d8] sm:$0xf]
    %v6035 = vld [vmem:[%s5915 + $0x1dc] sm:$0xf]
    %v6036 = vld [vmem:[%s5915 + $0x1e0] sm:$0xf]
    %v6037 = vld [vmem:[%s5915 + $0x1e4] sm:$0xf]
    %v6038 = vld [vmem:[%s5915 + $0x1e8] sm:$0xf]
    %v6039 = vld [vmem:[%s5915 + $0x1ec] sm:$0xf]
    %v6040 = vld [vmem:[%s5915 + $0x1f0] sm:$0xf]
    %v6041 = vld [vmem:[%s5915 + $0x1f4] sm:$0xf]
    %v6042 = vld [vmem:[%s5915 + $0x1f8] sm:$0xf]
    %v6043 = vld [vmem:[%s5915 + $0x1fc] sm:$0xf]
    %v6172 = vunpack.c.l.b16 %v5916
    %v6173 = vunpack.c.l.b16 %v5917
    %v6174 = vunpack.c.l.b16 %v5918
    %v6175 = vunpack.c.l.b16 %v5919
    %v6176 = vunpack.c.l.b16 %v5920
    %v6177 = vunpack.c.l.b16 %v5921
    %v6178 = vunpack.c.l.b16 %v5922
    %v6179 = vunpack.c.l.b16 %v5923
    %v6180 = vunpack.c.l.b16 %v5924
    %v6181 = vunpack.c.l.b16 %v5925
    %v6182 = vunpack.c.l.b16 %v5926
    %v6183 = vunpack.c.l.b16 %v5927
    %v6184 = vunpack.c.l.b16 %v5928
    %v6185 = vunpack.c.l.b16 %v5929
    %v6186 = vunpack.c.l.b16 %v5930
    %v6187 = vunpack.c.l.b16 %v5931
    %v6188 = vunpack.c.l.b16 %v5932
    %v6189 = vunpack.c.l.b16 %v5933
    %v6190 = vunpack.c.l.b16 %v5934
    %v6191 = vunpack.c.l.b16 %v5935
    %v6192 = vunpack.c.l.b16 %v5936
    %v6193 = vunpack.c.l.b16 %v5937
    %v6194 = vunpack.c.l.b16 %v5938
    %v6195 = vunpack.c.l.b16 %v5939
    %v6196 = vunpack.c.l.b16 %v5940
    %v6197 = vunpack.c.l.b16 %v5941
    %v6198 = vunpack.c.l.b16 %v5942
    %v6199 = vunpack.c.l.b16 %v5943
    %v6200 = vunpack.c.l.b16 %v5944
    %v6201 = vunpack.c.l.b16 %v5945
    %v6202 = vunpack.c.l.b16 %v5946
    %v6203 = vunpack.c.l.b16 %v5947
    %v6204 = vunpack.c.l.b16 %v5948
    %v6205 = vunpack.c.l.b16 %v5949
    %v6206 = vunpack.c.l.b16 %v5950
    %v6207 = vunpack.c.l.b16 %v5951
    %v6208 = vunpack.c.l.b16 %v5952
    %v6209 = vunpack.c.l.b16 %v5953
    %v6210 = vunpack.c.l.b16 %v5954
    %v6211 = vunpack.c.l.b16 %v5955
    %v6212 = vunpack.c.l.b16 %v5956
    %v6213 = vunpack.c.l.b16 %v5957
    %v6214 = vunpack.c.l.b16 %v5958
    %v6215 = vunpack.c.l.b16 %v5959
    %v6216 = vunpack.c.l.b16 %v5960
    %v6217 = vunpack.c.l.b16 %v5961
    %v6218 = vunpack.c.l.b16 %v5962
    %v6219 = vunpack.c.l.b16 %v5963
    %v6220 = vunpack.c.l.b16 %v5964
    %v6221 = vunpack.c.l.b16 %v5965
    %v6222 = vunpack.c.l.b16 %v5966
    %v6223 = vunpack.c.l.b16 %v5967
    %v6224 = vunpack.c.l.b16 %v5968
    %v6225 = vunpack.c.l.b16 %v5969
    %v6226 = vunpack.c.l.b16 %v5970
    %v6227 = vunpack.c.l.b16 %v5971
    %v6228 = vunpack.c.l.b16 %v5972
    %v6229 = vunpack.c.l.b16 %v5973
    %v6230 = vunpack.c.l.b16 %v5974
    %v6231 = vunpack.c.l.b16 %v5975
    %v6232 = vunpack.c.l.b16 %v5976
    %v6233 = vunpack.c.l.b16 %v5977
    %v6234 = vunpack.c.l.b16 %v5978
    %v6235 = vunpack.c.l.b16 %v5979
    %v6236 = vunpack.c.l.b16 %v5980
    %v6237 = vunpack.c.l.b16 %v5981
    %v6238 = vunpack.c.l.b16 %v5982
    %v6239 = vunpack.c.l.b16 %v5983
    %v6240 = vunpack.c.l.b16 %v5984
    %v6241 = vunpack.c.l.b16 %v5985
    %v6242 = vunpack.c.l.b16 %v5986
    %v6243 = vunpack.c.l.b16 %v5987
    %v6244 = vunpack.c.l.b16 %v5988
    %v6245 = vunpack.c.l.b16 %v5989
    %v6246 = vunpack.c.l.b16 %v5990
    %v6247 = vunpack.c.l.b16 %v5991
    %v6248 = vunpack.c.l.b16 %v5992
    %v6249 = vunpack.c.l.b16 %v5993
    %v6250 = vunpack.c.l.b16 %v5994
    %v6251 = vunpack.c.l.b16 %v5995
    %v6252 = vunpack.c.l.b16 %v5996
    %v6253 = vunpack.c.l.b16 %v5997
    %v6254 = vunpack.c.l.b16 %v5998
    %v6255 = vunpack.c.l.b16 %v5999
    %v6256 = vunpack.c.l.b16 %v6000
    %v6257 = vunpack.c.l.b16 %v6001
    %v6258 = vunpack.c.l.b16 %v6002
    %v6259 = vunpack.c.l.b16 %v6003
    %v6260 = vunpack.c.l.b16 %v6004
    %v6261 = vunpack.c.l.b16 %v6005
    %v6262 = vunpack.c.l.b16 %v6006
    %v6263 = vunpack.c.l.b16 %v6007
    %v6264 = vunpack.c.l.b16 %v6008
    %v6265 = vunpack.c.l.b16 %v6009
    %v6266 = vunpack.c.l.b16 %v6010
    %v6267 = vunpack.c.l.b16 %v6011
    %v6268 = vunpack.c.l.b16 %v6012
    %v6269 = vunpack.c.l.b16 %v6013
    %v6270 = vunpack.c.l.b16 %v6014
    %v6271 = vunpack.c.l.b16 %v6015
    %v6272 = vunpack.c.l.b16 %v6016
    %v6273 = vunpack.c.l.b16 %v6017
    %v6274 = vunpack.c.l.b16 %v6018
    %v6275 = vunpack.c.l.b16 %v6019
    %v6276 = vunpack.c.l.b16 %v6020
    %v6277 = vunpack.c.l.b16 %v6021
    %v6278 = vunpack.c.l.b16 %v6022
    %v6279 = vunpack.c.l.b16 %v6023
    %v6280 = vunpack.c.l.b16 %v6024
    %v6281 = vunpack.c.l.b16 %v6025
    %v6282 = vunpack.c.l.b16 %v6026
    %v6283 = vunpack.c.l.b16 %v6027
    %v6284 = vunpack.c.l.b16 %v6028
    %v6285 = vunpack.c.l.b16 %v6029
    %v6286 = vunpack.c.l.b16 %v6030
    %v6287 = vunpack.c.l.b16 %v6031
    %v6288 = vunpack.c.l.b16 %v6032
    %v6289 = vunpack.c.l.b16 %v6033
    %v6290 = vunpack.c.l.b16 %v6034
    %v6291 = vunpack.c.l.b16 %v6035
    %v6292 = vunpack.c.l.b16 %v6036
    %v6293 = vunpack.c.l.b16 %v6037
    %v6294 = vunpack.c.l.b16 %v6038
    %v6295 = vunpack.c.l.b16 %v6039
    %v6296 = vunpack.c.l.b16 %v6040
    %v6297 = vunpack.c.l.b16 %v6041
    %v6298 = vunpack.c.l.b16 %v6042
    %v6299 = vunpack.c.l.b16 %v6043
    %v6300 = vpack.c.b16 %v6173, %v6172
    %v6301 = vpack.c.b16 %v6175, %v6174
    %v6302 = vpack.c.b16 %v6177, %v6176
    %v6303 = vpack.c.b16 %v6179, %v6178
    %v6304 = vpack.c.b16 %v6181, %v6180
    %v6305 = vpack.c.b16 %v6183, %v6182
    %v6306 = vpack.c.b16 %v6185, %v6184
    %v6307 = vpack.c.b16 %v6187, %v6186
    %v6308 = vpack.c.b16 %v6189, %v6188
    %v6309 = vpack.c.b16 %v6191, %v6190
    %v6310 = vpack.c.b16 %v6193, %v6192
    %v6311 = vpack.c.b16 %v6195, %v6194
    %v6312 = vpack.c.b16 %v6197, %v6196
    %v6313 = vpack.c.b16 %v6199, %v6198
    %v6314 = vpack.c.b16 %v6201, %v6200
    %v6315 = vpack.c.b16 %v6203, %v6202
    %v6316 = vpack.c.b16 %v6205, %v6204
    %v6317 = vpack.c.b16 %v6207, %v6206
    %v6318 = vpack.c.b16 %v6209, %v6208
    %v6319 = vpack.c.b16 %v6211, %v6210
    %v6320 = vpack.c.b16 %v6213, %v6212
    %v6321 = vpack.c.b16 %v6215, %v6214
    %v6322 = vpack.c.b16 %v6217, %v6216
    %v6323 = vpack.c.b16 %v6219, %v6218
    %v6324 = vpack.c.b16 %v6221, %v6220
    %v6325 = vpack.c.b16 %v6223, %v6222
    %v6326 = vpack.c.b16 %v6225, %v6224
    %v6327 = vpack.c.b16 %v6227, %v6226
    %v6328 = vpack.c.b16 %v6229, %v6228
    %v6329 = vpack.c.b16 %v6231, %v6230
    %v6330 = vpack.c.b16 %v6233, %v6232
    %v6331 = vpack.c.b16 %v6235, %v6234
    %v6332 = vpack.c.b16 %v6237, %v6236
    %v6333 = vpack.c.b16 %v6239, %v6238
    %v6334 = vpack.c.b16 %v6241, %v6240
    %v6335 = vpack.c.b16 %v6243, %v6242
    %v6336 = vpack.c.b16 %v6245, %v6244
    %v6337 = vpack.c.b16 %v6247, %v6246
    %v6338 = vpack.c.b16 %v6249, %v6248
    %v6339 = vpack.c.b16 %v6251, %v6250
    %v6340 = vpack.c.b16 %v6253, %v6252
    %v6341 = vpack.c.b16 %v6255, %v6254
    %v6342 = vpack.c.b16 %v6257, %v6256
    %v6343 = vpack.c.b16 %v6259, %v6258
    %v6344 = vpack.c.b16 %v6261, %v6260
    %v6345 = vpack.c.b16 %v6263, %v6262
    %v6346 = vpack.c.b16 %v6265, %v6264
    %v6347 = vpack.c.b16 %v6267, %v6266
    %v6348 = vpack.c.b16 %v6269, %v6268
    %v6349 = vpack.c.b16 %v6271, %v6270
    %v6350 = vpack.c.b16 %v6273, %v6272
    %v6351 = vpack.c.b16 %v6275, %v6274
    %v6352 = vpack.c.b16 %v6277, %v6276
    %v6353 = vpack.c.b16 %v6279, %v6278
    %v6354 = vpack.c.b16 %v6281, %v6280
    %v6355 = vpack.c.b16 %v6283, %v6282
    %v6356 = vpack.c.b16 %v6285, %v6284
    %v6357 = vpack.c.b16 %v6287, %v6286
    %v6358 = vpack.c.b16 %v6289, %v6288
    %v6359 = vpack.c.b16 %v6291, %v6290
    %v6360 = vpack.c.b16 %v6293, %v6292
    %v6361 = vpack.c.b16 %v6295, %v6294
    %v6362 = vpack.c.b16 %v6297, %v6296
    %v6363 = vpack.c.b16 %v6299, %v6298
    %6428 = vmatprep.subr.bf16.mxu0 0
    %6429 = vmatpush1.bf16.msra.mxu0 %v6307
    %6430 = vmatprep.subr.bf16.mxu0 0
    %6431 = vmatpush1.bf16.msra.mxu0 %v6306
    %6432 = vmatprep.subr.bf16.mxu0 0
    %6433 = vmatpush1.bf16.msra.mxu0 %v6305
    %6434 = vmatprep.subr.bf16.mxu0 0
    %6435 = vmatpush1.bf16.msra.mxu0 %v6304
    %6436 = vmatprep.subr.bf16.mxu0 0
    %6437 = vmatpush1.bf16.msra.mxu0 %v6303
    %6438 = vmatprep.subr.bf16.mxu0 0
    %6439 = vmatpush1.bf16.msra.mxu0 %v6302
    %6440 = vmatprep.subr.bf16.mxu0 0
    %6441 = vmatpush1.bf16.msra.mxu0 %v6301
    %6442 = vmatprep.subr.bf16.mxu0 0
    %6443 = vmatpush1.bf16.msra.mxu0 %v6300
    %6444 = vmatprep.subr.bf16.mxu0 0
    %6445 = vmatpush2.bf16.msra.mxu0 %v6315
    %6446 = vmatprep.subr.bf16.mxu0 0
    %6447 = vmatpush2.bf16.msra.mxu0 %v6314
    %6448 = vmatprep.subr.bf16.mxu0 0
    %6449 = vmatpush2.bf16.msra.mxu0 %v6313
    %6450 = vmatprep.subr.bf16.mxu0 0
    %6451 = vmatpush2.bf16.msra.mxu0 %v6312
    %6452 = vmatprep.subr.bf16.mxu0 0
    %6453 = vmatpush2.bf16.msra.mxu0 %v6311
    %6454 = vmatprep.subr.bf16.mxu0 0
    %6455 = vmatpush2.bf16.msra.mxu0 %v6310
    %6456 = vmatprep.subr.bf16.mxu0 0
    %6457 = vmatpush2.bf16.msra.mxu0 %v6309
    %6458 = vmatprep.subr.bf16.mxu0 0
    %6459 = vmatpush2.bf16.msra.mxu0 %v6308
    %6460 = vmatprep.mubr.bf16.mxu0 %v4016
    %6461 = vmatmul.mubr.bf16.gmra.mxu0 %v4015
    %v6462 = vpop.f32.mrf.mxu0
    %v6463 = vadd.f32 0.0, %v6462
    %v6464 = vpop.f32.mrf.mxu0
    %v6465 = vpop.f32.mrf.mxu0
    %v6466 = vpop.f32.mrf.mxu0
    %6467 = vdwg.mxu0
    %6468 = vmatprep.subr.bf16.mxu0 0
    %6469 = vmatpush1.bf16.msra.mxu0 %v6323
    %6470 = vmatprep.subr.bf16.mxu0 0
    %6471 = vmatpush1.bf16.msra.mxu0 %v6322
    %6472 = vmatprep.subr.bf16.mxu0 0
    %6473 = vmatpush1.bf16.msra.mxu0 %v6321
    %6474 = vmatprep.subr.bf16.mxu0 0
    %6475 = vmatpush1.bf16.msra.mxu0 %v6320
    %6476 = vmatprep.subr.bf16.mxu0 0
    %6477 = vmatpush1.bf16.msra.mxu0 %v6319
    %6478 = vmatprep.subr.bf16.mxu0 0
    %6479 = vmatpush1.bf16.msra.mxu0 %v6318
    %6480 = vmatprep.subr.bf16.mxu0 0
    %6481 = vmatpush1.bf16.msra.mxu0 %v6317
    %6482 = vmatprep.subr.bf16.mxu0 0
    %6483 = vmatpush1.bf16.msra.mxu0 %v6316
    %6484 = vmatprep.subr.bf16.mxu0 0
    %6485 = vmatpush2.bf16.msra.mxu0 %v6331
    %6486 = vmatprep.subr.bf16.mxu0 0
    %6487 = vmatpush2.bf16.msra.mxu0 %v6330
    %6488 = vmatprep.subr.bf16.mxu0 0
    %6489 = vmatpush2.bf16.msra.mxu0 %v6329
    %6490 = vmatprep.subr.bf16.mxu0 0
    %6491 = vmatpush2.bf16.msra.mxu0 %v6328
    %6492 = vmatprep.subr.bf16.mxu0 0
    %6493 = vmatpush2.bf16.msra.mxu0 %v6327
    %6494 = vmatprep.subr.bf16.mxu0 0
    %6495 = vmatpush2.bf16.msra.mxu0 %v6326
    %6496 = vmatprep.subr.bf16.mxu0 0
    %6497 = vmatpush2.bf16.msra.mxu0 %v6325
    %6498 = vmatprep.subr.bf16.mxu0 0
    %6499 = vmatpush2.bf16.msra.mxu0 %v6324
    %6500 = vmatprep.mubr.bf16.mxu0 %v4018
    %6501 = vmatmul.mubr.bf16.gmra.mxu0 %v4017
    %v6502 = vpop.f32.mrf.mxu0
    %v6503 = vadd.f32 %v6463, %v6502
    %v6504 = vpop.f32.mrf.mxu0
    %v6505 = vpop.f32.mrf.mxu0
    %v6506 = vpop.f32.mrf.mxu0
    %6507 = vdwg.mxu0
    %6508 = vmatprep.subr.bf16.mxu0 0
    %6509 = vmatpush1.bf16.msra.mxu0 %v6339
    %6510 = vmatprep.subr.bf16.mxu0 0
    %6511 = vmatpush1.bf16.msra.mxu0 %v6338
    %6512 = vmatprep.subr.bf16.mxu0 0
    %6513 = vmatpush1.bf16.msra.mxu0 %v6337
    %6514 = vmatprep.subr.bf16.mxu0 0
    %6515 = vmatpush1.bf16.msra.mxu0 %v6336
    %6516 = vmatprep.subr.bf16.mxu0 0
    %6517 = vmatpush1.bf16.msra.mxu0 %v6335
    %6518 = vmatprep.subr.bf16.mxu0 0
    %6519 = vmatpush1.bf16.msra.mxu0 %v6334
    %6520 = vmatprep.subr.bf16.mxu0 0
    %6521 = vmatpush1.bf16.msra.mxu0 %v6333
    %6522 = vmatprep.subr.bf16.mxu0 0
    %6523 = vmatpush1.bf16.msra.mxu0 %v6332
    %6524 = vmatprep.subr.bf16.mxu0 0
    %6525 = vmatpush2.bf16.msra.mxu0 %v6347
    %6526 = vmatprep.subr.bf16.mxu0 0
    %6527 = vmatpush2.bf16.msra.mxu0 %v6346
    %6528 = vmatprep.subr.bf16.mxu0 0
    %6529 = vmatpush2.bf16.msra.mxu0 %v6345
    %6530 = vmatprep.subr.bf16.mxu0 0
    %6531 = vmatpush2.bf16.msra.mxu0 %v6344
    %6532 = vmatprep.subr.bf16.mxu0 0
    %6533 = vmatpush2.bf16.msra.mxu0 %v6343
    %6534 = vmatprep.subr.bf16.mxu0 0
    %6535 = vmatpush2.bf16.msra.mxu0 %v6342
    %6536 = vmatprep.subr.bf16.mxu0 0
    %6537 = vmatpush2.bf16.msra.mxu0 %v6341
    %6538 = vmatprep.subr.bf16.mxu0 0
    %6539 = vmatpush2.bf16.msra.mxu0 %v6340
    %6540 = vmatprep.mubr.bf16.mxu0 %v4020
    %6541 = vmatmul.mubr.bf16.gmra.mxu0 %v4019
    %v6542 = vpop.f32.mrf.mxu0
    %v6543 = vadd.f32 %v6503, %v6542
    %v6544 = vpop.f32.mrf.mxu0
    %v6545 = vpop.f32.mrf.mxu0
    %v6546 = vpop.f32.mrf.mxu0
    %6547 = vdwg.mxu0
    %6548 = vmatprep.subr.bf16.mxu0 0
    %6549 = vmatpush1.bf16.msra.mxu0 %v6355
    %6550 = vmatprep.subr.bf16.mxu0 0
    %6551 = vmatpush1.bf16.msra.mxu0 %v6354
    %6552 = vmatprep.subr.bf16.mxu0 0
    %6553 = vmatpush1.bf16.msra.mxu0 %v6353
    %6554 = vmatprep.subr.bf16.mxu0 0
    %6555 = vmatpush1.bf16.msra.mxu0 %v6352
    %6556 = vmatprep.subr.bf16.mxu0 0
    %6557 = vmatpush1.bf16.msra.mxu0 %v6351
    %6558 = vmatprep.subr.bf16.mxu0 0
    %6559 = vmatpush1.bf16.msra.mxu0 %v6350
    %6560 = vmatprep.subr.bf16.mxu0 0
    %6561 = vmatpush1.bf16.msra.mxu0 %v6349
    %6562 = vmatprep.subr.bf16.mxu0 0
    %6563 = vmatpush1.bf16.msra.mxu0 %v6348
    %6564 = vmatprep.subr.bf16.mxu0 0
    %6565 = vmatpush2.bf16.msra.mxu0 %v6363
    %6566 = vmatprep.subr.bf16.mxu0 0
    %6567 = vmatpush2.bf16.msra.mxu0 %v6362
    %6568 = vmatprep.subr.bf16.mxu0 0
    %6569 = vmatpush2.bf16.msra.mxu0 %v6361
    %6570 = vmatprep.subr.bf16.mxu0 0
    %6571 = vmatpush2.bf16.msra.mxu0 %v6360
    %6572 = vmatprep.subr.bf16.mxu0 0
    %6573 = vmatpush2.bf16.msra.mxu0 %v6359
    %6574 = vmatprep.subr.bf16.mxu0 0
    %6575 = vmatpush2.bf16.msra.mxu0 %v6358
    %6576 = vmatprep.subr.bf16.mxu0 0
    %6577 = vmatpush2.bf16.msra.mxu0 %v6357
    %6578 = vmatprep.subr.bf16.mxu0 0
    %6579 = vmatpush2.bf16.msra.mxu0 %v6356
    %6580 = vmatprep.mubr.bf16.mxu0 %v4022
    %6581 = vmatmul.mubr.bf16.gmra.mxu0 %v4021
    %v6582 = vpop.f32.mrf.mxu0
    %v6583 = vadd.f32 %v6543, %v6582
    %v6584 = vpop.f32.mrf.mxu0
    %v6585 = vpop.f32.mrf.mxu0
    %v6586 = vpop.f32.mrf.mxu0
    %6587 = vdwg.mxu0
    %v6588 = vmax.f32 %v5914, %v6583
    %v6589 = vld [vmem:[%s4] sm:$0x1]
    %v6591 = vlaneseq
    %v6592 = vshrl.u32 %v6591, 7
    %v6593 = vsub.s32 0, %v6592
    %v6594 = vrot.slane %v6589, %v6593
    %v6596 = vadd.f32 %v6588, %v6594
    %v6597 = vmax.f32 %v6596, 0.0
    %v6598 = vld [vmem:[%s5] sm:$0xf]
    %v6599 = vld [vmem:[%s5 + $0x4] sm:$0xf]
    %v6600 = vld [vmem:[%s5 + $0x8] sm:$0xf]
    %v6601 = vld [vmem:[%s5 + $0xc] sm:$0xf]
    %v6602 = vld [vmem:[%s5 + $0x10] sm:$0xf]
    %v6603 = vld [vmem:[%s5 + $0x14] sm:$0xf]
    %v6604 = vld [vmem:[%s5 + $0x18] sm:$0xf]
    %v6605 = vld [vmem:[%s5 + $0x1c] sm:$0xf]
    %v6606 = vld [vmem:[%s5 + $0x20] sm:$0xf]
    %v6607 = vld [vmem:[%s5 + $0x24] sm:$0xf]
    %v6608 = vld [vmem:[%s5 + $0x28] sm:$0xf]
    %v6609 = vld [vmem:[%s5 + $0x2c] sm:$0xf]
    %v6610 = vld [vmem:[%s5 + $0x30] sm:$0xf]
    %v6611 = vld [vmem:[%s5 + $0x34] sm:$0xf]
    %v6612 = vld [vmem:[%s5 + $0x38] sm:$0xf]
    %v6613 = vld [vmem:[%s5 + $0x3c] sm:$0xf]
    %v6614 = vpack.c.bf16 %v6597, %v6597
    %v6615 = vld [vmem:[%s6] sm:$0x1]
    %v6617 = vlaneseq
    %v6618 = vshrl.u32 %v6617, 7
    %v6619 = vsub.s32 0, %v6618
    %v6620 = vrot.slane %v6615, %v6619
    %v6638 = vunpack.c.l.b16 %v6598
    %v6639 = vunpack.c.l.b16 %v6599
    %v6640 = vunpack.c.l.b16 %v6600
    %v6641 = vunpack.c.l.b16 %v6601
    %v6642 = vunpack.c.l.b16 %v6602
    %v6643 = vunpack.c.l.b16 %v6603
    %v6644 = vunpack.c.l.b16 %v6604
    %v6645 = vunpack.c.l.b16 %v6605
    %v6646 = vunpack.c.l.b16 %v6606
    %v6647 = vunpack.c.l.b16 %v6607
    %v6648 = vunpack.c.l.b16 %v6608
    %v6649 = vunpack.c.l.b16 %v6609
    %v6650 = vunpack.c.l.b16 %v6610
    %v6651 = vunpack.c.l.b16 %v6611
    %v6652 = vunpack.c.l.b16 %v6612
    %v6653 = vunpack.c.l.b16 %v6613
    %v6654 = vpack.c.b16 %v6639, %v6638
    %v6655 = vpack.c.b16 %v6641, %v6640
    %v6656 = vpack.c.b16 %v6643, %v6642
    %v6657 = vpack.c.b16 %v6645, %v6644
    %v6658 = vpack.c.b16 %v6647, %v6646
    %v6659 = vpack.c.b16 %v6649, %v6648
    %v6660 = vpack.c.b16 %v6651, %v6650
    %v6661 = vpack.c.b16 %v6653, %v6652
    %6670 = vmatprep.subr.bf16.mxu0 0
    %6671 = vmatpush1.bf16.msra.mxu0 %v6661
    %6672 = vmatprep.subr.bf16.mxu0 0
    %6673 = vmatpush1.bf16.msra.mxu0 %v6660
    %6674 = vmatprep.subr.bf16.mxu0 0
    %6675 = vmatpush1.bf16.msra.mxu0 %v6659
    %6676 = vmatprep.subr.bf16.mxu0 0
    %6677 = vmatpush1.bf16.msra.mxu0 %v6658
    %6678 = vmatprep.subr.bf16.mxu0 0
    %6679 = vmatpush1.bf16.msra.mxu0 %v6657
    %6680 = vmatprep.subr.bf16.mxu0 0
    %6681 = vmatpush1.bf16.msra.mxu0 %v6656
    %6682 = vmatprep.subr.bf16.mxu0 0
    %6683 = vmatpush1.bf16.msra.mxu0 %v6655
    %6684 = vmatprep.subr.bf16.mxu0 0
    %6685 = vmatpush1.bf16.msra.mxu0 %v6654
    %6686 = vmatprep.subr.bf16.mxu0 0
    %6687 = vmatpush2.bf16.msra.mxu0 0
    %6688 = vmatprep.subr.bf16.mxu0 0
    %6689 = vmatpush2.bf16.msra.mxu0 0
    %6690 = vmatprep.subr.bf16.mxu0 0
    %6691 = vmatpush2.bf16.msra.mxu0 0
    %6692 = vmatprep.subr.bf16.mxu0 0
    %6693 = vmatpush2.bf16.msra.mxu0 0
    %6694 = vmatprep.subr.bf16.mxu0 0
    %6695 = vmatpush2.bf16.msra.mxu0 0
    %6696 = vmatprep.subr.bf16.mxu0 0
    %6697 = vmatpush2.bf16.msra.mxu0 0
    %6698 = vmatprep.subr.bf16.mxu0 0
    %6699 = vmatpush2.bf16.msra.mxu0 0
    %6700 = vmatprep.subr.bf16.mxu0 0
    %6701 = vmatpush2.bf16.msra.mxu0 0
    %6702 = vmatprep.mubr.bf16.mxu0 0
    %6703 = vmatmul.mubr.bf16.gmra.mxu0 %v6614
    %v6704 = vpop.f32.mrf.mxu0
    %v6705 = vadd.f32 %v6620, %v6704
    %v6706 = vpop.f32.mrf.mxu0
    %v6707 = vpop.f32.mrf.mxu0
    %v6708 = vpop.f32.mrf.mxu0
    %6709 = vdwg.mxu0
    %vm6710 = vcmask 74752
    %6711 = vst.msk [vmem:[#allocation2] sm:$0x3] %vm6710, %v6705
    %v6712 = vld [vmem:[%s7] sm:$0xf]
    %v6713 = vld [vmem:[%s7 + $0x4] sm:$0x1]
    %v6714 = vpack.c.bf16 %v6705, %v6705
    %v6715 = vld [vmem:[%s8] sm:$0x1]
    %v6717 = vlaneseq
    %v6718 = vshrl.u32 %v6717, 7
    %v6719 = vsub.s32 0, %v6718
    %v6720 = vrot.slane %v6715, %v6719
    %v6724 = vunpack.c.l.b16 %v6712
    %v6725 = vunpack.c.l.b16 %v6713
    %v6726 = vpack.c.b16 %v6725, %v6724
    %vm6727 = vcmask 80896
    %v6729 = vsel %vm6727, %v6714, 0
    %vm6731 = vcmask 1044480
    %v6733 = vsel %vm6731, %v6726, 0
    %6735 = vmatprep.subr.bf16.mxu0 0
    %6736 = vmatpush1.bf16.msra.mxu0 0
    %6737 = vmatprep.subr.bf16.mxu0 0
    %6738 = vmatpush1.bf16.msra.mxu0 0
    %6739 = vmatprep.subr.bf16.mxu0 0
    %6740 = vmatpush1.bf16.msra.mxu0 0
    %6741 = vmatprep.subr.bf16.mxu0 0
    %6742 = vmatpush1.bf16.msra.mxu0 0
    %6743 = vmatprep.subr.bf16.mxu0 0
    %6744 = vmatpush1.bf16.msra.mxu0 0
    %6745 = vmatprep.subr.bf16.mxu0 0
    %6746 = vmatpush1.bf16.msra.mxu0 0
    %6747 = vmatprep.subr.bf16.mxu0 0
    %6748 = vmatpush1.bf16.msra.mxu0 0
    %6749 = vmatprep.subr.bf16.mxu0 0
    %6750 = vmatpush1.bf16.msra.mxu0 %v6733
    %6751 = vmatprep.subr.bf16.mxu0 0
    %6752 = vmatpush2.bf16.msra.mxu0 0
    %6753 = vmatprep.subr.bf16.mxu0 0
    %6754 = vmatpush2.bf16.msra.mxu0 0
    %6755 = vmatprep.subr.bf16.mxu0 0
    %6756 = vmatpush2.bf16.msra.mxu0 0
    %6757 = vmatprep.subr.bf16.mxu0 0
    %6758 = vmatpush2.bf16.msra.mxu0 0
    %6759 = vmatprep.subr.bf16.mxu0 0
    %6760 = vmatpush2.bf16.msra.mxu0 0
    %6761 = vmatprep.subr.bf16.mxu0 0
    %6762 = vmatpush2.bf16.msra.mxu0 0
    %6763 = vmatprep.subr.bf16.mxu0 0
    %6764 = vmatpush2.bf16.msra.mxu0 0
    %6765 = vmatprep.subr.bf16.mxu0 0
    %6766 = vmatpush2.bf16.msra.mxu0 0
    %6767 = vmatprep.mubr.bf16.mxu0 0
    %6768 = vmatmul.mubr.bf16.gmra.mxu0 %v6729
    %v6769 = vpop.f32.mrf.mxu0
    %v6770 = vadd.f32 %v6720, %v6769
    %v6771 = vpop.f32.mrf.mxu0
    %v6772 = vpop.f32.mrf.mxu0
    %v6773 = vpop.f32.mrf.mxu0
    %6774 = vdwg.mxu0
    %v6775 = vld [vmem:[%s9] sm:$0xff]
    %v6776 = vld [vmem:[%s9 + $0x8] sm:$0xff]
    %v6777 = vld [vmem:[%s9 + $0x10] sm:$0xff]
    %v6778 = vld [vmem:[%s9 + $0x18] sm:$0xff]
    %v6779 = vld [vmem:[%s9 + $0x20] sm:$0xff]
    %v6780 = vld [vmem:[%s9 + $0x28] sm:$0xff]
    %v6781 = vld [vmem:[%s9 + $0x30] sm:$0xff]
    %v6782 = vld [vmem:[%s9 + $0x38] sm:$0xff]
    %v6783 = vld [vmem:[%s9 + $0x40] sm:$0xff]
    %v6784 = vld [vmem:[%s9 + $0x48] sm:$0xff]
    %v6785 = vld [vmem:[%s9 + $0x50] sm:$0xff]
    %v6786 = vld [vmem:[%s9 + $0x58] sm:$0xff]
    %v6787 = vld [vmem:[%s9 + $0x60] sm:$0xff]
    %v6788 = vld [vmem:[%s9 + $0x68] sm:$0xff]
    %v6789 = vld [vmem:[%s9 + $0x70] sm:$0xff]
    %v6790 = vld [vmem:[%s9 + $0x78] sm:$0xff]
    %v6791 = vld [vmem:[%s9 + $0x80] sm:$0xff]
    %v6792 = vld [vmem:[%s9 + $0x88] sm:$0xff]
    %v6793 = vld [vmem:[%s9 + $0x90] sm:$0xff]
    %v6794 = vld [vmem:[%s9 + $0x98] sm:$0xff]
    %v6795 = vld [vmem:[%s9 + $0xa0] sm:$0xff]
    %v6796 = vld [vmem:[%s9 + $0xa8] sm:$0xff]
    %v6797 = vld [vmem:[%s9 + $0xb0] sm:$0xff]
    %v6798 = vld [vmem:[%s9 + $0xb8] sm:$0xff]
    %v6799 = vld [vmem:[%s9 + $0xc0] sm:$0xff]
    %v6800 = vld [vmem:[%s9 + $0xc8] sm:$0xff]
    %v6801 = vld [vmem:[%s9 + $0xd0] sm:$0xff]
    %v6802 = vld [vmem:[%s9 + $0xd8] sm:$0xff]
    %v6803 = vld [vmem:[%s9 + $0xe0] sm:$0xff]
    %v6804 = vld [vmem:[%s9 + $0xe8] sm:$0xff]
    %v6805 = vld [vmem:[%s9 + $0xf0] sm:$0xff]
    %v6806 = vld [vmem:[%s9 + $0xf8] sm:$0xff]
    %v6807 = vld [vmem:[%s9 + $0x100] sm:$0xff]
    %v6808 = vld [vmem:[%s9 + $0x108] sm:$0xff]
    %v6809 = vld [vmem:[%s9 + $0x110] sm:$0xff]
    %v6810 = vld [vmem:[%s9 + $0x118] sm:$0xff]
    %v6811 = vld [vmem:[%s9 + $0x120] sm:$0xff]
    %v6812 = vld [vmem:[%s9 + $0x128] sm:$0xff]
    %v6813 = vld [vmem:[%s9 + $0x130] sm:$0xff]
    %v6814 = vld [vmem:[%s9 + $0x138] sm:$0xff]
    %v6815 = vld [vmem:[%s9 + $0x140] sm:$0xff]
    %v6816 = vld [vmem:[%s9 + $0x148] sm:$0xff]
    %v6817 = vld [vmem:[%s9 + $0x150] sm:$0xff]
    %v6818 = vld [vmem:[%s9 + $0x158] sm:$0xff]
    %v6819 = vld [vmem:[%s9 + $0x160] sm:$0xff]
    %v6820 = vld [vmem:[%s9 + $0x168] sm:$0xff]
    %v6821 = vld [vmem:[%s9 + $0x170] sm:$0xff]
    %v6822 = vld [vmem:[%s9 + $0x178] sm:$0xff]
    %v6823 = vld [vmem:[%s9 + $0x180] sm:$0xff]
    %v6824 = vld [vmem:[%s9 + $0x188] sm:$0xff]
    %v6825 = vld [vmem:[%s9 + $0x190] sm:$0xff]
    %v6826 = vld [vmem:[%s9 + $0x198] sm:$0xff]
    %v6827 = vld [vmem:[%s9 + $0x1a0] sm:$0xff]
    %v6828 = vld [vmem:[%s9 + $0x1a8] sm:$0xff]
    %v6829 = vld [vmem:[%s9 + $0x1b0] sm:$0xff]
    %v6830 = vld [vmem:[%s9 + $0x1b8] sm:$0xff]
    %v6831 = vld [vmem:[%s9 + $0x1c0] sm:$0xff]
    %v6832 = vld [vmem:[%s9 + $0x1c8] sm:$0xff]
    %v6833 = vld [vmem:[%s9 + $0x1d0] sm:$0xff]
    %v6834 = vld [vmem:[%s9 + $0x1d8] sm:$0xff]
    %v6835 = vld [vmem:[%s9 + $0x1e0] sm:$0xff]
    %v6836 = vld [vmem:[%s9 + $0x1e8] sm:$0xff]
    %v6837 = vld [vmem:[%s9 + $0x1f0] sm:$0xff]
    %v6838 = vld [vmem:[%s9 + $0x1f8] sm:$0xff]
    %v6839 = vpack.c.bf16 %v6770, %v6770
    %v6840 = vld [vmem:[%s10] sm:$0xff]
    %v6842 = vlaneseq
    %v6843 = vshrl.u32 %v6842, 7
    %v6844 = vsub.s32 0, %v6843
    %v6845 = vrot.slane %v6840, %v6844
    %v6846 = vlaneseq
    %v6847 = vshrl.u32 %v6846, 7
    %v6848 = vsub.s32 1, %v6847
    %v6849 = vrot.slane %v6840, %v6848
    %v6850 = vlaneseq
    %v6851 = vshrl.u32 %v6850, 7
    %v6852 = vsub.s32 2, %v6851
    %v6853 = vrot.slane %v6840, %v6852
    %v6854 = vlaneseq
    %v6855 = vshrl.u32 %v6854, 7
    %v6856 = vsub.s32 3, %v6855
    %v6857 = vrot.slane %v6840, %v6856
    %v6858 = vlaneseq
    %v6859 = vshrl.u32 %v6858, 7
    %v6860 = vsub.s32 4, %v6859
    %v6861 = vrot.slane %v6840, %v6860
    %v6862 = vlaneseq
    %v6863 = vshrl.u32 %v6862, 7
    %v6864 = vsub.s32 5, %v6863
    %v6865 = vrot.slane %v6840, %v6864
    %v6866 = vlaneseq
    %v6867 = vshrl.u32 %v6866, 7
    %v6868 = vsub.s32 6, %v6867
    %v6869 = vrot.slane %v6840, %v6868
    %v6870 = vlaneseq
    %v6871 = vshrl.u32 %v6870, 7
    %v6872 = vsub.s32 7, %v6871
    %v6873 = vrot.slane %v6840, %v6872
    %v6946 = vunpack.c.l.b16 %v6775
    %v6947 = vunpack.c.h.b16 %v6775
    %v6948 = vunpack.c.l.b16 %v6776
    %v6949 = vunpack.c.h.b16 %v6776
    %v6950 = vunpack.c.l.b16 %v6777
    %v6951 = vunpack.c.h.b16 %v6777
    %v6952 = vunpack.c.l.b16 %v6778
    %v6953 = vunpack.c.h.b16 %v6778
    %v6954 = vunpack.c.l.b16 %v6779
    %v6955 = vunpack.c.h.b16 %v6779
    %v6956 = vunpack.c.l.b16 %v6780
    %v6957 = vunpack.c.h.b16 %v6780
    %v6958 = vunpack.c.l.b16 %v6781
    %v6959 = vunpack.c.h.b16 %v6781
    %v6960 = vunpack.c.l.b16 %v6782
    %v6961 = vunpack.c.h.b16 %v6782
    %v6962 = vunpack.c.l.b16 %v6783
    %v6963 = vunpack.c.h.b16 %v6783
    %v6964 = vunpack.c.l.b16 %v6784
    %v6965 = vunpack.c.h.b16 %v6784
    %v6966 = vunpack.c.l.b16 %v6785
    %v6967 = vunpack.c.h.b16 %v6785
    %v6968 = vunpack.c.l.b16 %v6786
    %v6969 = vunpack.c.h.b16 %v6786
    %v6970 = vunpack.c.l.b16 %v6787
    %v6971 = vunpack.c.h.b16 %v6787
    %v6972 = vunpack.c.l.b16 %v6788
    %v6973 = vunpack.c.h.b16 %v6788
    %v6974 = vunpack.c.l.b16 %v6789
    %v6975 = vunpack.c.h.b16 %v6789
    %v6976 = vunpack.c.l.b16 %v6790
    %v6977 = vunpack.c.h.b16 %v6790
    %v6978 = vunpack.c.l.b16 %v6791
    %v6979 = vunpack.c.h.b16 %v6791
    %v6980 = vunpack.c.l.b16 %v6792
    %v6981 = vunpack.c.h.b16 %v6792
    %v6982 = vunpack.c.l.b16 %v6793
    %v6983 = vunpack.c.h.b16 %v6793
    %v6984 = vunpack.c.l.b16 %v6794
    %v6985 = vunpack.c.h.b16 %v6794
    %v6986 = vunpack.c.l.b16 %v6795
    %v6987 = vunpack.c.h.b16 %v6795
    %v6988 = vunpack.c.l.b16 %v6796
    %v6989 = vunpack.c.h.b16 %v6796
    %v6990 = vunpack.c.l.b16 %v6797
    %v6991 = vunpack.c.h.b16 %v6797
    %v6992 = vunpack.c.l.b16 %v6798
    %v6993 = vunpack.c.h.b16 %v6798
    %v6994 = vunpack.c.l.b16 %v6799
    %v6995 = vunpack.c.h.b16 %v6799
    %v6996 = vunpack.c.l.b16 %v6800
    %v6997 = vunpack.c.h.b16 %v6800
    %v6998 = vunpack.c.l.b16 %v6801
    %v6999 = vunpack.c.h.b16 %v6801
    %v7000 = vunpack.c.l.b16 %v6802
    %v7001 = vunpack.c.h.b16 %v6802
    %v7002 = vunpack.c.l.b16 %v6803
    %v7003 = vunpack.c.h.b16 %v6803
    %v7004 = vunpack.c.l.b16 %v6804
    %v7005 = vunpack.c.h.b16 %v6804
    %v7006 = vunpack.c.l.b16 %v6805
    %v7007 = vunpack.c.h.b16 %v6805
    %v7008 = vunpack.c.l.b16 %v6806
    %v7009 = vunpack.c.h.b16 %v6806
    %v7010 = vunpack.c.l.b16 %v6807
    %v7011 = vunpack.c.h.b16 %v6807
    %v7012 = vunpack.c.l.b16 %v6808
    %v7013 = vunpack.c.h.b16 %v6808
    %v7014 = vunpack.c.l.b16 %v6809
    %v7015 = vunpack.c.h.b16 %v6809
    %v7016 = vunpack.c.l.b16 %v6810
    %v7017 = vunpack.c.h.b16 %v6810
    %v7018 = vunpack.c.l.b16 %v6811
    %v7019 = vunpack.c.h.b16 %v6811
    %v7020 = vunpack.c.l.b16 %v6812
    %v7021 = vunpack.c.h.b16 %v6812
    %v7022 = vunpack.c.l.b16 %v6813
    %v7023 = vunpack.c.h.b16 %v6813
    %v7024 = vunpack.c.l.b16 %v6814
    %v7025 = vunpack.c.h.b16 %v6814
    %v7026 = vunpack.c.l.b16 %v6815
    %v7027 = vunpack.c.h.b16 %v6815
    %v7028 = vunpack.c.l.b16 %v6816
    %v7029 = vunpack.c.h.b16 %v6816
    %v7030 = vunpack.c.l.b16 %v6817
    %v7031 = vunpack.c.h.b16 %v6817
    %v7032 = vunpack.c.l.b16 %v6818
    %v7033 = vunpack.c.h.b16 %v6818
    %v7034 = vunpack.c.l.b16 %v6819
    %v7035 = vunpack.c.h.b16 %v6819
    %v7036 = vunpack.c.l.b16 %v6820
    %v7037 = vunpack.c.h.b16 %v6820
    %v7038 = vunpack.c.l.b16 %v6821
    %v7039 = vunpack.c.h.b16 %v6821
    %v7040 = vunpack.c.l.b16 %v6822
    %v7041 = vunpack.c.h.b16 %v6822
    %v7042 = vunpack.c.l.b16 %v6823
    %v7043 = vunpack.c.h.b16 %v6823
    %v7044 = vunpack.c.l.b16 %v6824
    %v7045 = vunpack.c.h.b16 %v6824
    %v7046 = vunpack.c.l.b16 %v6825
    %v7047 = vunpack.c.h.b16 %v6825
    %v7048 = vunpack.c.l.b16 %v6826
    %v7049 = vunpack.c.h.b16 %v6826
    %v7050 = vunpack.c.l.b16 %v6827
    %v7051 = vunpack.c.h.b16 %v6827
    %v7052 = vunpack.c.l.b16 %v6828
    %v7053 = vunpack.c.h.b16 %v6828
    %v7054 = vunpack.c.l.b16 %v6829
    %v7055 = vunpack.c.h.b16 %v6829
    %v7056 = vunpack.c.l.b16 %v6830
    %v7057 = vunpack.c.h.b16 %v6830
    %v7058 = vunpack.c.l.b16 %v6831
    %v7059 = vunpack.c.h.b16 %v6831
    %v7060 = vunpack.c.l.b16 %v6832
    %v7061 = vunpack.c.h.b16 %v6832
    %v7062 = vunpack.c.l.b16 %v6833
    %v7063 = vunpack.c.h.b16 %v6833
    %v7064 = vunpack.c.l.b16 %v6834
    %v7065 = vunpack.c.h.b16 %v6834
    %v7066 = vunpack.c.l.b16 %v6835
    %v7067 = vunpack.c.h.b16 %v6835
    %v7068 = vunpack.c.l.b16 %v6836
    %v7069 = vunpack.c.h.b16 %v6836
    %v7070 = vunpack.c.l.b16 %v6837
    %v7071 = vunpack.c.h.b16 %v6837
    %v7072 = vunpack.c.l.b16 %v6838
    %v7073 = vunpack.c.h.b16 %v6838
    %v7074 = vpack.c.b16 %v6954, %v6946
    %v7075 = vpack.c.b16 %v6955, %v6947
    %v7076 = vpack.c.b16 %v6956, %v6948
    %v7077 = vpack.c.b16 %v6957, %v6949
    %v7078 = vpack.c.b16 %v6958, %v6950
    %v7079 = vpack.c.b16 %v6959, %v6951
    %v7080 = vpack.c.b16 %v6960, %v6952
    %v7081 = vpack.c.b16 %v6961, %v6953
    %v7082 = vpack.c.b16 %v6970, %v6962
    %v7083 = vpack.c.b16 %v6971, %v6963
    %v7084 = vpack.c.b16 %v6972, %v6964
    %v7085 = vpack.c.b16 %v6973, %v6965
    %v7086 = vpack.c.b16 %v6974, %v6966
    %v7087 = vpack.c.b16 %v6975, %v6967
    %v7088 = vpack.c.b16 %v6976, %v6968
    %v7089 = vpack.c.b16 %v6977, %v6969
    %v7090 = vpack.c.b16 %v6986, %v6978
    %v7091 = vpack.c.b16 %v6987, %v6979
    %v7092 = vpack.c.b16 %v6988, %v6980
    %v7093 = vpack.c.b16 %v6989, %v6981
    %v7094 = vpack.c.b16 %v6990, %v6982
    %v7095 = vpack.c.b16 %v6991, %v6983
    %v7096 = vpack.c.b16 %v6992, %v6984
    %v7097 = vpack.c.b16 %v6993, %v6985
    %v7098 = vpack.c.b16 %v7002, %v6994
    %v7099 = vpack.c.b16 %v7003, %v6995
    %v7100 = vpack.c.b16 %v7004, %v6996
    %v7101 = vpack.c.b16 %v7005, %v6997
    %v7102 = vpack.c.b16 %v7006, %v6998
    %v7103 = vpack.c.b16 %v7007, %v6999
    %v7104 = vpack.c.b16 %v7008, %v7000
    %v7105 = vpack.c.b16 %v7009, %v7001
    %v7106 = vpack.c.b16 %v7018, %v7010
    %v7107 = vpack.c.b16 %v7019, %v7011
    %v7108 = vpack.c.b16 %v7020, %v7012
    %v7109 = vpack.c.b16 %v7021, %v7013
    %v7110 = vpack.c.b16 %v7022, %v7014
    %v7111 = vpack.c.b16 %v7023, %v7015
    %v7112 = vpack.c.b16 %v7024, %v7016
    %v7113 = vpack.c.b16 %v7025, %v7017
    %v7114 = vpack.c.b16 %v7034, %v7026
    %v7115 = vpack.c.b16 %v7035, %v7027
    %v7116 = vpack.c.b16 %v7036, %v7028
    %v7117 = vpack.c.b16 %v7037, %v7029
    %v7118 = vpack.c.b16 %v7038, %v7030
    %v7119 = vpack.c.b16 %v7039, %v7031
    %v7120 = vpack.c.b16 %v7040, %v7032
    %v7121 = vpack.c.b16 %v7041, %v7033
    %v7122 = vpack.c.b16 %v7050, %v7042
    %v7123 = vpack.c.b16 %v7051, %v7043
    %v7124 = vpack.c.b16 %v7052, %v7044
    %v7125 = vpack.c.b16 %v7053, %v7045
    %v7126 = vpack.c.b16 %v7054, %v7046
    %v7127 = vpack.c.b16 %v7055, %v7047
    %v7128 = vpack.c.b16 %v7056, %v7048
    %v7129 = vpack.c.b16 %v7057, %v7049
    %v7130 = vpack.c.b16 %v7066, %v7058
    %v7131 = vpack.c.b16 %v7067, %v7059
    %v7132 = vpack.c.b16 %v7068, %v7060
    %v7133 = vpack.c.b16 %v7069, %v7061
    %v7134 = vpack.c.b16 %v7070, %v7062
    %v7135 = vpack.c.b16 %v7071, %v7063
    %v7136 = vpack.c.b16 %v7072, %v7064
    %v7137 = vpack.c.b16 %v7073, %v7065
    %7202 = vmatprep.subr.bf16.mxu0 %v7131
    %7203 = vmatpush1.bf16.msra.mxu0 %v7130
    %7204 = vmatprep.subr.bf16.mxu0 %v7123
    %7205 = vmatpush1.bf16.msra.mxu0 %v7122
    %7206 = vmatprep.subr.bf16.mxu0 %v7115
    %7207 = vmatpush1.bf16.msra.mxu0 %v7114
    %7208 = vmatprep.subr.bf16.mxu0 %v7107
    %7209 = vmatpush1.bf16.msra.mxu0 %v7106
    %7210 = vmatprep.subr.bf16.mxu0 %v7099
    %7211 = vmatpush1.bf16.msra.mxu0 %v7098
    %7212 = vmatprep.subr.bf16.mxu0 %v7091
    %7213 = vmatpush1.bf16.msra.mxu0 %v7090
    %7214 = vmatprep.subr.bf16.mxu0 %v7083
    %7215 = vmatpush1.bf16.msra.mxu0 %v7082
    %7216 = vmatprep.subr.bf16.mxu0 %v7075
    %7217 = vmatpush1.bf16.msra.mxu0 %v7074
    %7218 = vmatprep.subr.bf16.mxu0 0
    %7219 = vmatpush2.bf16.msra.mxu0 0
    %7220 = vmatprep.subr.bf16.mxu0 0
    %7221 = vmatpush2.bf16.msra.mxu0 0
    %7222 = vmatprep.subr.bf16.mxu0 0
    %7223 = vmatpush2.bf16.msra.mxu0 0
    %7224 = vmatprep.subr.bf16.mxu0 0
    %7225 = vmatpush2.bf16.msra.mxu0 0
    %7226 = vmatprep.subr.bf16.mxu0 0
    %7227 = vmatpush2.bf16.msra.mxu0 0
    %7228 = vmatprep.subr.bf16.mxu0 0
    %7229 = vmatpush2.bf16.msra.mxu0 0
    %7230 = vmatprep.subr.bf16.mxu0 0
    %7231 = vmatpush2.bf16.msra.mxu0 0
    %7232 = vmatprep.subr.bf16.mxu0 0
    %7233 = vmatpush2.bf16.msra.mxu0 0
    %7234 = vmatprep.mubr.bf16.mxu0 0
    %7235 = vmatmul.mubr.bf16.gmra.mxu0 %v6839
    %v7236 = vpop.f32.mrf.mxu0
    %v7237 = vadd.f32 %v6845, %v7236
    %v7238 = vpop.f32.mrf.mxu0
    %v7239 = vadd.f32 %v6849, %v7238
    %v7240 = vpop.f32.mrf.mxu0
    %v7241 = vpop.f32.mrf.mxu0
    %7242 = vdwg.mxu0
    %7243 = vmatprep.subr.bf16.mxu0 %v7133
    %7244 = vmatpush1.bf16.msra.mxu0 %v7132
    %7245 = vmatprep.subr.bf16.mxu0 %v7125
    %7246 = vmatpush1.bf16.msra.mxu0 %v7124
    %7247 = vmatprep.subr.bf16.mxu0 %v7117
    %7248 = vmatpush1.bf16.msra.mxu0 %v7116
    %7249 = vmatprep.subr.bf16.mxu0 %v7109
    %7250 = vmatpush1.bf16.msra.mxu0 %v7108
    %7251 = vmatprep.subr.bf16.mxu0 %v7101
    %7252 = vmatpush1.bf16.msra.mxu0 %v7100
    %7253 = vmatprep.subr.bf16.mxu0 %v7093
    %7254 = vmatpush1.bf16.msra.mxu0 %v7092
    %7255 = vmatprep.subr.bf16.mxu0 %v7085
    %7256 = vmatpush1.bf16.msra.mxu0 %v7084
    %7257 = vmatprep.subr.bf16.mxu0 %v7077
    %7258 = vmatpush1.bf16.msra.mxu0 %v7076
    %7259 = vmatprep.subr.bf16.mxu0 0
    %7260 = vmatpush2.bf16.msra.mxu0 0
    %7261 = vmatprep.subr.bf16.mxu0 0
    %7262 = vmatpush2.bf16.msra.mxu0 0
    %7263 = vmatprep.subr.bf16.mxu0 0
    %7264 = vmatpush2.bf16.msra.mxu0 0
    %7265 = vmatprep.subr.bf16.mxu0 0
    %7266 = vmatpush2.bf16.msra.mxu0 0
    %7267 = vmatprep.subr.bf16.mxu0 0
    %7268 = vmatpush2.bf16.msra.mxu0 0
    %7269 = vmatprep.subr.bf16.mxu0 0
    %7270 = vmatpush2.bf16.msra.mxu0 0
    %7271 = vmatprep.subr.bf16.mxu0 0
    %7272 = vmatpush2.bf16.msra.mxu0 0
    %7273 = vmatprep.subr.bf16.mxu0 0
    %7274 = vmatpush2.bf16.msra.mxu0 0
    %7275 = vmatprep.mubr.bf16.mxu0 0
    %7276 = vmatmul.mubr.bf16.gmra.mxu0 %v6839
    %v7277 = vpop.f32.mrf.mxu0
    %v7278 = vadd.f32 %v6853, %v7277
    %v7279 = vpop.f32.mrf.mxu0
    %v7280 = vadd.f32 %v6857, %v7279
    %v7281 = vpop.f32.mrf.mxu0
    %v7282 = vpop.f32.mrf.mxu0
    %7283 = vdwg.mxu0
    %7284 = vmatprep.subr.bf16.mxu0 %v7135
    %7285 = vmatpush1.bf16.msra.mxu0 %v7134
    %7286 = vmatprep.subr.bf16.mxu0 %v7127
    %7287 = vmatpush1.bf16.msra.mxu0 %v7126
    %7288 = vmatprep.subr.bf16.mxu0 %v7119
    %7289 = vmatpush1.bf16.msra.mxu0 %v7118
    %7290 = vmatprep.subr.bf16.mxu0 %v7111
    %7291 = vmatpush1.bf16.msra.mxu0 %v7110
    %7292 = vmatprep.subr.bf16.mxu0 %v7103
    %7293 = vmatpush1.bf16.msra.mxu0 %v7102
    %7294 = vmatprep.subr.bf16.mxu0 %v7095
    %7295 = vmatpush1.bf16.msra.mxu0 %v7094
    %7296 = vmatprep.subr.bf16.mxu0 %v7087
    %7297 = vmatpush1.bf16.msra.mxu0 %v7086
    %7298 = vmatprep.subr.bf16.mxu0 %v7079
    %7299 = vmatpush1.bf16.msra.mxu0 %v7078
    %7300 = vmatprep.subr.bf16.mxu0 0
    %7301 = vmatpush2.bf16.msra.mxu0 0
    %7302 = vmatprep.subr.bf16.mxu0 0
    %7303 = vmatpush2.bf16.msra.mxu0 0
    %7304 = vmatprep.subr.bf16.mxu0 0
    %7305 = vmatpush2.bf16.msra.mxu0 0
    %7306 = vmatprep.subr.bf16.mxu0 0
    %7307 = vmatpush2.bf16.msra.mxu0 0
    %7308 = vmatprep.subr.bf16.mxu0 0
    %7309 = vmatpush2.bf16.msra.mxu0 0
    %7310 = vmatprep.subr.bf16.mxu0 0
    %7311 = vmatpush2.bf16.msra.mxu0 0
    %7312 = vmatprep.subr.bf16.mxu0 0
    %7313 = vmatpush2.bf16.msra.mxu0 0
    %7314 = vmatprep.subr.bf16.mxu0 0
    %7315 = vmatpush2.bf16.msra.mxu0 0
    %7316 = vmatprep.mubr.bf16.mxu0 0
    %7317 = vmatmul.mubr.bf16.gmra.mxu0 %v6839
    %v7318 = vpop.f32.mrf.mxu0
    %v7319 = vadd.f32 %v6861, %v7318
    %v7320 = vpop.f32.mrf.mxu0
    %v7321 = vadd.f32 %v6865, %v7320
    %v7322 = vpop.f32.mrf.mxu0
    %v7323 = vpop.f32.mrf.mxu0
    %7324 = vdwg.mxu0
    %7325 = vmatprep.subr.bf16.mxu0 %v7137
    %7326 = vmatpush1.bf16.msra.mxu0 %v7136
    %7327 = vmatprep.subr.bf16.mxu0 %v7129
    %7328 = vmatpush1.bf16.msra.mxu0 %v7128
    %7329 = vmatprep.subr.bf16.mxu0 %v7121
    %7330 = vmatpush1.bf16.msra.mxu0 %v7120
    %7331 = vmatprep.subr.bf16.mxu0 %v7113
    %7332 = vmatpush1.bf16.msra.mxu0 %v7112
    %7333 = vmatprep.subr.bf16.mxu0 %v7105
    %7334 = vmatpush1.bf16.msra.mxu0 %v7104
    %7335 = vmatprep.subr.bf16.mxu0 %v7097
    %7336 = vmatpush1.bf16.msra.mxu0 %v7096
    %7337 = vmatprep.subr.bf16.mxu0 %v7089
    %7338 = vmatpush1.bf16.msra.mxu0 %v7088
    %7339 = vmatprep.subr.bf16.mxu0 %v7081
    %7340 = vmatpush1.bf16.msra.mxu0 %v7080
    %7341 = vmatprep.subr.bf16.mxu0 0
    %7342 = vmatpush2.bf16.msra.mxu0 0
    %7343 = vmatprep.subr.bf16.mxu0 0
    %7344 = vmatpush2.bf16.msra.mxu0 0
    %7345 = vmatprep.subr.bf16.mxu0 0
    %7346 = vmatpush2.bf16.msra.mxu0 0
    %7347 = vmatprep.subr.bf16.mxu0 0
    %7348 = vmatpush2.bf16.msra.mxu0 0
    %7349 = vmatprep.subr.bf16.mxu0 0
    %7350 = vmatpush2.bf16.msra.mxu0 0
    %7351 = vmatprep.subr.bf16.mxu0 0
    %7352 = vmatpush2.bf16.msra.mxu0 0
    %7353 = vmatprep.subr.bf16.mxu0 0
    %7354 = vmatpush2.bf16.msra.mxu0 0
    %7355 = vmatprep.subr.bf16.mxu0 0
    %7356 = vmatpush2.bf16.msra.mxu0 0
    %7357 = vmatprep.mubr.bf16.mxu0 0
    %7358 = vmatmul.mubr.bf16.gmra.mxu0 %v6839
    %v7359 = vpop.f32.mrf.mxu0
    %v7360 = vadd.f32 %v6869, %v7359
    %v7361 = vpop.f32.mrf.mxu0
    %v7362 = vadd.f32 %v6873, %v7361
    %v7363 = vpop.f32.mrf.mxu0
    %v7364 = vpop.f32.mrf.mxu0
    %7365 = vdwg.mxu0
    %v7366 = vmax.f32 %v7237, 0.0
    %v7367 = vmax.f32 %v7239, 0.0
    %v7368 = vmax.f32 %v7278, 0.0
    %v7369 = vmax.f32 %v7280, 0.0
    %v7370 = vmax.f32 %v7319, 0.0
    %v7371 = vmax.f32 %v7321, 0.0
    %v7372 = vmax.f32 %v7360, 0.0
    %v7373 = vmax.f32 %v7362, 0.0
    %v7374 = vld [vmem:[%s11] sm:$0xff]
    %v7375 = vld [vmem:[%s11 + $0x8] sm:$0xff]
    %v7376 = vld [vmem:[%s11 + $0x10] sm:$0xff]
    %v7377 = vld [vmem:[%s11 + $0x18] sm:$0xff]
    %v7378 = vld [vmem:[%s11 + $0x20] sm:$0xff]
    %v7379 = vld [vmem:[%s11 + $0x28] sm:$0xff]
    %v7380 = vld [vmem:[%s11 + $0x30] sm:$0xff]
    %v7381 = vld [vmem:[%s11 + $0x38] sm:$0xff]
    %v7382 = vld [vmem:[%s11 + $0x40] sm:$0xff]
    %v7383 = vld [vmem:[%s11 + $0x48] sm:$0xff]
    %v7384 = vld [vmem:[%s11 + $0x50] sm:$0xff]
    %v7385 = vld [vmem:[%s11 + $0x58] sm:$0xff]
    %v7386 = vld [vmem:[%s11 + $0x60] sm:$0xff]
    %v7387 = vld [vmem:[%s11 + $0x68] sm:$0xff]
    %v7388 = vld [vmem:[%s11 + $0x70] sm:$0xff]
    %v7389 = vld [vmem:[%s11 + $0x78] sm:$0xff]
    %v7390 = vld [vmem:[%s11 + $0x80] sm:$0xff]
    %v7391 = vld [vmem:[%s11 + $0x88] sm:$0xff]
    %v7392 = vld [vmem:[%s11 + $0x90] sm:$0xff]
    %v7393 = vld [vmem:[%s11 + $0x98] sm:$0xff]
    %v7394 = vld [vmem:[%s11 + $0xa0] sm:$0xff]
    %v7395 = vld [vmem:[%s11 + $0xa8] sm:$0xff]
    %v7396 = vld [vmem:[%s11 + $0xb0] sm:$0xff]
    %v7397 = vld [vmem:[%s11 + $0xb8] sm:$0xff]
    %v7398 = vld [vmem:[%s11 + $0xc0] sm:$0xff]
    %v7399 = vld [vmem:[%s11 + $0xc8] sm:$0xff]
    %v7400 = vld [vmem:[%s11 + $0xd0] sm:$0xff]
    %v7401 = vld [vmem:[%s11 + $0xd8] sm:$0xff]
    %v7402 = vld [vmem:[%s11 + $0xe0] sm:$0xff]
    %v7403 = vld [vmem:[%s11 + $0xe8] sm:$0xff]
    %v7404 = vld [vmem:[%s11 + $0xf0] sm:$0xff]
    %v7405 = vld [vmem:[%s11 + $0xf8] sm:$0xff]
    %v7406 = vld [vmem:[%s11 + $0x100] sm:$0xff]
    %v7407 = vld [vmem:[%s11 + $0x108] sm:$0xff]
    %v7408 = vld [vmem:[%s11 + $0x110] sm:$0xff]
    %v7409 = vld [vmem:[%s11 + $0x118] sm:$0xff]
    %v7410 = vld [vmem:[%s11 + $0x120] sm:$0xff]
    %v7411 = vld [vmem:[%s11 + $0x128] sm:$0xff]
    %v7412 = vld [vmem:[%s11 + $0x130] sm:$0xff]
    %v7413 = vld [vmem:[%s11 + $0x138] sm:$0xff]
    %v7414 = vld [vmem:[%s11 + $0x140] sm:$0xff]
    %v7415 = vld [vmem:[%s11 + $0x148] sm:$0xff]
    %v7416 = vld [vmem:[%s11 + $0x150] sm:$0xff]
    %v7417 = vld [vmem:[%s11 + $0x158] sm:$0xff]
    %v7418 = vld [vmem:[%s11 + $0x160] sm:$0xff]
    %v7419 = vld [vmem:[%s11 + $0x168] sm:$0xff]
    %v7420 = vld [vmem:[%s11 + $0x170] sm:$0xff]
    %v7421 = vld [vmem:[%s11 + $0x178] sm:$0xff]
    %v7422 = vld [vmem:[%s11 + $0x180] sm:$0xff]
    %v7423 = vld [vmem:[%s11 + $0x188] sm:$0xff]
    %v7424 = vld [vmem:[%s11 + $0x190] sm:$0xff]
    %v7425 = vld [vmem:[%s11 + $0x198] sm:$0xff]
    %v7426 = vld [vmem:[%s11 + $0x1a0] sm:$0xff]
    %v7427 = vld [vmem:[%s11 + $0x1a8] sm:$0xff]
    %v7428 = vld [vmem:[%s11 + $0x1b0] sm:$0xff]
    %v7429 = vld [vmem:[%s11 + $0x1b8] sm:$0xff]
    %v7430 = vld [vmem:[%s11 + $0x1c0] sm:$0xff]
    %v7431 = vld [vmem:[%s11 + $0x1c8] sm:$0xff]
    %v7432 = vld [vmem:[%s11 + $0x1d0] sm:$0xff]
    %v7433 = vld [vmem:[%s11 + $0x1d8] sm:$0xff]
    %v7434 = vld [vmem:[%s11 + $0x1e0] sm:$0xff]
    %v7435 = vld [vmem:[%s11 + $0x1e8] sm:$0xff]
    %v7436 = vld [vmem:[%s11 + $0x1f0] sm:$0xff]
    %v7437 = vld [vmem:[%s11 + $0x1f8] sm:$0xff]
    %v7438 = vld [vmem:[%s11 + $0x200] sm:$0xff]
    %v7439 = vld [vmem:[%s11 + $0x208] sm:$0xff]
    %v7440 = vld [vmem:[%s11 + $0x210] sm:$0xff]
    %v7441 = vld [vmem:[%s11 + $0x218] sm:$0xff]
    %v7442 = vld [vmem:[%s11 + $0x220] sm:$0xff]
    %v7443 = vld [vmem:[%s11 + $0x228] sm:$0xff]
    %v7444 = vld [vmem:[%s11 + $0x230] sm:$0xff]
    %v7445 = vld [vmem:[%s11 + $0x238] sm:$0xff]
    %v7446 = vld [vmem:[%s11 + $0x240] sm:$0xff]
    %v7447 = vld [vmem:[%s11 + $0x248] sm:$0xff]
    %v7448 = vld [vmem:[%s11 + $0x250] sm:$0xff]
    %v7449 = vld [vmem:[%s11 + $0x258] sm:$0xff]
    %v7450 = vld [vmem:[%s11 + $0x260] sm:$0xff]
    %v7451 = vld [vmem:[%s11 + $0x268] sm:$0xff]
    %v7452 = vld [vmem:[%s11 + $0x270] sm:$0xff]
    %v7453 = vld [vmem:[%s11 + $0x278] sm:$0xff]
    %v7454 = vld [vmem:[%s11 + $0x280] sm:$0xff]
    %v7455 = vld [vmem:[%s11 + $0x288] sm:$0xff]
    %v7456 = vld [vmem:[%s11 + $0x290] sm:$0xff]
    %v7457 = vld [vmem:[%s11 + $0x298] sm:$0xff]
    %v7458 = vld [vmem:[%s11 + $0x2a0] sm:$0xff]
    %v7459 = vld [vmem:[%s11 + $0x2a8] sm:$0xff]
    %v7460 = vld [vmem:[%s11 + $0x2b0] sm:$0xff]
    %v7461 = vld [vmem:[%s11 + $0x2b8] sm:$0xff]
    %v7462 = vld [vmem:[%s11 + $0x2c0] sm:$0xff]
    %v7463 = vld [vmem:[%s11 + $0x2c8] sm:$0xff]
    %v7464 = vld [vmem:[%s11 + $0x2d0] sm:$0xff]
    %v7465 = vld [vmem:[%s11 + $0x2d8] sm:$0xff]
    %v7466 = vld [vmem:[%s11 + $0x2e0] sm:$0xff]
    %v7467 = vld [vmem:[%s11 + $0x2e8] sm:$0xff]
    %v7468 = vld [vmem:[%s11 + $0x2f0] sm:$0xff]
    %v7469 = vld [vmem:[%s11 + $0x2f8] sm:$0xff]
    %v7470 = vld [vmem:[%s11 + $0x300] sm:$0xff]
    %v7471 = vld [vmem:[%s11 + $0x308] sm:$0xff]
    %v7472 = vld [vmem:[%s11 + $0x310] sm:$0xff]
    %v7473 = vld [vmem:[%s11 + $0x318] sm:$0xff]
    %v7474 = vld [vmem:[%s11 + $0x320] sm:$0xff]
    %v7475 = vld [vmem:[%s11 + $0x328] sm:$0xff]
    %v7476 = vld [vmem:[%s11 + $0x330] sm:$0xff]
    %v7477 = vld [vmem:[%s11 + $0x338] sm:$0xff]
    %v7478 = vld [vmem:[%s11 + $0x340] sm:$0xff]
    %v7479 = vld [vmem:[%s11 + $0x348] sm:$0xff]
    %v7480 = vld [vmem:[%s11 + $0x350] sm:$0xff]
    %v7481 = vld [vmem:[%s11 + $0x358] sm:$0xff]
    %v7482 = vld [vmem:[%s11 + $0x360] sm:$0xff]
    %v7483 = vld [vmem:[%s11 + $0x368] sm:$0xff]
    %v7484 = vld [vmem:[%s11 + $0x370] sm:$0xff]
    %v7485 = vld [vmem:[%s11 + $0x378] sm:$0xff]
    %v7486 = vld [vmem:[%s11 + $0x380] sm:$0xff]
    %v7487 = vld [vmem:[%s11 + $0x388] sm:$0xff]
    %v7488 = vld [vmem:[%s11 + $0x390] sm:$0xff]
    %v7489 = vld [vmem:[%s11 + $0x398] sm:$0xff]
    %v7490 = vld [vmem:[%s11 + $0x3a0] sm:$0xff]
    %v7491 = vld [vmem:[%s11 + $0x3a8] sm:$0xff]
    %v7492 = vld [vmem:[%s11 + $0x3b0] sm:$0xff]
    %v7493 = vld [vmem:[%s11 + $0x3b8] sm:$0xff]
    %v7494 = vld [vmem:[%s11 + $0x3c0] sm:$0xff]
    %v7495 = vld [vmem:[%s11 + $0x3c8] sm:$0xff]
    %v7496 = vld [vmem:[%s11 + $0x3d0] sm:$0xff]
    %v7497 = vld [vmem:[%s11 + $0x3d8] sm:$0xff]
    %v7498 = vld [vmem:[%s11 + $0x3e0] sm:$0xff]
    %v7499 = vld [vmem:[%s11 + $0x3e8] sm:$0xff]
    %v7500 = vld [vmem:[%s11 + $0x3f0] sm:$0xff]
    %v7501 = vld [vmem:[%s11 + $0x3f8] sm:$0xff]
    %v7502 = vpack.c.bf16 %v7366, %v7366
    %v7503 = vpack.c.bf16 %v7367, %v7367
    %v7504 = vpack.c.bf16 %v7368, %v7368
    %v7505 = vpack.c.bf16 %v7369, %v7369
    %v7506 = vpack.c.bf16 %v7370, %v7370
    %v7507 = vpack.c.bf16 %v7371, %v7371
    %v7508 = vpack.c.bf16 %v7372, %v7372
    %v7509 = vpack.c.bf16 %v7373, %v7373
    %v7510 = vld [vmem:[%s12] sm:$0x3]
    %v7512 = vlaneseq
    %v7513 = vshrl.u32 %v7512, 7
    %v7514 = vsub.s32 0, %v7513
    %v7515 = vrot.slane %v7510, %v7514
    %v7516 = vlaneseq
    %v7517 = vshrl.u32 %v7516, 7
    %v7518 = vsub.s32 1, %v7517
    %v7519 = vrot.slane %v7510, %v7518
    %v7650 = vunpack.c.l.b16 %v7374
    %v7651 = vunpack.c.h.b16 %v7374
    %v7652 = vunpack.c.l.b16 %v7375
    %v7653 = vunpack.c.h.b16 %v7375
    %v7654 = vunpack.c.l.b16 %v7376
    %v7655 = vunpack.c.h.b16 %v7376
    %v7656 = vunpack.c.l.b16 %v7377
    %v7657 = vunpack.c.h.b16 %v7377
    %v7658 = vunpack.c.l.b16 %v7378
    %v7659 = vunpack.c.h.b16 %v7378
    %v7660 = vunpack.c.l.b16 %v7379
    %v7661 = vunpack.c.h.b16 %v7379
    %v7662 = vunpack.c.l.b16 %v7380
    %v7663 = vunpack.c.h.b16 %v7380
    %v7664 = vunpack.c.l.b16 %v7381
    %v7665 = vunpack.c.h.b16 %v7381
    %v7666 = vunpack.c.l.b16 %v7382
    %v7667 = vunpack.c.h.b16 %v7382
    %v7668 = vunpack.c.l.b16 %v7383
    %v7669 = vunpack.c.h.b16 %v7383
    %v7670 = vunpack.c.l.b16 %v7384
    %v7671 = vunpack.c.h.b16 %v7384
    %v7672 = vunpack.c.l.b16 %v7385
    %v7673 = vunpack.c.h.b16 %v7385
    %v7674 = vunpack.c.l.b16 %v7386
    %v7675 = vunpack.c.h.b16 %v7386
    %v7676 = vunpack.c.l.b16 %v7387
    %v7677 = vunpack.c.h.b16 %v7387
    %v7678 = vunpack.c.l.b16 %v7388
    %v7679 = vunpack.c.h.b16 %v7388
    %v7680 = vunpack.c.l.b16 %v7389
    %v7681 = vunpack.c.h.b16 %v7389
    %v7682 = vunpack.c.l.b16 %v7390
    %v7683 = vunpack.c.h.b16 %v7390
    %v7684 = vunpack.c.l.b16 %v7391
    %v7685 = vunpack.c.h.b16 %v7391
    %v7686 = vunpack.c.l.b16 %v7392
    %v7687 = vunpack.c.h.b16 %v7392
    %v7688 = vunpack.c.l.b16 %v7393
    %v7689 = vunpack.c.h.b16 %v7393
    %v7690 = vunpack.c.l.b16 %v7394
    %v7691 = vunpack.c.h.b16 %v7394
    %v7692 = vunpack.c.l.b16 %v7395
    %v7693 = vunpack.c.h.b16 %v7395
    %v7694 = vunpack.c.l.b16 %v7396
    %v7695 = vunpack.c.h.b16 %v7396
    %v7696 = vunpack.c.l.b16 %v7397
    %v7697 = vunpack.c.h.b16 %v7397
    %v7698 = vunpack.c.l.b16 %v7398
    %v7699 = vunpack.c.h.b16 %v7398
    %v7700 = vunpack.c.l.b16 %v7399
    %v7701 = vunpack.c.h.b16 %v7399
    %v7702 = vunpack.c.l.b16 %v7400
    %v7703 = vunpack.c.h.b16 %v7400
    %v7704 = vunpack.c.l.b16 %v7401
    %v7705 = vunpack.c.h.b16 %v7401
    %v7706 = vunpack.c.l.b16 %v7402
    %v7707 = vunpack.c.h.b16 %v7402
    %v7708 = vunpack.c.l.b16 %v7403
    %v7709 = vunpack.c.h.b16 %v7403
    %v7710 = vunpack.c.l.b16 %v7404
    %v7711 = vunpack.c.h.b16 %v7404
    %v7712 = vunpack.c.l.b16 %v7405
    %v7713 = vunpack.c.h.b16 %v7405
    %v7714 = vunpack.c.l.b16 %v7406
    %v7715 = vunpack.c.h.b16 %v7406
    %v7716 = vunpack.c.l.b16 %v7407
    %v7717 = vunpack.c.h.b16 %v7407
    %v7718 = vunpack.c.l.b16 %v7408
    %v7719 = vunpack.c.h.b16 %v7408
    %v7720 = vunpack.c.l.b16 %v7409
    %v7721 = vunpack.c.h.b16 %v7409
    %v7722 = vunpack.c.l.b16 %v7410
    %v7723 = vunpack.c.h.b16 %v7410
    %v7724 = vunpack.c.l.b16 %v7411
    %v7725 = vunpack.c.h.b16 %v7411
    %v7726 = vunpack.c.l.b16 %v7412
    %v7727 = vunpack.c.h.b16 %v7412
    %v7728 = vunpack.c.l.b16 %v7413
    %v7729 = vunpack.c.h.b16 %v7413
    %v7730 = vunpack.c.l.b16 %v7414
    %v7731 = vunpack.c.h.b16 %v7414
    %v7732 = vunpack.c.l.b16 %v7415
    %v7733 = vunpack.c.h.b16 %v7415
    %v7734 = vunpack.c.l.b16 %v7416
    %v7735 = vunpack.c.h.b16 %v7416
    %v7736 = vunpack.c.l.b16 %v7417
    %v7737 = vunpack.c.h.b16 %v7417
    %v7738 = vunpack.c.l.b16 %v7418
    %v7739 = vunpack.c.h.b16 %v7418
    %v7740 = vunpack.c.l.b16 %v7419
    %v7741 = vunpack.c.h.b16 %v7419
    %v7742 = vunpack.c.l.b16 %v7420
    %v7743 = vunpack.c.h.b16 %v7420
    %v7744 = vunpack.c.l.b16 %v7421
    %v7745 = vunpack.c.h.b16 %v7421
    %v7746 = vunpack.c.l.b16 %v7422
    %v7747 = vunpack.c.h.b16 %v7422
    %v7748 = vunpack.c.l.b16 %v7423
    %v7749 = vunpack.c.h.b16 %v7423
    %v7750 = vunpack.c.l.b16 %v7424
    %v7751 = vunpack.c.h.b16 %v7424
    %v7752 = vunpack.c.l.b16 %v7425
    %v7753 = vunpack.c.h.b16 %v7425
    %v7754 = vunpack.c.l.b16 %v7426
    %v7755 = vunpack.c.h.b16 %v7426
    %v7756 = vunpack.c.l.b16 %v7427
    %v7757 = vunpack.c.h.b16 %v7427
    %v7758 = vunpack.c.l.b16 %v7428
    %v7759 = vunpack.c.h.b16 %v7428
    %v7760 = vunpack.c.l.b16 %v7429
    %v7761 = vunpack.c.h.b16 %v7429
    %v7762 = vunpack.c.l.b16 %v7430
    %v7763 = vunpack.c.h.b16 %v7430
    %v7764 = vunpack.c.l.b16 %v7431
    %v7765 = vunpack.c.h.b16 %v7431
    %v7766 = vunpack.c.l.b16 %v7432
    %v7767 = vunpack.c.h.b16 %v7432
    %v7768 = vunpack.c.l.b16 %v7433
    %v7769 = vunpack.c.h.b16 %v7433
    %v7770 = vunpack.c.l.b16 %v7434
    %v7771 = vunpack.c.h.b16 %v7434
    %v7772 = vunpack.c.l.b16 %v7435
    %v7773 = vunpack.c.h.b16 %v7435
    %v7774 = vunpack.c.l.b16 %v7436
    %v7775 = vunpack.c.h.b16 %v7436
    %v7776 = vunpack.c.l.b16 %v7437
    %v7777 = vunpack.c.h.b16 %v7437
    %v7778 = vunpack.c.l.b16 %v7438
    %v7779 = vunpack.c.h.b16 %v7438
    %v7780 = vunpack.c.l.b16 %v7439
    %v7781 = vunpack.c.h.b16 %v7439
    %v7782 = vunpack.c.l.b16 %v7440
    %v7783 = vunpack.c.h.b16 %v7440
    %v7784 = vunpack.c.l.b16 %v7441
    %v7785 = vunpack.c.h.b16 %v7441
    %v7786 = vunpack.c.l.b16 %v7442
    %v7787 = vunpack.c.h.b16 %v7442
    %v7788 = vunpack.c.l.b16 %v7443
    %v7789 = vunpack.c.h.b16 %v7443
    %v7790 = vunpack.c.l.b16 %v7444
    %v7791 = vunpack.c.h.b16 %v7444
    %v7792 = vunpack.c.l.b16 %v7445
    %v7793 = vunpack.c.h.b16 %v7445
    %v7794 = vunpack.c.l.b16 %v7446
    %v7795 = vunpack.c.h.b16 %v7446
    %v7796 = vunpack.c.l.b16 %v7447
    %v7797 = vunpack.c.h.b16 %v7447
    %v7798 = vunpack.c.l.b16 %v7448
    %v7799 = vunpack.c.h.b16 %v7448
    %v7800 = vunpack.c.l.b16 %v7449
    %v7801 = vunpack.c.h.b16 %v7449
    %v7802 = vunpack.c.l.b16 %v7450
    %v7803 = vunpack.c.h.b16 %v7450
    %v7804 = vunpack.c.l.b16 %v7451
    %v7805 = vunpack.c.h.b16 %v7451
    %v7806 = vunpack.c.l.b16 %v7452
    %v7807 = vunpack.c.h.b16 %v7452
    %v7808 = vunpack.c.l.b16 %v7453
    %v7809 = vunpack.c.h.b16 %v7453
    %v7810 = vunpack.c.l.b16 %v7454
    %v7811 = vunpack.c.h.b16 %v7454
    %v7812 = vunpack.c.l.b16 %v7455
    %v7813 = vunpack.c.h.b16 %v7455
    %v7814 = vunpack.c.l.b16 %v7456
    %v7815 = vunpack.c.h.b16 %v7456
    %v7816 = vunpack.c.l.b16 %v7457
    %v7817 = vunpack.c.h.b16 %v7457
    %v7818 = vunpack.c.l.b16 %v7458
    %v7819 = vunpack.c.h.b16 %v7458
    %v7820 = vunpack.c.l.b16 %v7459
    %v7821 = vunpack.c.h.b16 %v7459
    %v7822 = vunpack.c.l.b16 %v7460
    %v7823 = vunpack.c.h.b16 %v7460
    %v7824 = vunpack.c.l.b16 %v7461
    %v7825 = vunpack.c.h.b16 %v7461
    %v7826 = vunpack.c.l.b16 %v7462
    %v7827 = vunpack.c.h.b16 %v7462
    %v7828 = vunpack.c.l.b16 %v7463
    %v7829 = vunpack.c.h.b16 %v7463
    %v7830 = vunpack.c.l.b16 %v7464
    %v7831 = vunpack.c.h.b16 %v7464
    %v7832 = vunpack.c.l.b16 %v7465
    %v7833 = vunpack.c.h.b16 %v7465
    %v7834 = vunpack.c.l.b16 %v7466
    %v7835 = vunpack.c.h.b16 %v7466
    %v7836 = vunpack.c.l.b16 %v7467
    %v7837 = vunpack.c.h.b16 %v7467
    %v7838 = vunpack.c.l.b16 %v7468
    %v7839 = vunpack.c.h.b16 %v7468
    %v7840 = vunpack.c.l.b16 %v7469
    %v7841 = vunpack.c.h.b16 %v7469
    %v7842 = vunpack.c.l.b16 %v7470
    %v7843 = vunpack.c.h.b16 %v7470
    %v7844 = vunpack.c.l.b16 %v7471
    %v7845 = vunpack.c.h.b16 %v7471
    %v7846 = vunpack.c.l.b16 %v7472
    %v7847 = vunpack.c.h.b16 %v7472
    %v7848 = vunpack.c.l.b16 %v7473
    %v7849 = vunpack.c.h.b16 %v7473
    %v7850 = vunpack.c.l.b16 %v7474
    %v7851 = vunpack.c.h.b16 %v7474
    %v7852 = vunpack.c.l.b16 %v7475
    %v7853 = vunpack.c.h.b16 %v7475
    %v7854 = vunpack.c.l.b16 %v7476
    %v7855 = vunpack.c.h.b16 %v7476
    %v7856 = vunpack.c.l.b16 %v7477
    %v7857 = vunpack.c.h.b16 %v7477
    %v7858 = vunpack.c.l.b16 %v7478
    %v7859 = vunpack.c.h.b16 %v7478
    %v7860 = vunpack.c.l.b16 %v7479
    %v7861 = vunpack.c.h.b16 %v7479
    %v7862 = vunpack.c.l.b16 %v7480
    %v7863 = vunpack.c.h.b16 %v7480
    %v7864 = vunpack.c.l.b16 %v7481
    %v7865 = vunpack.c.h.b16 %v7481
    %v7866 = vunpack.c.l.b16 %v7482
    %v7867 = vunpack.c.h.b16 %v7482
    %v7868 = vunpack.c.l.b16 %v7483
    %v7869 = vunpack.c.h.b16 %v7483
    %v7870 = vunpack.c.l.b16 %v7484
    %v7871 = vunpack.c.h.b16 %v7484
    %v7872 = vunpack.c.l.b16 %v7485
    %v7873 = vunpack.c.h.b16 %v7485
    %v7874 = vunpack.c.l.b16 %v7486
    %v7875 = vunpack.c.h.b16 %v7486
    %v7876 = vunpack.c.l.b16 %v7487
    %v7877 = vunpack.c.h.b16 %v7487
    %v7878 = vunpack.c.l.b16 %v7488
    %v7879 = vunpack.c.h.b16 %v7488
    %v7880 = vunpack.c.l.b16 %v7489
    %v7881 = vunpack.c.h.b16 %v7489
    %v7882 = vunpack.c.l.b16 %v7490
    %v7883 = vunpack.c.h.b16 %v7490
    %v7884 = vunpack.c.l.b16 %v7491
    %v7885 = vunpack.c.h.b16 %v7491
    %v7886 = vunpack.c.l.b16 %v7492
    %v7887 = vunpack.c.h.b16 %v7492
    %v7888 = vunpack.c.l.b16 %v7493
    %v7889 = vunpack.c.h.b16 %v7493
    %v7890 = vunpack.c.l.b16 %v7494
    %v7891 = vunpack.c.h.b16 %v7494
    %v7892 = vunpack.c.l.b16 %v7495
    %v7893 = vunpack.c.h.b16 %v7495
    %v7894 = vunpack.c.l.b16 %v7496
    %v7895 = vunpack.c.h.b16 %v7496
    %v7896 = vunpack.c.l.b16 %v7497
    %v7897 = vunpack.c.h.b16 %v7497
    %v7898 = vunpack.c.l.b16 %v7498
    %v7899 = vunpack.c.h.b16 %v7498
    %v7900 = vunpack.c.l.b16 %v7499
    %v7901 = vunpack.c.h.b16 %v7499
    %v7902 = vunpack.c.l.b16 %v7500
    %v7903 = vunpack.c.h.b16 %v7500
    %v7904 = vunpack.c.l.b16 %v7501
    %v7905 = vunpack.c.h.b16 %v7501
    %v7906 = vpack.c.b16 %v7652, %v7650
    %v7907 = vpack.c.b16 %v7653, %v7651
    %v7908 = vpack.c.b16 %v7656, %v7654
    %v7909 = vpack.c.b16 %v7657, %v7655
    %v7910 = vpack.c.b16 %v7660, %v7658
    %v7911 = vpack.c.b16 %v7661, %v7659
    %v7912 = vpack.c.b16 %v7664, %v7662
    %v7913 = vpack.c.b16 %v7665, %v7663
    %v7914 = vpack.c.b16 %v7668, %v7666
    %v7915 = vpack.c.b16 %v7669, %v7667
    %v7916 = vpack.c.b16 %v7672, %v7670
    %v7917 = vpack.c.b16 %v7673, %v7671
    %v7918 = vpack.c.b16 %v7676, %v7674
    %v7919 = vpack.c.b16 %v7677, %v7675
    %v7920 = vpack.c.b16 %v7680, %v7678
    %v7921 = vpack.c.b16 %v7681, %v7679
    %v7922 = vpack.c.b16 %v7684, %v7682
    %v7923 = vpack.c.b16 %v7685, %v7683
    %v7924 = vpack.c.b16 %v7688, %v7686
    %v7925 = vpack.c.b16 %v7689, %v7687
    %v7926 = vpack.c.b16 %v7692, %v7690
    %v7927 = vpack.c.b16 %v7693, %v7691
    %v7928 = vpack.c.b16 %v7696, %v7694
    %v7929 = vpack.c.b16 %v7697, %v7695
    %v7930 = vpack.c.b16 %v7700, %v7698
    %v7931 = vpack.c.b16 %v7701, %v7699
    %v7932 = vpack.c.b16 %v7704, %v7702
    %v7933 = vpack.c.b16 %v7705, %v7703
    %v7934 = vpack.c.b16 %v7708, %v7706
    %v7935 = vpack.c.b16 %v7709, %v7707
    %v7936 = vpack.c.b16 %v7712, %v7710
    %v7937 = vpack.c.b16 %v7713, %v7711
    %v7938 = vpack.c.b16 %v7716, %v7714
    %v7939 = vpack.c.b16 %v7717, %v7715
    %v7940 = vpack.c.b16 %v7720, %v7718
    %v7941 = vpack.c.b16 %v7721, %v7719
    %v7942 = vpack.c.b16 %v7724, %v7722
    %v7943 = vpack.c.b16 %v7725, %v7723
    %v7944 = vpack.c.b16 %v7728, %v7726
    %v7945 = vpack.c.b16 %v7729, %v7727
    %v7946 = vpack.c.b16 %v7732, %v7730
    %v7947 = vpack.c.b16 %v7733, %v7731
    %v7948 = vpack.c.b16 %v7736, %v7734
    %v7949 = vpack.c.b16 %v7737, %v7735
    %v7950 = vpack.c.b16 %v7740, %v7738
    %v7951 = vpack.c.b16 %v7741, %v7739
    %v7952 = vpack.c.b16 %v7744, %v7742
    %v7953 = vpack.c.b16 %v7745, %v7743
    %v7954 = vpack.c.b16 %v7748, %v7746
    %v7955 = vpack.c.b16 %v7749, %v7747
    %v7956 = vpack.c.b16 %v7752, %v7750
    %v7957 = vpack.c.b16 %v7753, %v7751
    %v7958 = vpack.c.b16 %v7756, %v7754
    %v7959 = vpack.c.b16 %v7757, %v7755
    %v7960 = vpack.c.b16 %v7760, %v7758
    %v7961 = vpack.c.b16 %v7761, %v7759
    %v7962 = vpack.c.b16 %v7764, %v7762
    %v7963 = vpack.c.b16 %v7765, %v7763
    %v7964 = vpack.c.b16 %v7768, %v7766
    %v7965 = vpack.c.b16 %v7769, %v7767
    %v7966 = vpack.c.b16 %v7772, %v7770
    %v7967 = vpack.c.b16 %v7773, %v7771
    %v7968 = vpack.c.b16 %v7776, %v7774
    %v7969 = vpack.c.b16 %v7777, %v7775
    %v7970 = vpack.c.b16 %v7780, %v7778
    %v7971 = vpack.c.b16 %v7781, %v7779
    %v7972 = vpack.c.b16 %v7784, %v7782
    %v7973 = vpack.c.b16 %v7785, %v7783
    %v7974 = vpack.c.b16 %v7788, %v7786
    %v7975 = vpack.c.b16 %v7789, %v7787
    %v7976 = vpack.c.b16 %v7792, %v7790
    %v7977 = vpack.c.b16 %v7793, %v7791
    %v7978 = vpack.c.b16 %v7796, %v7794
    %v7979 = vpack.c.b16 %v7797, %v7795
    %v7980 = vpack.c.b16 %v7800, %v7798
    %v7981 = vpack.c.b16 %v7801, %v7799
    %v7982 = vpack.c.b16 %v7804, %v7802
    %v7983 = vpack.c.b16 %v7805, %v7803
    %v7984 = vpack.c.b16 %v7808, %v7806
    %v7985 = vpack.c.b16 %v7809, %v7807
    %v7986 = vpack.c.b16 %v7812, %v7810
    %v7987 = vpack.c.b16 %v7813, %v7811
    %v7988 = vpack.c.b16 %v7816, %v7814
    %v7989 = vpack.c.b16 %v7817, %v7815
    %v7990 = vpack.c.b16 %v7820, %v7818
    %v7991 = vpack.c.b16 %v7821, %v7819
    %v7992 = vpack.c.b16 %v7824, %v7822
    %v7993 = vpack.c.b16 %v7825, %v7823
    %v7994 = vpack.c.b16 %v7828, %v7826
    %v7995 = vpack.c.b16 %v7829, %v7827
    %v7996 = vpack.c.b16 %v7832, %v7830
    %v7997 = vpack.c.b16 %v7833, %v7831
    %v7998 = vpack.c.b16 %v7836, %v7834
    %v7999 = vpack.c.b16 %v7837, %v7835
    %v8000 = vpack.c.b16 %v7840, %v7838
    %v8001 = vpack.c.b16 %v7841, %v7839
    %v8002 = vpack.c.b16 %v7844, %v7842
    %v8003 = vpack.c.b16 %v7845, %v7843
    %v8004 = vpack.c.b16 %v7848, %v7846
    %v8005 = vpack.c.b16 %v7849, %v7847
    %v8006 = vpack.c.b16 %v7852, %v7850
    %v8007 = vpack.c.b16 %v7853, %v7851
    %v8008 = vpack.c.b16 %v7856, %v7854
    %v8009 = vpack.c.b16 %v7857, %v7855
    %v8010 = vpack.c.b16 %v7860, %v7858
    %v8011 = vpack.c.b16 %v7861, %v7859
    %v8012 = vpack.c.b16 %v7864, %v7862
    %v8013 = vpack.c.b16 %v7865, %v7863
    %v8014 = vpack.c.b16 %v7868, %v7866
    %v8015 = vpack.c.b16 %v7869, %v7867
    %v8016 = vpack.c.b16 %v7872, %v7870
    %v8017 = vpack.c.b16 %v7873, %v7871
    %v8018 = vpack.c.b16 %v7876, %v7874
    %v8019 = vpack.c.b16 %v7877, %v7875
    %v8020 = vpack.c.b16 %v7880, %v7878
    %v8021 = vpack.c.b16 %v7881, %v7879
    %v8022 = vpack.c.b16 %v7884, %v7882
    %v8023 = vpack.c.b16 %v7885, %v7883
    %v8024 = vpack.c.b16 %v7888, %v7886
    %v8025 = vpack.c.b16 %v7889, %v7887
    %v8026 = vpack.c.b16 %v7892, %v7890
    %v8027 = vpack.c.b16 %v7893, %v7891
    %v8028 = vpack.c.b16 %v7896, %v7894
    %v8029 = vpack.c.b16 %v7897, %v7895
    %v8030 = vpack.c.b16 %v7900, %v7898
    %v8031 = vpack.c.b16 %v7901, %v7899
    %v8032 = vpack.c.b16 %v7904, %v7902
    %v8033 = vpack.c.b16 %v7905, %v7903
    %8162 = vmatprep.subr.bf16.mxu0 %v7921
    %8163 = vmatpush1.bf16.msra.mxu0 %v7920
    %8164 = vmatprep.subr.bf16.mxu0 %v7919
    %8165 = vmatpush1.bf16.msra.mxu0 %v7918
    %8166 = vmatprep.subr.bf16.mxu0 %v7917
    %8167 = vmatpush1.bf16.msra.mxu0 %v7916
    %8168 = vmatprep.subr.bf16.mxu0 %v7915
    %8169 = vmatpush1.bf16.msra.mxu0 %v7914
    %8170 = vmatprep.subr.bf16.mxu0 %v7913
    %8171 = vmatpush1.bf16.msra.mxu0 %v7912
    %8172 = vmatprep.subr.bf16.mxu0 %v7911
    %8173 = vmatpush1.bf16.msra.mxu0 %v7910
    %8174 = vmatprep.subr.bf16.mxu0 %v7909
    %8175 = vmatpush1.bf16.msra.mxu0 %v7908
    %8176 = vmatprep.subr.bf16.mxu0 %v7907
    %8177 = vmatpush1.bf16.msra.mxu0 %v7906
    %8178 = vmatprep.subr.bf16.mxu0 %v7937
    %8179 = vmatpush2.bf16.msra.mxu0 %v7936
    %8180 = vmatprep.subr.bf16.mxu0 %v7935
    %8181 = vmatpush2.bf16.msra.mxu0 %v7934
    %8182 = vmatprep.subr.bf16.mxu0 %v7933
    %8183 = vmatpush2.bf16.msra.mxu0 %v7932
    %8184 = vmatprep.subr.bf16.mxu0 %v7931
    %8185 = vmatpush2.bf16.msra.mxu0 %v7930
    %8186 = vmatprep.subr.bf16.mxu0 %v7929
    %8187 = vmatpush2.bf16.msra.mxu0 %v7928
    %8188 = vmatprep.subr.bf16.mxu0 %v7927
    %8189 = vmatpush2.bf16.msra.mxu0 %v7926
    %8190 = vmatprep.subr.bf16.mxu0 %v7925
    %8191 = vmatpush2.bf16.msra.mxu0 %v7924
    %8192 = vmatprep.subr.bf16.mxu0 %v7923
    %8193 = vmatpush2.bf16.msra.mxu0 %v7922
    %8194 = vmatprep.mubr.bf16.mxu0 %v7503
    %8195 = vmatmul.mubr.bf16.gmra.mxu0 %v7502
    %v8196 = vpop.f32.mrf.mxu0
    %v8197 = vadd.f32 %v7515, %v8196
    %v8198 = vpop.f32.mrf.mxu0
    %v8199 = vadd.f32 %v7519, %v8198
    %v8200 = vpop.f32.mrf.mxu0
    %v8201 = vpop.f32.mrf.mxu0
    %8202 = vdwg.mxu0
    %8203 = vmatprep.subr.bf16.mxu0 %v7953
    %8204 = vmatpush1.bf16.msra.mxu0 %v7952
    %8205 = vmatprep.subr.bf16.mxu0 %v7951
    %8206 = vmatpush1.bf16.msra.mxu0 %v7950
    %8207 = vmatprep.subr.bf16.mxu0 %v7949
    %8208 = vmatpush1.bf16.msra.mxu0 %v7948
    %8209 = vmatprep.subr.bf16.mxu0 %v7947
    %8210 = vmatpush1.bf16.msra.mxu0 %v7946
    %8211 = vmatprep.subr.bf16.mxu0 %v7945
    %8212 = vmatpush1.bf16.msra.mxu0 %v7944
    %8213 = vmatprep.subr.bf16.mxu0 %v7943
    %8214 = vmatpush1.bf16.msra.mxu0 %v7942
    %8215 = vmatprep.subr.bf16.mxu0 %v7941
    %8216 = vmatpush1.bf16.msra.mxu0 %v7940
    %8217 = vmatprep.subr.bf16.mxu0 %v7939
    %8218 = vmatpush1.bf16.msra.mxu0 %v7938
    %8219 = vmatprep.subr.bf16.mxu0 %v7969
    %8220 = vmatpush2.bf16.msra.mxu0 %v7968
    %8221 = vmatprep.subr.bf16.mxu0 %v7967
    %8222 = vmatpush2.bf16.msra.mxu0 %v7966
    %8223 = vmatprep.subr.bf16.mxu0 %v7965
    %8224 = vmatpush2.bf16.msra.mxu0 %v7964
    %8225 = vmatprep.subr.bf16.mxu0 %v7963
    %8226 = vmatpush2.bf16.msra.mxu0 %v7962
    %8227 = vmatprep.subr.bf16.mxu0 %v7961
    %8228 = vmatpush2.bf16.msra.mxu0 %v7960
    %8229 = vmatprep.subr.bf16.mxu0 %v7959
    %8230 = vmatpush2.bf16.msra.mxu0 %v7958
    %8231 = vmatprep.subr.bf16.mxu0 %v7957
    %8232 = vmatpush2.bf16.msra.mxu0 %v7956
    %8233 = vmatprep.subr.bf16.mxu0 %v7955
    %8234 = vmatpush2.bf16.msra.mxu0 %v7954
    %8235 = vmatprep.mubr.bf16.mxu0 %v7505
    %8236 = vmatmul.mubr.bf16.gmra.mxu0 %v7504
    %v8237 = vpop.f32.mrf.mxu0
    %v8238 = vadd.f32 %v8197, %v8237
    %v8239 = vpop.f32.mrf.mxu0
    %v8240 = vadd.f32 %v8199, %v8239
    %v8241 = vpop.f32.mrf.mxu0
    %v8242 = vpop.f32.mrf.mxu0
    %8243 = vdwg.mxu0
    %8244 = vmatprep.subr.bf16.mxu0 %v7985
    %8245 = vmatpush1.bf16.msra.mxu0 %v7984
    %8246 = vmatprep.subr.bf16.mxu0 %v7983
    %8247 = vmatpush1.bf16.msra.mxu0 %v7982
    %8248 = vmatprep.subr.bf16.mxu0 %v7981
    %8249 = vmatpush1.bf16.msra.mxu0 %v7980
    %8250 = vmatprep.subr.bf16.mxu0 %v7979
    %8251 = vmatpush1.bf16.msra.mxu0 %v7978
    %8252 = vmatprep.subr.bf16.mxu0 %v7977
    %8253 = vmatpush1.bf16.msra.mxu0 %v7976
    %8254 = vmatprep.subr.bf16.mxu0 %v7975
    %8255 = vmatpush1.bf16.msra.mxu0 %v7974
    %8256 = vmatprep.subr.bf16.mxu0 %v7973
    %8257 = vmatpush1.bf16.msra.mxu0 %v7972
    %8258 = vmatprep.subr.bf16.mxu0 %v7971
    %8259 = vmatpush1.bf16.msra.mxu0 %v7970
    %8260 = vmatprep.subr.bf16.mxu0 %v8001
    %8261 = vmatpush2.bf16.msra.mxu0 %v8000
    %8262 = vmatprep.subr.bf16.mxu0 %v7999
    %8263 = vmatpush2.bf16.msra.mxu0 %v7998
    %8264 = vmatprep.subr.bf16.mxu0 %v7997
    %8265 = vmatpush2.bf16.msra.mxu0 %v7996
    %8266 = vmatprep.subr.bf16.mxu0 %v7995
    %8267 = vmatpush2.bf16.msra.mxu0 %v7994
    %8268 = vmatprep.subr.bf16.mxu0 %v7993
    %8269 = vmatpush2.bf16.msra.mxu0 %v7992
    %8270 = vmatprep.subr.bf16.mxu0 %v7991
    %8271 = vmatpush2.bf16.msra.mxu0 %v7990
    %8272 = vmatprep.subr.bf16.mxu0 %v7989
    %8273 = vmatpush2.bf16.msra.mxu0 %v7988
    %8274 = vmatprep.subr.bf16.mxu0 %v7987
    %8275 = vmatpush2.bf16.msra.mxu0 %v7986
    %8276 = vmatprep.mubr.bf16.mxu0 %v7507
    %8277 = vmatmul.mubr.bf16.gmra.mxu0 %v7506
    %v8278 = vpop.f32.mrf.mxu0
    %v8279 = vadd.f32 %v8238, %v8278
    %v8280 = vpop.f32.mrf.mxu0
    %v8281 = vadd.f32 %v8240, %v8280
    %v8282 = vpop.f32.mrf.mxu0
    %v8283 = vpop.f32.mrf.mxu0
    %8284 = vdwg.mxu0
    %8285 = vmatprep.subr.bf16.mxu0 %v8017
    %8286 = vmatpush1.bf16.msra.mxu0 %v8016
    %8287 = vmatprep.subr.bf16.mxu0 %v8015
    %8288 = vmatpush1.bf16.msra.mxu0 %v8014
    %8289 = vmatprep.subr.bf16.mxu0 %v8013
    %8290 = vmatpush1.bf16.msra.mxu0 %v8012
    %8291 = vmatprep.subr.bf16.mxu0 %v8011
    %8292 = vmatpush1.bf16.msra.mxu0 %v8010
    %8293 = vmatprep.subr.bf16.mxu0 %v8009
    %8294 = vmatpush1.bf16.msra.mxu0 %v8008
    %8295 = vmatprep.subr.bf16.mxu0 %v8007
    %8296 = vmatpush1.bf16.msra.mxu0 %v8006
    %8297 = vmatprep.subr.bf16.mxu0 %v8005
    %8298 = vmatpush1.bf16.msra.mxu0 %v8004
    %8299 = vmatprep.subr.bf16.mxu0 %v8003
    %8300 = vmatpush1.bf16.msra.mxu0 %v8002
    %8301 = vmatprep.subr.bf16.mxu0 %v8033
    %8302 = vmatpush2.bf16.msra.mxu0 %v8032
    %8303 = vmatprep.subr.bf16.mxu0 %v8031
    %8304 = vmatpush2.bf16.msra.mxu0 %v8030
    %8305 = vmatprep.subr.bf16.mxu0 %v8029
    %8306 = vmatpush2.bf16.msra.mxu0 %v8028
    %8307 = vmatprep.subr.bf16.mxu0 %v8027
    %8308 = vmatpush2.bf16.msra.mxu0 %v8026
    %8309 = vmatprep.subr.bf16.mxu0 %v8025
    %8310 = vmatpush2.bf16.msra.mxu0 %v8024
    %8311 = vmatprep.subr.bf16.mxu0 %v8023
    %8312 = vmatpush2.bf16.msra.mxu0 %v8022
    %8313 = vmatprep.subr.bf16.mxu0 %v8021
    %8314 = vmatpush2.bf16.msra.mxu0 %v8020
    %8315 = vmatprep.subr.bf16.mxu0 %v8019
    %8316 = vmatpush2.bf16.msra.mxu0 %v8018
    %8317 = vmatprep.mubr.bf16.mxu0 %v7509
    %8318 = vmatmul.mubr.bf16.gmra.mxu0 %v7508
    %v8319 = vpop.f32.mrf.mxu0
    %v8320 = vadd.f32 %v8279, %v8319
    %v8321 = vpop.f32.mrf.mxu0
    %v8322 = vadd.f32 %v8281, %v8321
    %v8323 = vpop.f32.mrf.mxu0
    %v8324 = vpop.f32.mrf.mxu0
    %8325 = vdwg.mxu0
    %v8326 = vsub.f32 0.0, %v8320
    %v8327 = vsub.f32 0.0, %v8322
    %v8328 = vmul.f32 %v8326, 1.442695
    %v8329 = vpow.pop %v8328
    %v8330 = vmul.f32 %v8327, 1.442695
    %v8331 = vpow.pop %v8330
    %v8332 = vadd.f32 %v8329, 1.0
    %v8333 = vadd.f32 %v8331, 1.0
    %v8334 = vrcp.pop %v8332
    %v8335 = vmul.f32 1.0, %v8334
    %v8336 = vrcp.pop %v8333
    %v8337 = vmul.f32 1.0, %v8336
    %v8340 = vcombine.low %v8335, %v8337
    %v8342 = vunpack.c.l.s4 1983009808
    %v8343 = vunpack.c.0.s8 %v8342
    %v8344 = vlaneseq
    %v8345 = vshrl.u32 %v8344, 7
    %v8346 = vsub.s32 %v8343, %v8345
    %v8347 = vrot.slane %v8340, %v8346
    %8349 = vst [vmem:[%s14] sm:$0xf] %v8347
    // Predicated region
    $region54: #{autoencoder_forward.1} parent=1 // pred_check
      _
    $region55: #{autoencoder_forward.1} parent=1 // pred_check_branch
      %8351 = sbr.rel (0) target = $region57
    $region56: #{autoencoder_forward.1} parent=1 // pred_region
      %s8353 = ssub.s32 32, 32
      %8354 = vsyncadd [#allocation3], %s8353
      %s8356 = sshll.u32 [#allocation2], 4
      %s8357 = int_to_ptr.vmem [resolvable:$true] %s8356
      %8359 = dma.vmem_to_hbm [thread:$0]  %s8357, 32, %s13, [#allocation3]
    $region57: #{autoencoder_forward.1} parent=1 // pred_fallthru
      _
    // Predicated region
    $region58: #{autoencoder_forward.1} parent=1 // pred_check
      _
    $region59: #{autoencoder_forward.1} parent=1 // pred_check_branch
      %8361 = sbr.rel (0) target = $region61
    $region60: #{autoencoder_forward.1} parent=1 // pred_region
      _
    $region61: #{autoencoder_forward.1} parent=1 // pred_fallthru
      _
    // Predicated region
    $region62: #{autoencoder_forward.1} parent=1 // pred_check
      _
    $region63: #{autoencoder_forward.1} parent=1 // pred_check_branch
      %8363 = sbr.rel (0) target = $region65
    $region64: #{autoencoder_forward.1} parent=1 // pred_region
      %8364 = dma.done [#allocation3], 32
    $region65: #{autoencoder_forward.1} parent=1 // pred_fallthru
      _
    // Predicated region
    $region66: #{autoencoder_forward.1} parent=1 // pred_check
      _
    $region67: #{autoencoder_forward.1} parent=1 // pred_check_branch
      %8366 = sbr.rel (0) target = $region69
    $region68: #{autoencoder_forward.1} parent=1 // pred_region
      _
    $region69: #{autoencoder_forward.1} parent=1 // pred_fallthru
      _
    %8367 = vsyncpa [#allocation3], 1

</llo_original>
